<compile_context>
chip_gen: v7x
topology: tpu7x:2x2x1
jax: 0.10.0
libtpu: 0.0.40
codegen_flags: <defaults>
</compile_context>

<pallas_src>
import functools
import math

import jax
import jax.numpy as jnp
from jax.experimental import pallas as pl
from jax.experimental.pallas import tpu as pltpu

NUM_UNITS = 8
IN_FEATURES = 256
HIDDEN = 512
OUT_FEATURES = 128   # lane-aligned choice for the synthetic module


def _round_up(x, m):
    return ((x + m - 1) // m) * m


# --------------------------------------------------------------------------
# Kernel
# --------------------------------------------------------------------------
def _maxout_mlp_kernel(x_ref, w1_ref, b1_ref, w2_ref, b2_ref, o_ref, *,
                       num_units, hidden, out_features):
    """One batch tile of the full forward pass.

    x_ref : (tm, 256)        bf16 VMEM
    w1_ref: (256, U*512)     bf16 VMEM  (unit dim fused into lanes)
    b1_ref: (1, U*512)       f32
    w2_ref: (512, U*F)       bf16
    b2_ref: (1, U*F)         f32
    o_ref : (tm, F)          f32
    """
    x = x_ref[...]                                     # already bf16

    # ---- maxout layer 1: per-unit MXU dot + running max (small VMEM peak) ---
    h = (jnp.dot(x, w1_ref[:, :hidden], preferred_element_type=jnp.float32)
         + b1_ref[:, :hidden])
    for u in range(1, num_units):                      # lane-aligned static slices
        hu = (jnp.dot(x, w1_ref[:, u * hidden:(u + 1) * hidden],
                      preferred_element_type=jnp.float32)
              + b1_ref[:, u * hidden:(u + 1) * hidden])
        h = jnp.maximum(h, hu)

    # ---- dropout: identity (inference semantics) ----

    # ---- maxout layer 2: one fused MXU matmul + single bias add ----
    y_all = jnp.dot(h.astype(w2_ref.dtype), w2_ref[...],
                    preferred_element_type=jnp.float32)
    y_all = y_all + b2_ref[...]
    y = y_all[:, :out_features]
    for u in range(1, num_units):
        y = jnp.maximum(y, y_all[:, u * out_features:(u + 1) * out_features])

    # ---- log_softmax over the feature (last) axis ----
    m = jnp.max(y, axis=-1, keepdims=True)
    lse = m + jnp.log(jnp.sum(jnp.exp(y - m), axis=-1, keepdims=True))
    o_ref[...] = (y - lse).astype(o_ref.dtype)


# --------------------------------------------------------------------------
# One-time parameter fusion (hoisted out of the forward path)
# --------------------------------------------------------------------------
def prepare_maxout_params(w1, b1, w2, b2):
    """Fuse the unit dim into lanes and cast weights to bf16, ONCE.

    w1: (U, 256, 512), b1: (U, 512), w2: (U, 512, F), b2: (U, F)
    Column layout is u*hidden + h (matches the kernel's maxout slices).
    """
    u, in_features, hidden = w1.shape
    f = w2.shape[-1]
    w1f = jnp.transpose(w1, (1, 0, 2)).reshape(in_features, u * hidden)
    w2f = jnp.transpose(w2, (1, 0, 2)).reshape(hidden, u * f)
    return {
        "w1f": w1f.astype(jnp.bfloat16),
        "w2f": w2f.astype(jnp.bfloat16),
        "b1f": b1.reshape(1, u * hidden).astype(jnp.float32),
        "b2f": b2.reshape(1, u * f).astype(jnp.float32),
        "num_units": u,
        "in_features": in_features,
        "hidden": hidden,
        "out_features": f,
    }


# --------------------------------------------------------------------------
# pallas_call builder + forward wrapper
# --------------------------------------------------------------------------
def _build_call(*, tm_eff, n_pad, num_units, in_features, hidden, out_features,
                single_buffer_weights):
    kernel = functools.partial(_maxout_mlp_kernel, num_units=num_units,
                               hidden=hidden, out_features=out_features)
    # Grid-invariant weights/biases: a second pipeline buffer is never used.
    wkw = {"pipeline_mode": pl.Buffered(1)} if single_buffer_weights else {}
    return pl.pallas_call(
        kernel,
        out_shape=jax.ShapeDtypeStruct((n_pad, out_features), jnp.float32),
        grid_spec=pl.GridSpec(
            grid=(n_pad // tm_eff,),
            in_specs=[
                pl.BlockSpec((tm_eff, in_features), lambda i: (i, 0)),
                pl.BlockSpec((in_features, num_units * hidden),
                             lambda i: (0, 0), **wkw),
                pl.BlockSpec((1, num_units * hidden), lambda i: (0, 0), **wkw),
                pl.BlockSpec((hidden, num_units * out_features),
                             lambda i: (0, 0), **wkw),
                pl.BlockSpec((1, num_units * out_features),
                             lambda i: (0, 0), **wkw),
            ],
            out_specs=pl.BlockSpec((tm_eff, out_features), lambda i: (i, 0)),
        ),
        compiler_params=pltpu.CompilerParams(
            dimension_semantics=("parallel",),
            # ~10-12 MiB actual footprint at tm=512; 32 MiB is safely below
            # v7x's 64 MiB physical VMEM and equals v6e's default scoped limit.
            vmem_limit_bytes=32 * 1024 * 1024,
        ),
    )


def maxout_mlp_forward(x, params, *, tm=512):
    """x: any shape whose elements flatten to (N, in_features); returns (N, F).

    params: output of prepare_maxout_params (pre-fused, bf16 weights).
    """
    in_features = params["in_features"]
    x2 = x.reshape(-1, in_features).astype(jnp.bfloat16)
    n = x2.shape[0]

    # Batch tile: multiple of 8 (sublane); shrink for tiny batches.  If the
    # resulting grid would have an odd number (>1) of steps, halve the tile
    # once so v7x's two TensorCores get a more even split.
    n8 = _round_up(n, 8)
    tm_eff = max(8, min(tm, n8))
    steps = pl.cdiv(n8, tm_eff)
    if steps > 1 and steps % 2 == 1 and tm_eff >= 16:
        tm_eff = max(8, _round_up(tm_eff // 2, 8))
    n_pad = _round_up(n, tm_eff)
    if n_pad != n:
        x2 = jnp.pad(x2, ((0, n_pad - n), (0, 0)))

    args = (x2, params["w1f"], params["b1f"], params["w2f"], params["b2f"])
    build = functools.partial(
        _build_call, tm_eff=tm_eff, n_pad=n_pad,
        num_units=params["num_units"], in_features=in_features,
        hidden=params["hidden"], out_features=params["out_features"])
    try:
        out = build(single_buffer_weights=True)(*args)
    except Exception:
        # Fallback: default double-buffered weight blocks, for jax versions
        # that reject pipeline_mode=pl.Buffered(1) on pallas_call BlockSpecs.
        out = build(single_buffer_weights=False)(*args)
    return out[:n]


# --------------------------------------------------------------------------
# References & demo
# --------------------------------------------------------------------------
def _init_linear(key, fan_in, fan_out):
    """Deterministic PyTorch-style uniform init; weight stored as (in, out)."""
    kw, kb = jax.random.split(key)
    bound = 1.0 / math.sqrt(fan_in)
    w = jax.random.uniform(kw, (fan_in, fan_out), jnp.float32, -bound, bound)
    b = jax.random.uniform(kb, (fan_out,), jnp.float32, -bound, bound)
    return w, b


def _reference_f32(x, w1, b1, w2, b2):
    x2 = x.reshape(-1, IN_FEATURES)
    h = jnp.max(jnp.einsum("nd,udh->unh", x2, w1) + b1[:, None, :], axis=0)
    y = jnp.max(jnp.einsum("nh,uhf->unf", h, w2) + b2[:, None, :], axis=0)
    return jax.nn.log_softmax(y, axis=-1)


def _reference_bf16(x, w1, b1, w2, b2):
    """Reference with the same bf16-weight / f32-accumulate dtype policy."""
    x2 = x.reshape(-1, IN_FEATURES).astype(jnp.bfloat16)
    w1b = w1.astype(jnp.bfloat16)
    w2b = w2.astype(jnp.bfloat16)
    h = jnp.max(jnp.einsum("nd,udh->unh", x2, w1b,
                           preferred_element_type=jnp.float32)
                + b1[:, None, :], axis=0)
    h = h.astype(jnp.bfloat16)
    y = jnp.max(jnp.einsum("nh,uhf->unf", h, w2b,
                           preferred_element_type=jnp.float32)
                + b2[:, None, :], axis=0)
    return jax.nn.log_softmax(y, axis=-1)


if __name__ == "__main__":
    key = jax.random.PRNGKey(0)
    kx, k1, k2 = jax.random.split(key, 3)

    # Input: NCHW, (2, 4, 16, 16) -> flattens to (8, 256)
    x = jax.random.normal(kx, (2, 4, 16, 16), jnp.float32)

    # Stacked maxout-unit parameters
    w1_list, b1_list, w2_list, b2_list = [], [], [], []
    for i in range(NUM_UNITS):
        wa, ba = _init_linear(jax.random.fold_in(k1, i), IN_FEATURES, HIDDEN)
        wb, bb = _init_linear(jax.random.fold_in(k2, i), HIDDEN, OUT_FEATURES)
        w1_list.append(wa); b1_list.append(ba)
        w2_list.append(wb); b2_list.append(bb)
    w1 = jnp.stack(w1_list)   # (8, 256, 512)
    b1 = jnp.stack(b1_list)   # (8, 512)
    w2 = jnp.stack(w2_list)   # (8, 512, 128)
    b2 = jnp.stack(b2_list)   # (8, 128)

    # One-time weight fusion (hoisted out of the forward path).
    params = prepare_maxout_params(w1, b1, w2, b2)
    params = jax.block_until_ready(params)

    out = maxout_mlp_forward(x, params)
    out = jax.block_until_ready(out)
    assert out.shape == (8, OUT_FEATURES)

    # Exact-policy reference (bf16 weights, f32 accumulation): tight tolerance.
    ref_bf16 = _reference_bf16(x, w1, b1, w2, b2)
    assert jnp.allclose(out, ref_bf16, atol=5e-3, rtol=5e-3), \
        "mismatch vs bf16-matched JAX reference"

    # Full-f32 reference: loose tolerance accounting for bf16 weight cast.
    ref_f32 = _reference_f32(x, w1, b1, w2, b2)
    assert jnp.allclose(out, ref_f32, atol=1e-1, rtol=1e-1), \
        "mismatch vs f32 JAX reference"

    print("KERNEL_OK")
</pallas_src>

<mosaic_0001>
module attributes {stable_mosaic.version = 11 : i64} {
  func.func @_maxout_mlp_kernel(%arg0: i32, %arg1: memref<8x256xbf16, #tpu.memory_space<vmem>>, %arg2: memref<256x4096xbf16, #tpu.memory_space<vmem>>, %arg3: memref<1x4096xf32, #tpu.memory_space<vmem>>, %arg4: memref<512x1024xbf16, #tpu.memory_space<vmem>>, %arg5: memref<1x1024xf32, #tpu.memory_space<vmem>>, %arg6: memref<8x128xf32, #tpu.memory_space<vmem>>) attributes {dimension_semantics = [#tpu.dimension_semantics<parallel>], iteration_bounds = array<i64: 1>, scalar_prefetch = 0 : i64, scratch_operands = 0 : i64, tpu.core_type = #tpu.core_type<tc>, window_params = [{transform_indices = @transform_0, window_bounds = array<i64: 8, 256>}, {pipeline_mode = #tpu.pipeline_mode<synchronous>, transform_indices = @transform_1, window_bounds = array<i64: 256, 4096>}, {pipeline_mode = #tpu.pipeline_mode<synchronous>, transform_indices = @transform_2, window_bounds = array<i64: 1, 4096>}, {pipeline_mode = #tpu.pipeline_mode<synchronous>, transform_indices = @transform_3, window_bounds = array<i64: 512, 1024>}, {pipeline_mode = #tpu.pipeline_mode<synchronous>, transform_indices = @transform_4, window_bounds = array<i64: 1, 1024>}, {transform_indices = @transform_5, window_bounds = array<i64: 8, 128>}]} {
    %c0 = arith.constant 0 : index
    %c0_0 = arith.constant 0 : index
    %0 = vector.load %arg1[%c0, %c0_0] : memref<8x256xbf16, #tpu.memory_space<vmem>>, vector<8x256xbf16>
    %c0_1 = arith.constant 0 : index
    %c0_2 = arith.constant 0 : index
    %1 = vector.load %arg2[%c0_1, %c0_2] : memref<256x4096xbf16, #tpu.memory_space<vmem>>, vector<256x512xbf16>
    %cst = arith.constant dense<0.000000e+00> : vector<8x512xf32>
    %2 = tpu.matmul %0, %1, %cst {dimension_numbers = #tpu.dot_dimension_numbers<[1], [0], [0], [1], [0, 0, 1, 1], [], []>} : vector<8x256xbf16>, vector<256x512xbf16>, vector<8x512xf32> -> vector<8x512xf32>
    %c0_3 = arith.constant 0 : index
    %c0_4 = arith.constant 0 : index
    %3 = vector.load %arg3[%c0_3, %c0_4] : memref<1x4096xf32, #tpu.memory_space<vmem>>, vector<1x512xf32>
    %4 = vector.broadcast %3 : vector<1x512xf32> to vector<8x512xf32>
    %5 = arith.addf %2, %4 : vector<8x512xf32>
    %c0_5 = arith.constant 0 : index
    %c512 = arith.constant 512 : index
    %6 = vector.load %arg2[%c0_5, %c512] : memref<256x4096xbf16, #tpu.memory_space<vmem>>, vector<256x512xbf16>
    %cst_6 = arith.constant dense<0.000000e+00> : vector<8x512xf32>
    %7 = tpu.matmul %0, %6, %cst_6 {dimension_numbers = #tpu.dot_dimension_numbers<[1], [0], [0], [1], [0, 0, 1, 1], [], []>} : vector<8x256xbf16>, vector<256x512xbf16>, vector<8x512xf32> -> vector<8x512xf32>
    %c0_7 = arith.constant 0 : index
    %c512_8 = arith.constant 512 : index
    %8 = vector.load %arg3[%c0_7, %c512_8] : memref<1x4096xf32, #tpu.memory_space<vmem>>, vector<1x512xf32>
    %9 = vector.broadcast %8 : vector<1x512xf32> to vector<8x512xf32>
    %10 = arith.addf %7, %9 : vector<8x512xf32>
    %11 = arith.maximumf %5, %10 : vector<8x512xf32>
    %c0_9 = arith.constant 0 : index
    %c1024 = arith.constant 1024 : index
    %12 = vector.load %arg2[%c0_9, %c1024] : memref<256x4096xbf16, #tpu.memory_space<vmem>>, vector<256x512xbf16>
    %cst_10 = arith.constant dense<0.000000e+00> : vector<8x512xf32>
    %13 = tpu.matmul %0, %12, %cst_10 {dimension_numbers = #tpu.dot_dimension_numbers<[1], [0], [0], [1], [0, 0, 1, 1], [], []>} : vector<8x256xbf16>, vector<256x512xbf16>, vector<8x512xf32> -> vector<8x512xf32>
    %c0_11 = arith.constant 0 : index
    %c1024_12 = arith.constant 1024 : index
    %14 = vector.load %arg3[%c0_11, %c1024_12] : memref<1x4096xf32, #tpu.memory_space<vmem>>, vector<1x512xf32>
    %15 = vector.broadcast %14 : vector<1x512xf32> to vector<8x512xf32>
    %16 = arith.addf %13, %15 : vector<8x512xf32>
    %17 = arith.maximumf %11, %16 : vector<8x512xf32>
    %c0_13 = arith.constant 0 : index
    %c1536 = arith.constant 1536 : index
    %18 = vector.load %arg2[%c0_13, %c1536] : memref<256x4096xbf16, #tpu.memory_space<vmem>>, vector<256x512xbf16>
    %cst_14 = arith.constant dense<0.000000e+00> : vector<8x512xf32>
    %19 = tpu.matmul %0, %18, %cst_14 {dimension_numbers = #tpu.dot_dimension_numbers<[1], [0], [0], [1], [0, 0, 1, 1], [], []>} : vector<8x256xbf16>, vector<256x512xbf16>, vector<8x512xf32> -> vector<8x512xf32>
    %c0_15 = arith.constant 0 : index
    %c1536_16 = arith.constant 1536 : index
    %20 = vector.load %arg3[%c0_15, %c1536_16] : memref<1x4096xf32, #tpu.memory_space<vmem>>, vector<1x512xf32>
    %21 = vector.broadcast %20 : vector<1x512xf32> to vector<8x512xf32>
    %22 = arith.addf %19, %21 : vector<8x512xf32>
    %23 = arith.maximumf %17, %22 : vector<8x512xf32>
    %c0_17 = arith.constant 0 : index
    %c2048 = arith.constant 2048 : index
    %24 = vector.load %arg2[%c0_17, %c2048] : memref<256x4096xbf16, #tpu.memory_space<vmem>>, vector<256x512xbf16>
    %cst_18 = arith.constant dense<0.000000e+00> : vector<8x512xf32>
    %25 = tpu.matmul %0, %24, %cst_18 {dimension_numbers = #tpu.dot_dimension_numbers<[1], [0], [0], [1], [0, 0, 1, 1], [], []>} : vector<8x256xbf16>, vector<256x512xbf16>, vector<8x512xf32> -> vector<8x512xf32>
    %c0_19 = arith.constant 0 : index
    %c2048_20 = arith.constant 2048 : index
    %26 = vector.load %arg3[%c0_19, %c2048_20] : memref<1x4096xf32, #tpu.memory_space<vmem>>, vector<1x512xf32>
    %27 = vector.broadcast %26 : vector<1x512xf32> to vector<8x512xf32>
    %28 = arith.addf %25, %27 : vector<8x512xf32>
    %29 = arith.maximumf %23, %28 : vector<8x512xf32>
    %c0_21 = arith.constant 0 : index
    %c2560 = arith.constant 2560 : index
    %30 = vector.load %arg2[%c0_21, %c2560] : memref<256x4096xbf16, #tpu.memory_space<vmem>>, vector<256x512xbf16>
    %cst_22 = arith.constant dense<0.000000e+00> : vector<8x512xf32>
    %31 = tpu.matmul %0, %30, %cst_22 {dimension_numbers = #tpu.dot_dimension_numbers<[1], [0], [0], [1], [0, 0, 1, 1], [], []>} : vector<8x256xbf16>, vector<256x512xbf16>, vector<8x512xf32> -> vector<8x512xf32>
    %c0_23 = arith.constant 0 : index
    %c2560_24 = arith.constant 2560 : index
    %32 = vector.load %arg3[%c0_23, %c2560_24] : memref<1x4096xf32, #tpu.memory_space<vmem>>, vector<1x512xf32>
    %33 = vector.broadcast %32 : vector<1x512xf32> to vector<8x512xf32>
    %34 = arith.addf %31, %33 : vector<8x512xf32>
    %35 = arith.maximumf %29, %34 : vector<8x512xf32>
    %c0_25 = arith.constant 0 : index
    %c3072 = arith.constant 3072 : index
    %36 = vector.load %arg2[%c0_25, %c3072] : memref<256x4096xbf16, #tpu.memory_space<vmem>>, vector<256x512xbf16>
    %cst_26 = arith.constant dense<0.000000e+00> : vector<8x512xf32>
    %37 = tpu.matmul %0, %36, %cst_26 {dimension_numbers = #tpu.dot_dimension_numbers<[1], [0], [0], [1], [0, 0, 1, 1], [], []>} : vector<8x256xbf16>, vector<256x512xbf16>, vector<8x512xf32> -> vector<8x512xf32>
    %c0_27 = arith.constant 0 : index
    %c3072_28 = arith.constant 3072 : index
    %38 = vector.load %arg3[%c0_27, %c3072_28] : memref<1x4096xf32, #tpu.memory_space<vmem>>, vector<1x512xf32>
    %39 = vector.broadcast %38 : vector<1x512xf32> to vector<8x512xf32>
    %40 = arith.addf %37, %39 : vector<8x512xf32>
    %41 = arith.maximumf %35, %40 : vector<8x512xf32>
    %c0_29 = arith.constant 0 : index
    %c3584 = arith.constant 3584 : index
    %42 = vector.load %arg2[%c0_29, %c3584] : memref<256x4096xbf16, #tpu.memory_space<vmem>>, vector<256x512xbf16>
    %cst_30 = arith.constant dense<0.000000e+00> : vector<8x512xf32>
    %43 = tpu.matmul %0, %42, %cst_30 {dimension_numbers = #tpu.dot_dimension_numbers<[1], [0], [0], [1], [0, 0, 1, 1], [], []>} : vector<8x256xbf16>, vector<256x512xbf16>, vector<8x512xf32> -> vector<8x512xf32>
    %c0_31 = arith.constant 0 : index
    %c3584_32 = arith.constant 3584 : index
    %44 = vector.load %arg3[%c0_31, %c3584_32] : memref<1x4096xf32, #tpu.memory_space<vmem>>, vector<1x512xf32>
    %45 = vector.broadcast %44 : vector<1x512xf32> to vector<8x512xf32>
    %46 = arith.addf %43, %45 : vector<8x512xf32>
    %47 = arith.maximumf %41, %46 : vector<8x512xf32>
    %48 = arith.truncf %47 : vector<8x512xf32> to vector<8x512xbf16>
    %c0_33 = arith.constant 0 : index
    %c0_34 = arith.constant 0 : index
    %49 = vector.load %arg4[%c0_33, %c0_34] : memref<512x1024xbf16, #tpu.memory_space<vmem>>, vector<512x1024xbf16>
    %cst_35 = arith.constant dense<0.000000e+00> : vector<8x1024xf32>
    %50 = tpu.matmul %48, %49, %cst_35 {dimension_numbers = #tpu.dot_dimension_numbers<[1], [0], [0], [1], [0, 0, 1, 1], [], []>} : vector<8x512xbf16>, vector<512x1024xbf16>, vector<8x1024xf32> -> vector<8x1024xf32>
    %c0_36 = arith.constant 0 : index
    %c0_37 = arith.constant 0 : index
    %51 = vector.load %arg5[%c0_36, %c0_37] : memref<1x1024xf32, #tpu.memory_space<vmem>>, vector<1x1024xf32>
    %52 = vector.broadcast %51 : vector<1x1024xf32> to vector<8x1024xf32>
    %53 = arith.addf %50, %52 : vector<8x1024xf32>
    %54 = vector.extract_strided_slice %53 {offsets = [0, 0], sizes = [8, 128], strides = [1, 1]} : vector<8x1024xf32> to vector<8x128xf32>
    %55 = vector.extract_strided_slice %53 {offsets = [0, 128], sizes = [8, 128], strides = [1, 1]} : vector<8x1024xf32> to vector<8x128xf32>
    %56 = arith.maximumf %54, %55 : vector<8x128xf32>
    %57 = vector.extract_strided_slice %53 {offsets = [0, 256], sizes = [8, 128], strides = [1, 1]} : vector<8x1024xf32> to vector<8x128xf32>
    %58 = arith.maximumf %56, %57 : vector<8x128xf32>
    %59 = vector.extract_strided_slice %53 {offsets = [0, 384], sizes = [8, 128], strides = [1, 1]} : vector<8x1024xf32> to vector<8x128xf32>
    %60 = arith.maximumf %58, %59 : vector<8x128xf32>
    %61 = vector.extract_strided_slice %53 {offsets = [0, 512], sizes = [8, 128], strides = [1, 1]} : vector<8x1024xf32> to vector<8x128xf32>
    %62 = arith.maximumf %60, %61 : vector<8x128xf32>
    %63 = vector.extract_strided_slice %53 {offsets = [0, 640], sizes = [8, 128], strides = [1, 1]} : vector<8x1024xf32> to vector<8x128xf32>
    %64 = arith.maximumf %62, %63 : vector<8x128xf32>
    %65 = vector.extract_strided_slice %53 {offsets = [0, 768], sizes = [8, 128], strides = [1, 1]} : vector<8x1024xf32> to vector<8x128xf32>
    %66 = arith.maximumf %64, %65 : vector<8x128xf32>
    %67 = vector.extract_strided_slice %53 {offsets = [0, 896], sizes = [8, 128], strides = [1, 1]} : vector<8x1024xf32> to vector<8x128xf32>
    %68 = arith.maximumf %66, %67 : vector<8x128xf32>
    %cst_38 = arith.constant dense<0xFF800000> : vector<8xf32>
    %69 = vector.multi_reduction <maximumf>, %68, %cst_38 [1] : vector<8x128xf32> to vector<8xf32>
    %70 = vector.shape_cast %69 : vector<8xf32> to vector<8x1xf32>
    %71 = vector.broadcast %70 : vector<8x1xf32> to vector<8x128xf32>
    %72 = arith.subf %68, %71 : vector<8x128xf32>
    %73 = math.exp %72 : vector<8x128xf32>
    %cst_39 = arith.constant dense<0.000000e+00> : vector<8xf32>
    %74 = vector.multi_reduction <add>, %73, %cst_39 [1] : vector<8x128xf32> to vector<8xf32>
    %75 = vector.shape_cast %74 : vector<8xf32> to vector<8x1xf32>
    %76 = math.log %75 : vector<8x1xf32>
    %77 = arith.addf %70, %76 : vector<8x1xf32>
    %78 = vector.broadcast %77 : vector<8x1xf32> to vector<8x128xf32>
    %79 = arith.subf %68, %78 : vector<8x128xf32>
    %c0_40 = arith.constant 0 : index
    %c0_41 = arith.constant 0 : index
    %80 = vector.load %arg6[%c0_40, %c0_41] : memref<8x128xf32, #tpu.memory_space<vmem>>, vector<8x128xf32>
    tpu.vector_store %arg6[%c0_40, %c0_41], %79 {strides = array<i32>} : memref<8x128xf32, #tpu.memory_space<vmem>>, vector<8x128xf32>,
    return
  }
  func.func @transform_0(%arg0: i32) -> (i32, i32) {
    %c0_i32 = arith.constant 0 : i32
    %c0_i32_0 = arith.constant 0 : i32
    return %arg0, %c0_i32 : i32, i32
  }
  func.func @transform_1(%arg0: i32) -> (i32, i32) {
    %c0_i32 = arith.constant 0 : i32
    %c0_i32_0 = arith.constant 0 : i32
    %c0_i32_1 = arith.constant 0 : i32
    return %c0_i32, %c0_i32_0 : i32, i32
  }
  func.func @transform_2(%arg0: i32) -> (i32, i32) {
    %c0_i32 = arith.constant 0 : i32
    %c0_i32_0 = arith.constant 0 : i32
    %c0_i32_1 = arith.constant 0 : i32
    return %c0_i32, %c0_i32_0 : i32, i32
  }
  func.func @transform_3(%arg0: i32) -> (i32, i32) {
    %c0_i32 = arith.constant 0 : i32
    %c0_i32_0 = arith.constant 0 : i32
    %c0_i32_1 = arith.constant 0 : i32
    return %c0_i32, %c0_i32_0 : i32, i32
  }
  func.func @transform_4(%arg0: i32) -> (i32, i32) {
    %c0_i32 = arith.constant 0 : i32
    %c0_i32_0 = arith.constant 0 : i32
    %c0_i32_1 = arith.constant 0 : i32
    return %c0_i32, %c0_i32_0 : i32, i32
  }
  func.func @transform_5(%arg0: i32) -> (i32, i32) {
    %c0_i32 = arith.constant 0 : i32
    %c0_i32_0 = arith.constant 0 : i32
    return %arg0, %c0_i32 : i32, i32
  }
}

module attributes {stable_mosaic.version = 11 : i64} {
  func.func @_maxout_mlp_kernel(%arg0: i32, %arg1: memref<8x256xbf16, #tpu.memory_space<vmem>>, %arg2: memref<256x4096xbf16, #tpu.memory_space<vmem>>, %arg3: memref<1x4096xf32, #tpu.memory_space<vmem>>, %arg4: memref<512x1024xbf16, #tpu.memory_space<vmem>>, %arg5: memref<1x1024xf32, #tpu.memory_space<vmem>>, %arg6: memref<8x128xf32, #tpu.memory_space<vmem>>) attributes {dimension_semantics = [#tpu.dimension_semantics<parallel>], iteration_bounds = array<i64: 1>, scalar_prefetch = 0 : i64, scratch_operands = 0 : i64, tpu.core_type = #tpu.core_type<tc>, window_params = [{transform_indices = @transform_0, window_bounds = array<i64: 8, 256>}, {pipeline_mode = #tpu.pipeline_mode<synchronous>, transform_indices = @transform_1, window_bounds = array<i64: 256, 4096>}, {pipeline_mode = #tpu.pipeline_mode<synchronous>, transform_indices = @transform_2, window_bounds = array<i64: 1, 4096>}, {pipeline_mode = #tpu.pipeline_mode<synchronous>, transform_indices = @transform_3, window_bounds = array<i64: 512, 1024>}, {pipeline_mode = #tpu.pipeline_mode<synchronous>, transform_indices = @transform_4, window_bounds = array<i64: 1, 1024>}, {transform_indices = @transform_5, window_bounds = array<i64: 8, 128>}]} {
    %c0 = arith.constant 0 : index
    %c0_0 = arith.constant 0 : index
    %0 = vector.load %arg1[%c0, %c0_0] : memref<8x256xbf16, #tpu.memory_space<vmem>>, vector<8x256xbf16>
    %c0_1 = arith.constant 0 : index
    %c0_2 = arith.constant 0 : index
    %1 = vector.load %arg2[%c0_1, %c0_2] : memref<256x4096xbf16, #tpu.memory_space<vmem>>, vector<256x512xbf16>
    %cst = arith.constant dense<0.000000e+00> : vector<8x512xf32>
    %2 = tpu.matmul %0, %1, %cst {dimension_numbers = #tpu.dot_dimension_numbers<[1], [0], [0], [1], [0, 0, 1, 1], [], []>} : vector<8x256xbf16>, vector<256x512xbf16>, vector<8x512xf32> -> vector<8x512xf32>
    %c0_3 = arith.constant 0 : index
    %c0_4 = arith.constant 0 : index
    %3 = vector.load %arg3[%c0_3, %c0_4] : memref<1x4096xf32, #tpu.memory_space<vmem>>, vector<1x512xf32>
    %4 = vector.broadcast %3 : vector<1x512xf32> to vector<8x512xf32>
    %5 = arith.addf %2, %4 : vector<8x512xf32>
    %c0_5 = arith.constant 0 : index
    %c512 = arith.constant 512 : index
    %6 = vector.load %arg2[%c0_5, %c512] : memref<256x4096xbf16, #tpu.memory_space<vmem>>, vector<256x512xbf16>
    %cst_6 = arith.constant dense<0.000000e+00> : vector<8x512xf32>
    %7 = tpu.matmul %0, %6, %cst_6 {dimension_numbers = #tpu.dot_dimension_numbers<[1], [0], [0], [1], [0, 0, 1, 1], [], []>} : vector<8x256xbf16>, vector<256x512xbf16>, vector<8x512xf32> -> vector<8x512xf32>
    %c0_7 = arith.constant 0 : index
    %c512_8 = arith.constant 512 : index
    %8 = vector.load %arg3[%c0_7, %c512_8] : memref<1x4096xf32, #tpu.memory_space<vmem>>, vector<1x512xf32>
    %9 = vector.broadcast %8 : vector<1x512xf32> to vector<8x512xf32>
    %10 = arith.addf %7, %9 : vector<8x512xf32>
    %11 = arith.maximumf %5, %10 : vector<8x512xf32>
    %c0_9 = arith.constant 0 : index
    %c1024 = arith.constant 1024 : index
    %12 = vector.load %arg2[%c0_9, %c1024] : memref<256x4096xbf16, #tpu.memory_space<vmem>>, vector<256x512xbf16>
    %cst_10 = arith.constant dense<0.000000e+00> : vector<8x512xf32>
    %13 = tpu.matmul %0, %12, %cst_10 {dimension_numbers = #tpu.dot_dimension_numbers<[1], [0], [0], [1], [0, 0, 1, 1], [], []>} : vector<8x256xbf16>, vector<256x512xbf16>, vector<8x512xf32> -> vector<8x512xf32>
    %c0_11 = arith.constant 0 : index
    %c1024_12 = arith.constant 1024 : index
    %14 = vector.load %arg3[%c0_11, %c1024_12] : memref<1x4096xf32, #tpu.memory_space<vmem>>, vector<1x512xf32>
    %15 = vector.broadcast %14 : vector<1x512xf32> to vector<8x512xf32>
    %16 = arith.addf %13, %15 : vector<8x512xf32>
    %17 = arith.maximumf %11, %16 : vector<8x512xf32>
    %c0_13 = arith.constant 0 : index
    %c1536 = arith.constant 1536 : index
    %18 = vector.load %arg2[%c0_13, %c1536] : memref<256x4096xbf16, #tpu.memory_space<vmem>>, vector<256x512xbf16>
    %cst_14 = arith.constant dense<0.000000e+00> : vector<8x512xf32>
    %19 = tpu.matmul %0, %18, %cst_14 {dimension_numbers = #tpu.dot_dimension_numbers<[1], [0], [0], [1], [0, 0, 1, 1], [], []>} : vector<8x256xbf16>, vector<256x512xbf16>, vector<8x512xf32> -> vector<8x512xf32>
    %c0_15 = arith.constant 0 : index
    %c1536_16 = arith.constant 1536 : index
    %20 = vector.load %arg3[%c0_15, %c1536_16] : memref<1x4096xf32, #tpu.memory_space<vmem>>, vector<1x512xf32>
    %21 = vector.broadcast %20 : vector<1x512xf32> to vector<8x512xf32>
    %22 = arith.addf %19, %21 : vector<8x512xf32>
    %23 = arith.maximumf %17, %22 : vector<8x512xf32>
    %c0_17 = arith.constant 0 : index
    %c2048 = arith.constant 2048 : index
    %24 = vector.load %arg2[%c0_17, %c2048] : memref<256x4096xbf16, #tpu.memory_space<vmem>>, vector<256x512xbf16>
    %cst_18 = arith.constant dense<0.000000e+00> : vector<8x512xf32>
    %25 = tpu.matmul %0, %24, %cst_18 {dimension_numbers = #tpu.dot_dimension_numbers<[1], [0], [0], [1], [0, 0, 1, 1], [], []>} : vector<8x256xbf16>, vector<256x512xbf16>, vector<8x512xf32> -> vector<8x512xf32>
    %c0_19 = arith.constant 0 : index
    %c2048_20 = arith.constant 2048 : index
    %26 = vector.load %arg3[%c0_19, %c2048_20] : memref<1x4096xf32, #tpu.memory_space<vmem>>, vector<1x512xf32>
    %27 = vector.broadcast %26 : vector<1x512xf32> to vector<8x512xf32>
    %28 = arith.addf %25, %27 : vector<8x512xf32>
    %29 = arith.maximumf %23, %28 : vector<8x512xf32>
    %c0_21 = arith.constant 0 : index
    %c2560 = arith.constant 2560 : index
    %30 = vector.load %arg2[%c0_21, %c2560] : memref<256x4096xbf16, #tpu.memory_space<vmem>>, vector<256x512xbf16>
    %cst_22 = arith.constant dense<0.000000e+00> : vector<8x512xf32>
    %31 = tpu.matmul %0, %30, %cst_22 {dimension_numbers = #tpu.dot_dimension_numbers<[1], [0], [0], [1], [0, 0, 1, 1], [], []>} : vector<8x256xbf16>, vector<256x512xbf16>, vector<8x512xf32> -> vector<8x512xf32>
    %c0_23 = arith.constant 0 : index
    %c2560_24 = arith.constant 2560 : index
    %32 = vector.load %arg3[%c0_23, %c2560_24] : memref<1x4096xf32, #tpu.memory_space<vmem>>, vector<1x512xf32>
    %33 = vector.broadcast %32 : vector<1x512xf32> to vector<8x512xf32>
    %34 = arith.addf %31, %33 : vector<8x512xf32>
    %35 = arith.maximumf %29, %34 : vector<8x512xf32>
    %c0_25 = arith.constant 0 : index
    %c3072 = arith.constant 3072 : index
    %36 = vector.load %arg2[%c0_25, %c3072] : memref<256x4096xbf16, #tpu.memory_space<vmem>>, vector<256x512xbf16>
    %cst_26 = arith.constant dense<0.000000e+00> : vector<8x512xf32>
    %37 = tpu.matmul %0, %36, %cst_26 {dimension_numbers = #tpu.dot_dimension_numbers<[1], [0], [0], [1], [0, 0, 1, 1], [], []>} : vector<8x256xbf16>, vector<256x512xbf16>, vector<8x512xf32> -> vector<8x512xf32>
    %c0_27 = arith.constant 0 : index
    %c3072_28 = arith.constant 3072 : index
    %38 = vector.load %arg3[%c0_27, %c3072_28] : memref<1x4096xf32, #tpu.memory_space<vmem>>, vector<1x512xf32>
    %39 = vector.broadcast %38 : vector<1x512xf32> to vector<8x512xf32>
    %40 = arith.addf %37, %39 : vector<8x512xf32>
    %41 = arith.maximumf %35, %40 : vector<8x512xf32>
    %c0_29 = arith.constant 0 : index
    %c3584 = arith.constant 3584 : index
    %42 = vector.load %arg2[%c0_29, %c3584] : memref<256x4096xbf16, #tpu.memory_space<vmem>>, vector<256x512xbf16>
    %cst_30 = arith.constant dense<0.000000e+00> : vector<8x512xf32>
    %43 = tpu.matmul %0, %42, %cst_30 {dimension_numbers = #tpu.dot_dimension_numbers<[1], [0], [0], [1], [0, 0, 1, 1], [], []>} : vector<8x256xbf16>, vector<256x512xbf16>, vector<8x512xf32> -> vector<8x512xf32>
    %c0_31 = arith.constant 0 : index
    %c3584_32 = arith.constant 3584 : index
    %44 = vector.load %arg3[%c0_31, %c3584_32] : memref<1x4096xf32, #tpu.memory_space<vmem>>, vector<1x512xf32>
    %45 = vector.broadcast %44 : vector<1x512xf32> to vector<8x512xf32>
    %46 = arith.addf %43, %45 : vector<8x512xf32>
    %47 = arith.maximumf %41, %46 : vector<8x512xf32>
    %48 = arith.truncf %47 : vector<8x512xf32> to vector<8x512xbf16>
    %c0_33 = arith.constant 0 : index
    %c0_34 = arith.constant 0 : index
    %49 = vector.load %arg4[%c0_33, %c0_34] : memref<512x1024xbf16, #tpu.memory_space<vmem>>, vector<512x1024xbf16>
    %cst_35 = arith.constant dense<0.000000e+00> : vector<8x1024xf32>
    %50 = tpu.matmul %48, %49, %cst_35 {dimension_numbers = #tpu.dot_dimension_numbers<[1], [0], [0], [1], [0, 0, 1, 1], [], []>} : vector<8x512xbf16>, vector<512x1024xbf16>, vector<8x1024xf32> -> vector<8x1024xf32>
    %c0_36 = arith.constant 0 : index
    %c0_37 = arith.constant 0 : index
    %51 = vector.load %arg5[%c0_36, %c0_37] : memref<1x1024xf32, #tpu.memory_space<vmem>>, vector<1x1024xf32>
    %52 = vector.broadcast %51 : vector<1x1024xf32> to vector<8x1024xf32>
    %53 = arith.addf %50, %52 : vector<8x1024xf32>
    %54 = vector.extract_strided_slice %53 {offsets = [0, 0], sizes = [8, 128], strides = [1, 1]} : vector<8x1024xf32> to vector<8x128xf32>
    %55 = vector.extract_strided_slice %53 {offsets = [0, 128], sizes = [8, 128], strides = [1, 1]} : vector<8x1024xf32> to vector<8x128xf32>
    %56 = arith.maximumf %54, %55 : vector<8x128xf32>
    %57 = vector.extract_strided_slice %53 {offsets = [0, 256], sizes = [8, 128], strides = [1, 1]} : vector<8x1024xf32> to vector<8x128xf32>
    %58 = arith.maximumf %56, %57 : vector<8x128xf32>
    %59 = vector.extract_strided_slice %53 {offsets = [0, 384], sizes = [8, 128], strides = [1, 1]} : vector<8x1024xf32> to vector<8x128xf32>
    %60 = arith.maximumf %58, %59 : vector<8x128xf32>
    %61 = vector.extract_strided_slice %53 {offsets = [0, 512], sizes = [8, 128], strides = [1, 1]} : vector<8x1024xf32> to vector<8x128xf32>
    %62 = arith.maximumf %60, %61 : vector<8x128xf32>
    %63 = vector.extract_strided_slice %53 {offsets = [0, 640], sizes = [8, 128], strides = [1, 1]} : vector<8x1024xf32> to vector<8x128xf32>
    %64 = arith.maximumf %62, %63 : vector<8x128xf32>
    %65 = vector.extract_strided_slice %53 {offsets = [0, 768], sizes = [8, 128], strides = [1, 1]} : vector<8x1024xf32> to vector<8x128xf32>
    %66 = arith.maximumf %64, %65 : vector<8x128xf32>
    %67 = vector.extract_strided_slice %53 {offsets = [0, 896], sizes = [8, 128], strides = [1, 1]} : vector<8x1024xf32> to vector<8x128xf32>
    %68 = arith.maximumf %66, %67 : vector<8x128xf32>
    %cst_38 = arith.constant dense<0xFF800000> : vector<8xf32>
    %69 = vector.multi_reduction <maximumf>, %68, %cst_38 [1] : vector<8x128xf32> to vector<8xf32>
    %70 = vector.shape_cast %69 : vector<8xf32> to vector<8x1xf32>
    %71 = vector.broadcast %70 : vector<8x1xf32> to vector<8x128xf32>
    %72 = arith.subf %68, %71 : vector<8x128xf32>
    %73 = math.exp %72 : vector<8x128xf32>
    %cst_39 = arith.constant dense<0.000000e+00> : vector<8xf32>
    %74 = vector.multi_reduction <add>, %73, %cst_39 [1] : vector<8x128xf32> to vector<8xf32>
    %75 = vector.shape_cast %74 : vector<8xf32> to vector<8x1xf32>
    %76 = math.log %75 : vector<8x1xf32>
    %77 = arith.addf %70, %76 : vector<8x1xf32>
    %78 = vector.broadcast %77 : vector<8x1xf32> to vector<8x128xf32>
    %79 = arith.subf %68, %78 : vector<8x128xf32>
    %c0_40 = arith.constant 0 : index
    %c0_41 = arith.constant 0 : index
    %80 = vector.load %arg6[%c0_40, %c0_41] : memref<8x128xf32, #tpu.memory_space<vmem>>, vector<8x128xf32>
    tpu.vector_store %arg6[%c0_40, %c0_41], %79 {strides = array<i32>} : memref<8x128xf32, #tpu.memory_space<vmem>>, vector<8x128xf32>,
    return
  }
  func.func @transform_0(%arg0: i32) -> (i32, i32) {
    %c0_i32 = arith.constant 0 : i32
    %c0_i32_0 = arith.constant 0 : i32
    return %arg0, %c0_i32 : i32, i32
  }
  func.func @transform_1(%arg0: i32) -> (i32, i32) {
    %c0_i32 = arith.constant 0 : i32
    %c0_i32_0 = arith.constant 0 : i32
    %c0_i32_1 = arith.constant 0 : i32
    return %c0_i32, %c0_i32_0 : i32, i32
  }
  func.func @transform_2(%arg0: i32) -> (i32, i32) {
    %c0_i32 = arith.constant 0 : i32
    %c0_i32_0 = arith.constant 0 : i32
    %c0_i32_1 = arith.constant 0 : i32
    return %c0_i32, %c0_i32_0 : i32, i32
  }
  func.func @transform_3(%arg0: i32) -> (i32, i32) {
    %c0_i32 = arith.constant 0 : i32
    %c0_i32_0 = arith.constant 0 : i32
    %c0_i32_1 = arith.constant 0 : i32
    return %c0_i32, %c0_i32_0 : i32, i32
  }
  func.func @transform_4(%arg0: i32) -> (i32, i32) {
    %c0_i32 = arith.constant 0 : i32
    %c0_i32_0 = arith.constant 0 : i32
    %c0_i32_1 = arith.constant 0 : i32
    return %c0_i32, %c0_i32_0 : i32, i32
  }
  func.func @transform_5(%arg0: i32) -> (i32, i32) {
    %c0_i32 = arith.constant 0 : i32
    %c0_i32_0 = arith.constant 0 : i32
    return %arg0, %c0_i32 : i32, i32
  }
}

</mosaic_0001>

<llo_original>
// kernel: tpu_custom_call.1
$region0: #{tpu_custom_call.1}
  #allocation0 [shape = 'u32[]', space=smem, size = 0x4, offset = 0x4, fixed_abs, tag = 'smem constant byte address 0x4 - core index']
  #allocation1 [shape = 'u32[144,128]{1,0:T(1,128)}', space=vmem, size = 0x12000, scoped, tag = 'internal scratch']
  %s0 = inlined_call_operand.hbm [shape: bf16[8,256], index: 0, kind: input, shape index: {}]
  %s1 = inlined_call_operand.hbm [shape: bf16[256,4096], index: 1, kind: input, shape index: {}]
  %s2 = inlined_call_operand.hbm [shape: f32[1,4096], index: 2, kind: input, shape index: {}]
  %s3 = inlined_call_operand.hbm [shape: bf16[512,1024], index: 3, kind: input, shape index: {}]
  %s4 = inlined_call_operand.hbm [shape: f32[1,1024], index: 4, kind: input, shape index: {}]
  %s5 = inlined_call_operand.hbm [shape: f32[8,128], index: 5, kind: output, shape index: {}]
  %s6 = sld [smem:[#allocation0]]
  $region50: #{tpu_custom_call.1} parent=0
    _
  %s8 = ssub.s32 1, %s6
  %s9 = scalar_select 0, %s8, %s6
  $region1: #{tpu_custom_call.1} parent=0
    #allocation2 [shape = 'u8[4096]{0}', space=vmem, size = 0x1000, scoped, tag = 'input window, operand 0, single buffered']
    #allocation3 [shape = 's32[1]{0}', space=sflag, size = 0x4, scoped, tag = 'scoped memory for tpu_custom_call.1']
    #allocation4 [shape = 's32[1]{0}', space=sflag, size = 0x4, scoped, tag = 'scoped memory for tpu_custom_call.1']
    #allocation5 [shape = 'u8[2097152]{0}', space=vmem, size = 0x200000, scoped, tag = 'input window, operand 1, single buffered']
    #allocation6 [shape = 's32[1]{0}', space=sflag, size = 0x4, scoped, tag = 'scoped memory for tpu_custom_call.1']
    #allocation7 [shape = 'u8[16384]{0}', space=vmem, size = 0x4000, scoped, tag = 'input window, operand 2, single buffered']
    #allocation8 [shape = 'u8[1048576]{0}', space=vmem, size = 0x100000, scoped, tag = 'input window, operand 3, single buffered']
    #allocation9 [shape = 's32[1]{0}', space=sflag, size = 0x4, scoped, tag = 'scoped memory for tpu_custom_call.1']
    #allocation10 [shape = 'u8[4096]{0}', space=vmem, size = 0x1000, scoped, tag = 'input window, operand 4, single buffered']
    #allocation11 [shape = 'u8[4096]{0}', space=vmem, size = 0x1000, scoped, tag = 'output window, operand 0, single buffered']
    %10 = vsyncpa [#allocation3], 0
    %11 = vsyncpa [#allocation6], 0
    %12 = vsyncpa [#allocation9], 0
    %13 = vsyncpa [#allocation4], 0
    // Predicated region
    $region2: #{tpu_custom_call.1} parent=1 // pred_check
      _
    $region3: #{tpu_custom_call.1} parent=1 // pred_check_branch
      %15 = sbr.rel (0) target = $region5
    $region4: #{tpu_custom_call.1} parent=1 // pred_region
      %s17 = ssub.s32 128, 128
      %18 = vsyncadd [#allocation3], %s17
      %s20 = sshll.u32 [#allocation2], 4
      %s21 = int_to_ptr.vmem [resolvable:$true] %s20
      %23 = dma.hbm_to_vmem [thread:$0]  %s0, 128, %s21, [#allocation3]
    $region5: #{tpu_custom_call.1} parent=1 // pred_fallthru
      _
    // Predicated region
    $region6: #{tpu_custom_call.1} parent=1 // pred_check
      _
    $region7: #{tpu_custom_call.1} parent=1 // pred_check_branch
      %25 = sbr.rel (0) target = $region9
    $region8: #{tpu_custom_call.1} parent=1 // pred_region
      %s27 = ssub.s32 65536, 65536
      %28 = vsyncadd [#allocation6], %s27
      %s29 = sshll.u32 [#allocation5], 4
      %s30 = int_to_ptr.vmem [resolvable:$true] %s29
      %35 = dma.hbm_to_vmem [thread:$0]  %s1, 65536, %s30, [#allocation6], 2048, 2048, 128
    $region9: #{tpu_custom_call.1} parent=1 // pred_fallthru
      _
    // Predicated region
    $region10: #{tpu_custom_call.1} parent=1 // pred_check
      _
    $region11: #{tpu_custom_call.1} parent=1 // pred_check_branch
      %37 = sbr.rel (0) target = $region13
    $region12: #{tpu_custom_call.1} parent=1 // pred_region
      %s39 = ssub.s32 512, 512
      %40 = vsyncadd [#allocation6], %s39
      %s42 = sshll.u32 [#allocation7], 4
      %s43 = int_to_ptr.vmem [resolvable:$true] %s42
      %45 = dma.hbm_to_vmem [thread:$0]  %s2, 512, %s43, [#allocation6]
    $region13: #{tpu_custom_call.1} parent=1 // pred_fallthru
      _
    // Predicated region
    $region14: #{tpu_custom_call.1} parent=1 // pred_check
      _
    $region15: #{tpu_custom_call.1} parent=1 // pred_check_branch
      %47 = sbr.rel (0) target = $region17
    $region16: #{tpu_custom_call.1} parent=1 // pred_region
      %s49 = ssub.s32 32768, 32768
      %50 = vsyncadd [#allocation9], %s49
      %s51 = sshll.u32 [#allocation8], 4
      %s52 = int_to_ptr.vmem [resolvable:$true] %s51
      %57 = dma.hbm_to_vmem [thread:$0]  %s3, 32768, %s52, [#allocation9], 512, 512, 32
    $region17: #{tpu_custom_call.1} parent=1 // pred_fallthru
      _
    // Predicated region
    $region18: #{tpu_custom_call.1} parent=1 // pred_check
      _
    $region19: #{tpu_custom_call.1} parent=1 // pred_check_branch
      %59 = sbr.rel (0) target = $region21
    $region20: #{tpu_custom_call.1} parent=1 // pred_region
      %s61 = ssub.s32 128, 128
      %62 = vsyncadd [#allocation9], %s61
      %s64 = sshll.u32 [#allocation10], 4
      %s65 = int_to_ptr.vmem [resolvable:$true] %s64
      %67 = dma.hbm_to_vmem [thread:$0]  %s4, 128, %s65, [#allocation9]
    $region21: #{tpu_custom_call.1} parent=1 // pred_fallthru
      _
    // Predicated region
    $region22: #{tpu_custom_call.1} parent=1 // pred_check
      _
    $region23: #{tpu_custom_call.1} parent=1 // pred_check_branch
      %69 = sbr.rel (0) target = $region25
    $region24: #{tpu_custom_call.1} parent=1 // pred_region
      %70 = dma.done [#allocation3], 128
    $region25: #{tpu_custom_call.1} parent=1 // pred_fallthru
      _
    // Predicated region
    $region26: #{tpu_custom_call.1} parent=1 // pred_check
      _
    $region27: #{tpu_custom_call.1} parent=1 // pred_check_branch
      %72 = sbr.rel (0) target = $region29
    $region28: #{tpu_custom_call.1} parent=1 // pred_region
      %73 = dma.done [#allocation6], 65536
    $region29: #{tpu_custom_call.1} parent=1 // pred_fallthru
      _
    // Predicated region
    $region30: #{tpu_custom_call.1} parent=1 // pred_check
      _
    $region31: #{tpu_custom_call.1} parent=1 // pred_check_branch
      %75 = sbr.rel (0) target = $region33
    $region32: #{tpu_custom_call.1} parent=1 // pred_region
      %76 = dma.done [#allocation6], 512
    $region33: #{tpu_custom_call.1} parent=1 // pred_fallthru
      _
    // Predicated region
    $region34: #{tpu_custom_call.1} parent=1 // pred_check
      _
    $region35: #{tpu_custom_call.1} parent=1 // pred_check_branch
      %78 = sbr.rel (0) target = $region37
    $region36: #{tpu_custom_call.1} parent=1 // pred_region
      %79 = dma.done [#allocation9], 32768
    $region37: #{tpu_custom_call.1} parent=1 // pred_fallthru
      _
    // Predicated region
    $region38: #{tpu_custom_call.1} parent=1 // pred_check
      _
    $region39: #{tpu_custom_call.1} parent=1 // pred_check_branch
      %81 = sbr.rel (0) target = $region41
    $region40: #{tpu_custom_call.1} parent=1 // pred_region
      %82 = dma.done [#allocation9], 128
    $region41: #{tpu_custom_call.1} parent=1 // pred_fallthru
      _
    %v83 = vld [vmem:[#allocation2] sm:$0xff]
    %v84 = vld [vmem:[#allocation5] sm:$0xff]
    %v85 = vld [vmem:[#allocation5 + $0x8] sm:$0xff]
    %v86 = vld [vmem:[#allocation5 + $0x80] sm:$0xff]
    %v87 = vld [vmem:[#allocation5 + $0x88] sm:$0xff]
    %v88 = vld [vmem:[#allocation5 + $0x100] sm:$0xff]
    %v89 = vld [vmem:[#allocation5 + $0x108] sm:$0xff]
    %v90 = vld [vmem:[#allocation5 + $0x180] sm:$0xff]
    %v91 = vld [vmem:[#allocation5 + $0x188] sm:$0xff]
    %v92 = vld [vmem:[#allocation5 + $0x200] sm:$0xff]
    %v93 = vld [vmem:[#allocation5 + $0x208] sm:$0xff]
    %v94 = vld [vmem:[#allocation5 + $0x280] sm:$0xff]
    %v95 = vld [vmem:[#allocation5 + $0x288] sm:$0xff]
    %v96 = vld [vmem:[#allocation5 + $0x300] sm:$0xff]
    %v97 = vld [vmem:[#allocation5 + $0x308] sm:$0xff]
    %v98 = vld [vmem:[#allocation5 + $0x380] sm:$0xff]
    %v99 = vld [vmem:[#allocation5 + $0x388] sm:$0xff]
    %v100 = vld [vmem:[#allocation5 + $0x400] sm:$0xff]
    %v101 = vld [vmem:[#allocation5 + $0x408] sm:$0xff]
    %v102 = vld [vmem:[#allocation5 + $0x480] sm:$0xff]
    %v103 = vld [vmem:[#allocation5 + $0x488] sm:$0xff]
    %v104 = vld [vmem:[#allocation5 + $0x500] sm:$0xff]
    %v105 = vld [vmem:[#allocation5 + $0x508] sm:$0xff]
    %v106 = vld [vmem:[#allocation5 + $0x580] sm:$0xff]
    %v107 = vld [vmem:[#allocation5 + $0x588] sm:$0xff]
    %v108 = vld [vmem:[#allocation5 + $0x600] sm:$0xff]
    %v109 = vld [vmem:[#allocation5 + $0x608] sm:$0xff]
    %v110 = vld [vmem:[#allocation5 + $0x680] sm:$0xff]
    %v111 = vld [vmem:[#allocation5 + $0x688] sm:$0xff]
    %v112 = vld [vmem:[#allocation5 + $0x700] sm:$0xff]
    %v113 = vld [vmem:[#allocation5 + $0x708] sm:$0xff]
    %v114 = vld [vmem:[#allocation5 + $0x780] sm:$0xff]
    %v115 = vld [vmem:[#allocation5 + $0x788] sm:$0xff]
    %v116 = vld [vmem:[#allocation5 + $0x800] sm:$0xff]
    %v117 = vld [vmem:[#allocation5 + $0x808] sm:$0xff]
    %v118 = vld [vmem:[#allocation5 + $0x880] sm:$0xff]
    %v119 = vld [vmem:[#allocation5 + $0x888] sm:$0xff]
    %v120 = vld [vmem:[#allocation5 + $0x900] sm:$0xff]
    %v121 = vld [vmem:[#allocation5 + $0x908] sm:$0xff]
    %v122 = vld [vmem:[#allocation5 + $0x980] sm:$0xff]
    %v123 = vld [vmem:[#allocation5 + $0x988] sm:$0xff]
    %v124 = vld [vmem:[#allocation5 + $0xa00] sm:$0xff]
    %v125 = vld [vmem:[#allocation5 + $0xa08] sm:$0xff]
    %v126 = vld [vmem:[#allocation5 + $0xa80] sm:$0xff]
    %v127 = vld [vmem:[#allocation5 + $0xa88] sm:$0xff]
    %v128 = vld [vmem:[#allocation5 + $0xb00] sm:$0xff]
    %v129 = vld [vmem:[#allocation5 + $0xb08] sm:$0xff]
    %v130 = vld [vmem:[#allocation5 + $0xb80] sm:$0xff]
    %v131 = vld [vmem:[#allocation5 + $0xb88] sm:$0xff]
    %v132 = vld [vmem:[#allocation5 + $0xc00] sm:$0xff]
    %v133 = vld [vmem:[#allocation5 + $0xc08] sm:$0xff]
    %v134 = vld [vmem:[#allocation5 + $0xc80] sm:$0xff]
    %v135 = vld [vmem:[#allocation5 + $0xc88] sm:$0xff]
    %v136 = vld [vmem:[#allocation5 + $0xd00] sm:$0xff]
    %v137 = vld [vmem:[#allocation5 + $0xd08] sm:$0xff]
    %v138 = vld [vmem:[#allocation5 + $0xd80] sm:$0xff]
    %v139 = vld [vmem:[#allocation5 + $0xd88] sm:$0xff]
    %v140 = vld [vmem:[#allocation5 + $0xe00] sm:$0xff]
    %v141 = vld [vmem:[#allocation5 + $0xe08] sm:$0xff]
    %v142 = vld [vmem:[#allocation5 + $0xe80] sm:$0xff]
    %v143 = vld [vmem:[#allocation5 + $0xe88] sm:$0xff]
    %v144 = vld [vmem:[#allocation5 + $0xf00] sm:$0xff]
    %v145 = vld [vmem:[#allocation5 + $0xf08] sm:$0xff]
    %v146 = vld [vmem:[#allocation5 + $0xf80] sm:$0xff]
    %v147 = vld [vmem:[#allocation5 + $0xf88] sm:$0xff]
    %v148 = vld [vmem:[#allocation7] sm:$0xf]
    %v150 = vlaneseq
    %v151 = vshrl.u32 %v150, 7
    %v152 = vsub.s32 0, %v151
    %v153 = vrot.slane %v148, %v152
    %v154 = vlaneseq
    %v155 = vshrl.u32 %v154, 7
    %v156 = vsub.s32 1, %v155
    %v157 = vrot.slane %v148, %v156
    %v158 = vlaneseq
    %v159 = vshrl.u32 %v158, 7
    %v160 = vsub.s32 2, %v159
    %v161 = vrot.slane %v148, %v160
    %v162 = vlaneseq
    %v163 = vshrl.u32 %v162, 7
    %v164 = vsub.s32 3, %v163
    %v165 = vrot.slane %v148, %v164
    %v171 = vunpack.c.l.b16 %v83
    %v172 = vunpack.c.h.b16 %v83
    %v173 = vpack.c.b16 %v171, %v171
    %v174 = vpack.c.b16 %v172, %v172
    %v241 = vunpack.c.l.b16 %v84
    %v242 = vunpack.c.h.b16 %v84
    %v243 = vunpack.c.l.b16 %v85
    %v244 = vunpack.c.h.b16 %v85
    %v245 = vunpack.c.l.b16 %v86
    %v246 = vunpack.c.h.b16 %v86
    %v247 = vunpack.c.l.b16 %v87
    %v248 = vunpack.c.h.b16 %v87
    %v249 = vunpack.c.l.b16 %v88
    %v250 = vunpack.c.h.b16 %v88
    %v251 = vunpack.c.l.b16 %v89
    %v252 = vunpack.c.h.b16 %v89
    %v253 = vunpack.c.l.b16 %v90
    %v254 = vunpack.c.h.b16 %v90
    %v255 = vunpack.c.l.b16 %v91
    %v256 = vunpack.c.h.b16 %v91
    %v257 = vunpack.c.l.b16 %v92
    %v258 = vunpack.c.h.b16 %v92
    %v259 = vunpack.c.l.b16 %v93
    %v260 = vunpack.c.h.b16 %v93
    %v261 = vunpack.c.l.b16 %v94
    %v262 = vunpack.c.h.b16 %v94
    %v263 = vunpack.c.l.b16 %v95
    %v264 = vunpack.c.h.b16 %v95
    %v265 = vunpack.c.l.b16 %v96
    %v266 = vunpack.c.h.b16 %v96
    %v267 = vunpack.c.l.b16 %v97
    %v268 = vunpack.c.h.b16 %v97
    %v269 = vunpack.c.l.b16 %v98
    %v270 = vunpack.c.h.b16 %v98
    %v271 = vunpack.c.l.b16 %v99
    %v272 = vunpack.c.h.b16 %v99
    %v273 = vunpack.c.l.b16 %v100
    %v274 = vunpack.c.h.b16 %v100
    %v275 = vunpack.c.l.b16 %v101
    %v276 = vunpack.c.h.b16 %v101
    %v277 = vunpack.c.l.b16 %v102
    %v278 = vunpack.c.h.b16 %v102
    %v279 = vunpack.c.l.b16 %v103
    %v280 = vunpack.c.h.b16 %v103
    %v281 = vunpack.c.l.b16 %v104
    %v282 = vunpack.c.h.b16 %v104
    %v283 = vunpack.c.l.b16 %v105
    %v284 = vunpack.c.h.b16 %v105
    %v285 = vunpack.c.l.b16 %v106
    %v286 = vunpack.c.h.b16 %v106
    %v287 = vunpack.c.l.b16 %v107
    %v288 = vunpack.c.h.b16 %v107
    %v289 = vunpack.c.l.b16 %v108
    %v290 = vunpack.c.h.b16 %v108
    %v291 = vunpack.c.l.b16 %v109
    %v292 = vunpack.c.h.b16 %v109
    %v293 = vunpack.c.l.b16 %v110
    %v294 = vunpack.c.h.b16 %v110
    %v295 = vunpack.c.l.b16 %v111
    %v296 = vunpack.c.h.b16 %v111
    %v297 = vunpack.c.l.b16 %v112
    %v298 = vunpack.c.h.b16 %v112
    %v299 = vunpack.c.l.b16 %v113
    %v300 = vunpack.c.h.b16 %v113
    %v301 = vunpack.c.l.b16 %v114
    %v302 = vunpack.c.h.b16 %v114
    %v303 = vunpack.c.l.b16 %v115
    %v304 = vunpack.c.h.b16 %v115
    %v305 = vunpack.c.l.b16 %v116
    %v306 = vunpack.c.h.b16 %v116
    %v307 = vunpack.c.l.b16 %v117
    %v308 = vunpack.c.h.b16 %v117
    %v309 = vunpack.c.l.b16 %v118
    %v310 = vunpack.c.h.b16 %v118
    %v311 = vunpack.c.l.b16 %v119
    %v312 = vunpack.c.h.b16 %v119
    %v313 = vunpack.c.l.b16 %v120
    %v314 = vunpack.c.h.b16 %v120
    %v315 = vunpack.c.l.b16 %v121
    %v316 = vunpack.c.h.b16 %v121
    %v317 = vunpack.c.l.b16 %v122
    %v318 = vunpack.c.h.b16 %v122
    %v319 = vunpack.c.l.b16 %v123
    %v320 = vunpack.c.h.b16 %v123
    %v321 = vunpack.c.l.b16 %v124
    %v322 = vunpack.c.h.b16 %v124
    %v323 = vunpack.c.l.b16 %v125
    %v324 = vunpack.c.h.b16 %v125
    %v325 = vunpack.c.l.b16 %v126
    %v326 = vunpack.c.h.b16 %v126
    %v327 = vunpack.c.l.b16 %v127
    %v328 = vunpack.c.h.b16 %v127
    %v329 = vunpack.c.l.b16 %v128
    %v330 = vunpack.c.h.b16 %v128
    %v331 = vunpack.c.l.b16 %v129
    %v332 = vunpack.c.h.b16 %v129
    %v333 = vunpack.c.l.b16 %v130
    %v334 = vunpack.c.h.b16 %v130
    %v335 = vunpack.c.l.b16 %v131
    %v336 = vunpack.c.h.b16 %v131
    %v337 = vunpack.c.l.b16 %v132
    %v338 = vunpack.c.h.b16 %v132
    %v339 = vunpack.c.l.b16 %v133
    %v340 = vunpack.c.h.b16 %v133
    %v341 = vunpack.c.l.b16 %v134
    %v342 = vunpack.c.h.b16 %v134
    %v343 = vunpack.c.l.b16 %v135
    %v344 = vunpack.c.h.b16 %v135
    %v345 = vunpack.c.l.b16 %v136
    %v346 = vunpack.c.h.b16 %v136
    %v347 = vunpack.c.l.b16 %v137
    %v348 = vunpack.c.h.b16 %v137
    %v349 = vunpack.c.l.b16 %v138
    %v350 = vunpack.c.h.b16 %v138
    %v351 = vunpack.c.l.b16 %v139
    %v352 = vunpack.c.h.b16 %v139
    %v353 = vunpack.c.l.b16 %v140
    %v354 = vunpack.c.h.b16 %v140
    %v355 = vunpack.c.l.b16 %v141
    %v356 = vunpack.c.h.b16 %v141
    %v357 = vunpack.c.l.b16 %v142
    %v358 = vunpack.c.h.b16 %v142
    %v359 = vunpack.c.l.b16 %v143
    %v360 = vunpack.c.h.b16 %v143
    %v361 = vunpack.c.l.b16 %v144
    %v362 = vunpack.c.h.b16 %v144
    %v363 = vunpack.c.l.b16 %v145
    %v364 = vunpack.c.h.b16 %v145
    %v365 = vunpack.c.l.b16 %v146
    %v366 = vunpack.c.h.b16 %v146
    %v367 = vunpack.c.l.b16 %v147
    %v368 = vunpack.c.h.b16 %v147
    %v369 = vpack.c.b16 %v245, %v241
    %v370 = vpack.c.b16 %v246, %v242
    %v371 = vpack.c.b16 %v247, %v243
    %v372 = vpack.c.b16 %v248, %v244
    %v373 = vpack.c.b16 %v253, %v249
    %v374 = vpack.c.b16 %v254, %v250
    %v375 = vpack.c.b16 %v255, %v251
    %v376 = vpack.c.b16 %v256, %v252
    %v377 = vpack.c.b16 %v261, %v257
    %v378 = vpack.c.b16 %v262, %v258
    %v379 = vpack.c.b16 %v263, %v259
    %v380 = vpack.c.b16 %v264, %v260
    %v381 = vpack.c.b16 %v269, %v265
    %v382 = vpack.c.b16 %v270, %v266
    %v383 = vpack.c.b16 %v271, %v267
    %v384 = vpack.c.b16 %v272, %v268
    %v385 = vpack.c.b16 %v277, %v273
    %v386 = vpack.c.b16 %v278, %v274
    %v387 = vpack.c.b16 %v279, %v275
    %v388 = vpack.c.b16 %v280, %v276
    %v389 = vpack.c.b16 %v285, %v281
    %v390 = vpack.c.b16 %v286, %v282
    %v391 = vpack.c.b16 %v287, %v283
    %v392 = vpack.c.b16 %v288, %v284
    %v393 = vpack.c.b16 %v293, %v289
    %v394 = vpack.c.b16 %v294, %v290
    %v395 = vpack.c.b16 %v295, %v291
    %v396 = vpack.c.b16 %v296, %v292
    %v397 = vpack.c.b16 %v301, %v297
    %v398 = vpack.c.b16 %v302, %v298
    %v399 = vpack.c.b16 %v303, %v299
    %v400 = vpack.c.b16 %v304, %v300
    %v401 = vpack.c.b16 %v309, %v305
    %v402 = vpack.c.b16 %v310, %v306
    %v403 = vpack.c.b16 %v311, %v307
    %v404 = vpack.c.b16 %v312, %v308
    %v405 = vpack.c.b16 %v317, %v313
    %v406 = vpack.c.b16 %v318, %v314
    %v407 = vpack.c.b16 %v319, %v315
    %v408 = vpack.c.b16 %v320, %v316
    %v409 = vpack.c.b16 %v325, %v321
    %v410 = vpack.c.b16 %v326, %v322
    %v411 = vpack.c.b16 %v327, %v323
    %v412 = vpack.c.b16 %v328, %v324
    %v413 = vpack.c.b16 %v333, %v329
    %v414 = vpack.c.b16 %v334, %v330
    %v415 = vpack.c.b16 %v335, %v331
    %v416 = vpack.c.b16 %v336, %v332
    %v417 = vpack.c.b16 %v341, %v337
    %v418 = vpack.c.b16 %v342, %v338
    %v419 = vpack.c.b16 %v343, %v339
    %v420 = vpack.c.b16 %v344, %v340
    %v421 = vpack.c.b16 %v349, %v345
    %v422 = vpack.c.b16 %v350, %v346
    %v423 = vpack.c.b16 %v351, %v347
    %v424 = vpack.c.b16 %v352, %v348
    %v425 = vpack.c.b16 %v357, %v353
    %v426 = vpack.c.b16 %v358, %v354
    %v427 = vpack.c.b16 %v359, %v355
    %v428 = vpack.c.b16 %v360, %v356
    %v429 = vpack.c.b16 %v365, %v361
    %v430 = vpack.c.b16 %v366, %v362
    %v431 = vpack.c.b16 %v367, %v363
    %v432 = vpack.c.b16 %v368, %v364
    %497 = vmatprep.subr.bf16.mxu0 %v370
    %498 = vmatpush1.bf16.msra.mxu0 %v369
    %499 = vmatprep.subr.bf16.mxu0 %v374
    %500 = vmatpush1.bf16.msra.mxu0 %v373
    %501 = vmatprep.subr.bf16.mxu0 %v378
    %502 = vmatpush1.bf16.msra.mxu0 %v377
    %503 = vmatprep.subr.bf16.mxu0 %v382
    %504 = vmatpush1.bf16.msra.mxu0 %v381
    %505 = vmatprep.subr.bf16.mxu0 %v386
    %506 = vmatpush1.bf16.msra.mxu0 %v385
    %507 = vmatprep.subr.bf16.mxu0 %v390
    %508 = vmatpush1.bf16.msra.mxu0 %v389
    %509 = vmatprep.subr.bf16.mxu0 %v394
    %510 = vmatpush1.bf16.msra.mxu0 %v393
    %511 = vmatprep.subr.bf16.mxu0 %v398
    %512 = vmatpush1.bf16.msra.mxu0 %v397
    %513 = vmatprep.subr.bf16.mxu0 %v402
    %514 = vmatpush1.bf16.msra.mxu0 %v401
    %515 = vmatprep.subr.bf16.mxu0 %v406
    %516 = vmatpush1.bf16.msra.mxu0 %v405
    %517 = vmatprep.subr.bf16.mxu0 %v410
    %518 = vmatpush1.bf16.msra.mxu0 %v409
    %519 = vmatprep.subr.bf16.mxu0 %v414
    %520 = vmatpush1.bf16.msra.mxu0 %v413
    %521 = vmatprep.subr.bf16.mxu0 %v418
    %522 = vmatpush1.bf16.msra.mxu0 %v417
    %523 = vmatprep.subr.bf16.mxu0 %v422
    %524 = vmatpush1.bf16.msra.mxu0 %v421
    %525 = vmatprep.subr.bf16.mxu0 %v426
    %526 = vmatpush1.bf16.msra.mxu0 %v425
    %527 = vmatprep.subr.bf16.mxu0 %v430
    %528 = vmatpush1.bf16.msra.mxu0 %v429
    %529 = vmatprep.mubr.bf16.mxu0 %v174
    %530 = vmatmul.mubr.bf16.gmra.mrb[0].mxu0 %v173
    %v531 = vpop.f32.mrb[0].mxu0
    %v532 = vadd.f32 %v153, %v531
    %v533 = vpop.f32.mrb[0].mxu0
    %v534 = vadd.f32 %v157, %v533
    %v535 = vpop.f32.mrb[0].mxu0
    %v536 = vpop.f32.mrb[0].mxu0
    %537 = vdwg.mxu0
    %538 = vmatprep.subr.bf16.mxu0 %v372
    %539 = vmatpush1.bf16.msra.mxu0 %v371
    %540 = vmatprep.subr.bf16.mxu0 %v376
    %541 = vmatpush1.bf16.msra.mxu0 %v375
    %542 = vmatprep.subr.bf16.mxu0 %v380
    %543 = vmatpush1.bf16.msra.mxu0 %v379
    %544 = vmatprep.subr.bf16.mxu0 %v384
    %545 = vmatpush1.bf16.msra.mxu0 %v383
    %546 = vmatprep.subr.bf16.mxu0 %v388
    %547 = vmatpush1.bf16.msra.mxu0 %v387
    %548 = vmatprep.subr.bf16.mxu0 %v392
    %549 = vmatpush1.bf16.msra.mxu0 %v391
    %550 = vmatprep.subr.bf16.mxu0 %v396
    %551 = vmatpush1.bf16.msra.mxu0 %v395
    %552 = vmatprep.subr.bf16.mxu0 %v400
    %553 = vmatpush1.bf16.msra.mxu0 %v399
    %554 = vmatprep.subr.bf16.mxu0 %v404
    %555 = vmatpush1.bf16.msra.mxu0 %v403
    %556 = vmatprep.subr.bf16.mxu0 %v408
    %557 = vmatpush1.bf16.msra.mxu0 %v407
    %558 = vmatprep.subr.bf16.mxu0 %v412
    %559 = vmatpush1.bf16.msra.mxu0 %v411
    %560 = vmatprep.subr.bf16.mxu0 %v416
    %561 = vmatpush1.bf16.msra.mxu0 %v415
    %562 = vmatprep.subr.bf16.mxu0 %v420
    %563 = vmatpush1.bf16.msra.mxu0 %v419
    %564 = vmatprep.subr.bf16.mxu0 %v424
    %565 = vmatpush1.bf16.msra.mxu0 %v423
    %566 = vmatprep.subr.bf16.mxu0 %v428
    %567 = vmatpush1.bf16.msra.mxu0 %v427
    %568 = vmatprep.subr.bf16.mxu0 %v432
    %569 = vmatpush1.bf16.msra.mxu0 %v431
    %570 = vmatprep.mubr.bf16.mxu0 %v174
    %571 = vmatmul.mubr.bf16.gmra.mrb[0].mxu0 %v173
    %v572 = vpop.f32.mrb[0].mxu0
    %v573 = vadd.f32 %v161, %v572
    %v574 = vpop.f32.mrb[0].mxu0
    %v575 = vadd.f32 %v165, %v574
    %v576 = vpop.f32.mrb[0].mxu0
    %v577 = vpop.f32.mrb[0].mxu0
    %578 = vdwg.mxu0
    %v579 = vld [vmem:[#allocation5 + $0x10] sm:$0xff]
    %v580 = vld [vmem:[#allocation5 + $0x18] sm:$0xff]
    %v581 = vld [vmem:[#allocation5 + $0x90] sm:$0xff]
    %v582 = vld [vmem:[#allocation5 + $0x98] sm:$0xff]
    %v583 = vld [vmem:[#allocation5 + $0x110] sm:$0xff]
    %v584 = vld [vmem:[#allocation5 + $0x118] sm:$0xff]
    %v585 = vld [vmem:[#allocation5 + $0x190] sm:$0xff]
    %v586 = vld [vmem:[#allocation5 + $0x198] sm:$0xff]
    %v587 = vld [vmem:[#allocation5 + $0x210] sm:$0xff]
    %v588 = vld [vmem:[#allocation5 + $0x218] sm:$0xff]
    %v589 = vld [vmem:[#allocation5 + $0x290] sm:$0xff]
    %v590 = vld [vmem:[#allocation5 + $0x298] sm:$0xff]
    %v591 = vld [vmem:[#allocation5 + $0x310] sm:$0xff]
    %v592 = vld [vmem:[#allocation5 + $0x318] sm:$0xff]
    %v593 = vld [vmem:[#allocation5 + $0x390] sm:$0xff]
    %v594 = vld [vmem:[#allocation5 + $0x398] sm:$0xff]
    %v595 = vld [vmem:[#allocation5 + $0x410] sm:$0xff]
    %v596 = vld [vmem:[#allocation5 + $0x418] sm:$0xff]
    %v597 = vld [vmem:[#allocation5 + $0x490] sm:$0xff]
    %v598 = vld [vmem:[#allocation5 + $0x498] sm:$0xff]
    %v599 = vld [vmem:[#allocation5 + $0x510] sm:$0xff]
    %v600 = vld [vmem:[#allocation5 + $0x518] sm:$0xff]
    %v601 = vld [vmem:[#allocation5 + $0x590] sm:$0xff]
    %v602 = vld [vmem:[#allocation5 + $0x598] sm:$0xff]
    %v603 = vld [vmem:[#allocation5 + $0x610] sm:$0xff]
    %v604 = vld [vmem:[#allocation5 + $0x618] sm:$0xff]
    %v605 = vld [vmem:[#allocation5 + $0x690] sm:$0xff]
    %v606 = vld [vmem:[#allocation5 + $0x698] sm:$0xff]
    %v607 = vld [vmem:[#allocation5 + $0x710] sm:$0xff]
    %v608 = vld [vmem:[#allocation5 + $0x718] sm:$0xff]
    %v609 = vld [vmem:[#allocation5 + $0x790] sm:$0xff]
    %v610 = vld [vmem:[#allocation5 + $0x798] sm:$0xff]
    %v611 = vld [vmem:[#allocation5 + $0x810] sm:$0xff]
    %v612 = vld [vmem:[#allocation5 + $0x818] sm:$0xff]
    %v613 = vld [vmem:[#allocation5 + $0x890] sm:$0xff]
    %v614 = vld [vmem:[#allocation5 + $0x898] sm:$0xff]
    %v615 = vld [vmem:[#allocation5 + $0x910] sm:$0xff]
    %v616 = vld [vmem:[#allocation5 + $0x918] sm:$0xff]
    %v617 = vld [vmem:[#allocation5 + $0x990] sm:$0xff]
    %v618 = vld [vmem:[#allocation5 + $0x998] sm:$0xff]
    %v619 = vld [vmem:[#allocation5 + $0xa10] sm:$0xff]
    %v620 = vld [vmem:[#allocation5 + $0xa18] sm:$0xff]
    %v621 = vld [vmem:[#allocation5 + $0xa90] sm:$0xff]
    %v622 = vld [vmem:[#allocation5 + $0xa98] sm:$0xff]
    %v623 = vld [vmem:[#allocation5 + $0xb10] sm:$0xff]
    %v624 = vld [vmem:[#allocation5 + $0xb18] sm:$0xff]
    %v625 = vld [vmem:[#allocation5 + $0xb90] sm:$0xff]
    %v626 = vld [vmem:[#allocation5 + $0xb98] sm:$0xff]
    %v627 = vld [vmem:[#allocation5 + $0xc10] sm:$0xff]
    %v628 = vld [vmem:[#allocation5 + $0xc18] sm:$0xff]
    %v629 = vld [vmem:[#allocation5 + $0xc90] sm:$0xff]
    %v630 = vld [vmem:[#allocation5 + $0xc98] sm:$0xff]
    %v631 = vld [vmem:[#allocation5 + $0xd10] sm:$0xff]
    %v632 = vld [vmem:[#allocation5 + $0xd18] sm:$0xff]
    %v633 = vld [vmem:[#allocation5 + $0xd90] sm:$0xff]
    %v634 = vld [vmem:[#allocation5 + $0xd98] sm:$0xff]
    %v635 = vld [vmem:[#allocation5 + $0xe10] sm:$0xff]
    %v636 = vld [vmem:[#allocation5 + $0xe18] sm:$0xff]
    %v637 = vld [vmem:[#allocation5 + $0xe90] sm:$0xff]
    %v638 = vld [vmem:[#allocation5 + $0xe98] sm:$0xff]
    %v639 = vld [vmem:[#allocation5 + $0xf10] sm:$0xff]
    %v640 = vld [vmem:[#allocation5 + $0xf18] sm:$0xff]
    %v641 = vld [vmem:[#allocation5 + $0xf90] sm:$0xff]
    %v642 = vld [vmem:[#allocation5 + $0xf98] sm:$0xff]
    %v643 = vld [vmem:[#allocation7 + $0x4] sm:$0xf]
    %v645 = vlaneseq
    %v646 = vshrl.u32 %v645, 7
    %v647 = vsub.s32 0, %v646
    %v648 = vrot.slane %v643, %v647
    %v649 = vlaneseq
    %v650 = vshrl.u32 %v649, 7
    %v651 = vsub.s32 1, %v650
    %v652 = vrot.slane %v643, %v651
    %v653 = vlaneseq
    %v654 = vshrl.u32 %v653, 7
    %v655 = vsub.s32 2, %v654
    %v656 = vrot.slane %v643, %v655
    %v657 = vlaneseq
    %v658 = vshrl.u32 %v657, 7
    %v659 = vsub.s32 3, %v658
    %v660 = vrot.slane %v643, %v659
    %v729 = vunpack.c.l.b16 %v579
    %v730 = vunpack.c.h.b16 %v579
    %v731 = vunpack.c.l.b16 %v580
    %v732 = vunpack.c.h.b16 %v580
    %v733 = vunpack.c.l.b16 %v581
    %v734 = vunpack.c.h.b16 %v581
    %v735 = vunpack.c.l.b16 %v582
    %v736 = vunpack.c.h.b16 %v582
    %v737 = vunpack.c.l.b16 %v583
    %v738 = vunpack.c.h.b16 %v583
    %v739 = vunpack.c.l.b16 %v584
    %v740 = vunpack.c.h.b16 %v584
    %v741 = vunpack.c.l.b16 %v585
    %v742 = vunpack.c.h.b16 %v585
    %v743 = vunpack.c.l.b16 %v586
    %v744 = vunpack.c.h.b16 %v586
    %v745 = vunpack.c.l.b16 %v587
    %v746 = vunpack.c.h.b16 %v587
    %v747 = vunpack.c.l.b16 %v588
    %v748 = vunpack.c.h.b16 %v588
    %v749 = vunpack.c.l.b16 %v589
    %v750 = vunpack.c.h.b16 %v589
    %v751 = vunpack.c.l.b16 %v590
    %v752 = vunpack.c.h.b16 %v590
    %v753 = vunpack.c.l.b16 %v591
    %v754 = vunpack.c.h.b16 %v591
    %v755 = vunpack.c.l.b16 %v592
    %v756 = vunpack.c.h.b16 %v592
    %v757 = vunpack.c.l.b16 %v593
    %v758 = vunpack.c.h.b16 %v593
    %v759 = vunpack.c.l.b16 %v594
    %v760 = vunpack.c.h.b16 %v594
    %v761 = vunpack.c.l.b16 %v595
    %v762 = vunpack.c.h.b16 %v595
    %v763 = vunpack.c.l.b16 %v596
    %v764 = vunpack.c.h.b16 %v596
    %v765 = vunpack.c.l.b16 %v597
    %v766 = vunpack.c.h.b16 %v597
    %v767 = vunpack.c.l.b16 %v598
    %v768 = vunpack.c.h.b16 %v598
    %v769 = vunpack.c.l.b16 %v599
    %v770 = vunpack.c.h.b16 %v599
    %v771 = vunpack.c.l.b16 %v600
    %v772 = vunpack.c.h.b16 %v600
    %v773 = vunpack.c.l.b16 %v601
    %v774 = vunpack.c.h.b16 %v601
    %v775 = vunpack.c.l.b16 %v602
    %v776 = vunpack.c.h.b16 %v602
    %v777 = vunpack.c.l.b16 %v603
    %v778 = vunpack.c.h.b16 %v603
    %v779 = vunpack.c.l.b16 %v604
    %v780 = vunpack.c.h.b16 %v604
    %v781 = vunpack.c.l.b16 %v605
    %v782 = vunpack.c.h.b16 %v605
    %v783 = vunpack.c.l.b16 %v606
    %v784 = vunpack.c.h.b16 %v606
    %v785 = vunpack.c.l.b16 %v607
    %v786 = vunpack.c.h.b16 %v607
    %v787 = vunpack.c.l.b16 %v608
    %v788 = vunpack.c.h.b16 %v608
    %v789 = vunpack.c.l.b16 %v609
    %v790 = vunpack.c.h.b16 %v609
    %v791 = vunpack.c.l.b16 %v610
    %v792 = vunpack.c.h.b16 %v610
    %v793 = vunpack.c.l.b16 %v611
    %v794 = vunpack.c.h.b16 %v611
    %v795 = vunpack.c.l.b16 %v612
    %v796 = vunpack.c.h.b16 %v612
    %v797 = vunpack.c.l.b16 %v613
    %v798 = vunpack.c.h.b16 %v613
    %v799 = vunpack.c.l.b16 %v614
    %v800 = vunpack.c.h.b16 %v614
    %v801 = vunpack.c.l.b16 %v615
    %v802 = vunpack.c.h.b16 %v615
    %v803 = vunpack.c.l.b16 %v616
    %v804 = vunpack.c.h.b16 %v616
    %v805 = vunpack.c.l.b16 %v617
    %v806 = vunpack.c.h.b16 %v617
    %v807 = vunpack.c.l.b16 %v618
    %v808 = vunpack.c.h.b16 %v618
    %v809 = vunpack.c.l.b16 %v619
    %v810 = vunpack.c.h.b16 %v619
    %v811 = vunpack.c.l.b16 %v620
    %v812 = vunpack.c.h.b16 %v620
    %v813 = vunpack.c.l.b16 %v621
    %v814 = vunpack.c.h.b16 %v621
    %v815 = vunpack.c.l.b16 %v622
    %v816 = vunpack.c.h.b16 %v622
    %v817 = vunpack.c.l.b16 %v623
    %v818 = vunpack.c.h.b16 %v623
    %v819 = vunpack.c.l.b16 %v624
    %v820 = vunpack.c.h.b16 %v624
    %v821 = vunpack.c.l.b16 %v625
    %v822 = vunpack.c.h.b16 %v625
    %v823 = vunpack.c.l.b16 %v626
    %v824 = vunpack.c.h.b16 %v626
    %v825 = vunpack.c.l.b16 %v627
    %v826 = vunpack.c.h.b16 %v627
    %v827 = vunpack.c.l.b16 %v628
    %v828 = vunpack.c.h.b16 %v628
    %v829 = vunpack.c.l.b16 %v629
    %v830 = vunpack.c.h.b16 %v629
    %v831 = vunpack.c.l.b16 %v630
    %v832 = vunpack.c.h.b16 %v630
    %v833 = vunpack.c.l.b16 %v631
    %v834 = vunpack.c.h.b16 %v631
    %v835 = vunpack.c.l.b16 %v632
    %v836 = vunpack.c.h.b16 %v632
    %v837 = vunpack.c.l.b16 %v633
    %v838 = vunpack.c.h.b16 %v633
    %v839 = vunpack.c.l.b16 %v634
    %v840 = vunpack.c.h.b16 %v634
    %v841 = vunpack.c.l.b16 %v635
    %v842 = vunpack.c.h.b16 %v635
    %v843 = vunpack.c.l.b16 %v636
    %v844 = vunpack.c.h.b16 %v636
    %v845 = vunpack.c.l.b16 %v637
    %v846 = vunpack.c.h.b16 %v637
    %v847 = vunpack.c.l.b16 %v638
    %v848 = vunpack.c.h.b16 %v638
    %v849 = vunpack.c.l.b16 %v639
    %v850 = vunpack.c.h.b16 %v639
    %v851 = vunpack.c.l.b16 %v640
    %v852 = vunpack.c.h.b16 %v640
    %v853 = vunpack.c.l.b16 %v641
    %v854 = vunpack.c.h.b16 %v641
    %v855 = vunpack.c.l.b16 %v642
    %v856 = vunpack.c.h.b16 %v642
    %v857 = vpack.c.b16 %v733, %v729
    %v858 = vpack.c.b16 %v734, %v730
    %v859 = vpack.c.b16 %v735, %v731
    %v860 = vpack.c.b16 %v736, %v732
    %v861 = vpack.c.b16 %v741, %v737
    %v862 = vpack.c.b16 %v742, %v738
    %v863 = vpack.c.b16 %v743, %v739
    %v864 = vpack.c.b16 %v744, %v740
    %v865 = vpack.c.b16 %v749, %v745
    %v866 = vpack.c.b16 %v750, %v746
    %v867 = vpack.c.b16 %v751, %v747
    %v868 = vpack.c.b16 %v752, %v748
    %v869 = vpack.c.b16 %v757, %v753
    %v870 = vpack.c.b16 %v758, %v754
    %v871 = vpack.c.b16 %v759, %v755
    %v872 = vpack.c.b16 %v760, %v756
    %v873 = vpack.c.b16 %v765, %v761
    %v874 = vpack.c.b16 %v766, %v762
    %v875 = vpack.c.b16 %v767, %v763
    %v876 = vpack.c.b16 %v768, %v764
    %v877 = vpack.c.b16 %v773, %v769
    %v878 = vpack.c.b16 %v774, %v770
    %v879 = vpack.c.b16 %v775, %v771
    %v880 = vpack.c.b16 %v776, %v772
    %v881 = vpack.c.b16 %v781, %v777
    %v882 = vpack.c.b16 %v782, %v778
    %v883 = vpack.c.b16 %v783, %v779
    %v884 = vpack.c.b16 %v784, %v780
    %v885 = vpack.c.b16 %v789, %v785
    %v886 = vpack.c.b16 %v790, %v786
    %v887 = vpack.c.b16 %v791, %v787
    %v888 = vpack.c.b16 %v792, %v788
    %v889 = vpack.c.b16 %v797, %v793
    %v890 = vpack.c.b16 %v798, %v794
    %v891 = vpack.c.b16 %v799, %v795
    %v892 = vpack.c.b16 %v800, %v796
    %v893 = vpack.c.b16 %v805, %v801
    %v894 = vpack.c.b16 %v806, %v802
    %v895 = vpack.c.b16 %v807, %v803
    %v896 = vpack.c.b16 %v808, %v804
    %v897 = vpack.c.b16 %v813, %v809
    %v898 = vpack.c.b16 %v814, %v810
    %v899 = vpack.c.b16 %v815, %v811
    %v900 = vpack.c.b16 %v816, %v812
    %v901 = vpack.c.b16 %v821, %v817
    %v902 = vpack.c.b16 %v822, %v818
    %v903 = vpack.c.b16 %v823, %v819
    %v904 = vpack.c.b16 %v824, %v820
    %v905 = vpack.c.b16 %v829, %v825
    %v906 = vpack.c.b16 %v830, %v826
    %v907 = vpack.c.b16 %v831, %v827
    %v908 = vpack.c.b16 %v832, %v828
    %v909 = vpack.c.b16 %v837, %v833
    %v910 = vpack.c.b16 %v838, %v834
    %v911 = vpack.c.b16 %v839, %v835
    %v912 = vpack.c.b16 %v840, %v836
    %v913 = vpack.c.b16 %v845, %v841
    %v914 = vpack.c.b16 %v846, %v842
    %v915 = vpack.c.b16 %v847, %v843
    %v916 = vpack.c.b16 %v848, %v844
    %v917 = vpack.c.b16 %v853, %v849
    %v918 = vpack.c.b16 %v854, %v850
    %v919 = vpack.c.b16 %v855, %v851
    %v920 = vpack.c.b16 %v856, %v852
    %985 = vmatprep.subr.bf16.mxu0 %v858
    %986 = vmatpush1.bf16.msra.mxu0 %v857
    %987 = vmatprep.subr.bf16.mxu0 %v862
    %988 = vmatpush1.bf16.msra.mxu0 %v861
    %989 = vmatprep.subr.bf16.mxu0 %v866
    %990 = vmatpush1.bf16.msra.mxu0 %v865
    %991 = vmatprep.subr.bf16.mxu0 %v870
    %992 = vmatpush1.bf16.msra.mxu0 %v869
    %993 = vmatprep.subr.bf16.mxu0 %v874
    %994 = vmatpush1.bf16.msra.mxu0 %v873
    %995 = vmatprep.subr.bf16.mxu0 %v878
    %996 = vmatpush1.bf16.msra.mxu0 %v877
    %997 = vmatprep.subr.bf16.mxu0 %v882
    %998 = vmatpush1.bf16.msra.mxu0 %v881
    %999 = vmatprep.subr.bf16.mxu0 %v886
    %1000 = vmatpush1.bf16.msra.mxu0 %v885
    %1001 = vmatprep.subr.bf16.mxu0 %v890
    %1002 = vmatpush1.bf16.msra.mxu0 %v889
    %1003 = vmatprep.subr.bf16.mxu0 %v894
    %1004 = vmatpush1.bf16.msra.mxu0 %v893
    %1005 = vmatprep.subr.bf16.mxu0 %v898
    %1006 = vmatpush1.bf16.msra.mxu0 %v897
    %1007 = vmatprep.subr.bf16.mxu0 %v902
    %1008 = vmatpush1.bf16.msra.mxu0 %v901
    %1009 = vmatprep.subr.bf16.mxu0 %v906
    %1010 = vmatpush1.bf16.msra.mxu0 %v905
    %1011 = vmatprep.subr.bf16.mxu0 %v910
    %1012 = vmatpush1.bf16.msra.mxu0 %v909
    %1013 = vmatprep.subr.bf16.mxu0 %v914
    %1014 = vmatpush1.bf16.msra.mxu0 %v913
    %1015 = vmatprep.subr.bf16.mxu0 %v918
    %1016 = vmatpush1.bf16.msra.mxu0 %v917
    %1017 = vmatprep.mubr.bf16.mxu0 %v174
    %1018 = vmatmul.mubr.bf16.gmra.mrb[0].mxu0 %v173
    %v1019 = vpop.f32.mrb[0].mxu0
    %v1020 = vadd.f32 %v648, %v1019
    %v1021 = vpop.f32.mrb[0].mxu0
    %v1022 = vadd.f32 %v652, %v1021
    %v1023 = vpop.f32.mrb[0].mxu0
    %v1024 = vpop.f32.mrb[0].mxu0
    %1025 = vdwg.mxu0
    %1026 = vmatprep.subr.bf16.mxu0 %v860
    %1027 = vmatpush1.bf16.msra.mxu0 %v859
    %1028 = vmatprep.subr.bf16.mxu0 %v864
    %1029 = vmatpush1.bf16.msra.mxu0 %v863
    %1030 = vmatprep.subr.bf16.mxu0 %v868
    %1031 = vmatpush1.bf16.msra.mxu0 %v867
    %1032 = vmatprep.subr.bf16.mxu0 %v872
    %1033 = vmatpush1.bf16.msra.mxu0 %v871
    %1034 = vmatprep.subr.bf16.mxu0 %v876
    %1035 = vmatpush1.bf16.msra.mxu0 %v875
    %1036 = vmatprep.subr.bf16.mxu0 %v880
    %1037 = vmatpush1.bf16.msra.mxu0 %v879
    %1038 = vmatprep.subr.bf16.mxu0 %v884
    %1039 = vmatpush1.bf16.msra.mxu0 %v883
    %1040 = vmatprep.subr.bf16.mxu0 %v888
    %1041 = vmatpush1.bf16.msra.mxu0 %v887
    %1042 = vmatprep.subr.bf16.mxu0 %v892
    %1043 = vmatpush1.bf16.msra.mxu0 %v891
    %1044 = vmatprep.subr.bf16.mxu0 %v896
    %1045 = vmatpush1.bf16.msra.mxu0 %v895
    %1046 = vmatprep.subr.bf16.mxu0 %v900
    %1047 = vmatpush1.bf16.msra.mxu0 %v899
    %1048 = vmatprep.subr.bf16.mxu0 %v904
    %1049 = vmatpush1.bf16.msra.mxu0 %v903
    %1050 = vmatprep.subr.bf16.mxu0 %v908
    %1051 = vmatpush1.bf16.msra.mxu0 %v907
    %1052 = vmatprep.subr.bf16.mxu0 %v912
    %1053 = vmatpush1.bf16.msra.mxu0 %v911
    %1054 = vmatprep.subr.bf16.mxu0 %v916
    %1055 = vmatpush1.bf16.msra.mxu0 %v915
    %1056 = vmatprep.subr.bf16.mxu0 %v920
    %1057 = vmatpush1.bf16.msra.mxu0 %v919
    %1058 = vmatprep.mubr.bf16.mxu0 %v174
    %1059 = vmatmul.mubr.bf16.gmra.mrb[0].mxu0 %v173
    %v1060 = vpop.f32.mrb[0].mxu0
    %v1061 = vadd.f32 %v656, %v1060
    %v1062 = vpop.f32.mrb[0].mxu0
    %v1063 = vadd.f32 %v660, %v1062
    %v1064 = vpop.f32.mrb[0].mxu0
    %v1065 = vpop.f32.mrb[0].mxu0
    %1066 = vdwg.mxu0
    %v1067 = vmax.f32 %v532, %v1020
    %v1068 = vmax.f32 %v534, %v1022
    %v1069 = vmax.f32 %v573, %v1061
    %v1070 = vmax.f32 %v575, %v1063
    %v1071 = vld [vmem:[#allocation5 + $0x20] sm:$0xff]
    %v1072 = vld [vmem:[#allocation5 + $0x28] sm:$0xff]
    %v1073 = vld [vmem:[#allocation5 + $0xa0] sm:$0xff]
    %v1074 = vld [vmem:[#allocation5 + $0xa8] sm:$0xff]
    %v1075 = vld [vmem:[#allocation5 + $0x120] sm:$0xff]
    %v1076 = vld [vmem:[#allocation5 + $0x128] sm:$0xff]
    %v1077 = vld [vmem:[#allocation5 + $0x1a0] sm:$0xff]
    %v1078 = vld [vmem:[#allocation5 + $0x1a8] sm:$0xff]
    %v1079 = vld [vmem:[#allocation5 + $0x220] sm:$0xff]
    %v1080 = vld [vmem:[#allocation5 + $0x228] sm:$0xff]
    %v1081 = vld [vmem:[#allocation5 + $0x2a0] sm:$0xff]
    %v1082 = vld [vmem:[#allocation5 + $0x2a8] sm:$0xff]
    %v1083 = vld [vmem:[#allocation5 + $0x320] sm:$0xff]
    %v1084 = vld [vmem:[#allocation5 + $0x328] sm:$0xff]
    %v1085 = vld [vmem:[#allocation5 + $0x3a0] sm:$0xff]
    %v1086 = vld [vmem:[#allocation5 + $0x3a8] sm:$0xff]
    %v1087 = vld [vmem:[#allocation5 + $0x420] sm:$0xff]
    %v1088 = vld [vmem:[#allocation5 + $0x428] sm:$0xff]
    %v1089 = vld [vmem:[#allocation5 + $0x4a0] sm:$0xff]
    %v1090 = vld [vmem:[#allocation5 + $0x4a8] sm:$0xff]
    %v1091 = vld [vmem:[#allocation5 + $0x520] sm:$0xff]
    %v1092 = vld [vmem:[#allocation5 + $0x528] sm:$0xff]
    %v1093 = vld [vmem:[#allocation5 + $0x5a0] sm:$0xff]
    %v1094 = vld [vmem:[#allocation5 + $0x5a8] sm:$0xff]
    %v1095 = vld [vmem:[#allocation5 + $0x620] sm:$0xff]
    %v1096 = vld [vmem:[#allocation5 + $0x628] sm:$0xff]
    %v1097 = vld [vmem:[#allocation5 + $0x6a0] sm:$0xff]
    %v1098 = vld [vmem:[#allocation5 + $0x6a8] sm:$0xff]
    %v1099 = vld [vmem:[#allocation5 + $0x720] sm:$0xff]
    %v1100 = vld [vmem:[#allocation5 + $0x728] sm:$0xff]
    %v1101 = vld [vmem:[#allocation5 + $0x7a0] sm:$0xff]
    %v1102 = vld [vmem:[#allocation5 + $0x7a8] sm:$0xff]
    %v1103 = vld [vmem:[#allocation5 + $0x820] sm:$0xff]
    %v1104 = vld [vmem:[#allocation5 + $0x828] sm:$0xff]
    %v1105 = vld [vmem:[#allocation5 + $0x8a0] sm:$0xff]
    %v1106 = vld [vmem:[#allocation5 + $0x8a8] sm:$0xff]
    %v1107 = vld [vmem:[#allocation5 + $0x920] sm:$0xff]
    %v1108 = vld [vmem:[#allocation5 + $0x928] sm:$0xff]
    %v1109 = vld [vmem:[#allocation5 + $0x9a0] sm:$0xff]
    %v1110 = vld [vmem:[#allocation5 + $0x9a8] sm:$0xff]
    %v1111 = vld [vmem:[#allocation5 + $0xa20] sm:$0xff]
    %v1112 = vld [vmem:[#allocation5 + $0xa28] sm:$0xff]
    %v1113 = vld [vmem:[#allocation5 + $0xaa0] sm:$0xff]
    %v1114 = vld [vmem:[#allocation5 + $0xaa8] sm:$0xff]
    %v1115 = vld [vmem:[#allocation5 + $0xb20] sm:$0xff]
    %v1116 = vld [vmem:[#allocation5 + $0xb28] sm:$0xff]
    %v1117 = vld [vmem:[#allocation5 + $0xba0] sm:$0xff]
    %v1118 = vld [vmem:[#allocation5 + $0xba8] sm:$0xff]
    %v1119 = vld [vmem:[#allocation5 + $0xc20] sm:$0xff]
    %v1120 = vld [vmem:[#allocation5 + $0xc28] sm:$0xff]
    %v1121 = vld [vmem:[#allocation5 + $0xca0] sm:$0xff]
    %v1122 = vld [vmem:[#allocation5 + $0xca8] sm:$0xff]
    %v1123 = vld [vmem:[#allocation5 + $0xd20] sm:$0xff]
    %v1124 = vld [vmem:[#allocation5 + $0xd28] sm:$0xff]
    %v1125 = vld [vmem:[#allocation5 + $0xda0] sm:$0xff]
    %v1126 = vld [vmem:[#allocation5 + $0xda8] sm:$0xff]
    %v1127 = vld [vmem:[#allocation5 + $0xe20] sm:$0xff]
    %v1128 = vld [vmem:[#allocation5 + $0xe28] sm:$0xff]
    %v1129 = vld [vmem:[#allocation5 + $0xea0] sm:$0xff]
    %v1130 = vld [vmem:[#allocation5 + $0xea8] sm:$0xff]
    %v1131 = vld [vmem:[#allocation5 + $0xf20] sm:$0xff]
    %v1132 = vld [vmem:[#allocation5 + $0xf28] sm:$0xff]
    %v1133 = vld [vmem:[#allocation5 + $0xfa0] sm:$0xff]
    %v1134 = vld [vmem:[#allocation5 + $0xfa8] sm:$0xff]
    %v1135 = vld [vmem:[#allocation7 + $0x8] sm:$0xf]
    %v1137 = vlaneseq
    %v1138 = vshrl.u32 %v1137, 7
    %v1139 = vsub.s32 0, %v1138
    %v1140 = vrot.slane %v1135, %v1139
    %v1141 = vlaneseq
    %v1142 = vshrl.u32 %v1141, 7
    %v1143 = vsub.s32 1, %v1142
    %v1144 = vrot.slane %v1135, %v1143
    %v1145 = vlaneseq
    %v1146 = vshrl.u32 %v1145, 7
    %v1147 = vsub.s32 2, %v1146
    %v1148 = vrot.slane %v1135, %v1147
    %v1149 = vlaneseq
    %v1150 = vshrl.u32 %v1149, 7
    %v1151 = vsub.s32 3, %v1150
    %v1152 = vrot.slane %v1135, %v1151
    %v1221 = vunpack.c.l.b16 %v1071
    %v1222 = vunpack.c.h.b16 %v1071
    %v1223 = vunpack.c.l.b16 %v1072
    %v1224 = vunpack.c.h.b16 %v1072
    %v1225 = vunpack.c.l.b16 %v1073
    %v1226 = vunpack.c.h.b16 %v1073
    %v1227 = vunpack.c.l.b16 %v1074
    %v1228 = vunpack.c.h.b16 %v1074
    %v1229 = vunpack.c.l.b16 %v1075
    %v1230 = vunpack.c.h.b16 %v1075
    %v1231 = vunpack.c.l.b16 %v1076
    %v1232 = vunpack.c.h.b16 %v1076
    %v1233 = vunpack.c.l.b16 %v1077
    %v1234 = vunpack.c.h.b16 %v1077
    %v1235 = vunpack.c.l.b16 %v1078
    %v1236 = vunpack.c.h.b16 %v1078
    %v1237 = vunpack.c.l.b16 %v1079
    %v1238 = vunpack.c.h.b16 %v1079
    %v1239 = vunpack.c.l.b16 %v1080
    %v1240 = vunpack.c.h.b16 %v1080
    %v1241 = vunpack.c.l.b16 %v1081
    %v1242 = vunpack.c.h.b16 %v1081
    %v1243 = vunpack.c.l.b16 %v1082
    %v1244 = vunpack.c.h.b16 %v1082
    %v1245 = vunpack.c.l.b16 %v1083
    %v1246 = vunpack.c.h.b16 %v1083
    %v1247 = vunpack.c.l.b16 %v1084
    %v1248 = vunpack.c.h.b16 %v1084
    %v1249 = vunpack.c.l.b16 %v1085
    %v1250 = vunpack.c.h.b16 %v1085
    %v1251 = vunpack.c.l.b16 %v1086
    %v1252 = vunpack.c.h.b16 %v1086
    %v1253 = vunpack.c.l.b16 %v1087
    %v1254 = vunpack.c.h.b16 %v1087
    %v1255 = vunpack.c.l.b16 %v1088
    %v1256 = vunpack.c.h.b16 %v1088
    %v1257 = vunpack.c.l.b16 %v1089
    %v1258 = vunpack.c.h.b16 %v1089
    %v1259 = vunpack.c.l.b16 %v1090
    %v1260 = vunpack.c.h.b16 %v1090
    %v1261 = vunpack.c.l.b16 %v1091
    %v1262 = vunpack.c.h.b16 %v1091
    %v1263 = vunpack.c.l.b16 %v1092
    %v1264 = vunpack.c.h.b16 %v1092
    %v1265 = vunpack.c.l.b16 %v1093
    %v1266 = vunpack.c.h.b16 %v1093
    %v1267 = vunpack.c.l.b16 %v1094
    %v1268 = vunpack.c.h.b16 %v1094
    %v1269 = vunpack.c.l.b16 %v1095
    %v1270 = vunpack.c.h.b16 %v1095
    %v1271 = vunpack.c.l.b16 %v1096
    %v1272 = vunpack.c.h.b16 %v1096
    %v1273 = vunpack.c.l.b16 %v1097
    %v1274 = vunpack.c.h.b16 %v1097
    %v1275 = vunpack.c.l.b16 %v1098
    %v1276 = vunpack.c.h.b16 %v1098
    %v1277 = vunpack.c.l.b16 %v1099
    %v1278 = vunpack.c.h.b16 %v1099
    %v1279 = vunpack.c.l.b16 %v1100
    %v1280 = vunpack.c.h.b16 %v1100
    %v1281 = vunpack.c.l.b16 %v1101
    %v1282 = vunpack.c.h.b16 %v1101
    %v1283 = vunpack.c.l.b16 %v1102
    %v1284 = vunpack.c.h.b16 %v1102
    %v1285 = vunpack.c.l.b16 %v1103
    %v1286 = vunpack.c.h.b16 %v1103
    %v1287 = vunpack.c.l.b16 %v1104
    %v1288 = vunpack.c.h.b16 %v1104
    %v1289 = vunpack.c.l.b16 %v1105
    %v1290 = vunpack.c.h.b16 %v1105
    %v1291 = vunpack.c.l.b16 %v1106
    %v1292 = vunpack.c.h.b16 %v1106
    %v1293 = vunpack.c.l.b16 %v1107
    %v1294 = vunpack.c.h.b16 %v1107
    %v1295 = vunpack.c.l.b16 %v1108
    %v1296 = vunpack.c.h.b16 %v1108
    %v1297 = vunpack.c.l.b16 %v1109
    %v1298 = vunpack.c.h.b16 %v1109
    %v1299 = vunpack.c.l.b16 %v1110
    %v1300 = vunpack.c.h.b16 %v1110
    %v1301 = vunpack.c.l.b16 %v1111
    %v1302 = vunpack.c.h.b16 %v1111
    %v1303 = vunpack.c.l.b16 %v1112
    %v1304 = vunpack.c.h.b16 %v1112
    %v1305 = vunpack.c.l.b16 %v1113
    %v1306 = vunpack.c.h.b16 %v1113
    %v1307 = vunpack.c.l.b16 %v1114
    %v1308 = vunpack.c.h.b16 %v1114
    %v1309 = vunpack.c.l.b16 %v1115
    %v1310 = vunpack.c.h.b16 %v1115
    %v1311 = vunpack.c.l.b16 %v1116
    %v1312 = vunpack.c.h.b16 %v1116
    %v1313 = vunpack.c.l.b16 %v1117
    %v1314 = vunpack.c.h.b16 %v1117
    %v1315 = vunpack.c.l.b16 %v1118
    %v1316 = vunpack.c.h.b16 %v1118
    %v1317 = vunpack.c.l.b16 %v1119
    %v1318 = vunpack.c.h.b16 %v1119
    %v1319 = vunpack.c.l.b16 %v1120
    %v1320 = vunpack.c.h.b16 %v1120
    %v1321 = vunpack.c.l.b16 %v1121
    %v1322 = vunpack.c.h.b16 %v1121
    %v1323 = vunpack.c.l.b16 %v1122
    %v1324 = vunpack.c.h.b16 %v1122
    %v1325 = vunpack.c.l.b16 %v1123
    %v1326 = vunpack.c.h.b16 %v1123
    %v1327 = vunpack.c.l.b16 %v1124
    %v1328 = vunpack.c.h.b16 %v1124
    %v1329 = vunpack.c.l.b16 %v1125
    %v1330 = vunpack.c.h.b16 %v1125
    %v1331 = vunpack.c.l.b16 %v1126
    %v1332 = vunpack.c.h.b16 %v1126
    %v1333 = vunpack.c.l.b16 %v1127
    %v1334 = vunpack.c.h.b16 %v1127
    %v1335 = vunpack.c.l.b16 %v1128
    %v1336 = vunpack.c.h.b16 %v1128
    %v1337 = vunpack.c.l.b16 %v1129
    %v1338 = vunpack.c.h.b16 %v1129
    %v1339 = vunpack.c.l.b16 %v1130
    %v1340 = vunpack.c.h.b16 %v1130
    %v1341 = vunpack.c.l.b16 %v1131
    %v1342 = vunpack.c.h.b16 %v1131
    %v1343 = vunpack.c.l.b16 %v1132
    %v1344 = vunpack.c.h.b16 %v1132
    %v1345 = vunpack.c.l.b16 %v1133
    %v1346 = vunpack.c.h.b16 %v1133
    %v1347 = vunpack.c.l.b16 %v1134
    %v1348 = vunpack.c.h.b16 %v1134
    %v1349 = vpack.c.b16 %v1225, %v1221
    %v1350 = vpack.c.b16 %v1226, %v1222
    %v1351 = vpack.c.b16 %v1227, %v1223
    %v1352 = vpack.c.b16 %v1228, %v1224
    %v1353 = vpack.c.b16 %v1233, %v1229
    %v1354 = vpack.c.b16 %v1234, %v1230
    %v1355 = vpack.c.b16 %v1235, %v1231
    %v1356 = vpack.c.b16 %v1236, %v1232
    %v1357 = vpack.c.b16 %v1241, %v1237
    %v1358 = vpack.c.b16 %v1242, %v1238
    %v1359 = vpack.c.b16 %v1243, %v1239
    %v1360 = vpack.c.b16 %v1244, %v1240
    %v1361 = vpack.c.b16 %v1249, %v1245
    %v1362 = vpack.c.b16 %v1250, %v1246
    %v1363 = vpack.c.b16 %v1251, %v1247
    %v1364 = vpack.c.b16 %v1252, %v1248
    %v1365 = vpack.c.b16 %v1257, %v1253
    %v1366 = vpack.c.b16 %v1258, %v1254
    %v1367 = vpack.c.b16 %v1259, %v1255
    %v1368 = vpack.c.b16 %v1260, %v1256
    %v1369 = vpack.c.b16 %v1265, %v1261
    %v1370 = vpack.c.b16 %v1266, %v1262
    %v1371 = vpack.c.b16 %v1267, %v1263
    %v1372 = vpack.c.b16 %v1268, %v1264
    %v1373 = vpack.c.b16 %v1273, %v1269
    %v1374 = vpack.c.b16 %v1274, %v1270
    %v1375 = vpack.c.b16 %v1275, %v1271
    %v1376 = vpack.c.b16 %v1276, %v1272
    %v1377 = vpack.c.b16 %v1281, %v1277
    %v1378 = vpack.c.b16 %v1282, %v1278
    %v1379 = vpack.c.b16 %v1283, %v1279
    %v1380 = vpack.c.b16 %v1284, %v1280
    %v1381 = vpack.c.b16 %v1289, %v1285
    %v1382 = vpack.c.b16 %v1290, %v1286
    %v1383 = vpack.c.b16 %v1291, %v1287
    %v1384 = vpack.c.b16 %v1292, %v1288
    %v1385 = vpack.c.b16 %v1297, %v1293
    %v1386 = vpack.c.b16 %v1298, %v1294
    %v1387 = vpack.c.b16 %v1299, %v1295
    %v1388 = vpack.c.b16 %v1300, %v1296
    %v1389 = vpack.c.b16 %v1305, %v1301
    %v1390 = vpack.c.b16 %v1306, %v1302
    %v1391 = vpack.c.b16 %v1307, %v1303
    %v1392 = vpack.c.b16 %v1308, %v1304
    %v1393 = vpack.c.b16 %v1313, %v1309
    %v1394 = vpack.c.b16 %v1314, %v1310
    %v1395 = vpack.c.b16 %v1315, %v1311
    %v1396 = vpack.c.b16 %v1316, %v1312
    %v1397 = vpack.c.b16 %v1321, %v1317
    %v1398 = vpack.c.b16 %v1322, %v1318
    %v1399 = vpack.c.b16 %v1323, %v1319
    %v1400 = vpack.c.b16 %v1324, %v1320
    %v1401 = vpack.c.b16 %v1329, %v1325
    %v1402 = vpack.c.b16 %v1330, %v1326
    %v1403 = vpack.c.b16 %v1331, %v1327
    %v1404 = vpack.c.b16 %v1332, %v1328
    %v1405 = vpack.c.b16 %v1337, %v1333
    %v1406 = vpack.c.b16 %v1338, %v1334
    %v1407 = vpack.c.b16 %v1339, %v1335
    %v1408 = vpack.c.b16 %v1340, %v1336
    %v1409 = vpack.c.b16 %v1345, %v1341
    %v1410 = vpack.c.b16 %v1346, %v1342
    %v1411 = vpack.c.b16 %v1347, %v1343
    %v1412 = vpack.c.b16 %v1348, %v1344
    %1477 = vmatprep.subr.bf16.mxu0 %v1350
    %1478 = vmatpush1.bf16.msra.mxu0 %v1349
    %1479 = vmatprep.subr.bf16.mxu0 %v1354
    %1480 = vmatpush1.bf16.msra.mxu0 %v1353
    %1481 = vmatprep.subr.bf16.mxu0 %v1358
    %1482 = vmatpush1.bf16.msra.mxu0 %v1357
    %1483 = vmatprep.subr.bf16.mxu0 %v1362
    %1484 = vmatpush1.bf16.msra.mxu0 %v1361
    %1485 = vmatprep.subr.bf16.mxu0 %v1366
    %1486 = vmatpush1.bf16.msra.mxu0 %v1365
    %1487 = vmatprep.subr.bf16.mxu0 %v1370
    %1488 = vmatpush1.bf16.msra.mxu0 %v1369
    %1489 = vmatprep.subr.bf16.mxu0 %v1374
    %1490 = vmatpush1.bf16.msra.mxu0 %v1373
    %1491 = vmatprep.subr.bf16.mxu0 %v1378
    %1492 = vmatpush1.bf16.msra.mxu0 %v1377
    %1493 = vmatprep.subr.bf16.mxu0 %v1382
    %1494 = vmatpush1.bf16.msra.mxu0 %v1381
    %1495 = vmatprep.subr.bf16.mxu0 %v1386
    %1496 = vmatpush1.bf16.msra.mxu0 %v1385
    %1497 = vmatprep.subr.bf16.mxu0 %v1390
    %1498 = vmatpush1.bf16.msra.mxu0 %v1389
    %1499 = vmatprep.subr.bf16.mxu0 %v1394
    %1500 = vmatpush1.bf16.msra.mxu0 %v1393
    %1501 = vmatprep.subr.bf16.mxu0 %v1398
    %1502 = vmatpush1.bf16.msra.mxu0 %v1397
    %1503 = vmatprep.subr.bf16.mxu0 %v1402
    %1504 = vmatpush1.bf16.msra.mxu0 %v1401
    %1505 = vmatprep.subr.bf16.mxu0 %v1406
    %1506 = vmatpush1.bf16.msra.mxu0 %v1405
    %1507 = vmatprep.subr.bf16.mxu0 %v1410
    %1508 = vmatpush1.bf16.msra.mxu0 %v1409
    %1509 = vmatprep.mubr.bf16.mxu0 %v174
    %1510 = vmatmul.mubr.bf16.gmra.mrb[0].mxu0 %v173
    %v1511 = vpop.f32.mrb[0].mxu0
    %v1512 = vadd.f32 %v1140, %v1511
    %v1513 = vpop.f32.mrb[0].mxu0
    %v1514 = vadd.f32 %v1144, %v1513
    %v1515 = vpop.f32.mrb[0].mxu0
    %v1516 = vpop.f32.mrb[0].mxu0
    %1517 = vdwg.mxu0
    %1518 = vmatprep.subr.bf16.mxu0 %v1352
    %1519 = vmatpush1.bf16.msra.mxu0 %v1351
    %1520 = vmatprep.subr.bf16.mxu0 %v1356
    %1521 = vmatpush1.bf16.msra.mxu0 %v1355
    %1522 = vmatprep.subr.bf16.mxu0 %v1360
    %1523 = vmatpush1.bf16.msra.mxu0 %v1359
    %1524 = vmatprep.subr.bf16.mxu0 %v1364
    %1525 = vmatpush1.bf16.msra.mxu0 %v1363
    %1526 = vmatprep.subr.bf16.mxu0 %v1368
    %1527 = vmatpush1.bf16.msra.mxu0 %v1367
    %1528 = vmatprep.subr.bf16.mxu0 %v1372
    %1529 = vmatpush1.bf16.msra.mxu0 %v1371
    %1530 = vmatprep.subr.bf16.mxu0 %v1376
    %1531 = vmatpush1.bf16.msra.mxu0 %v1375
    %1532 = vmatprep.subr.bf16.mxu0 %v1380
    %1533 = vmatpush1.bf16.msra.mxu0 %v1379
    %1534 = vmatprep.subr.bf16.mxu0 %v1384
    %1535 = vmatpush1.bf16.msra.mxu0 %v1383
    %1536 = vmatprep.subr.bf16.mxu0 %v1388
    %1537 = vmatpush1.bf16.msra.mxu0 %v1387
    %1538 = vmatprep.subr.bf16.mxu0 %v1392
    %1539 = vmatpush1.bf16.msra.mxu0 %v1391
    %1540 = vmatprep.subr.bf16.mxu0 %v1396
    %1541 = vmatpush1.bf16.msra.mxu0 %v1395
    %1542 = vmatprep.subr.bf16.mxu0 %v1400
    %1543 = vmatpush1.bf16.msra.mxu0 %v1399
    %1544 = vmatprep.subr.bf16.mxu0 %v1404
    %1545 = vmatpush1.bf16.msra.mxu0 %v1403
    %1546 = vmatprep.subr.bf16.mxu0 %v1408
    %1547 = vmatpush1.bf16.msra.mxu0 %v1407
    %1548 = vmatprep.subr.bf16.mxu0 %v1412
    %1549 = vmatpush1.bf16.msra.mxu0 %v1411
    %1550 = vmatprep.mubr.bf16.mxu0 %v174
    %1551 = vmatmul.mubr.bf16.gmra.mrb[0].mxu0 %v173
    %v1552 = vpop.f32.mrb[0].mxu0
    %v1553 = vadd.f32 %v1148, %v1552
    %v1554 = vpop.f32.mrb[0].mxu0
    %v1555 = vadd.f32 %v1152, %v1554
    %v1556 = vpop.f32.mrb[0].mxu0
    %v1557 = vpop.f32.mrb[0].mxu0
    %1558 = vdwg.mxu0
    %v1559 = vmax.f32 %v1067, %v1512
    %v1560 = vmax.f32 %v1068, %v1514
    %v1561 = vmax.f32 %v1069, %v1553
    %v1562 = vmax.f32 %v1070, %v1555
    %v1563 = vld [vmem:[#allocation5 + $0x30] sm:$0xff]
    %v1564 = vld [vmem:[#allocation5 + $0x38] sm:$0xff]
    %v1565 = vld [vmem:[#allocation5 + $0xb0] sm:$0xff]
    %v1566 = vld [vmem:[#allocation5 + $0xb8] sm:$0xff]
    %v1567 = vld [vmem:[#allocation5 + $0x130] sm:$0xff]
    %v1568 = vld [vmem:[#allocation5 + $0x138] sm:$0xff]
    %v1569 = vld [vmem:[#allocation5 + $0x1b0] sm:$0xff]
    %v1570 = vld [vmem:[#allocation5 + $0x1b8] sm:$0xff]
    %v1571 = vld [vmem:[#allocation5 + $0x230] sm:$0xff]
    %v1572 = vld [vmem:[#allocation5 + $0x238] sm:$0xff]
    %v1573 = vld [vmem:[#allocation5 + $0x2b0] sm:$0xff]
    %v1574 = vld [vmem:[#allocation5 + $0x2b8] sm:$0xff]
    %v1575 = vld [vmem:[#allocation5 + $0x330] sm:$0xff]
    %v1576 = vld [vmem:[#allocation5 + $0x338] sm:$0xff]
    %v1577 = vld [vmem:[#allocation5 + $0x3b0] sm:$0xff]
    %v1578 = vld [vmem:[#allocation5 + $0x3b8] sm:$0xff]
    %v1579 = vld [vmem:[#allocation5 + $0x430] sm:$0xff]
    %v1580 = vld [vmem:[#allocation5 + $0x438] sm:$0xff]
    %v1581 = vld [vmem:[#allocation5 + $0x4b0] sm:$0xff]
    %v1582 = vld [vmem:[#allocation5 + $0x4b8] sm:$0xff]
    %v1583 = vld [vmem:[#allocation5 + $0x530] sm:$0xff]
    %v1584 = vld [vmem:[#allocation5 + $0x538] sm:$0xff]
    %v1585 = vld [vmem:[#allocation5 + $0x5b0] sm:$0xff]
    %v1586 = vld [vmem:[#allocation5 + $0x5b8] sm:$0xff]
    %v1587 = vld [vmem:[#allocation5 + $0x630] sm:$0xff]
    %v1588 = vld [vmem:[#allocation5 + $0x638] sm:$0xff]
    %v1589 = vld [vmem:[#allocation5 + $0x6b0] sm:$0xff]
    %v1590 = vld [vmem:[#allocation5 + $0x6b8] sm:$0xff]
    %v1591 = vld [vmem:[#allocation5 + $0x730] sm:$0xff]
    %v1592 = vld [vmem:[#allocation5 + $0x738] sm:$0xff]
    %v1593 = vld [vmem:[#allocation5 + $0x7b0] sm:$0xff]
    %v1594 = vld [vmem:[#allocation5 + $0x7b8] sm:$0xff]
    %v1595 = vld [vmem:[#allocation5 + $0x830] sm:$0xff]
    %v1596 = vld [vmem:[#allocation5 + $0x838] sm:$0xff]
    %v1597 = vld [vmem:[#allocation5 + $0x8b0] sm:$0xff]
    %v1598 = vld [vmem:[#allocation5 + $0x8b8] sm:$0xff]
    %v1599 = vld [vmem:[#allocation5 + $0x930] sm:$0xff]
    %v1600 = vld [vmem:[#allocation5 + $0x938] sm:$0xff]
    %v1601 = vld [vmem:[#allocation5 + $0x9b0] sm:$0xff]
    %v1602 = vld [vmem:[#allocation5 + $0x9b8] sm:$0xff]
    %v1603 = vld [vmem:[#allocation5 + $0xa30] sm:$0xff]
    %v1604 = vld [vmem:[#allocation5 + $0xa38] sm:$0xff]
    %v1605 = vld [vmem:[#allocation5 + $0xab0] sm:$0xff]
    %v1606 = vld [vmem:[#allocation5 + $0xab8] sm:$0xff]
    %v1607 = vld [vmem:[#allocation5 + $0xb30] sm:$0xff]
    %v1608 = vld [vmem:[#allocation5 + $0xb38] sm:$0xff]
    %v1609 = vld [vmem:[#allocation5 + $0xbb0] sm:$0xff]
    %v1610 = vld [vmem:[#allocation5 + $0xbb8] sm:$0xff]
    %v1611 = vld [vmem:[#allocation5 + $0xc30] sm:$0xff]
    %v1612 = vld [vmem:[#allocation5 + $0xc38] sm:$0xff]
    %v1613 = vld [vmem:[#allocation5 + $0xcb0] sm:$0xff]
    %v1614 = vld [vmem:[#allocation5 + $0xcb8] sm:$0xff]
    %v1615 = vld [vmem:[#allocation5 + $0xd30] sm:$0xff]
    %v1616 = vld [vmem:[#allocation5 + $0xd38] sm:$0xff]
    %v1617 = vld [vmem:[#allocation5 + $0xdb0] sm:$0xff]
    %v1618 = vld [vmem:[#allocation5 + $0xdb8] sm:$0xff]
    %v1619 = vld [vmem:[#allocation5 + $0xe30] sm:$0xff]
    %v1620 = vld [vmem:[#allocation5 + $0xe38] sm:$0xff]
    %v1621 = vld [vmem:[#allocation5 + $0xeb0] sm:$0xff]
    %v1622 = vld [vmem:[#allocation5 + $0xeb8] sm:$0xff]
    %v1623 = vld [vmem:[#allocation5 + $0xf30] sm:$0xff]
    %v1624 = vld [vmem:[#allocation5 + $0xf38] sm:$0xff]
    %v1625 = vld [vmem:[#allocation5 + $0xfb0] sm:$0xff]
    %v1626 = vld [vmem:[#allocation5 + $0xfb8] sm:$0xff]
    %v1627 = vld [vmem:[#allocation7 + $0xc] sm:$0xf]
    %v1629 = vlaneseq
    %v1630 = vshrl.u32 %v1629, 7
    %v1631 = vsub.s32 0, %v1630
    %v1632 = vrot.slane %v1627, %v1631
    %v1633 = vlaneseq
    %v1634 = vshrl.u32 %v1633, 7
    %v1635 = vsub.s32 1, %v1634
    %v1636 = vrot.slane %v1627, %v1635
    %v1637 = vlaneseq
    %v1638 = vshrl.u32 %v1637, 7
    %v1639 = vsub.s32 2, %v1638
    %v1640 = vrot.slane %v1627, %v1639
    %v1641 = vlaneseq
    %v1642 = vshrl.u32 %v1641, 7
    %v1643 = vsub.s32 3, %v1642
    %v1644 = vrot.slane %v1627, %v1643
    %v1713 = vunpack.c.l.b16 %v1563
    %v1714 = vunpack.c.h.b16 %v1563
    %v1715 = vunpack.c.l.b16 %v1564
    %v1716 = vunpack.c.h.b16 %v1564
    %v1717 = vunpack.c.l.b16 %v1565
    %v1718 = vunpack.c.h.b16 %v1565
    %v1719 = vunpack.c.l.b16 %v1566
    %v1720 = vunpack.c.h.b16 %v1566
    %v1721 = vunpack.c.l.b16 %v1567
    %v1722 = vunpack.c.h.b16 %v1567
    %v1723 = vunpack.c.l.b16 %v1568
    %v1724 = vunpack.c.h.b16 %v1568
    %v1725 = vunpack.c.l.b16 %v1569
    %v1726 = vunpack.c.h.b16 %v1569
    %v1727 = vunpack.c.l.b16 %v1570
    %v1728 = vunpack.c.h.b16 %v1570
    %v1729 = vunpack.c.l.b16 %v1571
    %v1730 = vunpack.c.h.b16 %v1571
    %v1731 = vunpack.c.l.b16 %v1572
    %v1732 = vunpack.c.h.b16 %v1572
    %v1733 = vunpack.c.l.b16 %v1573
    %v1734 = vunpack.c.h.b16 %v1573
    %v1735 = vunpack.c.l.b16 %v1574
    %v1736 = vunpack.c.h.b16 %v1574
    %v1737 = vunpack.c.l.b16 %v1575
    %v1738 = vunpack.c.h.b16 %v1575
    %v1739 = vunpack.c.l.b16 %v1576
    %v1740 = vunpack.c.h.b16 %v1576
    %v1741 = vunpack.c.l.b16 %v1577
    %v1742 = vunpack.c.h.b16 %v1577
    %v1743 = vunpack.c.l.b16 %v1578
    %v1744 = vunpack.c.h.b16 %v1578
    %v1745 = vunpack.c.l.b16 %v1579
    %v1746 = vunpack.c.h.b16 %v1579
    %v1747 = vunpack.c.l.b16 %v1580
    %v1748 = vunpack.c.h.b16 %v1580
    %v1749 = vunpack.c.l.b16 %v1581
    %v1750 = vunpack.c.h.b16 %v1581
    %v1751 = vunpack.c.l.b16 %v1582
    %v1752 = vunpack.c.h.b16 %v1582
    %v1753 = vunpack.c.l.b16 %v1583
    %v1754 = vunpack.c.h.b16 %v1583
    %v1755 = vunpack.c.l.b16 %v1584
    %v1756 = vunpack.c.h.b16 %v1584
    %v1757 = vunpack.c.l.b16 %v1585
    %v1758 = vunpack.c.h.b16 %v1585
    %v1759 = vunpack.c.l.b16 %v1586
    %v1760 = vunpack.c.h.b16 %v1586
    %v1761 = vunpack.c.l.b16 %v1587
    %v1762 = vunpack.c.h.b16 %v1587
    %v1763 = vunpack.c.l.b16 %v1588
    %v1764 = vunpack.c.h.b16 %v1588
    %v1765 = vunpack.c.l.b16 %v1589
    %v1766 = vunpack.c.h.b16 %v1589
    %v1767 = vunpack.c.l.b16 %v1590
    %v1768 = vunpack.c.h.b16 %v1590
    %v1769 = vunpack.c.l.b16 %v1591
    %v1770 = vunpack.c.h.b16 %v1591
    %v1771 = vunpack.c.l.b16 %v1592
    %v1772 = vunpack.c.h.b16 %v1592
    %v1773 = vunpack.c.l.b16 %v1593
    %v1774 = vunpack.c.h.b16 %v1593
    %v1775 = vunpack.c.l.b16 %v1594
    %v1776 = vunpack.c.h.b16 %v1594
    %v1777 = vunpack.c.l.b16 %v1595
    %v1778 = vunpack.c.h.b16 %v1595
    %v1779 = vunpack.c.l.b16 %v1596
    %v1780 = vunpack.c.h.b16 %v1596
    %v1781 = vunpack.c.l.b16 %v1597
    %v1782 = vunpack.c.h.b16 %v1597
    %v1783 = vunpack.c.l.b16 %v1598
    %v1784 = vunpack.c.h.b16 %v1598
    %v1785 = vunpack.c.l.b16 %v1599
    %v1786 = vunpack.c.h.b16 %v1599
    %v1787 = vunpack.c.l.b16 %v1600
    %v1788 = vunpack.c.h.b16 %v1600
    %v1789 = vunpack.c.l.b16 %v1601
    %v1790 = vunpack.c.h.b16 %v1601
    %v1791 = vunpack.c.l.b16 %v1602
    %v1792 = vunpack.c.h.b16 %v1602
    %v1793 = vunpack.c.l.b16 %v1603
    %v1794 = vunpack.c.h.b16 %v1603
    %v1795 = vunpack.c.l.b16 %v1604
    %v1796 = vunpack.c.h.b16 %v1604
    %v1797 = vunpack.c.l.b16 %v1605
    %v1798 = vunpack.c.h.b16 %v1605
    %v1799 = vunpack.c.l.b16 %v1606
    %v1800 = vunpack.c.h.b16 %v1606
    %v1801 = vunpack.c.l.b16 %v1607
    %v1802 = vunpack.c.h.b16 %v1607
    %v1803 = vunpack.c.l.b16 %v1608
    %v1804 = vunpack.c.h.b16 %v1608
    %v1805 = vunpack.c.l.b16 %v1609
    %v1806 = vunpack.c.h.b16 %v1609
    %v1807 = vunpack.c.l.b16 %v1610
    %v1808 = vunpack.c.h.b16 %v1610
    %v1809 = vunpack.c.l.b16 %v1611
    %v1810 = vunpack.c.h.b16 %v1611
    %v1811 = vunpack.c.l.b16 %v1612
    %v1812 = vunpack.c.h.b16 %v1612
    %v1813 = vunpack.c.l.b16 %v1613
    %v1814 = vunpack.c.h.b16 %v1613
    %v1815 = vunpack.c.l.b16 %v1614
    %v1816 = vunpack.c.h.b16 %v1614
    %v1817 = vunpack.c.l.b16 %v1615
    %v1818 = vunpack.c.h.b16 %v1615
    %v1819 = vunpack.c.l.b16 %v1616
    %v1820 = vunpack.c.h.b16 %v1616
    %v1821 = vunpack.c.l.b16 %v1617
    %v1822 = vunpack.c.h.b16 %v1617
    %v1823 = vunpack.c.l.b16 %v1618
    %v1824 = vunpack.c.h.b16 %v1618
    %v1825 = vunpack.c.l.b16 %v1619
    %v1826 = vunpack.c.h.b16 %v1619
    %v1827 = vunpack.c.l.b16 %v1620
    %v1828 = vunpack.c.h.b16 %v1620
    %v1829 = vunpack.c.l.b16 %v1621
    %v1830 = vunpack.c.h.b16 %v1621
    %v1831 = vunpack.c.l.b16 %v1622
    %v1832 = vunpack.c.h.b16 %v1622
    %v1833 = vunpack.c.l.b16 %v1623
    %v1834 = vunpack.c.h.b16 %v1623
    %v1835 = vunpack.c.l.b16 %v1624
    %v1836 = vunpack.c.h.b16 %v1624
    %v1837 = vunpack.c.l.b16 %v1625
    %v1838 = vunpack.c.h.b16 %v1625
    %v1839 = vunpack.c.l.b16 %v1626
    %v1840 = vunpack.c.h.b16 %v1626
    %v1841 = vpack.c.b16 %v1717, %v1713
    %v1842 = vpack.c.b16 %v1718, %v1714
    %v1843 = vpack.c.b16 %v1719, %v1715
    %v1844 = vpack.c.b16 %v1720, %v1716
    %v1845 = vpack.c.b16 %v1725, %v1721
    %v1846 = vpack.c.b16 %v1726, %v1722
    %v1847 = vpack.c.b16 %v1727, %v1723
    %v1848 = vpack.c.b16 %v1728, %v1724
    %v1849 = vpack.c.b16 %v1733, %v1729
    %v1850 = vpack.c.b16 %v1734, %v1730
    %v1851 = vpack.c.b16 %v1735, %v1731
    %v1852 = vpack.c.b16 %v1736, %v1732
    %v1853 = vpack.c.b16 %v1741, %v1737
    %v1854 = vpack.c.b16 %v1742, %v1738
    %v1855 = vpack.c.b16 %v1743, %v1739
    %v1856 = vpack.c.b16 %v1744, %v1740
    %v1857 = vpack.c.b16 %v1749, %v1745
    %v1858 = vpack.c.b16 %v1750, %v1746
    %v1859 = vpack.c.b16 %v1751, %v1747
    %v1860 = vpack.c.b16 %v1752, %v1748
    %v1861 = vpack.c.b16 %v1757, %v1753
    %v1862 = vpack.c.b16 %v1758, %v1754
    %v1863 = vpack.c.b16 %v1759, %v1755
    %v1864 = vpack.c.b16 %v1760, %v1756
    %v1865 = vpack.c.b16 %v1765, %v1761
    %v1866 = vpack.c.b16 %v1766, %v1762
    %v1867 = vpack.c.b16 %v1767, %v1763
    %v1868 = vpack.c.b16 %v1768, %v1764
    %v1869 = vpack.c.b16 %v1773, %v1769
    %v1870 = vpack.c.b16 %v1774, %v1770
    %v1871 = vpack.c.b16 %v1775, %v1771
    %v1872 = vpack.c.b16 %v1776, %v1772
    %v1873 = vpack.c.b16 %v1781, %v1777
    %v1874 = vpack.c.b16 %v1782, %v1778
    %v1875 = vpack.c.b16 %v1783, %v1779
    %v1876 = vpack.c.b16 %v1784, %v1780
    %v1877 = vpack.c.b16 %v1789, %v1785
    %v1878 = vpack.c.b16 %v1790, %v1786
    %v1879 = vpack.c.b16 %v1791, %v1787
    %v1880 = vpack.c.b16 %v1792, %v1788
    %v1881 = vpack.c.b16 %v1797, %v1793
    %v1882 = vpack.c.b16 %v1798, %v1794
    %v1883 = vpack.c.b16 %v1799, %v1795
    %v1884 = vpack.c.b16 %v1800, %v1796
    %v1885 = vpack.c.b16 %v1805, %v1801
    %v1886 = vpack.c.b16 %v1806, %v1802
    %v1887 = vpack.c.b16 %v1807, %v1803
    %v1888 = vpack.c.b16 %v1808, %v1804
    %v1889 = vpack.c.b16 %v1813, %v1809
    %v1890 = vpack.c.b16 %v1814, %v1810
    %v1891 = vpack.c.b16 %v1815, %v1811
    %v1892 = vpack.c.b16 %v1816, %v1812
    %v1893 = vpack.c.b16 %v1821, %v1817
    %v1894 = vpack.c.b16 %v1822, %v1818
    %v1895 = vpack.c.b16 %v1823, %v1819
    %v1896 = vpack.c.b16 %v1824, %v1820
    %v1897 = vpack.c.b16 %v1829, %v1825
    %v1898 = vpack.c.b16 %v1830, %v1826
    %v1899 = vpack.c.b16 %v1831, %v1827
    %v1900 = vpack.c.b16 %v1832, %v1828
    %v1901 = vpack.c.b16 %v1837, %v1833
    %v1902 = vpack.c.b16 %v1838, %v1834
    %v1903 = vpack.c.b16 %v1839, %v1835
    %v1904 = vpack.c.b16 %v1840, %v1836
    %1969 = vmatprep.subr.bf16.mxu0 %v1842
    %1970 = vmatpush1.bf16.msra.mxu0 %v1841
    %1971 = vmatprep.subr.bf16.mxu0 %v1846
    %1972 = vmatpush1.bf16.msra.mxu0 %v1845
    %1973 = vmatprep.subr.bf16.mxu0 %v1850
    %1974 = vmatpush1.bf16.msra.mxu0 %v1849
    %1975 = vmatprep.subr.bf16.mxu0 %v1854
    %1976 = vmatpush1.bf16.msra.mxu0 %v1853
    %1977 = vmatprep.subr.bf16.mxu0 %v1858
    %1978 = vmatpush1.bf16.msra.mxu0 %v1857
    %1979 = vmatprep.subr.bf16.mxu0 %v1862
    %1980 = vmatpush1.bf16.msra.mxu0 %v1861
    %1981 = vmatprep.subr.bf16.mxu0 %v1866
    %1982 = vmatpush1.bf16.msra.mxu0 %v1865
    %1983 = vmatprep.subr.bf16.mxu0 %v1870
    %1984 = vmatpush1.bf16.msra.mxu0 %v1869
    %1985 = vmatprep.subr.bf16.mxu0 %v1874
    %1986 = vmatpush1.bf16.msra.mxu0 %v1873
    %1987 = vmatprep.subr.bf16.mxu0 %v1878
    %1988 = vmatpush1.bf16.msra.mxu0 %v1877
    %1989 = vmatprep.subr.bf16.mxu0 %v1882
    %1990 = vmatpush1.bf16.msra.mxu0 %v1881
    %1991 = vmatprep.subr.bf16.mxu0 %v1886
    %1992 = vmatpush1.bf16.msra.mxu0 %v1885
    %1993 = vmatprep.subr.bf16.mxu0 %v1890
    %1994 = vmatpush1.bf16.msra.mxu0 %v1889
    %1995 = vmatprep.subr.bf16.mxu0 %v1894
    %1996 = vmatpush1.bf16.msra.mxu0 %v1893
    %1997 = vmatprep.subr.bf16.mxu0 %v1898
    %1998 = vmatpush1.bf16.msra.mxu0 %v1897
    %1999 = vmatprep.subr.bf16.mxu0 %v1902
    %2000 = vmatpush1.bf16.msra.mxu0 %v1901
    %2001 = vmatprep.mubr.bf16.mxu0 %v174
    %2002 = vmatmul.mubr.bf16.gmra.mrb[0].mxu0 %v173
    %v2003 = vpop.f32.mrb[0].mxu0
    %v2004 = vadd.f32 %v1632, %v2003
    %v2005 = vpop.f32.mrb[0].mxu0
    %v2006 = vadd.f32 %v1636, %v2005
    %v2007 = vpop.f32.mrb[0].mxu0
    %v2008 = vpop.f32.mrb[0].mxu0
    %2009 = vdwg.mxu0
    %2010 = vmatprep.subr.bf16.mxu0 %v1844
    %2011 = vmatpush1.bf16.msra.mxu0 %v1843
    %2012 = vmatprep.subr.bf16.mxu0 %v1848
    %2013 = vmatpush1.bf16.msra.mxu0 %v1847
    %2014 = vmatprep.subr.bf16.mxu0 %v1852
    %2015 = vmatpush1.bf16.msra.mxu0 %v1851
    %2016 = vmatprep.subr.bf16.mxu0 %v1856
    %2017 = vmatpush1.bf16.msra.mxu0 %v1855
    %2018 = vmatprep.subr.bf16.mxu0 %v1860
    %2019 = vmatpush1.bf16.msra.mxu0 %v1859
    %2020 = vmatprep.subr.bf16.mxu0 %v1864
    %2021 = vmatpush1.bf16.msra.mxu0 %v1863
    %2022 = vmatprep.subr.bf16.mxu0 %v1868
    %2023 = vmatpush1.bf16.msra.mxu0 %v1867
    %2024 = vmatprep.subr.bf16.mxu0 %v1872
    %2025 = vmatpush1.bf16.msra.mxu0 %v1871
    %2026 = vmatprep.subr.bf16.mxu0 %v1876
    %2027 = vmatpush1.bf16.msra.mxu0 %v1875
    %2028 = vmatprep.subr.bf16.mxu0 %v1880
    %2029 = vmatpush1.bf16.msra.mxu0 %v1879
    %2030 = vmatprep.subr.bf16.mxu0 %v1884
    %2031 = vmatpush1.bf16.msra.mxu0 %v1883
    %2032 = vmatprep.subr.bf16.mxu0 %v1888
    %2033 = vmatpush1.bf16.msra.mxu0 %v1887
    %2034 = vmatprep.subr.bf16.mxu0 %v1892
    %2035 = vmatpush1.bf16.msra.mxu0 %v1891
    %2036 = vmatprep.subr.bf16.mxu0 %v1896
    %2037 = vmatpush1.bf16.msra.mxu0 %v1895
    %2038 = vmatprep.subr.bf16.mxu0 %v1900
    %2039 = vmatpush1.bf16.msra.mxu0 %v1899
    %2040 = vmatprep.subr.bf16.mxu0 %v1904
    %2041 = vmatpush1.bf16.msra.mxu0 %v1903
    %2042 = vmatprep.mubr.bf16.mxu0 %v174
    %2043 = vmatmul.mubr.bf16.gmra.mrb[0].mxu0 %v173
    %v2044 = vpop.f32.mrb[0].mxu0
    %v2045 = vadd.f32 %v1640, %v2044
    %v2046 = vpop.f32.mrb[0].mxu0
    %v2047 = vadd.f32 %v1644, %v2046
    %v2048 = vpop.f32.mrb[0].mxu0
    %v2049 = vpop.f32.mrb[0].mxu0
    %2050 = vdwg.mxu0
    %v2051 = vmax.f32 %v1559, %v2004
    %v2052 = vmax.f32 %v1560, %v2006
    %v2053 = vmax.f32 %v1561, %v2045
    %v2054 = vmax.f32 %v1562, %v2047
    %v2055 = vld [vmem:[#allocation5 + $0x40] sm:$0xff]
    %v2056 = vld [vmem:[#allocation5 + $0x48] sm:$0xff]
    %v2057 = vld [vmem:[#allocation5 + $0xc0] sm:$0xff]
    %v2058 = vld [vmem:[#allocation5 + $0xc8] sm:$0xff]
    %v2059 = vld [vmem:[#allocation5 + $0x140] sm:$0xff]
    %v2060 = vld [vmem:[#allocation5 + $0x148] sm:$0xff]
    %v2061 = vld [vmem:[#allocation5 + $0x1c0] sm:$0xff]
    %v2062 = vld [vmem:[#allocation5 + $0x1c8] sm:$0xff]
    %v2063 = vld [vmem:[#allocation5 + $0x240] sm:$0xff]
    %v2064 = vld [vmem:[#allocation5 + $0x248] sm:$0xff]
    %v2065 = vld [vmem:[#allocation5 + $0x2c0] sm:$0xff]
    %v2066 = vld [vmem:[#allocation5 + $0x2c8] sm:$0xff]
    %v2067 = vld [vmem:[#allocation5 + $0x340] sm:$0xff]
    %v2068 = vld [vmem:[#allocation5 + $0x348] sm:$0xff]
    %v2069 = vld [vmem:[#allocation5 + $0x3c0] sm:$0xff]
    %v2070 = vld [vmem:[#allocation5 + $0x3c8] sm:$0xff]
    %v2071 = vld [vmem:[#allocation5 + $0x440] sm:$0xff]
    %v2072 = vld [vmem:[#allocation5 + $0x448] sm:$0xff]
    %v2073 = vld [vmem:[#allocation5 + $0x4c0] sm:$0xff]
    %v2074 = vld [vmem:[#allocation5 + $0x4c8] sm:$0xff]
    %v2075 = vld [vmem:[#allocation5 + $0x540] sm:$0xff]
    %v2076 = vld [vmem:[#allocation5 + $0x548] sm:$0xff]
    %v2077 = vld [vmem:[#allocation5 + $0x5c0] sm:$0xff]
    %v2078 = vld [vmem:[#allocation5 + $0x5c8] sm:$0xff]
    %v2079 = vld [vmem:[#allocation5 + $0x640] sm:$0xff]
    %v2080 = vld [vmem:[#allocation5 + $0x648] sm:$0xff]
    %v2081 = vld [vmem:[#allocation5 + $0x6c0] sm:$0xff]
    %v2082 = vld [vmem:[#allocation5 + $0x6c8] sm:$0xff]
    %v2083 = vld [vmem:[#allocation5 + $0x740] sm:$0xff]
    %v2084 = vld [vmem:[#allocation5 + $0x748] sm:$0xff]
    %v2085 = vld [vmem:[#allocation5 + $0x7c0] sm:$0xff]
    %v2086 = vld [vmem:[#allocation5 + $0x7c8] sm:$0xff]
    %v2087 = vld [vmem:[#allocation5 + $0x840] sm:$0xff]
    %v2088 = vld [vmem:[#allocation5 + $0x848] sm:$0xff]
    %v2089 = vld [vmem:[#allocation5 + $0x8c0] sm:$0xff]
    %v2090 = vld [vmem:[#allocation5 + $0x8c8] sm:$0xff]
    %v2091 = vld [vmem:[#allocation5 + $0x940] sm:$0xff]
    %v2092 = vld [vmem:[#allocation5 + $0x948] sm:$0xff]
    %v2093 = vld [vmem:[#allocation5 + $0x9c0] sm:$0xff]
    %v2094 = vld [vmem:[#allocation5 + $0x9c8] sm:$0xff]
    %v2095 = vld [vmem:[#allocation5 + $0xa40] sm:$0xff]
    %v2096 = vld [vmem:[#allocation5 + $0xa48] sm:$0xff]
    %v2097 = vld [vmem:[#allocation5 + $0xac0] sm:$0xff]
    %v2098 = vld [vmem:[#allocation5 + $0xac8] sm:$0xff]
    %v2099 = vld [vmem:[#allocation5 + $0xb40] sm:$0xff]
    %v2100 = vld [vmem:[#allocation5 + $0xb48] sm:$0xff]
    %v2101 = vld [vmem:[#allocation5 + $0xbc0] sm:$0xff]
    %v2102 = vld [vmem:[#allocation5 + $0xbc8] sm:$0xff]
    %v2103 = vld [vmem:[#allocation5 + $0xc40] sm:$0xff]
    %v2104 = vld [vmem:[#allocation5 + $0xc48] sm:$0xff]
    %v2105 = vld [vmem:[#allocation5 + $0xcc0] sm:$0xff]
    %v2106 = vld [vmem:[#allocation5 + $0xcc8] sm:$0xff]
    %v2107 = vld [vmem:[#allocation5 + $0xd40] sm:$0xff]
    %v2108 = vld [vmem:[#allocation5 + $0xd48] sm:$0xff]
    %v2109 = vld [vmem:[#allocation5 + $0xdc0] sm:$0xff]
    %v2110 = vld [vmem:[#allocation5 + $0xdc8] sm:$0xff]
    %v2111 = vld [vmem:[#allocation5 + $0xe40] sm:$0xff]
    %v2112 = vld [vmem:[#allocation5 + $0xe48] sm:$0xff]
    %v2113 = vld [vmem:[#allocation5 + $0xec0] sm:$0xff]
    %v2114 = vld [vmem:[#allocation5 + $0xec8] sm:$0xff]
    %v2115 = vld [vmem:[#allocation5 + $0xf40] sm:$0xff]
    %v2116 = vld [vmem:[#allocation5 + $0xf48] sm:$0xff]
    %v2117 = vld [vmem:[#allocation5 + $0xfc0] sm:$0xff]
    %v2118 = vld [vmem:[#allocation5 + $0xfc8] sm:$0xff]
    %v2119 = vld [vmem:[#allocation7 + $0x10] sm:$0xf]
    %v2121 = vlaneseq
    %v2122 = vshrl.u32 %v2121, 7
    %v2123 = vsub.s32 0, %v2122
    %v2124 = vrot.slane %v2119, %v2123
    %v2125 = vlaneseq
    %v2126 = vshrl.u32 %v2125, 7
    %v2127 = vsub.s32 1, %v2126
    %v2128 = vrot.slane %v2119, %v2127
    %v2129 = vlaneseq
    %v2130 = vshrl.u32 %v2129, 7
    %v2131 = vsub.s32 2, %v2130
    %v2132 = vrot.slane %v2119, %v2131
    %v2133 = vlaneseq
    %v2134 = vshrl.u32 %v2133, 7
    %v2135 = vsub.s32 3, %v2134
    %v2136 = vrot.slane %v2119, %v2135
    %v2205 = vunpack.c.l.b16 %v2055
    %v2206 = vunpack.c.h.b16 %v2055
    %v2207 = vunpack.c.l.b16 %v2056
    %v2208 = vunpack.c.h.b16 %v2056
    %v2209 = vunpack.c.l.b16 %v2057
    %v2210 = vunpack.c.h.b16 %v2057
    %v2211 = vunpack.c.l.b16 %v2058
    %v2212 = vunpack.c.h.b16 %v2058
    %v2213 = vunpack.c.l.b16 %v2059
    %v2214 = vunpack.c.h.b16 %v2059
    %v2215 = vunpack.c.l.b16 %v2060
    %v2216 = vunpack.c.h.b16 %v2060
    %v2217 = vunpack.c.l.b16 %v2061
    %v2218 = vunpack.c.h.b16 %v2061
    %v2219 = vunpack.c.l.b16 %v2062
    %v2220 = vunpack.c.h.b16 %v2062
    %v2221 = vunpack.c.l.b16 %v2063
    %v2222 = vunpack.c.h.b16 %v2063
    %v2223 = vunpack.c.l.b16 %v2064
    %v2224 = vunpack.c.h.b16 %v2064
    %v2225 = vunpack.c.l.b16 %v2065
    %v2226 = vunpack.c.h.b16 %v2065
    %v2227 = vunpack.c.l.b16 %v2066
    %v2228 = vunpack.c.h.b16 %v2066
    %v2229 = vunpack.c.l.b16 %v2067
    %v2230 = vunpack.c.h.b16 %v2067
    %v2231 = vunpack.c.l.b16 %v2068
    %v2232 = vunpack.c.h.b16 %v2068
    %v2233 = vunpack.c.l.b16 %v2069
    %v2234 = vunpack.c.h.b16 %v2069
    %v2235 = vunpack.c.l.b16 %v2070
    %v2236 = vunpack.c.h.b16 %v2070
    %v2237 = vunpack.c.l.b16 %v2071
    %v2238 = vunpack.c.h.b16 %v2071
    %v2239 = vunpack.c.l.b16 %v2072
    %v2240 = vunpack.c.h.b16 %v2072
    %v2241 = vunpack.c.l.b16 %v2073
    %v2242 = vunpack.c.h.b16 %v2073
    %v2243 = vunpack.c.l.b16 %v2074
    %v2244 = vunpack.c.h.b16 %v2074
    %v2245 = vunpack.c.l.b16 %v2075
    %v2246 = vunpack.c.h.b16 %v2075
    %v2247 = vunpack.c.l.b16 %v2076
    %v2248 = vunpack.c.h.b16 %v2076
    %v2249 = vunpack.c.l.b16 %v2077
    %v2250 = vunpack.c.h.b16 %v2077
    %v2251 = vunpack.c.l.b16 %v2078
    %v2252 = vunpack.c.h.b16 %v2078
    %v2253 = vunpack.c.l.b16 %v2079
    %v2254 = vunpack.c.h.b16 %v2079
    %v2255 = vunpack.c.l.b16 %v2080
    %v2256 = vunpack.c.h.b16 %v2080
    %v2257 = vunpack.c.l.b16 %v2081
    %v2258 = vunpack.c.h.b16 %v2081
    %v2259 = vunpack.c.l.b16 %v2082
    %v2260 = vunpack.c.h.b16 %v2082
    %v2261 = vunpack.c.l.b16 %v2083
    %v2262 = vunpack.c.h.b16 %v2083
    %v2263 = vunpack.c.l.b16 %v2084
    %v2264 = vunpack.c.h.b16 %v2084
    %v2265 = vunpack.c.l.b16 %v2085
    %v2266 = vunpack.c.h.b16 %v2085
    %v2267 = vunpack.c.l.b16 %v2086
    %v2268 = vunpack.c.h.b16 %v2086
    %v2269 = vunpack.c.l.b16 %v2087
    %v2270 = vunpack.c.h.b16 %v2087
    %v2271 = vunpack.c.l.b16 %v2088
    %v2272 = vunpack.c.h.b16 %v2088
    %v2273 = vunpack.c.l.b16 %v2089
    %v2274 = vunpack.c.h.b16 %v2089
    %v2275 = vunpack.c.l.b16 %v2090
    %v2276 = vunpack.c.h.b16 %v2090
    %v2277 = vunpack.c.l.b16 %v2091
    %v2278 = vunpack.c.h.b16 %v2091
    %v2279 = vunpack.c.l.b16 %v2092
    %v2280 = vunpack.c.h.b16 %v2092
    %v2281 = vunpack.c.l.b16 %v2093
    %v2282 = vunpack.c.h.b16 %v2093
    %v2283 = vunpack.c.l.b16 %v2094
    %v2284 = vunpack.c.h.b16 %v2094
    %v2285 = vunpack.c.l.b16 %v2095
    %v2286 = vunpack.c.h.b16 %v2095
    %v2287 = vunpack.c.l.b16 %v2096
    %v2288 = vunpack.c.h.b16 %v2096
    %v2289 = vunpack.c.l.b16 %v2097
    %v2290 = vunpack.c.h.b16 %v2097
    %v2291 = vunpack.c.l.b16 %v2098
    %v2292 = vunpack.c.h.b16 %v2098
    %v2293 = vunpack.c.l.b16 %v2099
    %v2294 = vunpack.c.h.b16 %v2099
    %v2295 = vunpack.c.l.b16 %v2100
    %v2296 = vunpack.c.h.b16 %v2100
    %v2297 = vunpack.c.l.b16 %v2101
    %v2298 = vunpack.c.h.b16 %v2101
    %v2299 = vunpack.c.l.b16 %v2102
    %v2300 = vunpack.c.h.b16 %v2102
    %v2301 = vunpack.c.l.b16 %v2103
    %v2302 = vunpack.c.h.b16 %v2103
    %v2303 = vunpack.c.l.b16 %v2104
    %v2304 = vunpack.c.h.b16 %v2104
    %v2305 = vunpack.c.l.b16 %v2105
    %v2306 = vunpack.c.h.b16 %v2105
    %v2307 = vunpack.c.l.b16 %v2106
    %v2308 = vunpack.c.h.b16 %v2106
    %v2309 = vunpack.c.l.b16 %v2107
    %v2310 = vunpack.c.h.b16 %v2107
    %v2311 = vunpack.c.l.b16 %v2108
    %v2312 = vunpack.c.h.b16 %v2108
    %v2313 = vunpack.c.l.b16 %v2109
    %v2314 = vunpack.c.h.b16 %v2109
    %v2315 = vunpack.c.l.b16 %v2110
    %v2316 = vunpack.c.h.b16 %v2110
    %v2317 = vunpack.c.l.b16 %v2111
    %v2318 = vunpack.c.h.b16 %v2111
    %v2319 = vunpack.c.l.b16 %v2112
    %v2320 = vunpack.c.h.b16 %v2112
    %v2321 = vunpack.c.l.b16 %v2113
    %v2322 = vunpack.c.h.b16 %v2113
    %v2323 = vunpack.c.l.b16 %v2114
    %v2324 = vunpack.c.h.b16 %v2114
    %v2325 = vunpack.c.l.b16 %v2115
    %v2326 = vunpack.c.h.b16 %v2115
    %v2327 = vunpack.c.l.b16 %v2116
    %v2328 = vunpack.c.h.b16 %v2116
    %v2329 = vunpack.c.l.b16 %v2117
    %v2330 = vunpack.c.h.b16 %v2117
    %v2331 = vunpack.c.l.b16 %v2118
    %v2332 = vunpack.c.h.b16 %v2118
    %v2333 = vpack.c.b16 %v2209, %v2205
    %v2334 = vpack.c.b16 %v2210, %v2206
    %v2335 = vpack.c.b16 %v2211, %v2207
    %v2336 = vpack.c.b16 %v2212, %v2208
    %v2337 = vpack.c.b16 %v2217, %v2213
    %v2338 = vpack.c.b16 %v2218, %v2214
    %v2339 = vpack.c.b16 %v2219, %v2215
    %v2340 = vpack.c.b16 %v2220, %v2216
    %v2341 = vpack.c.b16 %v2225, %v2221
    %v2342 = vpack.c.b16 %v2226, %v2222
    %v2343 = vpack.c.b16 %v2227, %v2223
    %v2344 = vpack.c.b16 %v2228, %v2224
    %v2345 = vpack.c.b16 %v2233, %v2229
    %v2346 = vpack.c.b16 %v2234, %v2230
    %v2347 = vpack.c.b16 %v2235, %v2231
    %v2348 = vpack.c.b16 %v2236, %v2232
    %v2349 = vpack.c.b16 %v2241, %v2237
    %v2350 = vpack.c.b16 %v2242, %v2238
    %v2351 = vpack.c.b16 %v2243, %v2239
    %v2352 = vpack.c.b16 %v2244, %v2240
    %v2353 = vpack.c.b16 %v2249, %v2245
    %v2354 = vpack.c.b16 %v2250, %v2246
    %v2355 = vpack.c.b16 %v2251, %v2247
    %v2356 = vpack.c.b16 %v2252, %v2248
    %v2357 = vpack.c.b16 %v2257, %v2253
    %v2358 = vpack.c.b16 %v2258, %v2254
    %v2359 = vpack.c.b16 %v2259, %v2255
    %v2360 = vpack.c.b16 %v2260, %v2256
    %v2361 = vpack.c.b16 %v2265, %v2261
    %v2362 = vpack.c.b16 %v2266, %v2262
    %v2363 = vpack.c.b16 %v2267, %v2263
    %v2364 = vpack.c.b16 %v2268, %v2264
    %v2365 = vpack.c.b16 %v2273, %v2269
    %v2366 = vpack.c.b16 %v2274, %v2270
    %v2367 = vpack.c.b16 %v2275, %v2271
    %v2368 = vpack.c.b16 %v2276, %v2272
    %v2369 = vpack.c.b16 %v2281, %v2277
    %v2370 = vpack.c.b16 %v2282, %v2278
    %v2371 = vpack.c.b16 %v2283, %v2279
    %v2372 = vpack.c.b16 %v2284, %v2280
    %v2373 = vpack.c.b16 %v2289, %v2285
    %v2374 = vpack.c.b16 %v2290, %v2286
    %v2375 = vpack.c.b16 %v2291, %v2287
    %v2376 = vpack.c.b16 %v2292, %v2288
    %v2377 = vpack.c.b16 %v2297, %v2293
    %v2378 = vpack.c.b16 %v2298, %v2294
    %v2379 = vpack.c.b16 %v2299, %v2295
    %v2380 = vpack.c.b16 %v2300, %v2296
    %v2381 = vpack.c.b16 %v2305, %v2301
    %v2382 = vpack.c.b16 %v2306, %v2302
    %v2383 = vpack.c.b16 %v2307, %v2303
    %v2384 = vpack.c.b16 %v2308, %v2304
    %v2385 = vpack.c.b16 %v2313, %v2309
    %v2386 = vpack.c.b16 %v2314, %v2310
    %v2387 = vpack.c.b16 %v2315, %v2311
    %v2388 = vpack.c.b16 %v2316, %v2312
    %v2389 = vpack.c.b16 %v2321, %v2317
    %v2390 = vpack.c.b16 %v2322, %v2318
    %v2391 = vpack.c.b16 %v2323, %v2319
    %v2392 = vpack.c.b16 %v2324, %v2320
    %v2393 = vpack.c.b16 %v2329, %v2325
    %v2394 = vpack.c.b16 %v2330, %v2326
    %v2395 = vpack.c.b16 %v2331, %v2327
    %v2396 = vpack.c.b16 %v2332, %v2328
    %2461 = vmatprep.subr.bf16.mxu0 %v2334
    %2462 = vmatpush1.bf16.msra.mxu0 %v2333
    %2463 = vmatprep.subr.bf16.mxu0 %v2338
    %2464 = vmatpush1.bf16.msra.mxu0 %v2337
    %2465 = vmatprep.subr.bf16.mxu0 %v2342
    %2466 = vmatpush1.bf16.msra.mxu0 %v2341
    %2467 = vmatprep.subr.bf16.mxu0 %v2346
    %2468 = vmatpush1.bf16.msra.mxu0 %v2345
    %2469 = vmatprep.subr.bf16.mxu0 %v2350
    %2470 = vmatpush1.bf16.msra.mxu0 %v2349
    %2471 = vmatprep.subr.bf16.mxu0 %v2354
    %2472 = vmatpush1.bf16.msra.mxu0 %v2353
    %2473 = vmatprep.subr.bf16.mxu0 %v2358
    %2474 = vmatpush1.bf16.msra.mxu0 %v2357
    %2475 = vmatprep.subr.bf16.mxu0 %v2362
    %2476 = vmatpush1.bf16.msra.mxu0 %v2361
    %2477 = vmatprep.subr.bf16.mxu0 %v2366
    %2478 = vmatpush1.bf16.msra.mxu0 %v2365
    %2479 = vmatprep.subr.bf16.mxu0 %v2370
    %2480 = vmatpush1.bf16.msra.mxu0 %v2369
    %2481 = vmatprep.subr.bf16.mxu0 %v2374
    %2482 = vmatpush1.bf16.msra.mxu0 %v2373
    %2483 = vmatprep.subr.bf16.mxu0 %v2378
    %2484 = vmatpush1.bf16.msra.mxu0 %v2377
    %2485 = vmatprep.subr.bf16.mxu0 %v2382
    %2486 = vmatpush1.bf16.msra.mxu0 %v2381
    %2487 = vmatprep.subr.bf16.mxu0 %v2386
    %2488 = vmatpush1.bf16.msra.mxu0 %v2385
    %2489 = vmatprep.subr.bf16.mxu0 %v2390
    %2490 = vmatpush1.bf16.msra.mxu0 %v2389
    %2491 = vmatprep.subr.bf16.mxu0 %v2394
    %2492 = vmatpush1.bf16.msra.mxu0 %v2393
    %2493 = vmatprep.mubr.bf16.mxu0 %v174
    %2494 = vmatmul.mubr.bf16.gmra.mrb[0].mxu0 %v173
    %v2495 = vpop.f32.mrb[0].mxu0
    %v2496 = vadd.f32 %v2124, %v2495
    %v2497 = vpop.f32.mrb[0].mxu0
    %v2498 = vadd.f32 %v2128, %v2497
    %v2499 = vpop.f32.mrb[0].mxu0
    %v2500 = vpop.f32.mrb[0].mxu0
    %2501 = vdwg.mxu0
    %2502 = vmatprep.subr.bf16.mxu0 %v2336
    %2503 = vmatpush1.bf16.msra.mxu0 %v2335
    %2504 = vmatprep.subr.bf16.mxu0 %v2340
    %2505 = vmatpush1.bf16.msra.mxu0 %v2339
    %2506 = vmatprep.subr.bf16.mxu0 %v2344
    %2507 = vmatpush1.bf16.msra.mxu0 %v2343
    %2508 = vmatprep.subr.bf16.mxu0 %v2348
    %2509 = vmatpush1.bf16.msra.mxu0 %v2347
    %2510 = vmatprep.subr.bf16.mxu0 %v2352
    %2511 = vmatpush1.bf16.msra.mxu0 %v2351
    %2512 = vmatprep.subr.bf16.mxu0 %v2356
    %2513 = vmatpush1.bf16.msra.mxu0 %v2355
    %2514 = vmatprep.subr.bf16.mxu0 %v2360
    %2515 = vmatpush1.bf16.msra.mxu0 %v2359
    %2516 = vmatprep.subr.bf16.mxu0 %v2364
    %2517 = vmatpush1.bf16.msra.mxu0 %v2363
    %2518 = vmatprep.subr.bf16.mxu0 %v2368
    %2519 = vmatpush1.bf16.msra.mxu0 %v2367
    %2520 = vmatprep.subr.bf16.mxu0 %v2372
    %2521 = vmatpush1.bf16.msra.mxu0 %v2371
    %2522 = vmatprep.subr.bf16.mxu0 %v2376
    %2523 = vmatpush1.bf16.msra.mxu0 %v2375
    %2524 = vmatprep.subr.bf16.mxu0 %v2380
    %2525 = vmatpush1.bf16.msra.mxu0 %v2379
    %2526 = vmatprep.subr.bf16.mxu0 %v2384
    %2527 = vmatpush1.bf16.msra.mxu0 %v2383
    %2528 = vmatprep.subr.bf16.mxu0 %v2388
    %2529 = vmatpush1.bf16.msra.mxu0 %v2387
    %2530 = vmatprep.subr.bf16.mxu0 %v2392
    %2531 = vmatpush1.bf16.msra.mxu0 %v2391
    %2532 = vmatprep.subr.bf16.mxu0 %v2396
    %2533 = vmatpush1.bf16.msra.mxu0 %v2395
    %2534 = vmatprep.mubr.bf16.mxu0 %v174
    %2535 = vmatmul.mubr.bf16.gmra.mrb[0].mxu0 %v173
    %v2536 = vpop.f32.mrb[0].mxu0
    %v2537 = vadd.f32 %v2132, %v2536
    %v2538 = vpop.f32.mrb[0].mxu0
    %v2539 = vadd.f32 %v2136, %v2538
    %v2540 = vpop.f32.mrb[0].mxu0
    %v2541 = vpop.f32.mrb[0].mxu0
    %2542 = vdwg.mxu0
    %v2543 = vmax.f32 %v2051, %v2496
    %v2544 = vmax.f32 %v2052, %v2498
    %v2545 = vmax.f32 %v2053, %v2537
    %v2546 = vmax.f32 %v2054, %v2539
    %v2547 = vld [vmem:[#allocation5 + $0x50] sm:$0xff]
    %v2548 = vld [vmem:[#allocation5 + $0x58] sm:$0xff]
    %v2549 = vld [vmem:[#allocation5 + $0xd0] sm:$0xff]
    %v2550 = vld [vmem:[#allocation5 + $0xd8] sm:$0xff]
    %v2551 = vld [vmem:[#allocation5 + $0x150] sm:$0xff]
    %v2552 = vld [vmem:[#allocation5 + $0x158] sm:$0xff]
    %v2553 = vld [vmem:[#allocation5 + $0x1d0] sm:$0xff]
    %v2554 = vld [vmem:[#allocation5 + $0x1d8] sm:$0xff]
    %v2555 = vld [vmem:[#allocation5 + $0x250] sm:$0xff]
    %v2556 = vld [vmem:[#allocation5 + $0x258] sm:$0xff]
    %v2557 = vld [vmem:[#allocation5 + $0x2d0] sm:$0xff]
    %v2558 = vld [vmem:[#allocation5 + $0x2d8] sm:$0xff]
    %v2559 = vld [vmem:[#allocation5 + $0x350] sm:$0xff]
    %v2560 = vld [vmem:[#allocation5 + $0x358] sm:$0xff]
    %v2561 = vld [vmem:[#allocation5 + $0x3d0] sm:$0xff]
    %v2562 = vld [vmem:[#allocation5 + $0x3d8] sm:$0xff]
    %v2563 = vld [vmem:[#allocation5 + $0x450] sm:$0xff]
    %v2564 = vld [vmem:[#allocation5 + $0x458] sm:$0xff]
    %v2565 = vld [vmem:[#allocation5 + $0x4d0] sm:$0xff]
    %v2566 = vld [vmem:[#allocation5 + $0x4d8] sm:$0xff]
    %v2567 = vld [vmem:[#allocation5 + $0x550] sm:$0xff]
    %v2568 = vld [vmem:[#allocation5 + $0x558] sm:$0xff]
    %v2569 = vld [vmem:[#allocation5 + $0x5d0] sm:$0xff]
    %v2570 = vld [vmem:[#allocation5 + $0x5d8] sm:$0xff]
    %v2571 = vld [vmem:[#allocation5 + $0x650] sm:$0xff]
    %v2572 = vld [vmem:[#allocation5 + $0x658] sm:$0xff]
    %v2573 = vld [vmem:[#allocation5 + $0x6d0] sm:$0xff]
    %v2574 = vld [vmem:[#allocation5 + $0x6d8] sm:$0xff]
    %v2575 = vld [vmem:[#allocation5 + $0x750] sm:$0xff]
    %v2576 = vld [vmem:[#allocation5 + $0x758] sm:$0xff]
    %v2577 = vld [vmem:[#allocation5 + $0x7d0] sm:$0xff]
    %v2578 = vld [vmem:[#allocation5 + $0x7d8] sm:$0xff]
    %v2579 = vld [vmem:[#allocation5 + $0x850] sm:$0xff]
    %v2580 = vld [vmem:[#allocation5 + $0x858] sm:$0xff]
    %v2581 = vld [vmem:[#allocation5 + $0x8d0] sm:$0xff]
    %v2582 = vld [vmem:[#allocation5 + $0x8d8] sm:$0xff]
    %v2583 = vld [vmem:[#allocation5 + $0x950] sm:$0xff]
    %v2584 = vld [vmem:[#allocation5 + $0x958] sm:$0xff]
    %v2585 = vld [vmem:[#allocation5 + $0x9d0] sm:$0xff]
    %v2586 = vld [vmem:[#allocation5 + $0x9d8] sm:$0xff]
    %v2587 = vld [vmem:[#allocation5 + $0xa50] sm:$0xff]
    %v2588 = vld [vmem:[#allocation5 + $0xa58] sm:$0xff]
    %v2589 = vld [vmem:[#allocation5 + $0xad0] sm:$0xff]
    %v2590 = vld [vmem:[#allocation5 + $0xad8] sm:$0xff]
    %v2591 = vld [vmem:[#allocation5 + $0xb50] sm:$0xff]
    %v2592 = vld [vmem:[#allocation5 + $0xb58] sm:$0xff]
    %v2593 = vld [vmem:[#allocation5 + $0xbd0] sm:$0xff]
    %v2594 = vld [vmem:[#allocation5 + $0xbd8] sm:$0xff]
    %v2595 = vld [vmem:[#allocation5 + $0xc50] sm:$0xff]
    %v2596 = vld [vmem:[#allocation5 + $0xc58] sm:$0xff]
    %v2597 = vld [vmem:[#allocation5 + $0xcd0] sm:$0xff]
    %v2598 = vld [vmem:[#allocation5 + $0xcd8] sm:$0xff]
    %v2599 = vld [vmem:[#allocation5 + $0xd50] sm:$0xff]
    %v2600 = vld [vmem:[#allocation5 + $0xd58] sm:$0xff]
    %v2601 = vld [vmem:[#allocation5 + $0xdd0] sm:$0xff]
    %v2602 = vld [vmem:[#allocation5 + $0xdd8] sm:$0xff]
    %v2603 = vld [vmem:[#allocation5 + $0xe50] sm:$0xff]
    %v2604 = vld [vmem:[#allocation5 + $0xe58] sm:$0xff]
    %v2605 = vld [vmem:[#allocation5 + $0xed0] sm:$0xff]
    %v2606 = vld [vmem:[#allocation5 + $0xed8] sm:$0xff]
    %v2607 = vld [vmem:[#allocation5 + $0xf50] sm:$0xff]
    %v2608 = vld [vmem:[#allocation5 + $0xf58] sm:$0xff]
    %v2609 = vld [vmem:[#allocation5 + $0xfd0] sm:$0xff]
    %v2610 = vld [vmem:[#allocation5 + $0xfd8] sm:$0xff]
    %v2611 = vld [vmem:[#allocation7 + $0x14] sm:$0xf]
    %v2613 = vlaneseq
    %v2614 = vshrl.u32 %v2613, 7
    %v2615 = vsub.s32 0, %v2614
    %v2616 = vrot.slane %v2611, %v2615
    %v2617 = vlaneseq
    %v2618 = vshrl.u32 %v2617, 7
    %v2619 = vsub.s32 1, %v2618
    %v2620 = vrot.slane %v2611, %v2619
    %v2621 = vlaneseq
    %v2622 = vshrl.u32 %v2621, 7
    %v2623 = vsub.s32 2, %v2622
    %v2624 = vrot.slane %v2611, %v2623
    %v2625 = vlaneseq
    %v2626 = vshrl.u32 %v2625, 7
    %v2627 = vsub.s32 3, %v2626
    %v2628 = vrot.slane %v2611, %v2627
    %v2697 = vunpack.c.l.b16 %v2547
    %v2698 = vunpack.c.h.b16 %v2547
    %v2699 = vunpack.c.l.b16 %v2548
    %v2700 = vunpack.c.h.b16 %v2548
    %v2701 = vunpack.c.l.b16 %v2549
    %v2702 = vunpack.c.h.b16 %v2549
    %v2703 = vunpack.c.l.b16 %v2550
    %v2704 = vunpack.c.h.b16 %v2550
    %v2705 = vunpack.c.l.b16 %v2551
    %v2706 = vunpack.c.h.b16 %v2551
    %v2707 = vunpack.c.l.b16 %v2552
    %v2708 = vunpack.c.h.b16 %v2552
    %v2709 = vunpack.c.l.b16 %v2553
    %v2710 = vunpack.c.h.b16 %v2553
    %v2711 = vunpack.c.l.b16 %v2554
    %v2712 = vunpack.c.h.b16 %v2554
    %v2713 = vunpack.c.l.b16 %v2555
    %v2714 = vunpack.c.h.b16 %v2555
    %v2715 = vunpack.c.l.b16 %v2556
    %v2716 = vunpack.c.h.b16 %v2556
    %v2717 = vunpack.c.l.b16 %v2557
    %v2718 = vunpack.c.h.b16 %v2557
    %v2719 = vunpack.c.l.b16 %v2558
    %v2720 = vunpack.c.h.b16 %v2558
    %v2721 = vunpack.c.l.b16 %v2559
    %v2722 = vunpack.c.h.b16 %v2559
    %v2723 = vunpack.c.l.b16 %v2560
    %v2724 = vunpack.c.h.b16 %v2560
    %v2725 = vunpack.c.l.b16 %v2561
    %v2726 = vunpack.c.h.b16 %v2561
    %v2727 = vunpack.c.l.b16 %v2562
    %v2728 = vunpack.c.h.b16 %v2562
    %v2729 = vunpack.c.l.b16 %v2563
    %v2730 = vunpack.c.h.b16 %v2563
    %v2731 = vunpack.c.l.b16 %v2564
    %v2732 = vunpack.c.h.b16 %v2564
    %v2733 = vunpack.c.l.b16 %v2565
    %v2734 = vunpack.c.h.b16 %v2565
    %v2735 = vunpack.c.l.b16 %v2566
    %v2736 = vunpack.c.h.b16 %v2566
    %v2737 = vunpack.c.l.b16 %v2567
    %v2738 = vunpack.c.h.b16 %v2567
    %v2739 = vunpack.c.l.b16 %v2568
    %v2740 = vunpack.c.h.b16 %v2568
    %v2741 = vunpack.c.l.b16 %v2569
    %v2742 = vunpack.c.h.b16 %v2569
    %v2743 = vunpack.c.l.b16 %v2570
    %v2744 = vunpack.c.h.b16 %v2570
    %v2745 = vunpack.c.l.b16 %v2571
    %v2746 = vunpack.c.h.b16 %v2571
    %v2747 = vunpack.c.l.b16 %v2572
    %v2748 = vunpack.c.h.b16 %v2572
    %v2749 = vunpack.c.l.b16 %v2573
    %v2750 = vunpack.c.h.b16 %v2573
    %v2751 = vunpack.c.l.b16 %v2574
    %v2752 = vunpack.c.h.b16 %v2574
    %v2753 = vunpack.c.l.b16 %v2575
    %v2754 = vunpack.c.h.b16 %v2575
    %v2755 = vunpack.c.l.b16 %v2576
    %v2756 = vunpack.c.h.b16 %v2576
    %v2757 = vunpack.c.l.b16 %v2577
    %v2758 = vunpack.c.h.b16 %v2577
    %v2759 = vunpack.c.l.b16 %v2578
    %v2760 = vunpack.c.h.b16 %v2578
    %v2761 = vunpack.c.l.b16 %v2579
    %v2762 = vunpack.c.h.b16 %v2579
    %v2763 = vunpack.c.l.b16 %v2580
    %v2764 = vunpack.c.h.b16 %v2580
    %v2765 = vunpack.c.l.b16 %v2581
    %v2766 = vunpack.c.h.b16 %v2581
    %v2767 = vunpack.c.l.b16 %v2582
    %v2768 = vunpack.c.h.b16 %v2582
    %v2769 = vunpack.c.l.b16 %v2583
    %v2770 = vunpack.c.h.b16 %v2583
    %v2771 = vunpack.c.l.b16 %v2584
    %v2772 = vunpack.c.h.b16 %v2584
    %v2773 = vunpack.c.l.b16 %v2585
    %v2774 = vunpack.c.h.b16 %v2585
    %v2775 = vunpack.c.l.b16 %v2586
    %v2776 = vunpack.c.h.b16 %v2586
    %v2777 = vunpack.c.l.b16 %v2587
    %v2778 = vunpack.c.h.b16 %v2587
    %v2779 = vunpack.c.l.b16 %v2588
    %v2780 = vunpack.c.h.b16 %v2588
    %v2781 = vunpack.c.l.b16 %v2589
    %v2782 = vunpack.c.h.b16 %v2589
    %v2783 = vunpack.c.l.b16 %v2590
    %v2784 = vunpack.c.h.b16 %v2590
    %v2785 = vunpack.c.l.b16 %v2591
    %v2786 = vunpack.c.h.b16 %v2591
    %v2787 = vunpack.c.l.b16 %v2592
    %v2788 = vunpack.c.h.b16 %v2592
    %v2789 = vunpack.c.l.b16 %v2593
    %v2790 = vunpack.c.h.b16 %v2593
    %v2791 = vunpack.c.l.b16 %v2594
    %v2792 = vunpack.c.h.b16 %v2594
    %v2793 = vunpack.c.l.b16 %v2595
    %v2794 = vunpack.c.h.b16 %v2595
    %v2795 = vunpack.c.l.b16 %v2596
    %v2796 = vunpack.c.h.b16 %v2596
    %v2797 = vunpack.c.l.b16 %v2597
    %v2798 = vunpack.c.h.b16 %v2597
    %v2799 = vunpack.c.l.b16 %v2598
    %v2800 = vunpack.c.h.b16 %v2598
    %v2801 = vunpack.c.l.b16 %v2599
    %v2802 = vunpack.c.h.b16 %v2599
    %v2803 = vunpack.c.l.b16 %v2600
    %v2804 = vunpack.c.h.b16 %v2600
    %v2805 = vunpack.c.l.b16 %v2601
    %v2806 = vunpack.c.h.b16 %v2601
    %v2807 = vunpack.c.l.b16 %v2602
    %v2808 = vunpack.c.h.b16 %v2602
    %v2809 = vunpack.c.l.b16 %v2603
    %v2810 = vunpack.c.h.b16 %v2603
    %v2811 = vunpack.c.l.b16 %v2604
    %v2812 = vunpack.c.h.b16 %v2604
    %v2813 = vunpack.c.l.b16 %v2605
    %v2814 = vunpack.c.h.b16 %v2605
    %v2815 = vunpack.c.l.b16 %v2606
    %v2816 = vunpack.c.h.b16 %v2606
    %v2817 = vunpack.c.l.b16 %v2607
    %v2818 = vunpack.c.h.b16 %v2607
    %v2819 = vunpack.c.l.b16 %v2608
    %v2820 = vunpack.c.h.b16 %v2608
    %v2821 = vunpack.c.l.b16 %v2609
    %v2822 = vunpack.c.h.b16 %v2609
    %v2823 = vunpack.c.l.b16 %v2610
    %v2824 = vunpack.c.h.b16 %v2610
    %v2825 = vpack.c.b16 %v2701, %v2697
    %v2826 = vpack.c.b16 %v2702, %v2698
    %v2827 = vpack.c.b16 %v2703, %v2699
    %v2828 = vpack.c.b16 %v2704, %v2700
    %v2829 = vpack.c.b16 %v2709, %v2705
    %v2830 = vpack.c.b16 %v2710, %v2706
    %v2831 = vpack.c.b16 %v2711, %v2707
    %v2832 = vpack.c.b16 %v2712, %v2708
    %v2833 = vpack.c.b16 %v2717, %v2713
    %v2834 = vpack.c.b16 %v2718, %v2714
    %v2835 = vpack.c.b16 %v2719, %v2715
    %v2836 = vpack.c.b16 %v2720, %v2716
    %v2837 = vpack.c.b16 %v2725, %v2721
    %v2838 = vpack.c.b16 %v2726, %v2722
    %v2839 = vpack.c.b16 %v2727, %v2723
    %v2840 = vpack.c.b16 %v2728, %v2724
    %v2841 = vpack.c.b16 %v2733, %v2729
    %v2842 = vpack.c.b16 %v2734, %v2730
    %v2843 = vpack.c.b16 %v2735, %v2731
    %v2844 = vpack.c.b16 %v2736, %v2732
    %v2845 = vpack.c.b16 %v2741, %v2737
    %v2846 = vpack.c.b16 %v2742, %v2738
    %v2847 = vpack.c.b16 %v2743, %v2739
    %v2848 = vpack.c.b16 %v2744, %v2740
    %v2849 = vpack.c.b16 %v2749, %v2745
    %v2850 = vpack.c.b16 %v2750, %v2746
    %v2851 = vpack.c.b16 %v2751, %v2747
    %v2852 = vpack.c.b16 %v2752, %v2748
    %v2853 = vpack.c.b16 %v2757, %v2753
    %v2854 = vpack.c.b16 %v2758, %v2754
    %v2855 = vpack.c.b16 %v2759, %v2755
    %v2856 = vpack.c.b16 %v2760, %v2756
    %v2857 = vpack.c.b16 %v2765, %v2761
    %v2858 = vpack.c.b16 %v2766, %v2762
    %v2859 = vpack.c.b16 %v2767, %v2763
    %v2860 = vpack.c.b16 %v2768, %v2764
    %v2861 = vpack.c.b16 %v2773, %v2769
    %v2862 = vpack.c.b16 %v2774, %v2770
    %v2863 = vpack.c.b16 %v2775, %v2771
    %v2864 = vpack.c.b16 %v2776, %v2772
    %v2865 = vpack.c.b16 %v2781, %v2777
    %v2866 = vpack.c.b16 %v2782, %v2778
    %v2867 = vpack.c.b16 %v2783, %v2779
    %v2868 = vpack.c.b16 %v2784, %v2780
    %v2869 = vpack.c.b16 %v2789, %v2785
    %v2870 = vpack.c.b16 %v2790, %v2786
    %v2871 = vpack.c.b16 %v2791, %v2787
    %v2872 = vpack.c.b16 %v2792, %v2788
    %v2873 = vpack.c.b16 %v2797, %v2793
    %v2874 = vpack.c.b16 %v2798, %v2794
    %v2875 = vpack.c.b16 %v2799, %v2795
    %v2876 = vpack.c.b16 %v2800, %v2796
    %v2877 = vpack.c.b16 %v2805, %v2801
    %v2878 = vpack.c.b16 %v2806, %v2802
    %v2879 = vpack.c.b16 %v2807, %v2803
    %v2880 = vpack.c.b16 %v2808, %v2804
    %v2881 = vpack.c.b16 %v2813, %v2809
    %v2882 = vpack.c.b16 %v2814, %v2810
    %v2883 = vpack.c.b16 %v2815, %v2811
    %v2884 = vpack.c.b16 %v2816, %v2812
    %v2885 = vpack.c.b16 %v2821, %v2817
    %v2886 = vpack.c.b16 %v2822, %v2818
    %v2887 = vpack.c.b16 %v2823, %v2819
    %v2888 = vpack.c.b16 %v2824, %v2820
    %2953 = vmatprep.subr.bf16.mxu0 %v2826
    %2954 = vmatpush1.bf16.msra.mxu0 %v2825
    %2955 = vmatprep.subr.bf16.mxu0 %v2830
    %2956 = vmatpush1.bf16.msra.mxu0 %v2829
    %2957 = vmatprep.subr.bf16.mxu0 %v2834
    %2958 = vmatpush1.bf16.msra.mxu0 %v2833
    %2959 = vmatprep.subr.bf16.mxu0 %v2838
    %2960 = vmatpush1.bf16.msra.mxu0 %v2837
    %2961 = vmatprep.subr.bf16.mxu0 %v2842
    %2962 = vmatpush1.bf16.msra.mxu0 %v2841
    %2963 = vmatprep.subr.bf16.mxu0 %v2846
    %2964 = vmatpush1.bf16.msra.mxu0 %v2845
    %2965 = vmatprep.subr.bf16.mxu0 %v2850
    %2966 = vmatpush1.bf16.msra.mxu0 %v2849
    %2967 = vmatprep.subr.bf16.mxu0 %v2854
    %2968 = vmatpush1.bf16.msra.mxu0 %v2853
    %2969 = vmatprep.subr.bf16.mxu0 %v2858
    %2970 = vmatpush1.bf16.msra.mxu0 %v2857
    %2971 = vmatprep.subr.bf16.mxu0 %v2862
    %2972 = vmatpush1.bf16.msra.mxu0 %v2861
    %2973 = vmatprep.subr.bf16.mxu0 %v2866
    %2974 = vmatpush1.bf16.msra.mxu0 %v2865
    %2975 = vmatprep.subr.bf16.mxu0 %v2870
    %2976 = vmatpush1.bf16.msra.mxu0 %v2869
    %2977 = vmatprep.subr.bf16.mxu0 %v2874
    %2978 = vmatpush1.bf16.msra.mxu0 %v2873
    %2979 = vmatprep.subr.bf16.mxu0 %v2878
    %2980 = vmatpush1.bf16.msra.mxu0 %v2877
    %2981 = vmatprep.subr.bf16.mxu0 %v2882
    %2982 = vmatpush1.bf16.msra.mxu0 %v2881
    %2983 = vmatprep.subr.bf16.mxu0 %v2886
    %2984 = vmatpush1.bf16.msra.mxu0 %v2885
    %2985 = vmatprep.mubr.bf16.mxu0 %v174
    %2986 = vmatmul.mubr.bf16.gmra.mrb[0].mxu0 %v173
    %v2987 = vpop.f32.mrb[0].mxu0
    %v2988 = vadd.f32 %v2616, %v2987
    %v2989 = vpop.f32.mrb[0].mxu0
    %v2990 = vadd.f32 %v2620, %v2989
    %v2991 = vpop.f32.mrb[0].mxu0
    %v2992 = vpop.f32.mrb[0].mxu0
    %2993 = vdwg.mxu0
    %2994 = vmatprep.subr.bf16.mxu0 %v2828
    %2995 = vmatpush1.bf16.msra.mxu0 %v2827
    %2996 = vmatprep.subr.bf16.mxu0 %v2832
    %2997 = vmatpush1.bf16.msra.mxu0 %v2831
    %2998 = vmatprep.subr.bf16.mxu0 %v2836
    %2999 = vmatpush1.bf16.msra.mxu0 %v2835
    %3000 = vmatprep.subr.bf16.mxu0 %v2840
    %3001 = vmatpush1.bf16.msra.mxu0 %v2839
    %3002 = vmatprep.subr.bf16.mxu0 %v2844
    %3003 = vmatpush1.bf16.msra.mxu0 %v2843
    %3004 = vmatprep.subr.bf16.mxu0 %v2848
    %3005 = vmatpush1.bf16.msra.mxu0 %v2847
    %3006 = vmatprep.subr.bf16.mxu0 %v2852
    %3007 = vmatpush1.bf16.msra.mxu0 %v2851
    %3008 = vmatprep.subr.bf16.mxu0 %v2856
    %3009 = vmatpush1.bf16.msra.mxu0 %v2855
    %3010 = vmatprep.subr.bf16.mxu0 %v2860
    %3011 = vmatpush1.bf16.msra.mxu0 %v2859
    %3012 = vmatprep.subr.bf16.mxu0 %v2864
    %3013 = vmatpush1.bf16.msra.mxu0 %v2863
    %3014 = vmatprep.subr.bf16.mxu0 %v2868
    %3015 = vmatpush1.bf16.msra.mxu0 %v2867
    %3016 = vmatprep.subr.bf16.mxu0 %v2872
    %3017 = vmatpush1.bf16.msra.mxu0 %v2871
    %3018 = vmatprep.subr.bf16.mxu0 %v2876
    %3019 = vmatpush1.bf16.msra.mxu0 %v2875
    %3020 = vmatprep.subr.bf16.mxu0 %v2880
    %3021 = vmatpush1.bf16.msra.mxu0 %v2879
    %3022 = vmatprep.subr.bf16.mxu0 %v2884
    %3023 = vmatpush1.bf16.msra.mxu0 %v2883
    %3024 = vmatprep.subr.bf16.mxu0 %v2888
    %3025 = vmatpush1.bf16.msra.mxu0 %v2887
    %3026 = vmatprep.mubr.bf16.mxu0 %v174
    %3027 = vmatmul.mubr.bf16.gmra.mrb[0].mxu0 %v173
    %v3028 = vpop.f32.mrb[0].mxu0
    %v3029 = vadd.f32 %v2624, %v3028
    %v3030 = vpop.f32.mrb[0].mxu0
    %v3031 = vadd.f32 %v2628, %v3030
    %v3032 = vpop.f32.mrb[0].mxu0
    %v3033 = vpop.f32.mrb[0].mxu0
    %3034 = vdwg.mxu0
    %v3035 = vmax.f32 %v2543, %v2988
    %v3036 = vmax.f32 %v2544, %v2990
    %v3037 = vmax.f32 %v2545, %v3029
    %v3038 = vmax.f32 %v2546, %v3031
    %v3039 = vld [vmem:[#allocation5 + $0x60] sm:$0xff]
    %v3040 = vld [vmem:[#allocation5 + $0x68] sm:$0xff]
    %v3041 = vld [vmem:[#allocation5 + $0xe0] sm:$0xff]
    %v3042 = vld [vmem:[#allocation5 + $0xe8] sm:$0xff]
    %v3043 = vld [vmem:[#allocation5 + $0x160] sm:$0xff]
    %v3044 = vld [vmem:[#allocation5 + $0x168] sm:$0xff]
    %v3045 = vld [vmem:[#allocation5 + $0x1e0] sm:$0xff]
    %v3046 = vld [vmem:[#allocation5 + $0x1e8] sm:$0xff]
    %v3047 = vld [vmem:[#allocation5 + $0x260] sm:$0xff]
    %v3048 = vld [vmem:[#allocation5 + $0x268] sm:$0xff]
    %v3049 = vld [vmem:[#allocation5 + $0x2e0] sm:$0xff]
    %v3050 = vld [vmem:[#allocation5 + $0x2e8] sm:$0xff]
    %v3051 = vld [vmem:[#allocation5 + $0x360] sm:$0xff]
    %v3052 = vld [vmem:[#allocation5 + $0x368] sm:$0xff]
    %v3053 = vld [vmem:[#allocation5 + $0x3e0] sm:$0xff]
    %v3054 = vld [vmem:[#allocation5 + $0x3e8] sm:$0xff]
    %v3055 = vld [vmem:[#allocation5 + $0x460] sm:$0xff]
    %v3056 = vld [vmem:[#allocation5 + $0x468] sm:$0xff]
    %v3057 = vld [vmem:[#allocation5 + $0x4e0] sm:$0xff]
    %v3058 = vld [vmem:[#allocation5 + $0x4e8] sm:$0xff]
    %v3059 = vld [vmem:[#allocation5 + $0x560] sm:$0xff]
    %v3060 = vld [vmem:[#allocation5 + $0x568] sm:$0xff]
    %v3061 = vld [vmem:[#allocation5 + $0x5e0] sm:$0xff]
    %v3062 = vld [vmem:[#allocation5 + $0x5e8] sm:$0xff]
    %v3063 = vld [vmem:[#allocation5 + $0x660] sm:$0xff]
    %v3064 = vld [vmem:[#allocation5 + $0x668] sm:$0xff]
    %v3065 = vld [vmem:[#allocation5 + $0x6e0] sm:$0xff]
    %v3066 = vld [vmem:[#allocation5 + $0x6e8] sm:$0xff]
    %v3067 = vld [vmem:[#allocation5 + $0x760] sm:$0xff]
    %v3068 = vld [vmem:[#allocation5 + $0x768] sm:$0xff]
    %v3069 = vld [vmem:[#allocation5 + $0x7e0] sm:$0xff]
    %v3070 = vld [vmem:[#allocation5 + $0x7e8] sm:$0xff]
    %v3071 = vld [vmem:[#allocation5 + $0x860] sm:$0xff]
    %v3072 = vld [vmem:[#allocation5 + $0x868] sm:$0xff]
    %v3073 = vld [vmem:[#allocation5 + $0x8e0] sm:$0xff]
    %v3074 = vld [vmem:[#allocation5 + $0x8e8] sm:$0xff]
    %v3075 = vld [vmem:[#allocation5 + $0x960] sm:$0xff]
    %v3076 = vld [vmem:[#allocation5 + $0x968] sm:$0xff]
    %v3077 = vld [vmem:[#allocation5 + $0x9e0] sm:$0xff]
    %v3078 = vld [vmem:[#allocation5 + $0x9e8] sm:$0xff]
    %v3079 = vld [vmem:[#allocation5 + $0xa60] sm:$0xff]
    %v3080 = vld [vmem:[#allocation5 + $0xa68] sm:$0xff]
    %v3081 = vld [vmem:[#allocation5 + $0xae0] sm:$0xff]
    %v3082 = vld [vmem:[#allocation5 + $0xae8] sm:$0xff]
    %v3083 = vld [vmem:[#allocation5 + $0xb60] sm:$0xff]
    %v3084 = vld [vmem:[#allocation5 + $0xb68] sm:$0xff]
    %v3085 = vld [vmem:[#allocation5 + $0xbe0] sm:$0xff]
    %v3086 = vld [vmem:[#allocation5 + $0xbe8] sm:$0xff]
    %v3087 = vld [vmem:[#allocation5 + $0xc60] sm:$0xff]
    %v3088 = vld [vmem:[#allocation5 + $0xc68] sm:$0xff]
    %v3089 = vld [vmem:[#allocation5 + $0xce0] sm:$0xff]
    %v3090 = vld [vmem:[#allocation5 + $0xce8] sm:$0xff]
    %v3091 = vld [vmem:[#allocation5 + $0xd60] sm:$0xff]
    %v3092 = vld [vmem:[#allocation5 + $0xd68] sm:$0xff]
    %v3093 = vld [vmem:[#allocation5 + $0xde0] sm:$0xff]
    %v3094 = vld [vmem:[#allocation5 + $0xde8] sm:$0xff]
    %v3095 = vld [vmem:[#allocation5 + $0xe60] sm:$0xff]
    %v3096 = vld [vmem:[#allocation5 + $0xe68] sm:$0xff]
    %v3097 = vld [vmem:[#allocation5 + $0xee0] sm:$0xff]
    %v3098 = vld [vmem:[#allocation5 + $0xee8] sm:$0xff]
    %v3099 = vld [vmem:[#allocation5 + $0xf60] sm:$0xff]
    %v3100 = vld [vmem:[#allocation5 + $0xf68] sm:$0xff]
    %v3101 = vld [vmem:[#allocation5 + $0xfe0] sm:$0xff]
    %v3102 = vld [vmem:[#allocation5 + $0xfe8] sm:$0xff]
    %v3103 = vld [vmem:[#allocation7 + $0x18] sm:$0xf]
    %v3105 = vlaneseq
    %v3106 = vshrl.u32 %v3105, 7
    %v3107 = vsub.s32 0, %v3106
    %v3108 = vrot.slane %v3103, %v3107
    %v3109 = vlaneseq
    %v3110 = vshrl.u32 %v3109, 7
    %v3111 = vsub.s32 1, %v3110
    %v3112 = vrot.slane %v3103, %v3111
    %v3113 = vlaneseq
    %v3114 = vshrl.u32 %v3113, 7
    %v3115 = vsub.s32 2, %v3114
    %v3116 = vrot.slane %v3103, %v3115
    %v3117 = vlaneseq
    %v3118 = vshrl.u32 %v3117, 7
    %v3119 = vsub.s32 3, %v3118
    %v3120 = vrot.slane %v3103, %v3119
    %v3189 = vunpack.c.l.b16 %v3039
    %v3190 = vunpack.c.h.b16 %v3039
    %v3191 = vunpack.c.l.b16 %v3040
    %v3192 = vunpack.c.h.b16 %v3040
    %v3193 = vunpack.c.l.b16 %v3041
    %v3194 = vunpack.c.h.b16 %v3041
    %v3195 = vunpack.c.l.b16 %v3042
    %v3196 = vunpack.c.h.b16 %v3042
    %v3197 = vunpack.c.l.b16 %v3043
    %v3198 = vunpack.c.h.b16 %v3043
    %v3199 = vunpack.c.l.b16 %v3044
    %v3200 = vunpack.c.h.b16 %v3044
    %v3201 = vunpack.c.l.b16 %v3045
    %v3202 = vunpack.c.h.b16 %v3045
    %v3203 = vunpack.c.l.b16 %v3046
    %v3204 = vunpack.c.h.b16 %v3046
    %v3205 = vunpack.c.l.b16 %v3047
    %v3206 = vunpack.c.h.b16 %v3047
    %v3207 = vunpack.c.l.b16 %v3048
    %v3208 = vunpack.c.h.b16 %v3048
    %v3209 = vunpack.c.l.b16 %v3049
    %v3210 = vunpack.c.h.b16 %v3049
    %v3211 = vunpack.c.l.b16 %v3050
    %v3212 = vunpack.c.h.b16 %v3050
    %v3213 = vunpack.c.l.b16 %v3051
    %v3214 = vunpack.c.h.b16 %v3051
    %v3215 = vunpack.c.l.b16 %v3052
    %v3216 = vunpack.c.h.b16 %v3052
    %v3217 = vunpack.c.l.b16 %v3053
    %v3218 = vunpack.c.h.b16 %v3053
    %v3219 = vunpack.c.l.b16 %v3054
    %v3220 = vunpack.c.h.b16 %v3054
    %v3221 = vunpack.c.l.b16 %v3055
    %v3222 = vunpack.c.h.b16 %v3055
    %v3223 = vunpack.c.l.b16 %v3056
    %v3224 = vunpack.c.h.b16 %v3056
    %v3225 = vunpack.c.l.b16 %v3057
    %v3226 = vunpack.c.h.b16 %v3057
    %v3227 = vunpack.c.l.b16 %v3058
    %v3228 = vunpack.c.h.b16 %v3058
    %v3229 = vunpack.c.l.b16 %v3059
    %v3230 = vunpack.c.h.b16 %v3059
    %v3231 = vunpack.c.l.b16 %v3060
    %v3232 = vunpack.c.h.b16 %v3060
    %v3233 = vunpack.c.l.b16 %v3061
    %v3234 = vunpack.c.h.b16 %v3061
    %v3235 = vunpack.c.l.b16 %v3062
    %v3236 = vunpack.c.h.b16 %v3062
    %v3237 = vunpack.c.l.b16 %v3063
    %v3238 = vunpack.c.h.b16 %v3063
    %v3239 = vunpack.c.l.b16 %v3064
    %v3240 = vunpack.c.h.b16 %v3064
    %v3241 = vunpack.c.l.b16 %v3065
    %v3242 = vunpack.c.h.b16 %v3065
    %v3243 = vunpack.c.l.b16 %v3066
    %v3244 = vunpack.c.h.b16 %v3066
    %v3245 = vunpack.c.l.b16 %v3067
    %v3246 = vunpack.c.h.b16 %v3067
    %v3247 = vunpack.c.l.b16 %v3068
    %v3248 = vunpack.c.h.b16 %v3068
    %v3249 = vunpack.c.l.b16 %v3069
    %v3250 = vunpack.c.h.b16 %v3069
    %v3251 = vunpack.c.l.b16 %v3070
    %v3252 = vunpack.c.h.b16 %v3070
    %v3253 = vunpack.c.l.b16 %v3071
    %v3254 = vunpack.c.h.b16 %v3071
    %v3255 = vunpack.c.l.b16 %v3072
    %v3256 = vunpack.c.h.b16 %v3072
    %v3257 = vunpack.c.l.b16 %v3073
    %v3258 = vunpack.c.h.b16 %v3073
    %v3259 = vunpack.c.l.b16 %v3074
    %v3260 = vunpack.c.h.b16 %v3074
    %v3261 = vunpack.c.l.b16 %v3075
    %v3262 = vunpack.c.h.b16 %v3075
    %v3263 = vunpack.c.l.b16 %v3076
    %v3264 = vunpack.c.h.b16 %v3076
    %v3265 = vunpack.c.l.b16 %v3077
    %v3266 = vunpack.c.h.b16 %v3077
    %v3267 = vunpack.c.l.b16 %v3078
    %v3268 = vunpack.c.h.b16 %v3078
    %v3269 = vunpack.c.l.b16 %v3079
    %v3270 = vunpack.c.h.b16 %v3079
    %v3271 = vunpack.c.l.b16 %v3080
    %v3272 = vunpack.c.h.b16 %v3080
    %v3273 = vunpack.c.l.b16 %v3081
    %v3274 = vunpack.c.h.b16 %v3081
    %v3275 = vunpack.c.l.b16 %v3082
    %v3276 = vunpack.c.h.b16 %v3082
    %v3277 = vunpack.c.l.b16 %v3083
    %v3278 = vunpack.c.h.b16 %v3083
    %v3279 = vunpack.c.l.b16 %v3084
    %v3280 = vunpack.c.h.b16 %v3084
    %v3281 = vunpack.c.l.b16 %v3085
    %v3282 = vunpack.c.h.b16 %v3085
    %v3283 = vunpack.c.l.b16 %v3086
    %v3284 = vunpack.c.h.b16 %v3086
    %v3285 = vunpack.c.l.b16 %v3087
    %v3286 = vunpack.c.h.b16 %v3087
    %v3287 = vunpack.c.l.b16 %v3088
    %v3288 = vunpack.c.h.b16 %v3088
    %v3289 = vunpack.c.l.b16 %v3089
    %v3290 = vunpack.c.h.b16 %v3089
    %v3291 = vunpack.c.l.b16 %v3090
    %v3292 = vunpack.c.h.b16 %v3090
    %v3293 = vunpack.c.l.b16 %v3091
    %v3294 = vunpack.c.h.b16 %v3091
    %v3295 = vunpack.c.l.b16 %v3092
    %v3296 = vunpack.c.h.b16 %v3092
    %v3297 = vunpack.c.l.b16 %v3093
    %v3298 = vunpack.c.h.b16 %v3093
    %v3299 = vunpack.c.l.b16 %v3094
    %v3300 = vunpack.c.h.b16 %v3094
    %v3301 = vunpack.c.l.b16 %v3095
    %v3302 = vunpack.c.h.b16 %v3095
    %v3303 = vunpack.c.l.b16 %v3096
    %v3304 = vunpack.c.h.b16 %v3096
    %v3305 = vunpack.c.l.b16 %v3097
    %v3306 = vunpack.c.h.b16 %v3097
    %v3307 = vunpack.c.l.b16 %v3098
    %v3308 = vunpack.c.h.b16 %v3098
    %v3309 = vunpack.c.l.b16 %v3099
    %v3310 = vunpack.c.h.b16 %v3099
    %v3311 = vunpack.c.l.b16 %v3100
    %v3312 = vunpack.c.h.b16 %v3100
    %v3313 = vunpack.c.l.b16 %v3101
    %v3314 = vunpack.c.h.b16 %v3101
    %v3315 = vunpack.c.l.b16 %v3102
    %v3316 = vunpack.c.h.b16 %v3102
    %v3317 = vpack.c.b16 %v3193, %v3189
    %v3318 = vpack.c.b16 %v3194, %v3190
    %v3319 = vpack.c.b16 %v3195, %v3191
    %v3320 = vpack.c.b16 %v3196, %v3192
    %v3321 = vpack.c.b16 %v3201, %v3197
    %v3322 = vpack.c.b16 %v3202, %v3198
    %v3323 = vpack.c.b16 %v3203, %v3199
    %v3324 = vpack.c.b16 %v3204, %v3200
    %v3325 = vpack.c.b16 %v3209, %v3205
    %v3326 = vpack.c.b16 %v3210, %v3206
    %v3327 = vpack.c.b16 %v3211, %v3207
    %v3328 = vpack.c.b16 %v3212, %v3208
    %v3329 = vpack.c.b16 %v3217, %v3213
    %v3330 = vpack.c.b16 %v3218, %v3214
    %v3331 = vpack.c.b16 %v3219, %v3215
    %v3332 = vpack.c.b16 %v3220, %v3216
    %v3333 = vpack.c.b16 %v3225, %v3221
    %v3334 = vpack.c.b16 %v3226, %v3222
    %v3335 = vpack.c.b16 %v3227, %v3223
    %v3336 = vpack.c.b16 %v3228, %v3224
    %v3337 = vpack.c.b16 %v3233, %v3229
    %v3338 = vpack.c.b16 %v3234, %v3230
    %v3339 = vpack.c.b16 %v3235, %v3231
    %v3340 = vpack.c.b16 %v3236, %v3232
    %v3341 = vpack.c.b16 %v3241, %v3237
    %v3342 = vpack.c.b16 %v3242, %v3238
    %v3343 = vpack.c.b16 %v3243, %v3239
    %v3344 = vpack.c.b16 %v3244, %v3240
    %v3345 = vpack.c.b16 %v3249, %v3245
    %v3346 = vpack.c.b16 %v3250, %v3246
    %v3347 = vpack.c.b16 %v3251, %v3247
    %v3348 = vpack.c.b16 %v3252, %v3248
    %v3349 = vpack.c.b16 %v3257, %v3253
    %v3350 = vpack.c.b16 %v3258, %v3254
    %v3351 = vpack.c.b16 %v3259, %v3255
    %v3352 = vpack.c.b16 %v3260, %v3256
    %v3353 = vpack.c.b16 %v3265, %v3261
    %v3354 = vpack.c.b16 %v3266, %v3262
    %v3355 = vpack.c.b16 %v3267, %v3263
    %v3356 = vpack.c.b16 %v3268, %v3264
    %v3357 = vpack.c.b16 %v3273, %v3269
    %v3358 = vpack.c.b16 %v3274, %v3270
    %v3359 = vpack.c.b16 %v3275, %v3271
    %v3360 = vpack.c.b16 %v3276, %v3272
    %v3361 = vpack.c.b16 %v3281, %v3277
    %v3362 = vpack.c.b16 %v3282, %v3278
    %v3363 = vpack.c.b16 %v3283, %v3279
    %v3364 = vpack.c.b16 %v3284, %v3280
    %v3365 = vpack.c.b16 %v3289, %v3285
    %v3366 = vpack.c.b16 %v3290, %v3286
    %v3367 = vpack.c.b16 %v3291, %v3287
    %v3368 = vpack.c.b16 %v3292, %v3288
    %v3369 = vpack.c.b16 %v3297, %v3293
    %v3370 = vpack.c.b16 %v3298, %v3294
    %v3371 = vpack.c.b16 %v3299, %v3295
    %v3372 = vpack.c.b16 %v3300, %v3296
    %v3373 = vpack.c.b16 %v3305, %v3301
    %v3374 = vpack.c.b16 %v3306, %v3302
    %v3375 = vpack.c.b16 %v3307, %v3303
    %v3376 = vpack.c.b16 %v3308, %v3304
    %v3377 = vpack.c.b16 %v3313, %v3309
    %v3378 = vpack.c.b16 %v3314, %v3310
    %v3379 = vpack.c.b16 %v3315, %v3311
    %v3380 = vpack.c.b16 %v3316, %v3312
    %3445 = vmatprep.subr.bf16.mxu0 %v3318
    %3446 = vmatpush1.bf16.msra.mxu0 %v3317
    %3447 = vmatprep.subr.bf16.mxu0 %v3322
    %3448 = vmatpush1.bf16.msra.mxu0 %v3321
    %3449 = vmatprep.subr.bf16.mxu0 %v3326
    %3450 = vmatpush1.bf16.msra.mxu0 %v3325
    %3451 = vmatprep.subr.bf16.mxu0 %v3330
    %3452 = vmatpush1.bf16.msra.mxu0 %v3329
    %3453 = vmatprep.subr.bf16.mxu0 %v3334
    %3454 = vmatpush1.bf16.msra.mxu0 %v3333
    %3455 = vmatprep.subr.bf16.mxu0 %v3338
    %3456 = vmatpush1.bf16.msra.mxu0 %v3337
    %3457 = vmatprep.subr.bf16.mxu0 %v3342
    %3458 = vmatpush1.bf16.msra.mxu0 %v3341
    %3459 = vmatprep.subr.bf16.mxu0 %v3346
    %3460 = vmatpush1.bf16.msra.mxu0 %v3345
    %3461 = vmatprep.subr.bf16.mxu0 %v3350
    %3462 = vmatpush1.bf16.msra.mxu0 %v3349
    %3463 = vmatprep.subr.bf16.mxu0 %v3354
    %3464 = vmatpush1.bf16.msra.mxu0 %v3353
    %3465 = vmatprep.subr.bf16.mxu0 %v3358
    %3466 = vmatpush1.bf16.msra.mxu0 %v3357
    %3467 = vmatprep.subr.bf16.mxu0 %v3362
    %3468 = vmatpush1.bf16.msra.mxu0 %v3361
    %3469 = vmatprep.subr.bf16.mxu0 %v3366
    %3470 = vmatpush1.bf16.msra.mxu0 %v3365
    %3471 = vmatprep.subr.bf16.mxu0 %v3370
    %3472 = vmatpush1.bf16.msra.mxu0 %v3369
    %3473 = vmatprep.subr.bf16.mxu0 %v3374
    %3474 = vmatpush1.bf16.msra.mxu0 %v3373
    %3475 = vmatprep.subr.bf16.mxu0 %v3378
    %3476 = vmatpush1.bf16.msra.mxu0 %v3377
    %3477 = vmatprep.mubr.bf16.mxu0 %v174
    %3478 = vmatmul.mubr.bf16.gmra.mrb[0].mxu0 %v173
    %v3479 = vpop.f32.mrb[0].mxu0
    %v3480 = vadd.f32 %v3108, %v3479
    %v3481 = vpop.f32.mrb[0].mxu0
    %v3482 = vadd.f32 %v3112, %v3481
    %v3483 = vpop.f32.mrb[0].mxu0
    %v3484 = vpop.f32.mrb[0].mxu0
    %3485 = vdwg.mxu0
    %3486 = vmatprep.subr.bf16.mxu0 %v3320
    %3487 = vmatpush1.bf16.msra.mxu0 %v3319
    %3488 = vmatprep.subr.bf16.mxu0 %v3324
    %3489 = vmatpush1.bf16.msra.mxu0 %v3323
    %3490 = vmatprep.subr.bf16.mxu0 %v3328
    %3491 = vmatpush1.bf16.msra.mxu0 %v3327
    %3492 = vmatprep.subr.bf16.mxu0 %v3332
    %3493 = vmatpush1.bf16.msra.mxu0 %v3331
    %3494 = vmatprep.subr.bf16.mxu0 %v3336
    %3495 = vmatpush1.bf16.msra.mxu0 %v3335
    %3496 = vmatprep.subr.bf16.mxu0 %v3340
    %3497 = vmatpush1.bf16.msra.mxu0 %v3339
    %3498 = vmatprep.subr.bf16.mxu0 %v3344
    %3499 = vmatpush1.bf16.msra.mxu0 %v3343
    %3500 = vmatprep.subr.bf16.mxu0 %v3348
    %3501 = vmatpush1.bf16.msra.mxu0 %v3347
    %3502 = vmatprep.subr.bf16.mxu0 %v3352
    %3503 = vmatpush1.bf16.msra.mxu0 %v3351
    %3504 = vmatprep.subr.bf16.mxu0 %v3356
    %3505 = vmatpush1.bf16.msra.mxu0 %v3355
    %3506 = vmatprep.subr.bf16.mxu0 %v3360
    %3507 = vmatpush1.bf16.msra.mxu0 %v3359
    %3508 = vmatprep.subr.bf16.mxu0 %v3364
    %3509 = vmatpush1.bf16.msra.mxu0 %v3363
    %3510 = vmatprep.subr.bf16.mxu0 %v3368
    %3511 = vmatpush1.bf16.msra.mxu0 %v3367
    %3512 = vmatprep.subr.bf16.mxu0 %v3372
    %3513 = vmatpush1.bf16.msra.mxu0 %v3371
    %3514 = vmatprep.subr.bf16.mxu0 %v3376
    %3515 = vmatpush1.bf16.msra.mxu0 %v3375
    %3516 = vmatprep.subr.bf16.mxu0 %v3380
    %3517 = vmatpush1.bf16.msra.mxu0 %v3379
    %3518 = vmatprep.mubr.bf16.mxu0 %v174
    %3519 = vmatmul.mubr.bf16.gmra.mrb[0].mxu0 %v173
    %v3520 = vpop.f32.mrb[0].mxu0
    %v3521 = vadd.f32 %v3116, %v3520
    %v3522 = vpop.f32.mrb[0].mxu0
    %v3523 = vadd.f32 %v3120, %v3522
    %v3524 = vpop.f32.mrb[0].mxu0
    %v3525 = vpop.f32.mrb[0].mxu0
    %3526 = vdwg.mxu0
    %v3527 = vmax.f32 %v3035, %v3480
    %v3528 = vmax.f32 %v3036, %v3482
    %v3529 = vmax.f32 %v3037, %v3521
    %v3530 = vmax.f32 %v3038, %v3523
    %v3531 = vld [vmem:[#allocation5 + $0x70] sm:$0xff]
    %v3532 = vld [vmem:[#allocation5 + $0x78] sm:$0xff]
    %v3533 = vld [vmem:[#allocation5 + $0xf0] sm:$0xff]
    %v3534 = vld [vmem:[#allocation5 + $0xf8] sm:$0xff]
    %v3535 = vld [vmem:[#allocation5 + $0x170] sm:$0xff]
    %v3536 = vld [vmem:[#allocation5 + $0x178] sm:$0xff]
    %v3537 = vld [vmem:[#allocation5 + $0x1f0] sm:$0xff]
    %v3538 = vld [vmem:[#allocation5 + $0x1f8] sm:$0xff]
    %v3539 = vld [vmem:[#allocation5 + $0x270] sm:$0xff]
    %v3540 = vld [vmem:[#allocation5 + $0x278] sm:$0xff]
    %v3541 = vld [vmem:[#allocation5 + $0x2f0] sm:$0xff]
    %v3542 = vld [vmem:[#allocation5 + $0x2f8] sm:$0xff]
    %v3543 = vld [vmem:[#allocation5 + $0x370] sm:$0xff]
    %v3544 = vld [vmem:[#allocation5 + $0x378] sm:$0xff]
    %v3545 = vld [vmem:[#allocation5 + $0x3f0] sm:$0xff]
    %v3546 = vld [vmem:[#allocation5 + $0x3f8] sm:$0xff]
    %v3547 = vld [vmem:[#allocation5 + $0x470] sm:$0xff]
    %v3548 = vld [vmem:[#allocation5 + $0x478] sm:$0xff]
    %v3549 = vld [vmem:[#allocation5 + $0x4f0] sm:$0xff]
    %v3550 = vld [vmem:[#allocation5 + $0x4f8] sm:$0xff]
    %v3551 = vld [vmem:[#allocation5 + $0x570] sm:$0xff]
    %v3552 = vld [vmem:[#allocation5 + $0x578] sm:$0xff]
    %v3553 = vld [vmem:[#allocation5 + $0x5f0] sm:$0xff]
    %v3554 = vld [vmem:[#allocation5 + $0x5f8] sm:$0xff]
    %v3555 = vld [vmem:[#allocation5 + $0x670] sm:$0xff]
    %v3556 = vld [vmem:[#allocation5 + $0x678] sm:$0xff]
    %v3557 = vld [vmem:[#allocation5 + $0x6f0] sm:$0xff]
    %v3558 = vld [vmem:[#allocation5 + $0x6f8] sm:$0xff]
    %v3559 = vld [vmem:[#allocation5 + $0x770] sm:$0xff]
    %v3560 = vld [vmem:[#allocation5 + $0x778] sm:$0xff]
    %v3561 = vld [vmem:[#allocation5 + $0x7f0] sm:$0xff]
    %v3562 = vld [vmem:[#allocation5 + $0x7f8] sm:$0xff]
    %v3563 = vld [vmem:[#allocation5 + $0x870] sm:$0xff]
    %v3564 = vld [vmem:[#allocation5 + $0x878] sm:$0xff]
    %v3565 = vld [vmem:[#allocation5 + $0x8f0] sm:$0xff]
    %v3566 = vld [vmem:[#allocation5 + $0x8f8] sm:$0xff]
    %v3567 = vld [vmem:[#allocation5 + $0x970] sm:$0xff]
    %v3568 = vld [vmem:[#allocation5 + $0x978] sm:$0xff]
    %v3569 = vld [vmem:[#allocation5 + $0x9f0] sm:$0xff]
    %v3570 = vld [vmem:[#allocation5 + $0x9f8] sm:$0xff]
    %v3571 = vld [vmem:[#allocation5 + $0xa70] sm:$0xff]
    %v3572 = vld [vmem:[#allocation5 + $0xa78] sm:$0xff]
    %v3573 = vld [vmem:[#allocation5 + $0xaf0] sm:$0xff]
    %v3574 = vld [vmem:[#allocation5 + $0xaf8] sm:$0xff]
    %v3575 = vld [vmem:[#allocation5 + $0xb70] sm:$0xff]
    %v3576 = vld [vmem:[#allocation5 + $0xb78] sm:$0xff]
    %v3577 = vld [vmem:[#allocation5 + $0xbf0] sm:$0xff]
    %v3578 = vld [vmem:[#allocation5 + $0xbf8] sm:$0xff]
    %v3579 = vld [vmem:[#allocation5 + $0xc70] sm:$0xff]
    %v3580 = vld [vmem:[#allocation5 + $0xc78] sm:$0xff]
    %v3581 = vld [vmem:[#allocation5 + $0xcf0] sm:$0xff]
    %v3582 = vld [vmem:[#allocation5 + $0xcf8] sm:$0xff]
    %v3583 = vld [vmem:[#allocation5 + $0xd70] sm:$0xff]
    %v3584 = vld [vmem:[#allocation5 + $0xd78] sm:$0xff]
    %v3585 = vld [vmem:[#allocation5 + $0xdf0] sm:$0xff]
    %v3586 = vld [vmem:[#allocation5 + $0xdf8] sm:$0xff]
    %v3587 = vld [vmem:[#allocation5 + $0xe70] sm:$0xff]
    %v3588 = vld [vmem:[#allocation5 + $0xe78] sm:$0xff]
    %v3589 = vld [vmem:[#allocation5 + $0xef0] sm:$0xff]
    %v3590 = vld [vmem:[#allocation5 + $0xef8] sm:$0xff]
    %v3591 = vld [vmem:[#allocation5 + $0xf70] sm:$0xff]
    %v3592 = vld [vmem:[#allocation5 + $0xf78] sm:$0xff]
    %v3593 = vld [vmem:[#allocation5 + $0xff0] sm:$0xff]
    %v3594 = vld [vmem:[#allocation5 + $0xff8] sm:$0xff]
    %v3595 = vld [vmem:[#allocation7 + $0x1c] sm:$0xf]
    %v3597 = vlaneseq
    %v3598 = vshrl.u32 %v3597, 7
    %v3599 = vsub.s32 0, %v3598
    %v3600 = vrot.slane %v3595, %v3599
    %v3601 = vlaneseq
    %v3602 = vshrl.u32 %v3601, 7
    %v3603 = vsub.s32 1, %v3602
    %v3604 = vrot.slane %v3595, %v3603
    %v3605 = vlaneseq
    %v3606 = vshrl.u32 %v3605, 7
    %v3607 = vsub.s32 2, %v3606
    %v3608 = vrot.slane %v3595, %v3607
    %v3609 = vlaneseq
    %v3610 = vshrl.u32 %v3609, 7
    %v3611 = vsub.s32 3, %v3610
    %v3612 = vrot.slane %v3595, %v3611
    %v3681 = vunpack.c.l.b16 %v3531
    %v3682 = vunpack.c.h.b16 %v3531
    %v3683 = vunpack.c.l.b16 %v3532
    %v3684 = vunpack.c.h.b16 %v3532
    %v3685 = vunpack.c.l.b16 %v3533
    %v3686 = vunpack.c.h.b16 %v3533
    %v3687 = vunpack.c.l.b16 %v3534
    %v3688 = vunpack.c.h.b16 %v3534
    %v3689 = vunpack.c.l.b16 %v3535
    %v3690 = vunpack.c.h.b16 %v3535
    %v3691 = vunpack.c.l.b16 %v3536
    %v3692 = vunpack.c.h.b16 %v3536
    %v3693 = vunpack.c.l.b16 %v3537
    %v3694 = vunpack.c.h.b16 %v3537
    %v3695 = vunpack.c.l.b16 %v3538
    %v3696 = vunpack.c.h.b16 %v3538
    %v3697 = vunpack.c.l.b16 %v3539
    %v3698 = vunpack.c.h.b16 %v3539
    %v3699 = vunpack.c.l.b16 %v3540
    %v3700 = vunpack.c.h.b16 %v3540
    %v3701 = vunpack.c.l.b16 %v3541
    %v3702 = vunpack.c.h.b16 %v3541
    %v3703 = vunpack.c.l.b16 %v3542
    %v3704 = vunpack.c.h.b16 %v3542
    %v3705 = vunpack.c.l.b16 %v3543
    %v3706 = vunpack.c.h.b16 %v3543
    %v3707 = vunpack.c.l.b16 %v3544
    %v3708 = vunpack.c.h.b16 %v3544
    %v3709 = vunpack.c.l.b16 %v3545
    %v3710 = vunpack.c.h.b16 %v3545
    %v3711 = vunpack.c.l.b16 %v3546
    %v3712 = vunpack.c.h.b16 %v3546
    %v3713 = vunpack.c.l.b16 %v3547
    %v3714 = vunpack.c.h.b16 %v3547
    %v3715 = vunpack.c.l.b16 %v3548
    %v3716 = vunpack.c.h.b16 %v3548
    %v3717 = vunpack.c.l.b16 %v3549
    %v3718 = vunpack.c.h.b16 %v3549
    %v3719 = vunpack.c.l.b16 %v3550
    %v3720 = vunpack.c.h.b16 %v3550
    %v3721 = vunpack.c.l.b16 %v3551
    %v3722 = vunpack.c.h.b16 %v3551
    %v3723 = vunpack.c.l.b16 %v3552
    %v3724 = vunpack.c.h.b16 %v3552
    %v3725 = vunpack.c.l.b16 %v3553
    %v3726 = vunpack.c.h.b16 %v3553
    %v3727 = vunpack.c.l.b16 %v3554
    %v3728 = vunpack.c.h.b16 %v3554
    %v3729 = vunpack.c.l.b16 %v3555
    %v3730 = vunpack.c.h.b16 %v3555
    %v3731 = vunpack.c.l.b16 %v3556
    %v3732 = vunpack.c.h.b16 %v3556
    %v3733 = vunpack.c.l.b16 %v3557
    %v3734 = vunpack.c.h.b16 %v3557
    %v3735 = vunpack.c.l.b16 %v3558
    %v3736 = vunpack.c.h.b16 %v3558
    %v3737 = vunpack.c.l.b16 %v3559
    %v3738 = vunpack.c.h.b16 %v3559
    %v3739 = vunpack.c.l.b16 %v3560
    %v3740 = vunpack.c.h.b16 %v3560
    %v3741 = vunpack.c.l.b16 %v3561
    %v3742 = vunpack.c.h.b16 %v3561
    %v3743 = vunpack.c.l.b16 %v3562
    %v3744 = vunpack.c.h.b16 %v3562
    %v3745 = vunpack.c.l.b16 %v3563
    %v3746 = vunpack.c.h.b16 %v3563
    %v3747 = vunpack.c.l.b16 %v3564
    %v3748 = vunpack.c.h.b16 %v3564
    %v3749 = vunpack.c.l.b16 %v3565
    %v3750 = vunpack.c.h.b16 %v3565
    %v3751 = vunpack.c.l.b16 %v3566
    %v3752 = vunpack.c.h.b16 %v3566
    %v3753 = vunpack.c.l.b16 %v3567
    %v3754 = vunpack.c.h.b16 %v3567
    %v3755 = vunpack.c.l.b16 %v3568
    %v3756 = vunpack.c.h.b16 %v3568
    %v3757 = vunpack.c.l.b16 %v3569
    %v3758 = vunpack.c.h.b16 %v3569
    %v3759 = vunpack.c.l.b16 %v3570
    %v3760 = vunpack.c.h.b16 %v3570
    %v3761 = vunpack.c.l.b16 %v3571
    %v3762 = vunpack.c.h.b16 %v3571
    %v3763 = vunpack.c.l.b16 %v3572
    %v3764 = vunpack.c.h.b16 %v3572
    %v3765 = vunpack.c.l.b16 %v3573
    %v3766 = vunpack.c.h.b16 %v3573
    %v3767 = vunpack.c.l.b16 %v3574
    %v3768 = vunpack.c.h.b16 %v3574
    %v3769 = vunpack.c.l.b16 %v3575
    %v3770 = vunpack.c.h.b16 %v3575
    %v3771 = vunpack.c.l.b16 %v3576
    %v3772 = vunpack.c.h.b16 %v3576
    %v3773 = vunpack.c.l.b16 %v3577
    %v3774 = vunpack.c.h.b16 %v3577
    %v3775 = vunpack.c.l.b16 %v3578
    %v3776 = vunpack.c.h.b16 %v3578
    %v3777 = vunpack.c.l.b16 %v3579
    %v3778 = vunpack.c.h.b16 %v3579
    %v3779 = vunpack.c.l.b16 %v3580
    %v3780 = vunpack.c.h.b16 %v3580
    %v3781 = vunpack.c.l.b16 %v3581
    %v3782 = vunpack.c.h.b16 %v3581
    %v3783 = vunpack.c.l.b16 %v3582
    %v3784 = vunpack.c.h.b16 %v3582
    %v3785 = vunpack.c.l.b16 %v3583
    %v3786 = vunpack.c.h.b16 %v3583
    %v3787 = vunpack.c.l.b16 %v3584
    %v3788 = vunpack.c.h.b16 %v3584
    %v3789 = vunpack.c.l.b16 %v3585
    %v3790 = vunpack.c.h.b16 %v3585
    %v3791 = vunpack.c.l.b16 %v3586
    %v3792 = vunpack.c.h.b16 %v3586
    %v3793 = vunpack.c.l.b16 %v3587
    %v3794 = vunpack.c.h.b16 %v3587
    %v3795 = vunpack.c.l.b16 %v3588
    %v3796 = vunpack.c.h.b16 %v3588
    %v3797 = vunpack.c.l.b16 %v3589
    %v3798 = vunpack.c.h.b16 %v3589
    %v3799 = vunpack.c.l.b16 %v3590
    %v3800 = vunpack.c.h.b16 %v3590
    %v3801 = vunpack.c.l.b16 %v3591
    %v3802 = vunpack.c.h.b16 %v3591
    %v3803 = vunpack.c.l.b16 %v3592
    %v3804 = vunpack.c.h.b16 %v3592
    %v3805 = vunpack.c.l.b16 %v3593
    %v3806 = vunpack.c.h.b16 %v3593
    %v3807 = vunpack.c.l.b16 %v3594
    %v3808 = vunpack.c.h.b16 %v3594
    %v3809 = vpack.c.b16 %v3685, %v3681
    %v3810 = vpack.c.b16 %v3686, %v3682
    %v3811 = vpack.c.b16 %v3687, %v3683
    %v3812 = vpack.c.b16 %v3688, %v3684
    %v3813 = vpack.c.b16 %v3693, %v3689
    %v3814 = vpack.c.b16 %v3694, %v3690
    %v3815 = vpack.c.b16 %v3695, %v3691
    %v3816 = vpack.c.b16 %v3696, %v3692
    %v3817 = vpack.c.b16 %v3701, %v3697
    %v3818 = vpack.c.b16 %v3702, %v3698
    %v3819 = vpack.c.b16 %v3703, %v3699
    %v3820 = vpack.c.b16 %v3704, %v3700
    %v3821 = vpack.c.b16 %v3709, %v3705
    %v3822 = vpack.c.b16 %v3710, %v3706
    %v3823 = vpack.c.b16 %v3711, %v3707
    %v3824 = vpack.c.b16 %v3712, %v3708
    %v3825 = vpack.c.b16 %v3717, %v3713
    %v3826 = vpack.c.b16 %v3718, %v3714
    %v3827 = vpack.c.b16 %v3719, %v3715
    %v3828 = vpack.c.b16 %v3720, %v3716
    %v3829 = vpack.c.b16 %v3725, %v3721
    %v3830 = vpack.c.b16 %v3726, %v3722
    %v3831 = vpack.c.b16 %v3727, %v3723
    %v3832 = vpack.c.b16 %v3728, %v3724
    %v3833 = vpack.c.b16 %v3733, %v3729
    %v3834 = vpack.c.b16 %v3734, %v3730
    %v3835 = vpack.c.b16 %v3735, %v3731
    %v3836 = vpack.c.b16 %v3736, %v3732
    %v3837 = vpack.c.b16 %v3741, %v3737
    %v3838 = vpack.c.b16 %v3742, %v3738
    %v3839 = vpack.c.b16 %v3743, %v3739
    %v3840 = vpack.c.b16 %v3744, %v3740
    %v3841 = vpack.c.b16 %v3749, %v3745
    %v3842 = vpack.c.b16 %v3750, %v3746
    %v3843 = vpack.c.b16 %v3751, %v3747
    %v3844 = vpack.c.b16 %v3752, %v3748
    %v3845 = vpack.c.b16 %v3757, %v3753
    %v3846 = vpack.c.b16 %v3758, %v3754
    %v3847 = vpack.c.b16 %v3759, %v3755
    %v3848 = vpack.c.b16 %v3760, %v3756
    %v3849 = vpack.c.b16 %v3765, %v3761
    %v3850 = vpack.c.b16 %v3766, %v3762
    %v3851 = vpack.c.b16 %v3767, %v3763
    %v3852 = vpack.c.b16 %v3768, %v3764
    %v3853 = vpack.c.b16 %v3773, %v3769
    %v3854 = vpack.c.b16 %v3774, %v3770
    %v3855 = vpack.c.b16 %v3775, %v3771
    %v3856 = vpack.c.b16 %v3776, %v3772
    %v3857 = vpack.c.b16 %v3781, %v3777
    %v3858 = vpack.c.b16 %v3782, %v3778
    %v3859 = vpack.c.b16 %v3783, %v3779
    %v3860 = vpack.c.b16 %v3784, %v3780
    %v3861 = vpack.c.b16 %v3789, %v3785
    %v3862 = vpack.c.b16 %v3790, %v3786
    %v3863 = vpack.c.b16 %v3791, %v3787
    %v3864 = vpack.c.b16 %v3792, %v3788
    %v3865 = vpack.c.b16 %v3797, %v3793
    %v3866 = vpack.c.b16 %v3798, %v3794
    %v3867 = vpack.c.b16 %v3799, %v3795
    %v3868 = vpack.c.b16 %v3800, %v3796
    %v3869 = vpack.c.b16 %v3805, %v3801
    %v3870 = vpack.c.b16 %v3806, %v3802
    %v3871 = vpack.c.b16 %v3807, %v3803
    %v3872 = vpack.c.b16 %v3808, %v3804
    %3937 = vmatprep.subr.bf16.mxu0 %v3810
    %3938 = vmatpush1.bf16.msra.mxu0 %v3809
    %3939 = vmatprep.subr.bf16.mxu0 %v3814
    %3940 = vmatpush1.bf16.msra.mxu0 %v3813
    %3941 = vmatprep.subr.bf16.mxu0 %v3818
    %3942 = vmatpush1.bf16.msra.mxu0 %v3817
    %3943 = vmatprep.subr.bf16.mxu0 %v3822
    %3944 = vmatpush1.bf16.msra.mxu0 %v3821
    %3945 = vmatprep.subr.bf16.mxu0 %v3826
    %3946 = vmatpush1.bf16.msra.mxu0 %v3825
    %3947 = vmatprep.subr.bf16.mxu0 %v3830
    %3948 = vmatpush1.bf16.msra.mxu0 %v3829
    %3949 = vmatprep.subr.bf16.mxu0 %v3834
    %3950 = vmatpush1.bf16.msra.mxu0 %v3833
    %3951 = vmatprep.subr.bf16.mxu0 %v3838
    %3952 = vmatpush1.bf16.msra.mxu0 %v3837
    %3953 = vmatprep.subr.bf16.mxu0 %v3842
    %3954 = vmatpush1.bf16.msra.mxu0 %v3841
    %3955 = vmatprep.subr.bf16.mxu0 %v3846
    %3956 = vmatpush1.bf16.msra.mxu0 %v3845
    %3957 = vmatprep.subr.bf16.mxu0 %v3850
    %3958 = vmatpush1.bf16.msra.mxu0 %v3849
    %3959 = vmatprep.subr.bf16.mxu0 %v3854
    %3960 = vmatpush1.bf16.msra.mxu0 %v3853
    %3961 = vmatprep.subr.bf16.mxu0 %v3858
    %3962 = vmatpush1.bf16.msra.mxu0 %v3857
    %3963 = vmatprep.subr.bf16.mxu0 %v3862
    %3964 = vmatpush1.bf16.msra.mxu0 %v3861
    %3965 = vmatprep.subr.bf16.mxu0 %v3866
    %3966 = vmatpush1.bf16.msra.mxu0 %v3865
    %3967 = vmatprep.subr.bf16.mxu0 %v3870
    %3968 = vmatpush1.bf16.msra.mxu0 %v3869
    %3969 = vmatprep.mubr.bf16.mxu0 %v174
    %3970 = vmatmul.mubr.bf16.gmra.mrb[0].mxu0 %v173
    %v3971 = vpop.f32.mrb[0].mxu0
    %v3972 = vadd.f32 %v3600, %v3971
    %v3973 = vpop.f32.mrb[0].mxu0
    %v3974 = vadd.f32 %v3604, %v3973
    %v3975 = vpop.f32.mrb[0].mxu0
    %v3976 = vpop.f32.mrb[0].mxu0
    %3977 = vdwg.mxu0
    %3978 = vmatprep.subr.bf16.mxu0 %v3812
    %3979 = vmatpush1.bf16.msra.mxu0 %v3811
    %3980 = vmatprep.subr.bf16.mxu0 %v3816
    %3981 = vmatpush1.bf16.msra.mxu0 %v3815
    %3982 = vmatprep.subr.bf16.mxu0 %v3820
    %3983 = vmatpush1.bf16.msra.mxu0 %v3819
    %3984 = vmatprep.subr.bf16.mxu0 %v3824
    %3985 = vmatpush1.bf16.msra.mxu0 %v3823
    %3986 = vmatprep.subr.bf16.mxu0 %v3828
    %3987 = vmatpush1.bf16.msra.mxu0 %v3827
    %3988 = vmatprep.subr.bf16.mxu0 %v3832
    %3989 = vmatpush1.bf16.msra.mxu0 %v3831
    %3990 = vmatprep.subr.bf16.mxu0 %v3836
    %3991 = vmatpush1.bf16.msra.mxu0 %v3835
    %3992 = vmatprep.subr.bf16.mxu0 %v3840
    %3993 = vmatpush1.bf16.msra.mxu0 %v3839
    %3994 = vmatprep.subr.bf16.mxu0 %v3844
    %3995 = vmatpush1.bf16.msra.mxu0 %v3843
    %3996 = vmatprep.subr.bf16.mxu0 %v3848
    %3997 = vmatpush1.bf16.msra.mxu0 %v3847
    %3998 = vmatprep.subr.bf16.mxu0 %v3852
    %3999 = vmatpush1.bf16.msra.mxu0 %v3851
    %4000 = vmatprep.subr.bf16.mxu0 %v3856
    %4001 = vmatpush1.bf16.msra.mxu0 %v3855
    %4002 = vmatprep.subr.bf16.mxu0 %v3860
    %4003 = vmatpush1.bf16.msra.mxu0 %v3859
    %4004 = vmatprep.subr.bf16.mxu0 %v3864
    %4005 = vmatpush1.bf16.msra.mxu0 %v3863
    %4006 = vmatprep.subr.bf16.mxu0 %v3868
    %4007 = vmatpush1.bf16.msra.mxu0 %v3867
    %4008 = vmatprep.subr.bf16.mxu0 %v3872
    %4009 = vmatpush1.bf16.msra.mxu0 %v3871
    %4010 = vmatprep.mubr.bf16.mxu0 %v174
    %4011 = vmatmul.mubr.bf16.gmra.mrb[0].mxu0 %v173
    %v4012 = vpop.f32.mrb[0].mxu0
    %v4013 = vadd.f32 %v3608, %v4012
    %v4014 = vpop.f32.mrb[0].mxu0
    %v4015 = vadd.f32 %v3612, %v4014
    %v4016 = vpop.f32.mrb[0].mxu0
    %v4017 = vpop.f32.mrb[0].mxu0
    %4018 = vdwg.mxu0
    %v4019 = vmax.f32 %v3527, %v3972
    %v4020 = vmax.f32 %v3528, %v3974
    %v4021 = vmax.f32 %v3529, %v4013
    %v4022 = vmax.f32 %v3530, %v4015
    %v4023 = vpack.c.bf16 %v4019, %v4019
    %v4024 = vpack.c.bf16 %v4020, %v4020
    %v4025 = vpack.c.bf16 %v4021, %v4021
    %v4026 = vpack.c.bf16 %v4022, %v4022
    %v4027 = vld [vmem:[#allocation8] sm:$0xff]
    %v4028 = vld [vmem:[#allocation8 + $0x8] sm:$0xff]
    %v4029 = vld [vmem:[#allocation8 + $0x10] sm:$0xff]
    %v4030 = vld [vmem:[#allocation8 + $0x18] sm:$0xff]
    %v4031 = vld [vmem:[#allocation8 + $0x20] sm:$0xff]
    %v4032 = vld [vmem:[#allocation8 + $0x28] sm:$0xff]
    %v4033 = vld [vmem:[#allocation8 + $0x30] sm:$0xff]
    %v4034 = vld [vmem:[#allocation8 + $0x38] sm:$0xff]
    %v4035 = vld [vmem:[#allocation8 + $0x40] sm:$0xff]
    %v4036 = vld [vmem:[#allocation8 + $0x48] sm:$0xff]
    %v4037 = vld [vmem:[#allocation8 + $0x50] sm:$0xff]
    %v4038 = vld [vmem:[#allocation8 + $0x58] sm:$0xff]
    %v4039 = vld [vmem:[#allocation8 + $0x60] sm:$0xff]
    %v4040 = vld [vmem:[#allocation8 + $0x68] sm:$0xff]
    %v4041 = vld [vmem:[#allocation8 + $0x70] sm:$0xff]
    %v4042 = vld [vmem:[#allocation8 + $0x78] sm:$0xff]
    %v4043 = vld [vmem:[#allocation8 + $0x80] sm:$0xff]
    %v4044 = vld [vmem:[#allocation8 + $0x88] sm:$0xff]
    %v4045 = vld [vmem:[#allocation8 + $0x90] sm:$0xff]
    %v4046 = vld [vmem:[#allocation8 + $0x98] sm:$0xff]
    %v4047 = vld [vmem:[#allocation8 + $0xa0] sm:$0xff]
    %v4048 = vld [vmem:[#allocation8 + $0xa8] sm:$0xff]
    %v4049 = vld [vmem:[#allocation8 + $0xb0] sm:$0xff]
    %v4050 = vld [vmem:[#allocation8 + $0xb8] sm:$0xff]
    %v4051 = vld [vmem:[#allocation8 + $0xc0] sm:$0xff]
    %v4052 = vld [vmem:[#allocation8 + $0xc8] sm:$0xff]
    %v4053 = vld [vmem:[#allocation8 + $0xd0] sm:$0xff]
    %v4054 = vld [vmem:[#allocation8 + $0xd8] sm:$0xff]
    %v4055 = vld [vmem:[#allocation8 + $0xe0] sm:$0xff]
    %v4056 = vld [vmem:[#allocation8 + $0xe8] sm:$0xff]
    %v4057 = vld [vmem:[#allocation8 + $0xf0] sm:$0xff]
    %v4058 = vld [vmem:[#allocation8 + $0xf8] sm:$0xff]
    %v4059 = vld [vmem:[#allocation8 + $0x100] sm:$0xff]
    %v4060 = vld [vmem:[#allocation8 + $0x108] sm:$0xff]
    %v4061 = vld [vmem:[#allocation8 + $0x110] sm:$0xff]
    %v4062 = vld [vmem:[#allocation8 + $0x118] sm:$0xff]
    %v4063 = vld [vmem:[#allocation8 + $0x120] sm:$0xff]
    %v4064 = vld [vmem:[#allocation8 + $0x128] sm:$0xff]
    %v4065 = vld [vmem:[#allocation8 + $0x130] sm:$0xff]
    %v4066 = vld [vmem:[#allocation8 + $0x138] sm:$0xff]
    %v4067 = vld [vmem:[#allocation8 + $0x140] sm:$0xff]
    %v4068 = vld [vmem:[#allocation8 + $0x148] sm:$0xff]
    %v4069 = vld [vmem:[#allocation8 + $0x150] sm:$0xff]
    %v4070 = vld [vmem:[#allocation8 + $0x158] sm:$0xff]
    %v4071 = vld [vmem:[#allocation8 + $0x160] sm:$0xff]
    %v4072 = vld [vmem:[#allocation8 + $0x168] sm:$0xff]
    %v4073 = vld [vmem:[#allocation8 + $0x170] sm:$0xff]
    %v4074 = vld [vmem:[#allocation8 + $0x178] sm:$0xff]
    %v4075 = vld [vmem:[#allocation8 + $0x180] sm:$0xff]
    %v4076 = vld [vmem:[#allocation8 + $0x188] sm:$0xff]
    %v4077 = vld [vmem:[#allocation8 + $0x190] sm:$0xff]
    %v4078 = vld [vmem:[#allocation8 + $0x198] sm:$0xff]
    %v4079 = vld [vmem:[#allocation8 + $0x1a0] sm:$0xff]
    %v4080 = vld [vmem:[#allocation8 + $0x1a8] sm:$0xff]
    %v4081 = vld [vmem:[#allocation8 + $0x1b0] sm:$0xff]
    %v4082 = vld [vmem:[#allocation8 + $0x1b8] sm:$0xff]
    %v4083 = vld [vmem:[#allocation8 + $0x1c0] sm:$0xff]
    %v4084 = vld [vmem:[#allocation8 + $0x1c8] sm:$0xff]
    %v4085 = vld [vmem:[#allocation8 + $0x1d0] sm:$0xff]
    %v4086 = vld [vmem:[#allocation8 + $0x1d8] sm:$0xff]
    %v4087 = vld [vmem:[#allocation8 + $0x1e0] sm:$0xff]
    %v4088 = vld [vmem:[#allocation8 + $0x1e8] sm:$0xff]
    %v4089 = vld [vmem:[#allocation8 + $0x1f0] sm:$0xff]
    %v4090 = vld [vmem:[#allocation8 + $0x1f8] sm:$0xff]
    %v4091 = vld [vmem:[#allocation8 + $0x200] sm:$0xff]
    %v4092 = vld [vmem:[#allocation8 + $0x208] sm:$0xff]
    %v4093 = vld [vmem:[#allocation8 + $0x210] sm:$0xff]
    %v4094 = vld [vmem:[#allocation8 + $0x218] sm:$0xff]
    %v4095 = vld [vmem:[#allocation8 + $0x220] sm:$0xff]
    %v4096 = vld [vmem:[#allocation8 + $0x228] sm:$0xff]
    %v4097 = vld [vmem:[#allocation8 + $0x230] sm:$0xff]
    %v4098 = vld [vmem:[#allocation8 + $0x238] sm:$0xff]
    %v4099 = vld [vmem:[#allocation8 + $0x240] sm:$0xff]
    %v4100 = vld [vmem:[#allocation8 + $0x248] sm:$0xff]
    %v4101 = vld [vmem:[#allocation8 + $0x250] sm:$0xff]
    %v4102 = vld [vmem:[#allocation8 + $0x258] sm:$0xff]
    %v4103 = vld [vmem:[#allocation8 + $0x260] sm:$0xff]
    %v4104 = vld [vmem:[#allocation8 + $0x268] sm:$0xff]
    %v4105 = vld [vmem:[#allocation8 + $0x270] sm:$0xff]
    %v4106 = vld [vmem:[#allocation8 + $0x278] sm:$0xff]
    %v4107 = vld [vmem:[#allocation8 + $0x280] sm:$0xff]
    %v4108 = vld [vmem:[#allocation8 + $0x288] sm:$0xff]
    %v4109 = vld [vmem:[#allocation8 + $0x290] sm:$0xff]
    %v4110 = vld [vmem:[#allocation8 + $0x298] sm:$0xff]
    %v4111 = vld [vmem:[#allocation8 + $0x2a0] sm:$0xff]
    %v4112 = vld [vmem:[#allocation8 + $0x2a8] sm:$0xff]
    %v4113 = vld [vmem:[#allocation8 + $0x2b0] sm:$0xff]
    %v4114 = vld [vmem:[#allocation8 + $0x2b8] sm:$0xff]
    %v4115 = vld [vmem:[#allocation8 + $0x2c0] sm:$0xff]
    %v4116 = vld [vmem:[#allocation8 + $0x2c8] sm:$0xff]
    %v4117 = vld [vmem:[#allocation8 + $0x2d0] sm:$0xff]
    %v4118 = vld [vmem:[#allocation8 + $0x2d8] sm:$0xff]
    %v4119 = vld [vmem:[#allocation8 + $0x2e0] sm:$0xff]
    %v4120 = vld [vmem:[#allocation8 + $0x2e8] sm:$0xff]
    %v4121 = vld [vmem:[#allocation8 + $0x2f0] sm:$0xff]
    %v4122 = vld [vmem:[#allocation8 + $0x2f8] sm:$0xff]
    %v4123 = vld [vmem:[#allocation8 + $0x300] sm:$0xff]
    %v4124 = vld [vmem:[#allocation8 + $0x308] sm:$0xff]
    %v4125 = vld [vmem:[#allocation8 + $0x310] sm:$0xff]
    %v4126 = vld [vmem:[#allocation8 + $0x318] sm:$0xff]
    %v4127 = vld [vmem:[#allocation8 + $0x320] sm:$0xff]
    %v4128 = vld [vmem:[#allocation8 + $0x328] sm:$0xff]
    %v4129 = vld [vmem:[#allocation8 + $0x330] sm:$0xff]
    %v4130 = vld [vmem:[#allocation8 + $0x338] sm:$0xff]
    %v4131 = vld [vmem:[#allocation8 + $0x340] sm:$0xff]
    %v4132 = vld [vmem:[#allocation8 + $0x348] sm:$0xff]
    %v4133 = vld [vmem:[#allocation8 + $0x350] sm:$0xff]
    %v4134 = vld [vmem:[#allocation8 + $0x358] sm:$0xff]
    %v4135 = vld [vmem:[#allocation8 + $0x360] sm:$0xff]
    %v4136 = vld [vmem:[#allocation8 + $0x368] sm:$0xff]
    %v4137 = vld [vmem:[#allocation8 + $0x370] sm:$0xff]
    %v4138 = vld [vmem:[#allocation8 + $0x378] sm:$0xff]
    %v4139 = vld [vmem:[#allocation8 + $0x380] sm:$0xff]
    %v4140 = vld [vmem:[#allocation8 + $0x388] sm:$0xff]
    %v4141 = vld [vmem:[#allocation8 + $0x390] sm:$0xff]
    %v4142 = vld [vmem:[#allocation8 + $0x398] sm:$0xff]
    %v4143 = vld [vmem:[#allocation8 + $0x3a0] sm:$0xff]
    %v4144 = vld [vmem:[#allocation8 + $0x3a8] sm:$0xff]
    %v4145 = vld [vmem:[#allocation8 + $0x3b0] sm:$0xff]
    %v4146 = vld [vmem:[#allocation8 + $0x3b8] sm:$0xff]
    %v4147 = vld [vmem:[#allocation8 + $0x3c0] sm:$0xff]
    %v4148 = vld [vmem:[#allocation8 + $0x3c8] sm:$0xff]
    %v4149 = vld [vmem:[#allocation8 + $0x3d0] sm:$0xff]
    %v4150 = vld [vmem:[#allocation8 + $0x3d8] sm:$0xff]
    %v4151 = vld [vmem:[#allocation8 + $0x3e0] sm:$0xff]
    %v4152 = vld [vmem:[#allocation8 + $0x3e8] sm:$0xff]
    %v4153 = vld [vmem:[#allocation8 + $0x3f0] sm:$0xff]
    %v4154 = vld [vmem:[#allocation8 + $0x3f8] sm:$0xff]
    %v4155 = vld [vmem:[#allocation8 + $0x400] sm:$0xff]
    %v4156 = vld [vmem:[#allocation8 + $0x408] sm:$0xff]
    %v4157 = vld [vmem:[#allocation8 + $0x410] sm:$0xff]
    %v4158 = vld [vmem:[#allocation8 + $0x418] sm:$0xff]
    %v4159 = vld [vmem:[#allocation8 + $0x420] sm:$0xff]
    %v4160 = vld [vmem:[#allocation8 + $0x428] sm:$0xff]
    %v4161 = vld [vmem:[#allocation8 + $0x430] sm:$0xff]
    %v4162 = vld [vmem:[#allocation8 + $0x438] sm:$0xff]
    %v4163 = vld [vmem:[#allocation8 + $0x440] sm:$0xff]
    %v4164 = vld [vmem:[#allocation8 + $0x448] sm:$0xff]
    %v4165 = vld [vmem:[#allocation8 + $0x450] sm:$0xff]
    %v4166 = vld [vmem:[#allocation8 + $0x458] sm:$0xff]
    %v4167 = vld [vmem:[#allocation8 + $0x460] sm:$0xff]
    %v4168 = vld [vmem:[#allocation8 + $0x468] sm:$0xff]
    %v4169 = vld [vmem:[#allocation8 + $0x470] sm:$0xff]
    %v4170 = vld [vmem:[#allocation8 + $0x478] sm:$0xff]
    %v4171 = vld [vmem:[#allocation8 + $0x480] sm:$0xff]
    %v4172 = vld [vmem:[#allocation8 + $0x488] sm:$0xff]
    %v4173 = vld [vmem:[#allocation8 + $0x490] sm:$0xff]
    %v4174 = vld [vmem:[#allocation8 + $0x498] sm:$0xff]
    %v4175 = vld [vmem:[#allocation8 + $0x4a0] sm:$0xff]
    %v4176 = vld [vmem:[#allocation8 + $0x4a8] sm:$0xff]
    %v4177 = vld [vmem:[#allocation8 + $0x4b0] sm:$0xff]
    %v4178 = vld [vmem:[#allocation8 + $0x4b8] sm:$0xff]
    %v4179 = vld [vmem:[#allocation8 + $0x4c0] sm:$0xff]
    %v4180 = vld [vmem:[#allocation8 + $0x4c8] sm:$0xff]
    %v4181 = vld [vmem:[#allocation8 + $0x4d0] sm:$0xff]
    %v4182 = vld [vmem:[#allocation8 + $0x4d8] sm:$0xff]
    %v4183 = vld [vmem:[#allocation8 + $0x4e0] sm:$0xff]
    %v4184 = vld [vmem:[#allocation8 + $0x4e8] sm:$0xff]
    %v4185 = vld [vmem:[#allocation8 + $0x4f0] sm:$0xff]
    %v4186 = vld [vmem:[#allocation8 + $0x4f8] sm:$0xff]
    %v4187 = vld [vmem:[#allocation8 + $0x500] sm:$0xff]
    %v4188 = vld [vmem:[#allocation8 + $0x508] sm:$0xff]
    %v4189 = vld [vmem:[#allocation8 + $0x510] sm:$0xff]
    %v4190 = vld [vmem:[#allocation8 + $0x518] sm:$0xff]
    %v4191 = vld [vmem:[#allocation8 + $0x520] sm:$0xff]
    %v4192 = vld [vmem:[#allocation8 + $0x528] sm:$0xff]
    %v4193 = vld [vmem:[#allocation8 + $0x530] sm:$0xff]
    %v4194 = vld [vmem:[#allocation8 + $0x538] sm:$0xff]
    %v4195 = vld [vmem:[#allocation8 + $0x540] sm:$0xff]
    %v4196 = vld [vmem:[#allocation8 + $0x548] sm:$0xff]
    %v4197 = vld [vmem:[#allocation8 + $0x550] sm:$0xff]
    %v4198 = vld [vmem:[#allocation8 + $0x558] sm:$0xff]
    %v4199 = vld [vmem:[#allocation8 + $0x560] sm:$0xff]
    %v4200 = vld [vmem:[#allocation8 + $0x568] sm:$0xff]
    %v4201 = vld [vmem:[#allocation8 + $0x570] sm:$0xff]
    %v4202 = vld [vmem:[#allocation8 + $0x578] sm:$0xff]
    %v4203 = vld [vmem:[#allocation8 + $0x580] sm:$0xff]
    %v4204 = vld [vmem:[#allocation8 + $0x588] sm:$0xff]
    %v4205 = vld [vmem:[#allocation8 + $0x590] sm:$0xff]
    %v4206 = vld [vmem:[#allocation8 + $0x598] sm:$0xff]
    %v4207 = vld [vmem:[#allocation8 + $0x5a0] sm:$0xff]
    %v4208 = vld [vmem:[#allocation8 + $0x5a8] sm:$0xff]
    %v4209 = vld [vmem:[#allocation8 + $0x5b0] sm:$0xff]
    %v4210 = vld [vmem:[#allocation8 + $0x5b8] sm:$0xff]
    %v4211 = vld [vmem:[#allocation8 + $0x5c0] sm:$0xff]
    %v4212 = vld [vmem:[#allocation8 + $0x5c8] sm:$0xff]
    %v4213 = vld [vmem:[#allocation8 + $0x5d0] sm:$0xff]
    %v4214 = vld [vmem:[#allocation8 + $0x5d8] sm:$0xff]
    %v4215 = vld [vmem:[#allocation8 + $0x5e0] sm:$0xff]
    %v4216 = vld [vmem:[#allocation8 + $0x5e8] sm:$0xff]
    %v4217 = vld [vmem:[#allocation8 + $0x5f0] sm:$0xff]
    %v4218 = vld [vmem:[#allocation8 + $0x5f8] sm:$0xff]
    %v4219 = vld [vmem:[#allocation8 + $0x600] sm:$0xff]
    %v4220 = vld [vmem:[#allocation8 + $0x608] sm:$0xff]
    %v4221 = vld [vmem:[#allocation8 + $0x610] sm:$0xff]
    %v4222 = vld [vmem:[#allocation8 + $0x618] sm:$0xff]
    %v4223 = vld [vmem:[#allocation8 + $0x620] sm:$0xff]
    %v4224 = vld [vmem:[#allocation8 + $0x628] sm:$0xff]
    %v4225 = vld [vmem:[#allocation8 + $0x630] sm:$0xff]
    %v4226 = vld [vmem:[#allocation8 + $0x638] sm:$0xff]
    %v4227 = vld [vmem:[#allocation8 + $0x640] sm:$0xff]
    %v4228 = vld [vmem:[#allocation8 + $0x648] sm:$0xff]
    %v4229 = vld [vmem:[#allocation8 + $0x650] sm:$0xff]
    %v4230 = vld [vmem:[#allocation8 + $0x658] sm:$0xff]
    %v4231 = vld [vmem:[#allocation8 + $0x660] sm:$0xff]
    %v4232 = vld [vmem:[#allocation8 + $0x668] sm:$0xff]
    %v4233 = vld [vmem:[#allocation8 + $0x670] sm:$0xff]
    %v4234 = vld [vmem:[#allocation8 + $0x678] sm:$0xff]
    %v4235 = vld [vmem:[#allocation8 + $0x680] sm:$0xff]
    %v4236 = vld [vmem:[#allocation8 + $0x688] sm:$0xff]
    %v4237 = vld [vmem:[#allocation8 + $0x690] sm:$0xff]
    %v4238 = vld [vmem:[#allocation8 + $0x698] sm:$0xff]
    %v4239 = vld [vmem:[#allocation8 + $0x6a0] sm:$0xff]
    %v4240 = vld [vmem:[#allocation8 + $0x6a8] sm:$0xff]
    %v4241 = vld [vmem:[#allocation8 + $0x6b0] sm:$0xff]
    %v4242 = vld [vmem:[#allocation8 + $0x6b8] sm:$0xff]
    %v4243 = vld [vmem:[#allocation8 + $0x6c0] sm:$0xff]
    %v4244 = vld [vmem:[#allocation8 + $0x6c8] sm:$0xff]
    %v4245 = vld [vmem:[#allocation8 + $0x6d0] sm:$0xff]
    %v4246 = vld [vmem:[#allocation8 + $0x6d8] sm:$0xff]
    %v4247 = vld [vmem:[#allocation8 + $0x6e0] sm:$0xff]
    %v4248 = vld [vmem:[#allocation8 + $0x6e8] sm:$0xff]
    %v4249 = vld [vmem:[#allocation8 + $0x6f0] sm:$0xff]
    %v4250 = vld [vmem:[#allocation8 + $0x6f8] sm:$0xff]
    %v4251 = vld [vmem:[#allocation8 + $0x700] sm:$0xff]
    %v4252 = vld [vmem:[#allocation8 + $0x708] sm:$0xff]
    %v4253 = vld [vmem:[#allocation8 + $0x710] sm:$0xff]
    %v4254 = vld [vmem:[#allocation8 + $0x718] sm:$0xff]
    %v4255 = vld [vmem:[#allocation8 + $0x720] sm:$0xff]
    %v4256 = vld [vmem:[#allocation8 + $0x728] sm:$0xff]
    %v4257 = vld [vmem:[#allocation8 + $0x730] sm:$0xff]
    %v4258 = vld [vmem:[#allocation8 + $0x738] sm:$0xff]
    %v4259 = vld [vmem:[#allocation8 + $0x740] sm:$0xff]
    %v4260 = vld [vmem:[#allocation8 + $0x748] sm:$0xff]
    %v4261 = vld [vmem:[#allocation8 + $0x750] sm:$0xff]
    %v4262 = vld [vmem:[#allocation8 + $0x758] sm:$0xff]
    %v4263 = vld [vmem:[#allocation8 + $0x760] sm:$0xff]
    %v4264 = vld [vmem:[#allocation8 + $0x768] sm:$0xff]
    %v4265 = vld [vmem:[#allocation8 + $0x770] sm:$0xff]
    %v4266 = vld [vmem:[#allocation8 + $0x778] sm:$0xff]
    %v4267 = vld [vmem:[#allocation8 + $0x780] sm:$0xff]
    %v4268 = vld [vmem:[#allocation8 + $0x788] sm:$0xff]
    %v4269 = vld [vmem:[#allocation8 + $0x790] sm:$0xff]
    %v4270 = vld [vmem:[#allocation8 + $0x798] sm:$0xff]
    %v4271 = vld [vmem:[#allocation8 + $0x7a0] sm:$0xff]
    %v4272 = vld [vmem:[#allocation8 + $0x7a8] sm:$0xff]
    %v4273 = vld [vmem:[#allocation8 + $0x7b0] sm:$0xff]
    %v4274 = vld [vmem:[#allocation8 + $0x7b8] sm:$0xff]
    %v4275 = vld [vmem:[#allocation8 + $0x7c0] sm:$0xff]
    %v4276 = vld [vmem:[#allocation8 + $0x7c8] sm:$0xff]
    %v4277 = vld [vmem:[#allocation8 + $0x7d0] sm:$0xff]
    %v4278 = vld [vmem:[#allocation8 + $0x7d8] sm:$0xff]
    %v4279 = vld [vmem:[#allocation8 + $0x7e0] sm:$0xff]
    %v4280 = vld [vmem:[#allocation8 + $0x7e8] sm:$0xff]
    %v4281 = vld [vmem:[#allocation8 + $0x7f0] sm:$0xff]
    %v4282 = vld [vmem:[#allocation8 + $0x7f8] sm:$0xff]
    %v4283 = vld [vmem:[#allocation10] sm:$0xff]
    %v4285 = vlaneseq
    %v4286 = vshrl.u32 %v4285, 7
    %v4287 = vsub.s32 0, %v4286
    %v4288 = vrot.slane %v4283, %v4287
    %v4289 = vlaneseq
    %v4290 = vshrl.u32 %v4289, 7
    %v4291 = vsub.s32 1, %v4290
    %v4292 = vrot.slane %v4283, %v4291
    %v4293 = vlaneseq
    %v4294 = vshrl.u32 %v4293, 7
    %v4295 = vsub.s32 2, %v4294
    %v4296 = vrot.slane %v4283, %v4295
    %v4297 = vlaneseq
    %v4298 = vshrl.u32 %v4297, 7
    %v4299 = vsub.s32 3, %v4298
    %v4300 = vrot.slane %v4283, %v4299
    %v4301 = vlaneseq
    %v4302 = vshrl.u32 %v4301, 7
    %v4303 = vsub.s32 4, %v4302
    %v4304 = vrot.slane %v4283, %v4303
    %v4305 = vlaneseq
    %v4306 = vshrl.u32 %v4305, 7
    %v4307 = vsub.s32 5, %v4306
    %v4308 = vrot.slane %v4283, %v4307
    %v4309 = vlaneseq
    %v4310 = vshrl.u32 %v4309, 7
    %v4311 = vsub.s32 6, %v4310
    %v4312 = vrot.slane %v4283, %v4311
    %v4313 = vlaneseq
    %v4314 = vshrl.u32 %v4313, 7
    %v4315 = vsub.s32 7, %v4314
    %v4316 = vrot.slane %v4283, %v4315
    %v4581 = vunpack.c.l.b16 %v4027
    %v4582 = vunpack.c.h.b16 %v4027
    %v4583 = vunpack.c.l.b16 %v4028
    %v4584 = vunpack.c.h.b16 %v4028
    %v4585 = vunpack.c.l.b16 %v4029
    %v4586 = vunpack.c.h.b16 %v4029
    %v4587 = vunpack.c.l.b16 %v4030
    %v4588 = vunpack.c.h.b16 %v4030
    %v4589 = vunpack.c.l.b16 %v4031
    %v4590 = vunpack.c.h.b16 %v4031
    %v4591 = vunpack.c.l.b16 %v4032
    %v4592 = vunpack.c.h.b16 %v4032
    %v4593 = vunpack.c.l.b16 %v4033
    %v4594 = vunpack.c.h.b16 %v4033
    %v4595 = vunpack.c.l.b16 %v4034
    %v4596 = vunpack.c.h.b16 %v4034
    %v4597 = vunpack.c.l.b16 %v4035
    %v4598 = vunpack.c.h.b16 %v4035
    %v4599 = vunpack.c.l.b16 %v4036
    %v4600 = vunpack.c.h.b16 %v4036
    %v4601 = vunpack.c.l.b16 %v4037
    %v4602 = vunpack.c.h.b16 %v4037
    %v4603 = vunpack.c.l.b16 %v4038
    %v4604 = vunpack.c.h.b16 %v4038
    %v4605 = vunpack.c.l.b16 %v4039
    %v4606 = vunpack.c.h.b16 %v4039
    %v4607 = vunpack.c.l.b16 %v4040
    %v4608 = vunpack.c.h.b16 %v4040
    %v4609 = vunpack.c.l.b16 %v4041
    %v4610 = vunpack.c.h.b16 %v4041
    %v4611 = vunpack.c.l.b16 %v4042
    %v4612 = vunpack.c.h.b16 %v4042
    %v4613 = vunpack.c.l.b16 %v4043
    %v4614 = vunpack.c.h.b16 %v4043
    %v4615 = vunpack.c.l.b16 %v4044
    %v4616 = vunpack.c.h.b16 %v4044
    %v4617 = vunpack.c.l.b16 %v4045
    %v4618 = vunpack.c.h.b16 %v4045
    %v4619 = vunpack.c.l.b16 %v4046
    %v4620 = vunpack.c.h.b16 %v4046
    %v4621 = vunpack.c.l.b16 %v4047
    %v4622 = vunpack.c.h.b16 %v4047
    %v4623 = vunpack.c.l.b16 %v4048
    %v4624 = vunpack.c.h.b16 %v4048
    %v4625 = vunpack.c.l.b16 %v4049
    %v4626 = vunpack.c.h.b16 %v4049
    %v4627 = vunpack.c.l.b16 %v4050
    %v4628 = vunpack.c.h.b16 %v4050
    %v4629 = vunpack.c.l.b16 %v4051
    %v4630 = vunpack.c.h.b16 %v4051
    %v4631 = vunpack.c.l.b16 %v4052
    %v4632 = vunpack.c.h.b16 %v4052
    %v4633 = vunpack.c.l.b16 %v4053
    %v4634 = vunpack.c.h.b16 %v4053
    %v4635 = vunpack.c.l.b16 %v4054
    %v4636 = vunpack.c.h.b16 %v4054
    %v4637 = vunpack.c.l.b16 %v4055
    %v4638 = vunpack.c.h.b16 %v4055
    %v4639 = vunpack.c.l.b16 %v4056
    %v4640 = vunpack.c.h.b16 %v4056
    %v4641 = vunpack.c.l.b16 %v4057
    %v4642 = vunpack.c.h.b16 %v4057
    %v4643 = vunpack.c.l.b16 %v4058
    %v4644 = vunpack.c.h.b16 %v4058
    %v4645 = vunpack.c.l.b16 %v4059
    %v4646 = vunpack.c.h.b16 %v4059
    %v4647 = vunpack.c.l.b16 %v4060
    %v4648 = vunpack.c.h.b16 %v4060
    %v4649 = vunpack.c.l.b16 %v4061
    %v4650 = vunpack.c.h.b16 %v4061
    %v4651 = vunpack.c.l.b16 %v4062
    %v4652 = vunpack.c.h.b16 %v4062
    %v4653 = vunpack.c.l.b16 %v4063
    %v4654 = vunpack.c.h.b16 %v4063
    %v4655 = vunpack.c.l.b16 %v4064
    %v4656 = vunpack.c.h.b16 %v4064
    %v4657 = vunpack.c.l.b16 %v4065
    %v4658 = vunpack.c.h.b16 %v4065
    %v4659 = vunpack.c.l.b16 %v4066
    %v4660 = vunpack.c.h.b16 %v4066
    %v4661 = vunpack.c.l.b16 %v4067
    %v4662 = vunpack.c.h.b16 %v4067
    %v4663 = vunpack.c.l.b16 %v4068
    %v4664 = vunpack.c.h.b16 %v4068
    %v4665 = vunpack.c.l.b16 %v4069
    %v4666 = vunpack.c.h.b16 %v4069
    %v4667 = vunpack.c.l.b16 %v4070
    %v4668 = vunpack.c.h.b16 %v4070
    %v4669 = vunpack.c.l.b16 %v4071
    %v4670 = vunpack.c.h.b16 %v4071
    %v4671 = vunpack.c.l.b16 %v4072
    %v4672 = vunpack.c.h.b16 %v4072
    %v4673 = vunpack.c.l.b16 %v4073
    %v4674 = vunpack.c.h.b16 %v4073
    %v4675 = vunpack.c.l.b16 %v4074
    %v4676 = vunpack.c.h.b16 %v4074
    %v4677 = vunpack.c.l.b16 %v4075
    %v4678 = vunpack.c.h.b16 %v4075
    %v4679 = vunpack.c.l.b16 %v4076
    %v4680 = vunpack.c.h.b16 %v4076
    %v4681 = vunpack.c.l.b16 %v4077
    %v4682 = vunpack.c.h.b16 %v4077
    %v4683 = vunpack.c.l.b16 %v4078
    %v4684 = vunpack.c.h.b16 %v4078
    %v4685 = vunpack.c.l.b16 %v4079
    %v4686 = vunpack.c.h.b16 %v4079
    %v4687 = vunpack.c.l.b16 %v4080
    %v4688 = vunpack.c.h.b16 %v4080
    %v4689 = vunpack.c.l.b16 %v4081
    %v4690 = vunpack.c.h.b16 %v4081
    %v4691 = vunpack.c.l.b16 %v4082
    %v4692 = vunpack.c.h.b16 %v4082
    %v4693 = vunpack.c.l.b16 %v4083
    %v4694 = vunpack.c.h.b16 %v4083
    %v4695 = vunpack.c.l.b16 %v4084
    %v4696 = vunpack.c.h.b16 %v4084
    %v4697 = vunpack.c.l.b16 %v4085
    %v4698 = vunpack.c.h.b16 %v4085
    %v4699 = vunpack.c.l.b16 %v4086
    %v4700 = vunpack.c.h.b16 %v4086
    %v4701 = vunpack.c.l.b16 %v4087
    %v4702 = vunpack.c.h.b16 %v4087
    %v4703 = vunpack.c.l.b16 %v4088
    %v4704 = vunpack.c.h.b16 %v4088
    %v4705 = vunpack.c.l.b16 %v4089
    %v4706 = vunpack.c.h.b16 %v4089
    %v4707 = vunpack.c.l.b16 %v4090
    %v4708 = vunpack.c.h.b16 %v4090
    %v4709 = vunpack.c.l.b16 %v4091
    %v4710 = vunpack.c.h.b16 %v4091
    %v4711 = vunpack.c.l.b16 %v4092
    %v4712 = vunpack.c.h.b16 %v4092
    %v4713 = vunpack.c.l.b16 %v4093
    %v4714 = vunpack.c.h.b16 %v4093
    %v4715 = vunpack.c.l.b16 %v4094
    %v4716 = vunpack.c.h.b16 %v4094
    %v4717 = vunpack.c.l.b16 %v4095
    %v4718 = vunpack.c.h.b16 %v4095
    %v4719 = vunpack.c.l.b16 %v4096
    %v4720 = vunpack.c.h.b16 %v4096
    %v4721 = vunpack.c.l.b16 %v4097
    %v4722 = vunpack.c.h.b16 %v4097
    %v4723 = vunpack.c.l.b16 %v4098
    %v4724 = vunpack.c.h.b16 %v4098
    %v4725 = vunpack.c.l.b16 %v4099
    %v4726 = vunpack.c.h.b16 %v4099
    %v4727 = vunpack.c.l.b16 %v4100
    %v4728 = vunpack.c.h.b16 %v4100
    %v4729 = vunpack.c.l.b16 %v4101
    %v4730 = vunpack.c.h.b16 %v4101
    %v4731 = vunpack.c.l.b16 %v4102
    %v4732 = vunpack.c.h.b16 %v4102
    %v4733 = vunpack.c.l.b16 %v4103
    %v4734 = vunpack.c.h.b16 %v4103
    %v4735 = vunpack.c.l.b16 %v4104
    %v4736 = vunpack.c.h.b16 %v4104
    %v4737 = vunpack.c.l.b16 %v4105
    %v4738 = vunpack.c.h.b16 %v4105
    %v4739 = vunpack.c.l.b16 %v4106
    %v4740 = vunpack.c.h.b16 %v4106
    %v4741 = vunpack.c.l.b16 %v4107
    %v4742 = vunpack.c.h.b16 %v4107
    %v4743 = vunpack.c.l.b16 %v4108
    %v4744 = vunpack.c.h.b16 %v4108
    %v4745 = vunpack.c.l.b16 %v4109
    %v4746 = vunpack.c.h.b16 %v4109
    %v4747 = vunpack.c.l.b16 %v4110
    %v4748 = vunpack.c.h.b16 %v4110
    %v4749 = vunpack.c.l.b16 %v4111
    %v4750 = vunpack.c.h.b16 %v4111
    %v4751 = vunpack.c.l.b16 %v4112
    %v4752 = vunpack.c.h.b16 %v4112
    %v4753 = vunpack.c.l.b16 %v4113
    %v4754 = vunpack.c.h.b16 %v4113
    %v4755 = vunpack.c.l.b16 %v4114
    %v4756 = vunpack.c.h.b16 %v4114
    %v4757 = vunpack.c.l.b16 %v4115
    %v4758 = vunpack.c.h.b16 %v4115
    %v4759 = vunpack.c.l.b16 %v4116
    %v4760 = vunpack.c.h.b16 %v4116
    %v4761 = vunpack.c.l.b16 %v4117
    %v4762 = vunpack.c.h.b16 %v4117
    %v4763 = vunpack.c.l.b16 %v4118
    %v4764 = vunpack.c.h.b16 %v4118
    %v4765 = vunpack.c.l.b16 %v4119
    %v4766 = vunpack.c.h.b16 %v4119
    %v4767 = vunpack.c.l.b16 %v4120
    %v4768 = vunpack.c.h.b16 %v4120
    %v4769 = vunpack.c.l.b16 %v4121
    %v4770 = vunpack.c.h.b16 %v4121
    %v4771 = vunpack.c.l.b16 %v4122
    %v4772 = vunpack.c.h.b16 %v4122
    %v4773 = vunpack.c.l.b16 %v4123
    %v4774 = vunpack.c.h.b16 %v4123
    %v4775 = vunpack.c.l.b16 %v4124
    %v4776 = vunpack.c.h.b16 %v4124
    %v4777 = vunpack.c.l.b16 %v4125
    %v4778 = vunpack.c.h.b16 %v4125
    %v4779 = vunpack.c.l.b16 %v4126
    %v4780 = vunpack.c.h.b16 %v4126
    %v4781 = vunpack.c.l.b16 %v4127
    %v4782 = vunpack.c.h.b16 %v4127
    %v4783 = vunpack.c.l.b16 %v4128
    %v4784 = vunpack.c.h.b16 %v4128
    %v4785 = vunpack.c.l.b16 %v4129
    %v4786 = vunpack.c.h.b16 %v4129
    %v4787 = vunpack.c.l.b16 %v4130
    %v4788 = vunpack.c.h.b16 %v4130
    %v4789 = vunpack.c.l.b16 %v4131
    %v4790 = vunpack.c.h.b16 %v4131
    %v4791 = vunpack.c.l.b16 %v4132
    %v4792 = vunpack.c.h.b16 %v4132
    %v4793 = vunpack.c.l.b16 %v4133
    %v4794 = vunpack.c.h.b16 %v4133
    %v4795 = vunpack.c.l.b16 %v4134
    %v4796 = vunpack.c.h.b16 %v4134
    %v4797 = vunpack.c.l.b16 %v4135
    %v4798 = vunpack.c.h.b16 %v4135
    %v4799 = vunpack.c.l.b16 %v4136
    %v4800 = vunpack.c.h.b16 %v4136
    %v4801 = vunpack.c.l.b16 %v4137
    %v4802 = vunpack.c.h.b16 %v4137
    %v4803 = vunpack.c.l.b16 %v4138
    %v4804 = vunpack.c.h.b16 %v4138
    %v4805 = vunpack.c.l.b16 %v4139
    %v4806 = vunpack.c.h.b16 %v4139
    %v4807 = vunpack.c.l.b16 %v4140
    %v4808 = vunpack.c.h.b16 %v4140
    %v4809 = vunpack.c.l.b16 %v4141
    %v4810 = vunpack.c.h.b16 %v4141
    %v4811 = vunpack.c.l.b16 %v4142
    %v4812 = vunpack.c.h.b16 %v4142
    %v4813 = vunpack.c.l.b16 %v4143
    %v4814 = vunpack.c.h.b16 %v4143
    %v4815 = vunpack.c.l.b16 %v4144
    %v4816 = vunpack.c.h.b16 %v4144
    %v4817 = vunpack.c.l.b16 %v4145
    %v4818 = vunpack.c.h.b16 %v4145
    %v4819 = vunpack.c.l.b16 %v4146
    %v4820 = vunpack.c.h.b16 %v4146
    %v4821 = vunpack.c.l.b16 %v4147
    %v4822 = vunpack.c.h.b16 %v4147
    %v4823 = vunpack.c.l.b16 %v4148
    %v4824 = vunpack.c.h.b16 %v4148
    %v4825 = vunpack.c.l.b16 %v4149
    %v4826 = vunpack.c.h.b16 %v4149
    %v4827 = vunpack.c.l.b16 %v4150
    %v4828 = vunpack.c.h.b16 %v4150
    %v4829 = vunpack.c.l.b16 %v4151
    %v4830 = vunpack.c.h.b16 %v4151
    %v4831 = vunpack.c.l.b16 %v4152
    %v4832 = vunpack.c.h.b16 %v4152
    %v4833 = vunpack.c.l.b16 %v4153
    %v4834 = vunpack.c.h.b16 %v4153
    %v4835 = vunpack.c.l.b16 %v4154
    %v4836 = vunpack.c.h.b16 %v4154
    %v4837 = vunpack.c.l.b16 %v4155
    %v4838 = vunpack.c.h.b16 %v4155
    %v4839 = vunpack.c.l.b16 %v4156
    %v4840 = vunpack.c.h.b16 %v4156
    %v4841 = vunpack.c.l.b16 %v4157
    %v4842 = vunpack.c.h.b16 %v4157
    %v4843 = vunpack.c.l.b16 %v4158
    %v4844 = vunpack.c.h.b16 %v4158
    %v4845 = vunpack.c.l.b16 %v4159
    %v4846 = vunpack.c.h.b16 %v4159
    %v4847 = vunpack.c.l.b16 %v4160
    %v4848 = vunpack.c.h.b16 %v4160
    %v4849 = vunpack.c.l.b16 %v4161
    %v4850 = vunpack.c.h.b16 %v4161
    %v4851 = vunpack.c.l.b16 %v4162
    %v4852 = vunpack.c.h.b16 %v4162
    %v4853 = vunpack.c.l.b16 %v4163
    %v4854 = vunpack.c.h.b16 %v4163
    %v4855 = vunpack.c.l.b16 %v4164
    %v4856 = vunpack.c.h.b16 %v4164
    %v4857 = vunpack.c.l.b16 %v4165
    %v4858 = vunpack.c.h.b16 %v4165
    %v4859 = vunpack.c.l.b16 %v4166
    %v4860 = vunpack.c.h.b16 %v4166
    %v4861 = vunpack.c.l.b16 %v4167
    %v4862 = vunpack.c.h.b16 %v4167
    %v4863 = vunpack.c.l.b16 %v4168
    %v4864 = vunpack.c.h.b16 %v4168
    %v4865 = vunpack.c.l.b16 %v4169
    %v4866 = vunpack.c.h.b16 %v4169
    %v4867 = vunpack.c.l.b16 %v4170
    %v4868 = vunpack.c.h.b16 %v4170
    %v4869 = vunpack.c.l.b16 %v4171
    %v4870 = vunpack.c.h.b16 %v4171
    %v4871 = vunpack.c.l.b16 %v4172
    %v4872 = vunpack.c.h.b16 %v4172
    %v4873 = vunpack.c.l.b16 %v4173
    %v4874 = vunpack.c.h.b16 %v4173
    %v4875 = vunpack.c.l.b16 %v4174
    %v4876 = vunpack.c.h.b16 %v4174
    %v4877 = vunpack.c.l.b16 %v4175
    %v4878 = vunpack.c.h.b16 %v4175
    %v4879 = vunpack.c.l.b16 %v4176
    %v4880 = vunpack.c.h.b16 %v4176
    %v4881 = vunpack.c.l.b16 %v4177
    %v4882 = vunpack.c.h.b16 %v4177
    %v4883 = vunpack.c.l.b16 %v4178
    %v4884 = vunpack.c.h.b16 %v4178
    %v4885 = vunpack.c.l.b16 %v4179
    %v4886 = vunpack.c.h.b16 %v4179
    %v4887 = vunpack.c.l.b16 %v4180
    %v4888 = vunpack.c.h.b16 %v4180
    %v4889 = vunpack.c.l.b16 %v4181
    %v4890 = vunpack.c.h.b16 %v4181
    %v4891 = vunpack.c.l.b16 %v4182
    %v4892 = vunpack.c.h.b16 %v4182
    %v4893 = vunpack.c.l.b16 %v4183
    %v4894 = vunpack.c.h.b16 %v4183
    %v4895 = vunpack.c.l.b16 %v4184
    %v4896 = vunpack.c.h.b16 %v4184
    %v4897 = vunpack.c.l.b16 %v4185
    %v4898 = vunpack.c.h.b16 %v4185
    %v4899 = vunpack.c.l.b16 %v4186
    %v4900 = vunpack.c.h.b16 %v4186
    %v4901 = vunpack.c.l.b16 %v4187
    %v4902 = vunpack.c.h.b16 %v4187
    %v4903 = vunpack.c.l.b16 %v4188
    %v4904 = vunpack.c.h.b16 %v4188
    %v4905 = vunpack.c.l.b16 %v4189
    %v4906 = vunpack.c.h.b16 %v4189
    %v4907 = vunpack.c.l.b16 %v4190
    %v4908 = vunpack.c.h.b16 %v4190
    %v4909 = vunpack.c.l.b16 %v4191
    %v4910 = vunpack.c.h.b16 %v4191
    %v4911 = vunpack.c.l.b16 %v4192
    %v4912 = vunpack.c.h.b16 %v4192
    %v4913 = vunpack.c.l.b16 %v4193
    %v4914 = vunpack.c.h.b16 %v4193
    %v4915 = vunpack.c.l.b16 %v4194
    %v4916 = vunpack.c.h.b16 %v4194
    %v4917 = vunpack.c.l.b16 %v4195
    %v4918 = vunpack.c.h.b16 %v4195
    %v4919 = vunpack.c.l.b16 %v4196
    %v4920 = vunpack.c.h.b16 %v4196
    %v4921 = vunpack.c.l.b16 %v4197
    %v4922 = vunpack.c.h.b16 %v4197
    %v4923 = vunpack.c.l.b16 %v4198
    %v4924 = vunpack.c.h.b16 %v4198
    %v4925 = vunpack.c.l.b16 %v4199
    %v4926 = vunpack.c.h.b16 %v4199
    %v4927 = vunpack.c.l.b16 %v4200
    %v4928 = vunpack.c.h.b16 %v4200
    %v4929 = vunpack.c.l.b16 %v4201
    %v4930 = vunpack.c.h.b16 %v4201
    %v4931 = vunpack.c.l.b16 %v4202
    %v4932 = vunpack.c.h.b16 %v4202
    %v4933 = vunpack.c.l.b16 %v4203
    %v4934 = vunpack.c.h.b16 %v4203
    %v4935 = vunpack.c.l.b16 %v4204
    %v4936 = vunpack.c.h.b16 %v4204
    %v4937 = vunpack.c.l.b16 %v4205
    %v4938 = vunpack.c.h.b16 %v4205
    %v4939 = vunpack.c.l.b16 %v4206
    %v4940 = vunpack.c.h.b16 %v4206
    %v4941 = vunpack.c.l.b16 %v4207
    %v4942 = vunpack.c.h.b16 %v4207
    %v4943 = vunpack.c.l.b16 %v4208
    %v4944 = vunpack.c.h.b16 %v4208
    %v4945 = vunpack.c.l.b16 %v4209
    %v4946 = vunpack.c.h.b16 %v4209
    %v4947 = vunpack.c.l.b16 %v4210
    %v4948 = vunpack.c.h.b16 %v4210
    %v4949 = vunpack.c.l.b16 %v4211
    %v4950 = vunpack.c.h.b16 %v4211
    %v4951 = vunpack.c.l.b16 %v4212
    %v4952 = vunpack.c.h.b16 %v4212
    %v4953 = vunpack.c.l.b16 %v4213
    %v4954 = vunpack.c.h.b16 %v4213
    %v4955 = vunpack.c.l.b16 %v4214
    %v4956 = vunpack.c.h.b16 %v4214
    %v4957 = vunpack.c.l.b16 %v4215
    %v4958 = vunpack.c.h.b16 %v4215
    %v4959 = vunpack.c.l.b16 %v4216
    %v4960 = vunpack.c.h.b16 %v4216
    %v4961 = vunpack.c.l.b16 %v4217
    %v4962 = vunpack.c.h.b16 %v4217
    %v4963 = vunpack.c.l.b16 %v4218
    %v4964 = vunpack.c.h.b16 %v4218
    %v4965 = vunpack.c.l.b16 %v4219
    %v4966 = vunpack.c.h.b16 %v4219
    %v4967 = vunpack.c.l.b16 %v4220
    %v4968 = vunpack.c.h.b16 %v4220
    %v4969 = vunpack.c.l.b16 %v4221
    %v4970 = vunpack.c.h.b16 %v4221
    %v4971 = vunpack.c.l.b16 %v4222
    %v4972 = vunpack.c.h.b16 %v4222
    %v4973 = vunpack.c.l.b16 %v4223
    %v4974 = vunpack.c.h.b16 %v4223
    %v4975 = vunpack.c.l.b16 %v4224
    %v4976 = vunpack.c.h.b16 %v4224
    %v4977 = vunpack.c.l.b16 %v4225
    %v4978 = vunpack.c.h.b16 %v4225
    %v4979 = vunpack.c.l.b16 %v4226
    %v4980 = vunpack.c.h.b16 %v4226
    %v4981 = vunpack.c.l.b16 %v4227
    %v4982 = vunpack.c.h.b16 %v4227
    %v4983 = vunpack.c.l.b16 %v4228
    %v4984 = vunpack.c.h.b16 %v4228
    %v4985 = vunpack.c.l.b16 %v4229
    %v4986 = vunpack.c.h.b16 %v4229
    %v4987 = vunpack.c.l.b16 %v4230
    %v4988 = vunpack.c.h.b16 %v4230
    %v4989 = vunpack.c.l.b16 %v4231
    %v4990 = vunpack.c.h.b16 %v4231
    %v4991 = vunpack.c.l.b16 %v4232
    %v4992 = vunpack.c.h.b16 %v4232
    %v4993 = vunpack.c.l.b16 %v4233
    %v4994 = vunpack.c.h.b16 %v4233
    %v4995 = vunpack.c.l.b16 %v4234
    %v4996 = vunpack.c.h.b16 %v4234
    %v4997 = vunpack.c.l.b16 %v4235
    %v4998 = vunpack.c.h.b16 %v4235
    %v4999 = vunpack.c.l.b16 %v4236
    %v5000 = vunpack.c.h.b16 %v4236
    %v5001 = vunpack.c.l.b16 %v4237
    %v5002 = vunpack.c.h.b16 %v4237
    %v5003 = vunpack.c.l.b16 %v4238
    %v5004 = vunpack.c.h.b16 %v4238
    %v5005 = vunpack.c.l.b16 %v4239
    %v5006 = vunpack.c.h.b16 %v4239
    %v5007 = vunpack.c.l.b16 %v4240
    %v5008 = vunpack.c.h.b16 %v4240
    %v5009 = vunpack.c.l.b16 %v4241
    %v5010 = vunpack.c.h.b16 %v4241
    %v5011 = vunpack.c.l.b16 %v4242
    %v5012 = vunpack.c.h.b16 %v4242
    %v5013 = vunpack.c.l.b16 %v4243
    %v5014 = vunpack.c.h.b16 %v4243
    %v5015 = vunpack.c.l.b16 %v4244
    %v5016 = vunpack.c.h.b16 %v4244
    %v5017 = vunpack.c.l.b16 %v4245
    %v5018 = vunpack.c.h.b16 %v4245
    %v5019 = vunpack.c.l.b16 %v4246
    %v5020 = vunpack.c.h.b16 %v4246
    %v5021 = vunpack.c.l.b16 %v4247
    %v5022 = vunpack.c.h.b16 %v4247
    %v5023 = vunpack.c.l.b16 %v4248
    %v5024 = vunpack.c.h.b16 %v4248
    %v5025 = vunpack.c.l.b16 %v4249
    %v5026 = vunpack.c.h.b16 %v4249
    %v5027 = vunpack.c.l.b16 %v4250
    %v5028 = vunpack.c.h.b16 %v4250
    %v5029 = vunpack.c.l.b16 %v4251
    %v5030 = vunpack.c.h.b16 %v4251
    %v5031 = vunpack.c.l.b16 %v4252
    %v5032 = vunpack.c.h.b16 %v4252
    %v5033 = vunpack.c.l.b16 %v4253
    %v5034 = vunpack.c.h.b16 %v4253
    %v5035 = vunpack.c.l.b16 %v4254
    %v5036 = vunpack.c.h.b16 %v4254
    %v5037 = vunpack.c.l.b16 %v4255
    %v5038 = vunpack.c.h.b16 %v4255
    %v5039 = vunpack.c.l.b16 %v4256
    %v5040 = vunpack.c.h.b16 %v4256
    %v5041 = vunpack.c.l.b16 %v4257
    %v5042 = vunpack.c.h.b16 %v4257
    %v5043 = vunpack.c.l.b16 %v4258
    %v5044 = vunpack.c.h.b16 %v4258
    %v5045 = vunpack.c.l.b16 %v4259
    %v5046 = vunpack.c.h.b16 %v4259
    %v5047 = vunpack.c.l.b16 %v4260
    %v5048 = vunpack.c.h.b16 %v4260
    %v5049 = vunpack.c.l.b16 %v4261
    %v5050 = vunpack.c.h.b16 %v4261
    %v5051 = vunpack.c.l.b16 %v4262
    %v5052 = vunpack.c.h.b16 %v4262
    %v5053 = vunpack.c.l.b16 %v4263
    %v5054 = vunpack.c.h.b16 %v4263
    %v5055 = vunpack.c.l.b16 %v4264
    %v5056 = vunpack.c.h.b16 %v4264
    %v5057 = vunpack.c.l.b16 %v4265
    %v5058 = vunpack.c.h.b16 %v4265
    %v5059 = vunpack.c.l.b16 %v4266
    %v5060 = vunpack.c.h.b16 %v4266
    %v5061 = vunpack.c.l.b16 %v4267
    %v5062 = vunpack.c.h.b16 %v4267
    %v5063 = vunpack.c.l.b16 %v4268
    %v5064 = vunpack.c.h.b16 %v4268
    %v5065 = vunpack.c.l.b16 %v4269
    %v5066 = vunpack.c.h.b16 %v4269
    %v5067 = vunpack.c.l.b16 %v4270
    %v5068 = vunpack.c.h.b16 %v4270
    %v5069 = vunpack.c.l.b16 %v4271
    %v5070 = vunpack.c.h.b16 %v4271
    %v5071 = vunpack.c.l.b16 %v4272
    %v5072 = vunpack.c.h.b16 %v4272
    %v5073 = vunpack.c.l.b16 %v4273
    %v5074 = vunpack.c.h.b16 %v4273
    %v5075 = vunpack.c.l.b16 %v4274
    %v5076 = vunpack.c.h.b16 %v4274
    %v5077 = vunpack.c.l.b16 %v4275
    %v5078 = vunpack.c.h.b16 %v4275
    %v5079 = vunpack.c.l.b16 %v4276
    %v5080 = vunpack.c.h.b16 %v4276
    %v5081 = vunpack.c.l.b16 %v4277
    %v5082 = vunpack.c.h.b16 %v4277
    %v5083 = vunpack.c.l.b16 %v4278
    %v5084 = vunpack.c.h.b16 %v4278
    %v5085 = vunpack.c.l.b16 %v4279
    %v5086 = vunpack.c.h.b16 %v4279
    %v5087 = vunpack.c.l.b16 %v4280
    %v5088 = vunpack.c.h.b16 %v4280
    %v5089 = vunpack.c.l.b16 %v4281
    %v5090 = vunpack.c.h.b16 %v4281
    %v5091 = vunpack.c.l.b16 %v4282
    %v5092 = vunpack.c.h.b16 %v4282
    %v5093 = vpack.c.b16 %v4589, %v4581
    %v5094 = vpack.c.b16 %v4590, %v4582
    %v5095 = vpack.c.b16 %v4591, %v4583
    %v5096 = vpack.c.b16 %v4592, %v4584
    %v5097 = vpack.c.b16 %v4593, %v4585
    %v5098 = vpack.c.b16 %v4594, %v4586
    %v5099 = vpack.c.b16 %v4595, %v4587
    %v5100 = vpack.c.b16 %v4596, %v4588
    %v5101 = vpack.c.b16 %v4605, %v4597
    %v5102 = vpack.c.b16 %v4606, %v4598
    %v5103 = vpack.c.b16 %v4607, %v4599
    %v5104 = vpack.c.b16 %v4608, %v4600
    %v5105 = vpack.c.b16 %v4609, %v4601
    %v5106 = vpack.c.b16 %v4610, %v4602
    %v5107 = vpack.c.b16 %v4611, %v4603
    %v5108 = vpack.c.b16 %v4612, %v4604
    %v5109 = vpack.c.b16 %v4621, %v4613
    %v5110 = vpack.c.b16 %v4622, %v4614
    %v5111 = vpack.c.b16 %v4623, %v4615
    %v5112 = vpack.c.b16 %v4624, %v4616
    %v5113 = vpack.c.b16 %v4625, %v4617
    %v5114 = vpack.c.b16 %v4626, %v4618
    %v5115 = vpack.c.b16 %v4627, %v4619
    %v5116 = vpack.c.b16 %v4628, %v4620
    %v5117 = vpack.c.b16 %v4637, %v4629
    %v5118 = vpack.c.b16 %v4638, %v4630
    %v5119 = vpack.c.b16 %v4639, %v4631
    %v5120 = vpack.c.b16 %v4640, %v4632
    %v5121 = vpack.c.b16 %v4641, %v4633
    %v5122 = vpack.c.b16 %v4642, %v4634
    %v5123 = vpack.c.b16 %v4643, %v4635
    %v5124 = vpack.c.b16 %v4644, %v4636
    %v5125 = vpack.c.b16 %v4653, %v4645
    %v5126 = vpack.c.b16 %v4654, %v4646
    %v5127 = vpack.c.b16 %v4655, %v4647
    %v5128 = vpack.c.b16 %v4656, %v4648
    %v5129 = vpack.c.b16 %v4657, %v4649
    %v5130 = vpack.c.b16 %v4658, %v4650
    %v5131 = vpack.c.b16 %v4659, %v4651
    %v5132 = vpack.c.b16 %v4660, %v4652
    %v5133 = vpack.c.b16 %v4669, %v4661
    %v5134 = vpack.c.b16 %v4670, %v4662
    %v5135 = vpack.c.b16 %v4671, %v4663
    %v5136 = vpack.c.b16 %v4672, %v4664
    %v5137 = vpack.c.b16 %v4673, %v4665
    %v5138 = vpack.c.b16 %v4674, %v4666
    %v5139 = vpack.c.b16 %v4675, %v4667
    %v5140 = vpack.c.b16 %v4676, %v4668
    %v5141 = vpack.c.b16 %v4685, %v4677
    %v5142 = vpack.c.b16 %v4686, %v4678
    %v5143 = vpack.c.b16 %v4687, %v4679
    %v5144 = vpack.c.b16 %v4688, %v4680
    %v5145 = vpack.c.b16 %v4689, %v4681
    %v5146 = vpack.c.b16 %v4690, %v4682
    %v5147 = vpack.c.b16 %v4691, %v4683
    %v5148 = vpack.c.b16 %v4692, %v4684
    %v5149 = vpack.c.b16 %v4701, %v4693
    %v5150 = vpack.c.b16 %v4702, %v4694
    %v5151 = vpack.c.b16 %v4703, %v4695
    %v5152 = vpack.c.b16 %v4704, %v4696
    %v5153 = vpack.c.b16 %v4705, %v4697
    %v5154 = vpack.c.b16 %v4706, %v4698
    %v5155 = vpack.c.b16 %v4707, %v4699
    %v5156 = vpack.c.b16 %v4708, %v4700
    %v5157 = vpack.c.b16 %v4717, %v4709
    %v5158 = vpack.c.b16 %v4718, %v4710
    %v5159 = vpack.c.b16 %v4719, %v4711
    %v5160 = vpack.c.b16 %v4720, %v4712
    %v5161 = vpack.c.b16 %v4721, %v4713
    %v5162 = vpack.c.b16 %v4722, %v4714
    %v5163 = vpack.c.b16 %v4723, %v4715
    %v5164 = vpack.c.b16 %v4724, %v4716
    %v5165 = vpack.c.b16 %v4733, %v4725
    %v5166 = vpack.c.b16 %v4734, %v4726
    %v5167 = vpack.c.b16 %v4735, %v4727
    %v5168 = vpack.c.b16 %v4736, %v4728
    %v5169 = vpack.c.b16 %v4737, %v4729
    %v5170 = vpack.c.b16 %v4738, %v4730
    %v5171 = vpack.c.b16 %v4739, %v4731
    %v5172 = vpack.c.b16 %v4740, %v4732
    %v5173 = vpack.c.b16 %v4749, %v4741
    %v5174 = vpack.c.b16 %v4750, %v4742
    %v5175 = vpack.c.b16 %v4751, %v4743
    %v5176 = vpack.c.b16 %v4752, %v4744
    %v5177 = vpack.c.b16 %v4753, %v4745
    %v5178 = vpack.c.b16 %v4754, %v4746
    %v5179 = vpack.c.b16 %v4755, %v4747
    %v5180 = vpack.c.b16 %v4756, %v4748
    %v5181 = vpack.c.b16 %v4765, %v4757
    %v5182 = vpack.c.b16 %v4766, %v4758
    %v5183 = vpack.c.b16 %v4767, %v4759
    %v5184 = vpack.c.b16 %v4768, %v4760
    %v5185 = vpack.c.b16 %v4769, %v4761
    %v5186 = vpack.c.b16 %v4770, %v4762
    %v5187 = vpack.c.b16 %v4771, %v4763
    %v5188 = vpack.c.b16 %v4772, %v4764
    %v5189 = vpack.c.b16 %v4781, %v4773
    %v5190 = vpack.c.b16 %v4782, %v4774
    %v5191 = vpack.c.b16 %v4783, %v4775
    %v5192 = vpack.c.b16 %v4784, %v4776
    %v5193 = vpack.c.b16 %v4785, %v4777
    %v5194 = vpack.c.b16 %v4786, %v4778
    %v5195 = vpack.c.b16 %v4787, %v4779
    %v5196 = vpack.c.b16 %v4788, %v4780
    %v5197 = vpack.c.b16 %v4797, %v4789
    %v5198 = vpack.c.b16 %v4798, %v4790
    %v5199 = vpack.c.b16 %v4799, %v4791
    %v5200 = vpack.c.b16 %v4800, %v4792
    %v5201 = vpack.c.b16 %v4801, %v4793
    %v5202 = vpack.c.b16 %v4802, %v4794
    %v5203 = vpack.c.b16 %v4803, %v4795
    %v5204 = vpack.c.b16 %v4804, %v4796
    %v5205 = vpack.c.b16 %v4813, %v4805
    %v5206 = vpack.c.b16 %v4814, %v4806
    %v5207 = vpack.c.b16 %v4815, %v4807
    %v5208 = vpack.c.b16 %v4816, %v4808
    %v5209 = vpack.c.b16 %v4817, %v4809
    %v5210 = vpack.c.b16 %v4818, %v4810
    %v5211 = vpack.c.b16 %v4819, %v4811
    %v5212 = vpack.c.b16 %v4820, %v4812
    %v5213 = vpack.c.b16 %v4829, %v4821
    %v5214 = vpack.c.b16 %v4830, %v4822
    %v5215 = vpack.c.b16 %v4831, %v4823
    %v5216 = vpack.c.b16 %v4832, %v4824
    %v5217 = vpack.c.b16 %v4833, %v4825
    %v5218 = vpack.c.b16 %v4834, %v4826
    %v5219 = vpack.c.b16 %v4835, %v4827
    %v5220 = vpack.c.b16 %v4836, %v4828
    %v5221 = vpack.c.b16 %v4845, %v4837
    %v5222 = vpack.c.b16 %v4846, %v4838
    %v5223 = vpack.c.b16 %v4847, %v4839
    %v5224 = vpack.c.b16 %v4848, %v4840
    %v5225 = vpack.c.b16 %v4849, %v4841
    %v5226 = vpack.c.b16 %v4850, %v4842
    %v5227 = vpack.c.b16 %v4851, %v4843
    %v5228 = vpack.c.b16 %v4852, %v4844
    %v5229 = vpack.c.b16 %v4861, %v4853
    %v5230 = vpack.c.b16 %v4862, %v4854
    %v5231 = vpack.c.b16 %v4863, %v4855
    %v5232 = vpack.c.b16 %v4864, %v4856
    %v5233 = vpack.c.b16 %v4865, %v4857
    %v5234 = vpack.c.b16 %v4866, %v4858
    %v5235 = vpack.c.b16 %v4867, %v4859
    %v5236 = vpack.c.b16 %v4868, %v4860
    %v5237 = vpack.c.b16 %v4877, %v4869
    %v5238 = vpack.c.b16 %v4878, %v4870
    %v5239 = vpack.c.b16 %v4879, %v4871
    %v5240 = vpack.c.b16 %v4880, %v4872
    %v5241 = vpack.c.b16 %v4881, %v4873
    %v5242 = vpack.c.b16 %v4882, %v4874
    %v5243 = vpack.c.b16 %v4883, %v4875
    %v5244 = vpack.c.b16 %v4884, %v4876
    %v5245 = vpack.c.b16 %v4893, %v4885
    %v5246 = vpack.c.b16 %v4894, %v4886
    %v5247 = vpack.c.b16 %v4895, %v4887
    %v5248 = vpack.c.b16 %v4896, %v4888
    %v5249 = vpack.c.b16 %v4897, %v4889
    %v5250 = vpack.c.b16 %v4898, %v4890
    %v5251 = vpack.c.b16 %v4899, %v4891
    %v5252 = vpack.c.b16 %v4900, %v4892
    %v5253 = vpack.c.b16 %v4909, %v4901
    %v5254 = vpack.c.b16 %v4910, %v4902
    %v5255 = vpack.c.b16 %v4911, %v4903
    %v5256 = vpack.c.b16 %v4912, %v4904
    %v5257 = vpack.c.b16 %v4913, %v4905
    %v5258 = vpack.c.b16 %v4914, %v4906
    %v5259 = vpack.c.b16 %v4915, %v4907
    %v5260 = vpack.c.b16 %v4916, %v4908
    %v5261 = vpack.c.b16 %v4925, %v4917
    %v5262 = vpack.c.b16 %v4926, %v4918
    %v5263 = vpack.c.b16 %v4927, %v4919
    %v5264 = vpack.c.b16 %v4928, %v4920
    %v5265 = vpack.c.b16 %v4929, %v4921
    %v5266 = vpack.c.b16 %v4930, %v4922
    %v5267 = vpack.c.b16 %v4931, %v4923
    %v5268 = vpack.c.b16 %v4932, %v4924
    %v5269 = vpack.c.b16 %v4941, %v4933
    %v5270 = vpack.c.b16 %v4942, %v4934
    %v5271 = vpack.c.b16 %v4943, %v4935
    %v5272 = vpack.c.b16 %v4944, %v4936
    %v5273 = vpack.c.b16 %v4945, %v4937
    %v5274 = vpack.c.b16 %v4946, %v4938
    %v5275 = vpack.c.b16 %v4947, %v4939
    %v5276 = vpack.c.b16 %v4948, %v4940
    %v5277 = vpack.c.b16 %v4957, %v4949
    %v5278 = vpack.c.b16 %v4958, %v4950
    %v5279 = vpack.c.b16 %v4959, %v4951
    %v5280 = vpack.c.b16 %v4960, %v4952
    %v5281 = vpack.c.b16 %v4961, %v4953
    %v5282 = vpack.c.b16 %v4962, %v4954
    %v5283 = vpack.c.b16 %v4963, %v4955
    %v5284 = vpack.c.b16 %v4964, %v4956
    %v5285 = vpack.c.b16 %v4973, %v4965
    %v5286 = vpack.c.b16 %v4974, %v4966
    %v5287 = vpack.c.b16 %v4975, %v4967
    %v5288 = vpack.c.b16 %v4976, %v4968
    %v5289 = vpack.c.b16 %v4977, %v4969
    %v5290 = vpack.c.b16 %v4978, %v4970
    %v5291 = vpack.c.b16 %v4979, %v4971
    %v5292 = vpack.c.b16 %v4980, %v4972
    %v5293 = vpack.c.b16 %v4989, %v4981
    %v5294 = vpack.c.b16 %v4990, %v4982
    %v5295 = vpack.c.b16 %v4991, %v4983
    %v5296 = vpack.c.b16 %v4992, %v4984
    %v5297 = vpack.c.b16 %v4993, %v4985
    %v5298 = vpack.c.b16 %v4994, %v4986
    %v5299 = vpack.c.b16 %v4995, %v4987
    %v5300 = vpack.c.b16 %v4996, %v4988
    %v5301 = vpack.c.b16 %v5005, %v4997
    %v5302 = vpack.c.b16 %v5006, %v4998
    %v5303 = vpack.c.b16 %v5007, %v4999
    %v5304 = vpack.c.b16 %v5008, %v5000
    %v5305 = vpack.c.b16 %v5009, %v5001
    %v5306 = vpack.c.b16 %v5010, %v5002
    %v5307 = vpack.c.b16 %v5011, %v5003
    %v5308 = vpack.c.b16 %v5012, %v5004
    %v5309 = vpack.c.b16 %v5021, %v5013
    %v5310 = vpack.c.b16 %v5022, %v5014
    %v5311 = vpack.c.b16 %v5023, %v5015
    %v5312 = vpack.c.b16 %v5024, %v5016
    %v5313 = vpack.c.b16 %v5025, %v5017
    %v5314 = vpack.c.b16 %v5026, %v5018
    %v5315 = vpack.c.b16 %v5027, %v5019
    %v5316 = vpack.c.b16 %v5028, %v5020
    %v5317 = vpack.c.b16 %v5037, %v5029
    %v5318 = vpack.c.b16 %v5038, %v5030
    %v5319 = vpack.c.b16 %v5039, %v5031
    %v5320 = vpack.c.b16 %v5040, %v5032
    %v5321 = vpack.c.b16 %v5041, %v5033
    %v5322 = vpack.c.b16 %v5042, %v5034
    %v5323 = vpack.c.b16 %v5043, %v5035
    %v5324 = vpack.c.b16 %v5044, %v5036
    %v5325 = vpack.c.b16 %v5053, %v5045
    %v5326 = vpack.c.b16 %v5054, %v5046
    %v5327 = vpack.c.b16 %v5055, %v5047
    %v5328 = vpack.c.b16 %v5056, %v5048
    %v5329 = vpack.c.b16 %v5057, %v5049
    %v5330 = vpack.c.b16 %v5058, %v5050
    %v5331 = vpack.c.b16 %v5059, %v5051
    %v5332 = vpack.c.b16 %v5060, %v5052
    %v5333 = vpack.c.b16 %v5069, %v5061
    %v5334 = vpack.c.b16 %v5070, %v5062
    %v5335 = vpack.c.b16 %v5071, %v5063
    %v5336 = vpack.c.b16 %v5072, %v5064
    %v5337 = vpack.c.b16 %v5073, %v5065
    %v5338 = vpack.c.b16 %v5074, %v5066
    %v5339 = vpack.c.b16 %v5075, %v5067
    %v5340 = vpack.c.b16 %v5076, %v5068
    %v5341 = vpack.c.b16 %v5085, %v5077
    %v5342 = vpack.c.b16 %v5086, %v5078
    %v5343 = vpack.c.b16 %v5087, %v5079
    %v5344 = vpack.c.b16 %v5088, %v5080
    %v5345 = vpack.c.b16 %v5089, %v5081
    %v5346 = vpack.c.b16 %v5090, %v5082
    %v5347 = vpack.c.b16 %v5091, %v5083
    %v5348 = vpack.c.b16 %v5092, %v5084
    %5605 = vmatprep.subr.bf16.mxu0 %v5094
    %5606 = vmatpush1.bf16.msra.mxu0 %v5093
    %5607 = vmatprep.subr.bf16.mxu0 %v5102
    %5608 = vmatpush1.bf16.msra.mxu0 %v5101
    %5609 = vmatprep.subr.bf16.mxu0 %v5110
    %5610 = vmatpush1.bf16.msra.mxu0 %v5109
    %5611 = vmatprep.subr.bf16.mxu0 %v5118
    %5612 = vmatpush1.bf16.msra.mxu0 %v5117
    %5613 = vmatprep.subr.bf16.mxu0 %v5126
    %5614 = vmatpush1.bf16.msra.mxu0 %v5125
    %5615 = vmatprep.subr.bf16.mxu0 %v5134
    %5616 = vmatpush1.bf16.msra.mxu0 %v5133
    %5617 = vmatprep.subr.bf16.mxu0 %v5142
    %5618 = vmatpush1.bf16.msra.mxu0 %v5141
    %5619 = vmatprep.subr.bf16.mxu0 %v5150
    %5620 = vmatpush1.bf16.msra.mxu0 %v5149
    %5621 = vmatprep.subr.bf16.mxu0 %v5158
    %5622 = vmatpush1.bf16.msra.mxu0 %v5157
    %5623 = vmatprep.subr.bf16.mxu0 %v5166
    %5624 = vmatpush1.bf16.msra.mxu0 %v5165
    %5625 = vmatprep.subr.bf16.mxu0 %v5174
    %5626 = vmatpush1.bf16.msra.mxu0 %v5173
    %5627 = vmatprep.subr.bf16.mxu0 %v5182
    %5628 = vmatpush1.bf16.msra.mxu0 %v5181
    %5629 = vmatprep.subr.bf16.mxu0 %v5190
    %5630 = vmatpush1.bf16.msra.mxu0 %v5189
    %5631 = vmatprep.subr.bf16.mxu0 %v5198
    %5632 = vmatpush1.bf16.msra.mxu0 %v5197
    %5633 = vmatprep.subr.bf16.mxu0 %v5206
    %5634 = vmatpush1.bf16.msra.mxu0 %v5205
    %5635 = vmatprep.subr.bf16.mxu0 %v5214
    %5636 = vmatpush1.bf16.msra.mxu0 %v5213
    %5637 = vmatprep.mubr.bf16.mxu0 %v4024
    %5638 = vmatmul.mubr.bf16.gmra.mrb[0].mxu0 %v4023
    %v5639 = vpop.f32.mrb[0].mxu0
    %v5640 = vadd.f32 %v4288, %v5639
    %v5641 = vpop.f32.mrb[0].mxu0
    %v5642 = vadd.f32 %v4292, %v5641
    %v5643 = vpop.f32.mrb[0].mxu0
    %v5644 = vpop.f32.mrb[0].mxu0
    %5645 = vdwg.mxu0
    %5646 = vmatprep.subr.bf16.mxu0 %v5222
    %5647 = vmatpush1.bf16.msra.mxu0 %v5221
    %5648 = vmatprep.subr.bf16.mxu0 %v5230
    %5649 = vmatpush1.bf16.msra.mxu0 %v5229
    %5650 = vmatprep.subr.bf16.mxu0 %v5238
    %5651 = vmatpush1.bf16.msra.mxu0 %v5237
    %5652 = vmatprep.subr.bf16.mxu0 %v5246
    %5653 = vmatpush1.bf16.msra.mxu0 %v5245
    %5654 = vmatprep.subr.bf16.mxu0 %v5254
    %5655 = vmatpush1.bf16.msra.mxu0 %v5253
    %5656 = vmatprep.subr.bf16.mxu0 %v5262
    %5657 = vmatpush1.bf16.msra.mxu0 %v5261
    %5658 = vmatprep.subr.bf16.mxu0 %v5270
    %5659 = vmatpush1.bf16.msra.mxu0 %v5269
    %5660 = vmatprep.subr.bf16.mxu0 %v5278
    %5661 = vmatpush1.bf16.msra.mxu0 %v5277
    %5662 = vmatprep.subr.bf16.mxu0 %v5286
    %5663 = vmatpush1.bf16.msra.mxu0 %v5285
    %5664 = vmatprep.subr.bf16.mxu0 %v5294
    %5665 = vmatpush1.bf16.msra.mxu0 %v5293
    %5666 = vmatprep.subr.bf16.mxu0 %v5302
    %5667 = vmatpush1.bf16.msra.mxu0 %v5301
    %5668 = vmatprep.subr.bf16.mxu0 %v5310
    %5669 = vmatpush1.bf16.msra.mxu0 %v5309
    %5670 = vmatprep.subr.bf16.mxu0 %v5318
    %5671 = vmatpush1.bf16.msra.mxu0 %v5317
    %5672 = vmatprep.subr.bf16.mxu0 %v5326
    %5673 = vmatpush1.bf16.msra.mxu0 %v5325
    %5674 = vmatprep.subr.bf16.mxu0 %v5334
    %5675 = vmatpush1.bf16.msra.mxu0 %v5333
    %5676 = vmatprep.subr.bf16.mxu0 %v5342
    %5677 = vmatpush1.bf16.msra.mxu0 %v5341
    %5678 = vmatprep.mubr.bf16.mxu0 %v4026
    %5679 = vmatmul.mubr.bf16.gmra.mrb[0].mxu0 %v4025
    %v5680 = vpop.f32.mrb[0].mxu0
    %v5681 = vadd.f32 %v5640, %v5680
    %v5682 = vpop.f32.mrb[0].mxu0
    %v5683 = vadd.f32 %v5642, %v5682
    %v5684 = vpop.f32.mrb[0].mxu0
    %v5685 = vpop.f32.mrb[0].mxu0
    %5686 = vdwg.mxu0
    %5687 = vmatprep.subr.bf16.mxu0 %v5096
    %5688 = vmatpush1.bf16.msra.mxu0 %v5095
    %5689 = vmatprep.subr.bf16.mxu0 %v5104
    %5690 = vmatpush1.bf16.msra.mxu0 %v5103
    %5691 = vmatprep.subr.bf16.mxu0 %v5112
    %5692 = vmatpush1.bf16.msra.mxu0 %v5111
    %5693 = vmatprep.subr.bf16.mxu0 %v5120
    %5694 = vmatpush1.bf16.msra.mxu0 %v5119
    %5695 = vmatprep.subr.bf16.mxu0 %v5128
    %5696 = vmatpush1.bf16.msra.mxu0 %v5127
    %5697 = vmatprep.subr.bf16.mxu0 %v5136
    %5698 = vmatpush1.bf16.msra.mxu0 %v5135
    %5699 = vmatprep.subr.bf16.mxu0 %v5144
    %5700 = vmatpush1.bf16.msra.mxu0 %v5143
    %5701 = vmatprep.subr.bf16.mxu0 %v5152
    %5702 = vmatpush1.bf16.msra.mxu0 %v5151
    %5703 = vmatprep.subr.bf16.mxu0 %v5160
    %5704 = vmatpush1.bf16.msra.mxu0 %v5159
    %5705 = vmatprep.subr.bf16.mxu0 %v5168
    %5706 = vmatpush1.bf16.msra.mxu0 %v5167
    %5707 = vmatprep.subr.bf16.mxu0 %v5176
    %5708 = vmatpush1.bf16.msra.mxu0 %v5175
    %5709 = vmatprep.subr.bf16.mxu0 %v5184
    %5710 = vmatpush1.bf16.msra.mxu0 %v5183
    %5711 = vmatprep.subr.bf16.mxu0 %v5192
    %5712 = vmatpush1.bf16.msra.mxu0 %v5191
    %5713 = vmatprep.subr.bf16.mxu0 %v5200
    %5714 = vmatpush1.bf16.msra.mxu0 %v5199
    %5715 = vmatprep.subr.bf16.mxu0 %v5208
    %5716 = vmatpush1.bf16.msra.mxu0 %v5207
    %5717 = vmatprep.subr.bf16.mxu0 %v5216
    %5718 = vmatpush1.bf16.msra.mxu0 %v5215
    %5719 = vmatprep.mubr.bf16.mxu0 %v4024
    %5720 = vmatmul.mubr.bf16.gmra.mrb[0].mxu0 %v4023
    %v5721 = vpop.f32.mrb[0].mxu0
    %v5722 = vadd.f32 %v4296, %v5721
    %v5723 = vpop.f32.mrb[0].mxu0
    %v5724 = vadd.f32 %v4300, %v5723
    %v5725 = vpop.f32.mrb[0].mxu0
    %v5726 = vpop.f32.mrb[0].mxu0
    %5727 = vdwg.mxu0
    %5728 = vmatprep.subr.bf16.mxu0 %v5224
    %5729 = vmatpush1.bf16.msra.mxu0 %v5223
    %5730 = vmatprep.subr.bf16.mxu0 %v5232
    %5731 = vmatpush1.bf16.msra.mxu0 %v5231
    %5732 = vmatprep.subr.bf16.mxu0 %v5240
    %5733 = vmatpush1.bf16.msra.mxu0 %v5239
    %5734 = vmatprep.subr.bf16.mxu0 %v5248
    %5735 = vmatpush1.bf16.msra.mxu0 %v5247
    %5736 = vmatprep.subr.bf16.mxu0 %v5256
    %5737 = vmatpush1.bf16.msra.mxu0 %v5255
    %5738 = vmatprep.subr.bf16.mxu0 %v5264
    %5739 = vmatpush1.bf16.msra.mxu0 %v5263
    %5740 = vmatprep.subr.bf16.mxu0 %v5272
    %5741 = vmatpush1.bf16.msra.mxu0 %v5271
    %5742 = vmatprep.subr.bf16.mxu0 %v5280
    %5743 = vmatpush1.bf16.msra.mxu0 %v5279
    %5744 = vmatprep.subr.bf16.mxu0 %v5288
    %5745 = vmatpush1.bf16.msra.mxu0 %v5287
    %5746 = vmatprep.subr.bf16.mxu0 %v5296
    %5747 = vmatpush1.bf16.msra.mxu0 %v5295
    %5748 = vmatprep.subr.bf16.mxu0 %v5304
    %5749 = vmatpush1.bf16.msra.mxu0 %v5303
    %5750 = vmatprep.subr.bf16.mxu0 %v5312
    %5751 = vmatpush1.bf16.msra.mxu0 %v5311
    %5752 = vmatprep.subr.bf16.mxu0 %v5320
    %5753 = vmatpush1.bf16.msra.mxu0 %v5319
    %5754 = vmatprep.subr.bf16.mxu0 %v5328
    %5755 = vmatpush1.bf16.msra.mxu0 %v5327
    %5756 = vmatprep.subr.bf16.mxu0 %v5336
    %5757 = vmatpush1.bf16.msra.mxu0 %v5335
    %5758 = vmatprep.subr.bf16.mxu0 %v5344
    %5759 = vmatpush1.bf16.msra.mxu0 %v5343
    %5760 = vmatprep.mubr.bf16.mxu0 %v4026
    %5761 = vmatmul.mubr.bf16.gmra.mrb[0].mxu0 %v4025
    %v5762 = vpop.f32.mrb[0].mxu0
    %v5763 = vadd.f32 %v5722, %v5762
    %v5764 = vpop.f32.mrb[0].mxu0
    %v5765 = vadd.f32 %v5724, %v5764
    %v5766 = vpop.f32.mrb[0].mxu0
    %v5767 = vpop.f32.mrb[0].mxu0
    %5768 = vdwg.mxu0
    %5769 = vmatprep.subr.bf16.mxu0 %v5098
    %5770 = vmatpush1.bf16.msra.mxu0 %v5097
    %5771 = vmatprep.subr.bf16.mxu0 %v5106
    %5772 = vmatpush1.bf16.msra.mxu0 %v5105
    %5773 = vmatprep.subr.bf16.mxu0 %v5114
    %5774 = vmatpush1.bf16.msra.mxu0 %v5113
    %5775 = vmatprep.subr.bf16.mxu0 %v5122
    %5776 = vmatpush1.bf16.msra.mxu0 %v5121
    %5777 = vmatprep.subr.bf16.mxu0 %v5130
    %5778 = vmatpush1.bf16.msra.mxu0 %v5129
    %5779 = vmatprep.subr.bf16.mxu0 %v5138
    %5780 = vmatpush1.bf16.msra.mxu0 %v5137
    %5781 = vmatprep.subr.bf16.mxu0 %v5146
    %5782 = vmatpush1.bf16.msra.mxu0 %v5145
    %5783 = vmatprep.subr.bf16.mxu0 %v5154
    %5784 = vmatpush1.bf16.msra.mxu0 %v5153
    %5785 = vmatprep.subr.bf16.mxu0 %v5162
    %5786 = vmatpush1.bf16.msra.mxu0 %v5161
    %5787 = vmatprep.subr.bf16.mxu0 %v5170
    %5788 = vmatpush1.bf16.msra.mxu0 %v5169
    %5789 = vmatprep.subr.bf16.mxu0 %v5178
    %5790 = vmatpush1.bf16.msra.mxu0 %v5177
    %5791 = vmatprep.subr.bf16.mxu0 %v5186
    %5792 = vmatpush1.bf16.msra.mxu0 %v5185
    %5793 = vmatprep.subr.bf16.mxu0 %v5194
    %5794 = vmatpush1.bf16.msra.mxu0 %v5193
    %5795 = vmatprep.subr.bf16.mxu0 %v5202
    %5796 = vmatpush1.bf16.msra.mxu0 %v5201
    %5797 = vmatprep.subr.bf16.mxu0 %v5210
    %5798 = vmatpush1.bf16.msra.mxu0 %v5209
    %5799 = vmatprep.subr.bf16.mxu0 %v5218
    %5800 = vmatpush1.bf16.msra.mxu0 %v5217
    %5801 = vmatprep.mubr.bf16.mxu0 %v4024
    %5802 = vmatmul.mubr.bf16.gmra.mrb[0].mxu0 %v4023
    %v5803 = vpop.f32.mrb[0].mxu0
    %v5804 = vadd.f32 %v4304, %v5803
    %v5805 = vpop.f32.mrb[0].mxu0
    %v5806 = vadd.f32 %v4308, %v5805
    %v5807 = vpop.f32.mrb[0].mxu0
    %v5808 = vpop.f32.mrb[0].mxu0
    %5809 = vdwg.mxu0
    %5810 = vmatprep.subr.bf16.mxu0 %v5226
    %5811 = vmatpush1.bf16.msra.mxu0 %v5225
    %5812 = vmatprep.subr.bf16.mxu0 %v5234
    %5813 = vmatpush1.bf16.msra.mxu0 %v5233
    %5814 = vmatprep.subr.bf16.mxu0 %v5242
    %5815 = vmatpush1.bf16.msra.mxu0 %v5241
    %5816 = vmatprep.subr.bf16.mxu0 %v5250
    %5817 = vmatpush1.bf16.msra.mxu0 %v5249
    %5818 = vmatprep.subr.bf16.mxu0 %v5258
    %5819 = vmatpush1.bf16.msra.mxu0 %v5257
    %5820 = vmatprep.subr.bf16.mxu0 %v5266
    %5821 = vmatpush1.bf16.msra.mxu0 %v5265
    %5822 = vmatprep.subr.bf16.mxu0 %v5274
    %5823 = vmatpush1.bf16.msra.mxu0 %v5273
    %5824 = vmatprep.subr.bf16.mxu0 %v5282
    %5825 = vmatpush1.bf16.msra.mxu0 %v5281
    %5826 = vmatprep.subr.bf16.mxu0 %v5290
    %5827 = vmatpush1.bf16.msra.mxu0 %v5289
    %5828 = vmatprep.subr.bf16.mxu0 %v5298
    %5829 = vmatpush1.bf16.msra.mxu0 %v5297
    %5830 = vmatprep.subr.bf16.mxu0 %v5306
    %5831 = vmatpush1.bf16.msra.mxu0 %v5305
    %5832 = vmatprep.subr.bf16.mxu0 %v5314
    %5833 = vmatpush1.bf16.msra.mxu0 %v5313
    %5834 = vmatprep.subr.bf16.mxu0 %v5322
    %5835 = vmatpush1.bf16.msra.mxu0 %v5321
    %5836 = vmatprep.subr.bf16.mxu0 %v5330
    %5837 = vmatpush1.bf16.msra.mxu0 %v5329
    %5838 = vmatprep.subr.bf16.mxu0 %v5338
    %5839 = vmatpush1.bf16.msra.mxu0 %v5337
    %5840 = vmatprep.subr.bf16.mxu0 %v5346
    %5841 = vmatpush1.bf16.msra.mxu0 %v5345
    %5842 = vmatprep.mubr.bf16.mxu0 %v4026
    %5843 = vmatmul.mubr.bf16.gmra.mrb[0].mxu0 %v4025
    %v5844 = vpop.f32.mrb[0].mxu0
    %v5845 = vadd.f32 %v5804, %v5844
    %v5846 = vpop.f32.mrb[0].mxu0
    %v5847 = vadd.f32 %v5806, %v5846
    %v5848 = vpop.f32.mrb[0].mxu0
    %v5849 = vpop.f32.mrb[0].mxu0
    %5850 = vdwg.mxu0
    %5851 = vmatprep.subr.bf16.mxu0 %v5100
    %5852 = vmatpush1.bf16.msra.mxu0 %v5099
    %5853 = vmatprep.subr.bf16.mxu0 %v5108
    %5854 = vmatpush1.bf16.msra.mxu0 %v5107
    %5855 = vmatprep.subr.bf16.mxu0 %v5116
    %5856 = vmatpush1.bf16.msra.mxu0 %v5115
    %5857 = vmatprep.subr.bf16.mxu0 %v5124
    %5858 = vmatpush1.bf16.msra.mxu0 %v5123
    %5859 = vmatprep.subr.bf16.mxu0 %v5132
    %5860 = vmatpush1.bf16.msra.mxu0 %v5131
    %5861 = vmatprep.subr.bf16.mxu0 %v5140
    %5862 = vmatpush1.bf16.msra.mxu0 %v5139
    %5863 = vmatprep.subr.bf16.mxu0 %v5148
    %5864 = vmatpush1.bf16.msra.mxu0 %v5147
    %5865 = vmatprep.subr.bf16.mxu0 %v5156
    %5866 = vmatpush1.bf16.msra.mxu0 %v5155
    %5867 = vmatprep.subr.bf16.mxu0 %v5164
    %5868 = vmatpush1.bf16.msra.mxu0 %v5163
    %5869 = vmatprep.subr.bf16.mxu0 %v5172
    %5870 = vmatpush1.bf16.msra.mxu0 %v5171
    %5871 = vmatprep.subr.bf16.mxu0 %v5180
    %5872 = vmatpush1.bf16.msra.mxu0 %v5179
    %5873 = vmatprep.subr.bf16.mxu0 %v5188
    %5874 = vmatpush1.bf16.msra.mxu0 %v5187
    %5875 = vmatprep.subr.bf16.mxu0 %v5196
    %5876 = vmatpush1.bf16.msra.mxu0 %v5195
    %5877 = vmatprep.subr.bf16.mxu0 %v5204
    %5878 = vmatpush1.bf16.msra.mxu0 %v5203
    %5879 = vmatprep.subr.bf16.mxu0 %v5212
    %5880 = vmatpush1.bf16.msra.mxu0 %v5211
    %5881 = vmatprep.subr.bf16.mxu0 %v5220
    %5882 = vmatpush1.bf16.msra.mxu0 %v5219
    %5883 = vmatprep.mubr.bf16.mxu0 %v4024
    %5884 = vmatmul.mubr.bf16.gmra.mrb[0].mxu0 %v4023
    %v5885 = vpop.f32.mrb[0].mxu0
    %v5886 = vadd.f32 %v4312, %v5885
    %v5887 = vpop.f32.mrb[0].mxu0
    %v5888 = vadd.f32 %v4316, %v5887
    %v5889 = vpop.f32.mrb[0].mxu0
    %v5890 = vpop.f32.mrb[0].mxu0
    %5891 = vdwg.mxu0
    %5892 = vmatprep.subr.bf16.mxu0 %v5228
    %5893 = vmatpush1.bf16.msra.mxu0 %v5227
    %5894 = vmatprep.subr.bf16.mxu0 %v5236
    %5895 = vmatpush1.bf16.msra.mxu0 %v5235
    %5896 = vmatprep.subr.bf16.mxu0 %v5244
    %5897 = vmatpush1.bf16.msra.mxu0 %v5243
    %5898 = vmatprep.subr.bf16.mxu0 %v5252
    %5899 = vmatpush1.bf16.msra.mxu0 %v5251
    %5900 = vmatprep.subr.bf16.mxu0 %v5260
    %5901 = vmatpush1.bf16.msra.mxu0 %v5259
    %5902 = vmatprep.subr.bf16.mxu0 %v5268
    %5903 = vmatpush1.bf16.msra.mxu0 %v5267
    %5904 = vmatprep.subr.bf16.mxu0 %v5276
    %5905 = vmatpush1.bf16.msra.mxu0 %v5275
    %5906 = vmatprep.subr.bf16.mxu0 %v5284
    %5907 = vmatpush1.bf16.msra.mxu0 %v5283
    %5908 = vmatprep.subr.bf16.mxu0 %v5292
    %5909 = vmatpush1.bf16.msra.mxu0 %v5291
    %5910 = vmatprep.subr.bf16.mxu0 %v5300
    %5911 = vmatpush1.bf16.msra.mxu0 %v5299
    %5912 = vmatprep.subr.bf16.mxu0 %v5308
    %5913 = vmatpush1.bf16.msra.mxu0 %v5307
    %5914 = vmatprep.subr.bf16.mxu0 %v5316
    %5915 = vmatpush1.bf16.msra.mxu0 %v5315
    %5916 = vmatprep.subr.bf16.mxu0 %v5324
    %5917 = vmatpush1.bf16.msra.mxu0 %v5323
    %5918 = vmatprep.subr.bf16.mxu0 %v5332
    %5919 = vmatpush1.bf16.msra.mxu0 %v5331
    %5920 = vmatprep.subr.bf16.mxu0 %v5340
    %5921 = vmatpush1.bf16.msra.mxu0 %v5339
    %5922 = vmatprep.subr.bf16.mxu0 %v5348
    %5923 = vmatpush1.bf16.msra.mxu0 %v5347
    %5924 = vmatprep.mubr.bf16.mxu0 %v4026
    %5925 = vmatmul.mubr.bf16.gmra.mrb[0].mxu0 %v4025
    %v5926 = vpop.f32.mrb[0].mxu0
    %v5927 = vadd.f32 %v5886, %v5926
    %v5928 = vpop.f32.mrb[0].mxu0
    %v5929 = vadd.f32 %v5888, %v5928
    %v5930 = vpop.f32.mrb[0].mxu0
    %v5931 = vpop.f32.mrb[0].mxu0
    %5932 = vdwg.mxu0
    %v5933 = vmax.f32 %v5681, %v5683
    %v5934 = vmax.f32 %v5933, %v5763
    %v5935 = vmax.f32 %v5934, %v5765
    %v5936 = vmax.f32 %v5935, %v5845
    %v5937 = vmax.f32 %v5936, %v5847
    %v5938 = vmax.f32 %v5937, %v5927
    %v5939 = vmax.f32 %v5938, %v5929
    %5940 = vmax.xlane.f32.xlu0 %v5939
    %v5941 = vpop.xlane.xlu0 %5940
    %v5942 = vsub.f32 %v5939, %v5941
    %v5943 = vmul.f32 %v5942, 1.442695
    %v5944 = vpow.pop %v5943
    %5945 = vadd.xlane.f32.xlu0 %v5944
    %v5946 = vpop.xlane.xlu0 %5945
    %v5947 = vlog2.pop %v5946
    %v5948 = vmul.f32 %v5947, 0.6931472
    %v5949 = vadd.f32 %v5941, %v5948
    %v5950 = vsub.f32 %v5939, %v5949
    %5951 = vst [vmem:[#allocation11] sm:$0xff] %v5950
    // Predicated region
    $region42: #{tpu_custom_call.1} parent=1 // pred_check
      _
    $region43: #{tpu_custom_call.1} parent=1 // pred_check_branch
      %5953 = sbr.rel (0) target = $region45
    $region44: #{tpu_custom_call.1} parent=1 // pred_region
      %s5955 = ssub.s32 128, 128
      %5956 = vsyncadd [#allocation4], %s5955
      %s5958 = sshll.u32 [#allocation11], 4
      %s5959 = int_to_ptr.vmem [resolvable:$true] %s5958
      %5961 = dma.vmem_to_hbm [thread:$0]  %s5959, 128, %s5, [#allocation4]
    $region45: #{tpu_custom_call.1} parent=1 // pred_fallthru
      _
    // Predicated region
    $region46: #{tpu_custom_call.1} parent=1 // pred_check
      _
    $region47: #{tpu_custom_call.1} parent=1 // pred_check_branch
      %5963 = sbr.rel (0) target = $region49
    $region48: #{tpu_custom_call.1} parent=1 // pred_region
      %5964 = dma.done [#allocation4], 128
    $region49: #{tpu_custom_call.1} parent=1 // pred_fallthru
      _
    %5965 = vsyncpa [#allocation3], 1
    %5966 = vsyncpa [#allocation6], 1
    %5967 = vsyncpa [#allocation9], 1
    %5968 = vsyncpa [#allocation4], 1

// kernel: tpu_custom_call.1
$region0: #{tpu_custom_call.1}
  #allocation0 [shape = 'u32[]', space=smem, size = 0x4, offset = 0x4, fixed_abs, tag = 'smem constant byte address 0x4 - core index']
  #allocation1 [shape = 'u32[144,128]{1,0:T(1,128)}', space=vmem, size = 0x12000, scoped, tag = 'internal scratch']
  %s0 = inlined_call_operand.hbm [shape: bf16[8,256], index: 0, kind: input, shape index: {}]
  %s1 = inlined_call_operand.hbm [shape: bf16[256,4096], index: 1, kind: input, shape index: {}]
  %s2 = inlined_call_operand.hbm [shape: f32[1,4096], index: 2, kind: input, shape index: {}]
  %s3 = inlined_call_operand.hbm [shape: bf16[512,1024], index: 3, kind: input, shape index: {}]
  %s4 = inlined_call_operand.hbm [shape: f32[1,1024], index: 4, kind: input, shape index: {}]
  %s5 = inlined_call_operand.hbm [shape: f32[8,128], index: 5, kind: output, shape index: {}]
  %s6 = sld [smem:[#allocation0]]
  $region50: #{tpu_custom_call.1} parent=0
    _
  %s8 = ssub.s32 1, %s6
  %s9 = scalar_select 0, %s8, %s6
  $region1: #{tpu_custom_call.1} parent=0
    #allocation2 [shape = 'u8[4096]{0}', space=vmem, size = 0x1000, scoped, tag = 'input window, operand 0, single buffered']
    #allocation3 [shape = 's32[1]{0}', space=sflag, size = 0x4, scoped, tag = 'scoped memory for tpu_custom_call.1']
    #allocation4 [shape = 's32[1]{0}', space=sflag, size = 0x4, scoped, tag = 'scoped memory for tpu_custom_call.1']
    #allocation5 [shape = 'u8[2097152]{0}', space=vmem, size = 0x200000, scoped, tag = 'input window, operand 1, single buffered']
    #allocation6 [shape = 's32[1]{0}', space=sflag, size = 0x4, scoped, tag = 'scoped memory for tpu_custom_call.1']
    #allocation7 [shape = 'u8[16384]{0}', space=vmem, size = 0x4000, scoped, tag = 'input window, operand 2, single buffered']
    #allocation8 [shape = 'u8[1048576]{0}', space=vmem, size = 0x100000, scoped, tag = 'input window, operand 3, single buffered']
    #allocation9 [shape = 's32[1]{0}', space=sflag, size = 0x4, scoped, tag = 'scoped memory for tpu_custom_call.1']
    #allocation10 [shape = 'u8[4096]{0}', space=vmem, size = 0x1000, scoped, tag = 'input window, operand 4, single buffered']
    #allocation11 [shape = 'u8[4096]{0}', space=vmem, size = 0x1000, scoped, tag = 'output window, operand 0, single buffered']
    %10 = vsyncpa [#allocation3], 0
    %11 = vsyncpa [#allocation6], 0
    %12 = vsyncpa [#allocation9], 0
    %13 = vsyncpa [#allocation4], 0
    // Predicated region
    $region2: #{tpu_custom_call.1} parent=1 // pred_check
      _
    $region3: #{tpu_custom_call.1} parent=1 // pred_check_branch
      %15 = sbr.rel (0) target = $region5
    $region4: #{tpu_custom_call.1} parent=1 // pred_region
      %s17 = ssub.s32 128, 128
      %18 = vsyncadd [#allocation3], %s17
      %s20 = sshll.u32 [#allocation2], 4
      %s21 = int_to_ptr.vmem [resolvable:$true] %s20
      %23 = dma.hbm_to_vmem [thread:$0]  %s0, 128, %s21, [#allocation3]
    $region5: #{tpu_custom_call.1} parent=1 // pred_fallthru
      _
    // Predicated region
    $region6: #{tpu_custom_call.1} parent=1 // pred_check
      _
    $region7: #{tpu_custom_call.1} parent=1 // pred_check_branch
      %25 = sbr.rel (0) target = $region9
    $region8: #{tpu_custom_call.1} parent=1 // pred_region
      %s27 = ssub.s32 65536, 65536
      %28 = vsyncadd [#allocation6], %s27
      %s29 = sshll.u32 [#allocation5], 4
      %s30 = int_to_ptr.vmem [resolvable:$true] %s29
      %35 = dma.hbm_to_vmem [thread:$0]  %s1, 65536, %s30, [#allocation6], 2048, 2048, 128
    $region9: #{tpu_custom_call.1} parent=1 // pred_fallthru
      _
    // Predicated region
    $region10: #{tpu_custom_call.1} parent=1 // pred_check
      _
    $region11: #{tpu_custom_call.1} parent=1 // pred_check_branch
      %37 = sbr.rel (0) target = $region13
    $region12: #{tpu_custom_call.1} parent=1 // pred_region
      %s39 = ssub.s32 512, 512
      %40 = vsyncadd [#allocation6], %s39
      %s42 = sshll.u32 [#allocation7], 4
      %s43 = int_to_ptr.vmem [resolvable:$true] %s42
      %45 = dma.hbm_to_vmem [thread:$0]  %s2, 512, %s43, [#allocation6]
    $region13: #{tpu_custom_call.1} parent=1 // pred_fallthru
      _
    // Predicated region
    $region14: #{tpu_custom_call.1} parent=1 // pred_check
      _
    $region15: #{tpu_custom_call.1} parent=1 // pred_check_branch
      %47 = sbr.rel (0) target = $region17
    $region16: #{tpu_custom_call.1} parent=1 // pred_region
      %s49 = ssub.s32 32768, 32768
      %50 = vsyncadd [#allocation9], %s49
      %s51 = sshll.u32 [#allocation8], 4
      %s52 = int_to_ptr.vmem [resolvable:$true] %s51
      %57 = dma.hbm_to_vmem [thread:$0]  %s3, 32768, %s52, [#allocation9], 512, 512, 32
    $region17: #{tpu_custom_call.1} parent=1 // pred_fallthru
      _
    // Predicated region
    $region18: #{tpu_custom_call.1} parent=1 // pred_check
      _
    $region19: #{tpu_custom_call.1} parent=1 // pred_check_branch
      %59 = sbr.rel (0) target = $region21
    $region20: #{tpu_custom_call.1} parent=1 // pred_region
      %s61 = ssub.s32 128, 128
      %62 = vsyncadd [#allocation9], %s61
      %s64 = sshll.u32 [#allocation10], 4
      %s65 = int_to_ptr.vmem [resolvable:$true] %s64
      %67 = dma.hbm_to_vmem [thread:$0]  %s4, 128, %s65, [#allocation9]
    $region21: #{tpu_custom_call.1} parent=1 // pred_fallthru
      _
    // Predicated region
    $region22: #{tpu_custom_call.1} parent=1 // pred_check
      _
    $region23: #{tpu_custom_call.1} parent=1 // pred_check_branch
      %69 = sbr.rel (0) target = $region25
    $region24: #{tpu_custom_call.1} parent=1 // pred_region
      %70 = dma.done [#allocation3], 128
    $region25: #{tpu_custom_call.1} parent=1 // pred_fallthru
      _
    // Predicated region
    $region26: #{tpu_custom_call.1} parent=1 // pred_check
      _
    $region27: #{tpu_custom_call.1} parent=1 // pred_check_branch
      %72 = sbr.rel (0) target = $region29
    $region28: #{tpu_custom_call.1} parent=1 // pred_region
      %73 = dma.done [#allocation6], 65536
    $region29: #{tpu_custom_call.1} parent=1 // pred_fallthru
      _
    // Predicated region
    $region30: #{tpu_custom_call.1} parent=1 // pred_check
      _
    $region31: #{tpu_custom_call.1} parent=1 // pred_check_branch
      %75 = sbr.rel (0) target = $region33
    $region32: #{tpu_custom_call.1} parent=1 // pred_region
      %76 = dma.done [#allocation6], 512
    $region33: #{tpu_custom_call.1} parent=1 // pred_fallthru
      _
    // Predicated region
    $region34: #{tpu_custom_call.1} parent=1 // pred_check
      _
    $region35: #{tpu_custom_call.1} parent=1 // pred_check_branch
      %78 = sbr.rel (0) target = $region37
    $region36: #{tpu_custom_call.1} parent=1 // pred_region
      %79 = dma.done [#allocation9], 32768
    $region37: #{tpu_custom_call.1} parent=1 // pred_fallthru
      _
    // Predicated region
    $region38: #{tpu_custom_call.1} parent=1 // pred_check
      _
    $region39: #{tpu_custom_call.1} parent=1 // pred_check_branch
      %81 = sbr.rel (0) target = $region41
    $region40: #{tpu_custom_call.1} parent=1 // pred_region
      %82 = dma.done [#allocation9], 128
    $region41: #{tpu_custom_call.1} parent=1 // pred_fallthru
      _
    %v83 = vld [vmem:[#allocation2] sm:$0xff]
    %v84 = vld [vmem:[#allocation5] sm:$0xff]
    %v85 = vld [vmem:[#allocation5 + $0x8] sm:$0xff]
    %v86 = vld [vmem:[#allocation5 + $0x80] sm:$0xff]
    %v87 = vld [vmem:[#allocation5 + $0x88] sm:$0xff]
    %v88 = vld [vmem:[#allocation5 + $0x100] sm:$0xff]
    %v89 = vld [vmem:[#allocation5 + $0x108] sm:$0xff]
    %v90 = vld [vmem:[#allocation5 + $0x180] sm:$0xff]
    %v91 = vld [vmem:[#allocation5 + $0x188] sm:$0xff]
    %v92 = vld [vmem:[#allocation5 + $0x200] sm:$0xff]
    %v93 = vld [vmem:[#allocation5 + $0x208] sm:$0xff]
    %v94 = vld [vmem:[#allocation5 + $0x280] sm:$0xff]
    %v95 = vld [vmem:[#allocation5 + $0x288] sm:$0xff]
    %v96 = vld [vmem:[#allocation5 + $0x300] sm:$0xff]
    %v97 = vld [vmem:[#allocation5 + $0x308] sm:$0xff]
    %v98 = vld [vmem:[#allocation5 + $0x380] sm:$0xff]
    %v99 = vld [vmem:[#allocation5 + $0x388] sm:$0xff]
    %v100 = vld [vmem:[#allocation5 + $0x400] sm:$0xff]
    %v101 = vld [vmem:[#allocation5 + $0x408] sm:$0xff]
    %v102 = vld [vmem:[#allocation5 + $0x480] sm:$0xff]
    %v103 = vld [vmem:[#allocation5 + $0x488] sm:$0xff]
    %v104 = vld [vmem:[#allocation5 + $0x500] sm:$0xff]
    %v105 = vld [vmem:[#allocation5 + $0x508] sm:$0xff]
    %v106 = vld [vmem:[#allocation5 + $0x580] sm:$0xff]
    %v107 = vld [vmem:[#allocation5 + $0x588] sm:$0xff]
    %v108 = vld [vmem:[#allocation5 + $0x600] sm:$0xff]
    %v109 = vld [vmem:[#allocation5 + $0x608] sm:$0xff]
    %v110 = vld [vmem:[#allocation5 + $0x680] sm:$0xff]
    %v111 = vld [vmem:[#allocation5 + $0x688] sm:$0xff]
    %v112 = vld [vmem:[#allocation5 + $0x700] sm:$0xff]
    %v113 = vld [vmem:[#allocation5 + $0x708] sm:$0xff]
    %v114 = vld [vmem:[#allocation5 + $0x780] sm:$0xff]
    %v115 = vld [vmem:[#allocation5 + $0x788] sm:$0xff]
    %v116 = vld [vmem:[#allocation5 + $0x800] sm:$0xff]
    %v117 = vld [vmem:[#allocation5 + $0x808] sm:$0xff]
    %v118 = vld [vmem:[#allocation5 + $0x880] sm:$0xff]
    %v119 = vld [vmem:[#allocation5 + $0x888] sm:$0xff]
    %v120 = vld [vmem:[#allocation5 + $0x900] sm:$0xff]
    %v121 = vld [vmem:[#allocation5 + $0x908] sm:$0xff]
    %v122 = vld [vmem:[#allocation5 + $0x980] sm:$0xff]
    %v123 = vld [vmem:[#allocation5 + $0x988] sm:$0xff]
    %v124 = vld [vmem:[#allocation5 + $0xa00] sm:$0xff]
    %v125 = vld [vmem:[#allocation5 + $0xa08] sm:$0xff]
    %v126 = vld [vmem:[#allocation5 + $0xa80] sm:$0xff]
    %v127 = vld [vmem:[#allocation5 + $0xa88] sm:$0xff]
    %v128 = vld [vmem:[#allocation5 + $0xb00] sm:$0xff]
    %v129 = vld [vmem:[#allocation5 + $0xb08] sm:$0xff]
    %v130 = vld [vmem:[#allocation5 + $0xb80] sm:$0xff]
    %v131 = vld [vmem:[#allocation5 + $0xb88] sm:$0xff]
    %v132 = vld [vmem:[#allocation5 + $0xc00] sm:$0xff]
    %v133 = vld [vmem:[#allocation5 + $0xc08] sm:$0xff]
    %v134 = vld [vmem:[#allocation5 + $0xc80] sm:$0xff]
    %v135 = vld [vmem:[#allocation5 + $0xc88] sm:$0xff]
    %v136 = vld [vmem:[#allocation5 + $0xd00] sm:$0xff]
    %v137 = vld [vmem:[#allocation5 + $0xd08] sm:$0xff]
    %v138 = vld [vmem:[#allocation5 + $0xd80] sm:$0xff]
    %v139 = vld [vmem:[#allocation5 + $0xd88] sm:$0xff]
    %v140 = vld [vmem:[#allocation5 + $0xe00] sm:$0xff]
    %v141 = vld [vmem:[#allocation5 + $0xe08] sm:$0xff]
    %v142 = vld [vmem:[#allocation5 + $0xe80] sm:$0xff]
    %v143 = vld [vmem:[#allocation5 + $0xe88] sm:$0xff]
    %v144 = vld [vmem:[#allocation5 + $0xf00] sm:$0xff]
    %v145 = vld [vmem:[#allocation5 + $0xf08] sm:$0xff]
    %v146 = vld [vmem:[#allocation5 + $0xf80] sm:$0xff]
    %v147 = vld [vmem:[#allocation5 + $0xf88] sm:$0xff]
    %v148 = vld [vmem:[#allocation7] sm:$0xf]
    %v150 = vlaneseq
    %v151 = vshrl.u32 %v150, 7
    %v152 = vsub.s32 0, %v151
    %v153 = vrot.slane %v148, %v152
    %v154 = vlaneseq
    %v155 = vshrl.u32 %v154, 7
    %v156 = vsub.s32 1, %v155
    %v157 = vrot.slane %v148, %v156
    %v158 = vlaneseq
    %v159 = vshrl.u32 %v158, 7
    %v160 = vsub.s32 2, %v159
    %v161 = vrot.slane %v148, %v160
    %v162 = vlaneseq
    %v163 = vshrl.u32 %v162, 7
    %v164 = vsub.s32 3, %v163
    %v165 = vrot.slane %v148, %v164
    %v171 = vunpack.c.l.b16 %v83
    %v172 = vunpack.c.h.b16 %v83
    %v173 = vpack.c.b16 %v171, %v171
    %v174 = vpack.c.b16 %v172, %v172
    %v241 = vunpack.c.l.b16 %v84
    %v242 = vunpack.c.h.b16 %v84
    %v243 = vunpack.c.l.b16 %v85
    %v244 = vunpack.c.h.b16 %v85
    %v245 = vunpack.c.l.b16 %v86
    %v246 = vunpack.c.h.b16 %v86
    %v247 = vunpack.c.l.b16 %v87
    %v248 = vunpack.c.h.b16 %v87
    %v249 = vunpack.c.l.b16 %v88
    %v250 = vunpack.c.h.b16 %v88
    %v251 = vunpack.c.l.b16 %v89
    %v252 = vunpack.c.h.b16 %v89
    %v253 = vunpack.c.l.b16 %v90
    %v254 = vunpack.c.h.b16 %v90
    %v255 = vunpack.c.l.b16 %v91
    %v256 = vunpack.c.h.b16 %v91
    %v257 = vunpack.c.l.b16 %v92
    %v258 = vunpack.c.h.b16 %v92
    %v259 = vunpack.c.l.b16 %v93
    %v260 = vunpack.c.h.b16 %v93
    %v261 = vunpack.c.l.b16 %v94
    %v262 = vunpack.c.h.b16 %v94
    %v263 = vunpack.c.l.b16 %v95
    %v264 = vunpack.c.h.b16 %v95
    %v265 = vunpack.c.l.b16 %v96
    %v266 = vunpack.c.h.b16 %v96
    %v267 = vunpack.c.l.b16 %v97
    %v268 = vunpack.c.h.b16 %v97
    %v269 = vunpack.c.l.b16 %v98
    %v270 = vunpack.c.h.b16 %v98
    %v271 = vunpack.c.l.b16 %v99
    %v272 = vunpack.c.h.b16 %v99
    %v273 = vunpack.c.l.b16 %v100
    %v274 = vunpack.c.h.b16 %v100
    %v275 = vunpack.c.l.b16 %v101
    %v276 = vunpack.c.h.b16 %v101
    %v277 = vunpack.c.l.b16 %v102
    %v278 = vunpack.c.h.b16 %v102
    %v279 = vunpack.c.l.b16 %v103
    %v280 = vunpack.c.h.b16 %v103
    %v281 = vunpack.c.l.b16 %v104
    %v282 = vunpack.c.h.b16 %v104
    %v283 = vunpack.c.l.b16 %v105
    %v284 = vunpack.c.h.b16 %v105
    %v285 = vunpack.c.l.b16 %v106
    %v286 = vunpack.c.h.b16 %v106
    %v287 = vunpack.c.l.b16 %v107
    %v288 = vunpack.c.h.b16 %v107
    %v289 = vunpack.c.l.b16 %v108
    %v290 = vunpack.c.h.b16 %v108
    %v291 = vunpack.c.l.b16 %v109
    %v292 = vunpack.c.h.b16 %v109
    %v293 = vunpack.c.l.b16 %v110
    %v294 = vunpack.c.h.b16 %v110
    %v295 = vunpack.c.l.b16 %v111
    %v296 = vunpack.c.h.b16 %v111
    %v297 = vunpack.c.l.b16 %v112
    %v298 = vunpack.c.h.b16 %v112
    %v299 = vunpack.c.l.b16 %v113
    %v300 = vunpack.c.h.b16 %v113
    %v301 = vunpack.c.l.b16 %v114
    %v302 = vunpack.c.h.b16 %v114
    %v303 = vunpack.c.l.b16 %v115
    %v304 = vunpack.c.h.b16 %v115
    %v305 = vunpack.c.l.b16 %v116
    %v306 = vunpack.c.h.b16 %v116
    %v307 = vunpack.c.l.b16 %v117
    %v308 = vunpack.c.h.b16 %v117
    %v309 = vunpack.c.l.b16 %v118
    %v310 = vunpack.c.h.b16 %v118
    %v311 = vunpack.c.l.b16 %v119
    %v312 = vunpack.c.h.b16 %v119
    %v313 = vunpack.c.l.b16 %v120
    %v314 = vunpack.c.h.b16 %v120
    %v315 = vunpack.c.l.b16 %v121
    %v316 = vunpack.c.h.b16 %v121
    %v317 = vunpack.c.l.b16 %v122
    %v318 = vunpack.c.h.b16 %v122
    %v319 = vunpack.c.l.b16 %v123
    %v320 = vunpack.c.h.b16 %v123
    %v321 = vunpack.c.l.b16 %v124
    %v322 = vunpack.c.h.b16 %v124
    %v323 = vunpack.c.l.b16 %v125
    %v324 = vunpack.c.h.b16 %v125
    %v325 = vunpack.c.l.b16 %v126
    %v326 = vunpack.c.h.b16 %v126
    %v327 = vunpack.c.l.b16 %v127
    %v328 = vunpack.c.h.b16 %v127
    %v329 = vunpack.c.l.b16 %v128
    %v330 = vunpack.c.h.b16 %v128
    %v331 = vunpack.c.l.b16 %v129
    %v332 = vunpack.c.h.b16 %v129
    %v333 = vunpack.c.l.b16 %v130
    %v334 = vunpack.c.h.b16 %v130
    %v335 = vunpack.c.l.b16 %v131
    %v336 = vunpack.c.h.b16 %v131
    %v337 = vunpack.c.l.b16 %v132
    %v338 = vunpack.c.h.b16 %v132
    %v339 = vunpack.c.l.b16 %v133
    %v340 = vunpack.c.h.b16 %v133
    %v341 = vunpack.c.l.b16 %v134
    %v342 = vunpack.c.h.b16 %v134
    %v343 = vunpack.c.l.b16 %v135
    %v344 = vunpack.c.h.b16 %v135
    %v345 = vunpack.c.l.b16 %v136
    %v346 = vunpack.c.h.b16 %v136
    %v347 = vunpack.c.l.b16 %v137
    %v348 = vunpack.c.h.b16 %v137
    %v349 = vunpack.c.l.b16 %v138
    %v350 = vunpack.c.h.b16 %v138
    %v351 = vunpack.c.l.b16 %v139
    %v352 = vunpack.c.h.b16 %v139
    %v353 = vunpack.c.l.b16 %v140
    %v354 = vunpack.c.h.b16 %v140
    %v355 = vunpack.c.l.b16 %v141
    %v356 = vunpack.c.h.b16 %v141
    %v357 = vunpack.c.l.b16 %v142
    %v358 = vunpack.c.h.b16 %v142
    %v359 = vunpack.c.l.b16 %v143
    %v360 = vunpack.c.h.b16 %v143
    %v361 = vunpack.c.l.b16 %v144
    %v362 = vunpack.c.h.b16 %v144
    %v363 = vunpack.c.l.b16 %v145
    %v364 = vunpack.c.h.b16 %v145
    %v365 = vunpack.c.l.b16 %v146
    %v366 = vunpack.c.h.b16 %v146
    %v367 = vunpack.c.l.b16 %v147
    %v368 = vunpack.c.h.b16 %v147
    %v369 = vpack.c.b16 %v245, %v241
    %v370 = vpack.c.b16 %v246, %v242
    %v371 = vpack.c.b16 %v247, %v243
    %v372 = vpack.c.b16 %v248, %v244
    %v373 = vpack.c.b16 %v253, %v249
    %v374 = vpack.c.b16 %v254, %v250
    %v375 = vpack.c.b16 %v255, %v251
    %v376 = vpack.c.b16 %v256, %v252
    %v377 = vpack.c.b16 %v261, %v257
    %v378 = vpack.c.b16 %v262, %v258
    %v379 = vpack.c.b16 %v263, %v259
    %v380 = vpack.c.b16 %v264, %v260
    %v381 = vpack.c.b16 %v269, %v265
    %v382 = vpack.c.b16 %v270, %v266
    %v383 = vpack.c.b16 %v271, %v267
    %v384 = vpack.c.b16 %v272, %v268
    %v385 = vpack.c.b16 %v277, %v273
    %v386 = vpack.c.b16 %v278, %v274
    %v387 = vpack.c.b16 %v279, %v275
    %v388 = vpack.c.b16 %v280, %v276
    %v389 = vpack.c.b16 %v285, %v281
    %v390 = vpack.c.b16 %v286, %v282
    %v391 = vpack.c.b16 %v287, %v283
    %v392 = vpack.c.b16 %v288, %v284
    %v393 = vpack.c.b16 %v293, %v289
    %v394 = vpack.c.b16 %v294, %v290
    %v395 = vpack.c.b16 %v295, %v291
    %v396 = vpack.c.b16 %v296, %v292
    %v397 = vpack.c.b16 %v301, %v297
    %v398 = vpack.c.b16 %v302, %v298
    %v399 = vpack.c.b16 %v303, %v299
    %v400 = vpack.c.b16 %v304, %v300
    %v401 = vpack.c.b16 %v309, %v305
    %v402 = vpack.c.b16 %v310, %v306
    %v403 = vpack.c.b16 %v311, %v307
    %v404 = vpack.c.b16 %v312, %v308
    %v405 = vpack.c.b16 %v317, %v313
    %v406 = vpack.c.b16 %v318, %v314
    %v407 = vpack.c.b16 %v319, %v315
    %v408 = vpack.c.b16 %v320, %v316
    %v409 = vpack.c.b16 %v325, %v321
    %v410 = vpack.c.b16 %v326, %v322
    %v411 = vpack.c.b16 %v327, %v323
    %v412 = vpack.c.b16 %v328, %v324
    %v413 = vpack.c.b16 %v333, %v329
    %v414 = vpack.c.b16 %v334, %v330
    %v415 = vpack.c.b16 %v335, %v331
    %v416 = vpack.c.b16 %v336, %v332
    %v417 = vpack.c.b16 %v341, %v337
    %v418 = vpack.c.b16 %v342, %v338
    %v419 = vpack.c.b16 %v343, %v339
    %v420 = vpack.c.b16 %v344, %v340
    %v421 = vpack.c.b16 %v349, %v345
    %v422 = vpack.c.b16 %v350, %v346
    %v423 = vpack.c.b16 %v351, %v347
    %v424 = vpack.c.b16 %v352, %v348
    %v425 = vpack.c.b16 %v357, %v353
    %v426 = vpack.c.b16 %v358, %v354
    %v427 = vpack.c.b16 %v359, %v355
    %v428 = vpack.c.b16 %v360, %v356
    %v429 = vpack.c.b16 %v365, %v361
    %v430 = vpack.c.b16 %v366, %v362
    %v431 = vpack.c.b16 %v367, %v363
    %v432 = vpack.c.b16 %v368, %v364
    %497 = vmatprep.subr.bf16.mxu0 %v370
    %498 = vmatpush1.bf16.msra.mxu0 %v369
    %499 = vmatprep.subr.bf16.mxu0 %v374
    %500 = vmatpush1.bf16.msra.mxu0 %v373
    %501 = vmatprep.subr.bf16.mxu0 %v378
    %502 = vmatpush1.bf16.msra.mxu0 %v377
    %503 = vmatprep.subr.bf16.mxu0 %v382
    %504 = vmatpush1.bf16.msra.mxu0 %v381
    %505 = vmatprep.subr.bf16.mxu0 %v386
    %506 = vmatpush1.bf16.msra.mxu0 %v385
    %507 = vmatprep.subr.bf16.mxu0 %v390
    %508 = vmatpush1.bf16.msra.mxu0 %v389
    %509 = vmatprep.subr.bf16.mxu0 %v394
    %510 = vmatpush1.bf16.msra.mxu0 %v393
    %511 = vmatprep.subr.bf16.mxu0 %v398
    %512 = vmatpush1.bf16.msra.mxu0 %v397
    %513 = vmatprep.subr.bf16.mxu0 %v402
    %514 = vmatpush1.bf16.msra.mxu0 %v401
    %515 = vmatprep.subr.bf16.mxu0 %v406
    %516 = vmatpush1.bf16.msra.mxu0 %v405
    %517 = vmatprep.subr.bf16.mxu0 %v410
    %518 = vmatpush1.bf16.msra.mxu0 %v409
    %519 = vmatprep.subr.bf16.mxu0 %v414
    %520 = vmatpush1.bf16.msra.mxu0 %v413
    %521 = vmatprep.subr.bf16.mxu0 %v418
    %522 = vmatpush1.bf16.msra.mxu0 %v417
    %523 = vmatprep.subr.bf16.mxu0 %v422
    %524 = vmatpush1.bf16.msra.mxu0 %v421
    %525 = vmatprep.subr.bf16.mxu0 %v426
    %526 = vmatpush1.bf16.msra.mxu0 %v425
    %527 = vmatprep.subr.bf16.mxu0 %v430
    %528 = vmatpush1.bf16.msra.mxu0 %v429
    %529 = vmatprep.mubr.bf16.mxu0 %v174
    %530 = vmatmul.mubr.bf16.gmra.mrb[0].mxu0 %v173
    %v531 = vpop.f32.mrb[0].mxu0
    %v532 = vadd.f32 %v153, %v531
    %v533 = vpop.f32.mrb[0].mxu0
    %v534 = vadd.f32 %v157, %v533
    %v535 = vpop.f32.mrb[0].mxu0
    %v536 = vpop.f32.mrb[0].mxu0
    %537 = vdwg.mxu0
    %538 = vmatprep.subr.bf16.mxu0 %v372
    %539 = vmatpush1.bf16.msra.mxu0 %v371
    %540 = vmatprep.subr.bf16.mxu0 %v376
    %541 = vmatpush1.bf16.msra.mxu0 %v375
    %542 = vmatprep.subr.bf16.mxu0 %v380
    %543 = vmatpush1.bf16.msra.mxu0 %v379
    %544 = vmatprep.subr.bf16.mxu0 %v384
    %545 = vmatpush1.bf16.msra.mxu0 %v383
    %546 = vmatprep.subr.bf16.mxu0 %v388
    %547 = vmatpush1.bf16.msra.mxu0 %v387
    %548 = vmatprep.subr.bf16.mxu0 %v392
    %549 = vmatpush1.bf16.msra.mxu0 %v391
    %550 = vmatprep.subr.bf16.mxu0 %v396
    %551 = vmatpush1.bf16.msra.mxu0 %v395
    %552 = vmatprep.subr.bf16.mxu0 %v400
    %553 = vmatpush1.bf16.msra.mxu0 %v399
    %554 = vmatprep.subr.bf16.mxu0 %v404
    %555 = vmatpush1.bf16.msra.mxu0 %v403
    %556 = vmatprep.subr.bf16.mxu0 %v408
    %557 = vmatpush1.bf16.msra.mxu0 %v407
    %558 = vmatprep.subr.bf16.mxu0 %v412
    %559 = vmatpush1.bf16.msra.mxu0 %v411
    %560 = vmatprep.subr.bf16.mxu0 %v416
    %561 = vmatpush1.bf16.msra.mxu0 %v415
    %562 = vmatprep.subr.bf16.mxu0 %v420
    %563 = vmatpush1.bf16.msra.mxu0 %v419
    %564 = vmatprep.subr.bf16.mxu0 %v424
    %565 = vmatpush1.bf16.msra.mxu0 %v423
    %566 = vmatprep.subr.bf16.mxu0 %v428
    %567 = vmatpush1.bf16.msra.mxu0 %v427
    %568 = vmatprep.subr.bf16.mxu0 %v432
    %569 = vmatpush1.bf16.msra.mxu0 %v431
    %570 = vmatprep.mubr.bf16.mxu0 %v174
    %571 = vmatmul.mubr.bf16.gmra.mrb[0].mxu0 %v173
    %v572 = vpop.f32.mrb[0].mxu0
    %v573 = vadd.f32 %v161, %v572
    %v574 = vpop.f32.mrb[0].mxu0
    %v575 = vadd.f32 %v165, %v574
    %v576 = vpop.f32.mrb[0].mxu0
    %v577 = vpop.f32.mrb[0].mxu0
    %578 = vdwg.mxu0
    %v579 = vld [vmem:[#allocation5 + $0x10] sm:$0xff]
    %v580 = vld [vmem:[#allocation5 + $0x18] sm:$0xff]
    %v581 = vld [vmem:[#allocation5 + $0x90] sm:$0xff]
    %v582 = vld [vmem:[#allocation5 + $0x98] sm:$0xff]
    %v583 = vld [vmem:[#allocation5 + $0x110] sm:$0xff]
    %v584 = vld [vmem:[#allocation5 + $0x118] sm:$0xff]
    %v585 = vld [vmem:[#allocation5 + $0x190] sm:$0xff]
    %v586 = vld [vmem:[#allocation5 + $0x198] sm:$0xff]
    %v587 = vld [vmem:[#allocation5 + $0x210] sm:$0xff]
    %v588 = vld [vmem:[#allocation5 + $0x218] sm:$0xff]
    %v589 = vld [vmem:[#allocation5 + $0x290] sm:$0xff]
    %v590 = vld [vmem:[#allocation5 + $0x298] sm:$0xff]
    %v591 = vld [vmem:[#allocation5 + $0x310] sm:$0xff]
    %v592 = vld [vmem:[#allocation5 + $0x318] sm:$0xff]
    %v593 = vld [vmem:[#allocation5 + $0x390] sm:$0xff]
    %v594 = vld [vmem:[#allocation5 + $0x398] sm:$0xff]
    %v595 = vld [vmem:[#allocation5 + $0x410] sm:$0xff]
    %v596 = vld [vmem:[#allocation5 + $0x418] sm:$0xff]
    %v597 = vld [vmem:[#allocation5 + $0x490] sm:$0xff]
    %v598 = vld [vmem:[#allocation5 + $0x498] sm:$0xff]
    %v599 = vld [vmem:[#allocation5 + $0x510] sm:$0xff]
    %v600 = vld [vmem:[#allocation5 + $0x518] sm:$0xff]
    %v601 = vld [vmem:[#allocation5 + $0x590] sm:$0xff]
    %v602 = vld [vmem:[#allocation5 + $0x598] sm:$0xff]
    %v603 = vld [vmem:[#allocation5 + $0x610] sm:$0xff]
    %v604 = vld [vmem:[#allocation5 + $0x618] sm:$0xff]
    %v605 = vld [vmem:[#allocation5 + $0x690] sm:$0xff]
    %v606 = vld [vmem:[#allocation5 + $0x698] sm:$0xff]
    %v607 = vld [vmem:[#allocation5 + $0x710] sm:$0xff]
    %v608 = vld [vmem:[#allocation5 + $0x718] sm:$0xff]
    %v609 = vld [vmem:[#allocation5 + $0x790] sm:$0xff]
    %v610 = vld [vmem:[#allocation5 + $0x798] sm:$0xff]
    %v611 = vld [vmem:[#allocation5 + $0x810] sm:$0xff]
    %v612 = vld [vmem:[#allocation5 + $0x818] sm:$0xff]
    %v613 = vld [vmem:[#allocation5 + $0x890] sm:$0xff]
    %v614 = vld [vmem:[#allocation5 + $0x898] sm:$0xff]
    %v615 = vld [vmem:[#allocation5 + $0x910] sm:$0xff]
    %v616 = vld [vmem:[#allocation5 + $0x918] sm:$0xff]
    %v617 = vld [vmem:[#allocation5 + $0x990] sm:$0xff]
    %v618 = vld [vmem:[#allocation5 + $0x998] sm:$0xff]
    %v619 = vld [vmem:[#allocation5 + $0xa10] sm:$0xff]
    %v620 = vld [vmem:[#allocation5 + $0xa18] sm:$0xff]
    %v621 = vld [vmem:[#allocation5 + $0xa90] sm:$0xff]
    %v622 = vld [vmem:[#allocation5 + $0xa98] sm:$0xff]
    %v623 = vld [vmem:[#allocation5 + $0xb10] sm:$0xff]
    %v624 = vld [vmem:[#allocation5 + $0xb18] sm:$0xff]
    %v625 = vld [vmem:[#allocation5 + $0xb90] sm:$0xff]
    %v626 = vld [vmem:[#allocation5 + $0xb98] sm:$0xff]
    %v627 = vld [vmem:[#allocation5 + $0xc10] sm:$0xff]
    %v628 = vld [vmem:[#allocation5 + $0xc18] sm:$0xff]
    %v629 = vld [vmem:[#allocation5 + $0xc90] sm:$0xff]
    %v630 = vld [vmem:[#allocation5 + $0xc98] sm:$0xff]
    %v631 = vld [vmem:[#allocation5 + $0xd10] sm:$0xff]
    %v632 = vld [vmem:[#allocation5 + $0xd18] sm:$0xff]
    %v633 = vld [vmem:[#allocation5 + $0xd90] sm:$0xff]
    %v634 = vld [vmem:[#allocation5 + $0xd98] sm:$0xff]
    %v635 = vld [vmem:[#allocation5 + $0xe10] sm:$0xff]
    %v636 = vld [vmem:[#allocation5 + $0xe18] sm:$0xff]
    %v637 = vld [vmem:[#allocation5 + $0xe90] sm:$0xff]
    %v638 = vld [vmem:[#allocation5 + $0xe98] sm:$0xff]
    %v639 = vld [vmem:[#allocation5 + $0xf10] sm:$0xff]
    %v640 = vld [vmem:[#allocation5 + $0xf18] sm:$0xff]
    %v641 = vld [vmem:[#allocation5 + $0xf90] sm:$0xff]
    %v642 = vld [vmem:[#allocation5 + $0xf98] sm:$0xff]
    %v643 = vld [vmem:[#allocation7 + $0x4] sm:$0xf]
    %v645 = vlaneseq
    %v646 = vshrl.u32 %v645, 7
    %v647 = vsub.s32 0, %v646
    %v648 = vrot.slane %v643, %v647
    %v649 = vlaneseq
    %v650 = vshrl.u32 %v649, 7
    %v651 = vsub.s32 1, %v650
    %v652 = vrot.slane %v643, %v651
    %v653 = vlaneseq
    %v654 = vshrl.u32 %v653, 7
    %v655 = vsub.s32 2, %v654
    %v656 = vrot.slane %v643, %v655
    %v657 = vlaneseq
    %v658 = vshrl.u32 %v657, 7
    %v659 = vsub.s32 3, %v658
    %v660 = vrot.slane %v643, %v659
    %v729 = vunpack.c.l.b16 %v579
    %v730 = vunpack.c.h.b16 %v579
    %v731 = vunpack.c.l.b16 %v580
    %v732 = vunpack.c.h.b16 %v580
    %v733 = vunpack.c.l.b16 %v581
    %v734 = vunpack.c.h.b16 %v581
    %v735 = vunpack.c.l.b16 %v582
    %v736 = vunpack.c.h.b16 %v582
    %v737 = vunpack.c.l.b16 %v583
    %v738 = vunpack.c.h.b16 %v583
    %v739 = vunpack.c.l.b16 %v584
    %v740 = vunpack.c.h.b16 %v584
    %v741 = vunpack.c.l.b16 %v585
    %v742 = vunpack.c.h.b16 %v585
    %v743 = vunpack.c.l.b16 %v586
    %v744 = vunpack.c.h.b16 %v586
    %v745 = vunpack.c.l.b16 %v587
    %v746 = vunpack.c.h.b16 %v587
    %v747 = vunpack.c.l.b16 %v588
    %v748 = vunpack.c.h.b16 %v588
    %v749 = vunpack.c.l.b16 %v589
    %v750 = vunpack.c.h.b16 %v589
    %v751 = vunpack.c.l.b16 %v590
    %v752 = vunpack.c.h.b16 %v590
    %v753 = vunpack.c.l.b16 %v591
    %v754 = vunpack.c.h.b16 %v591
    %v755 = vunpack.c.l.b16 %v592
    %v756 = vunpack.c.h.b16 %v592
    %v757 = vunpack.c.l.b16 %v593
    %v758 = vunpack.c.h.b16 %v593
    %v759 = vunpack.c.l.b16 %v594
    %v760 = vunpack.c.h.b16 %v594
    %v761 = vunpack.c.l.b16 %v595
    %v762 = vunpack.c.h.b16 %v595
    %v763 = vunpack.c.l.b16 %v596
    %v764 = vunpack.c.h.b16 %v596
    %v765 = vunpack.c.l.b16 %v597
    %v766 = vunpack.c.h.b16 %v597
    %v767 = vunpack.c.l.b16 %v598
    %v768 = vunpack.c.h.b16 %v598
    %v769 = vunpack.c.l.b16 %v599
    %v770 = vunpack.c.h.b16 %v599
    %v771 = vunpack.c.l.b16 %v600
    %v772 = vunpack.c.h.b16 %v600
    %v773 = vunpack.c.l.b16 %v601
    %v774 = vunpack.c.h.b16 %v601
    %v775 = vunpack.c.l.b16 %v602
    %v776 = vunpack.c.h.b16 %v602
    %v777 = vunpack.c.l.b16 %v603
    %v778 = vunpack.c.h.b16 %v603
    %v779 = vunpack.c.l.b16 %v604
    %v780 = vunpack.c.h.b16 %v604
    %v781 = vunpack.c.l.b16 %v605
    %v782 = vunpack.c.h.b16 %v605
    %v783 = vunpack.c.l.b16 %v606
    %v784 = vunpack.c.h.b16 %v606
    %v785 = vunpack.c.l.b16 %v607
    %v786 = vunpack.c.h.b16 %v607
    %v787 = vunpack.c.l.b16 %v608
    %v788 = vunpack.c.h.b16 %v608
    %v789 = vunpack.c.l.b16 %v609
    %v790 = vunpack.c.h.b16 %v609
    %v791 = vunpack.c.l.b16 %v610
    %v792 = vunpack.c.h.b16 %v610
    %v793 = vunpack.c.l.b16 %v611
    %v794 = vunpack.c.h.b16 %v611
    %v795 = vunpack.c.l.b16 %v612
    %v796 = vunpack.c.h.b16 %v612
    %v797 = vunpack.c.l.b16 %v613
    %v798 = vunpack.c.h.b16 %v613
    %v799 = vunpack.c.l.b16 %v614
    %v800 = vunpack.c.h.b16 %v614
    %v801 = vunpack.c.l.b16 %v615
    %v802 = vunpack.c.h.b16 %v615
    %v803 = vunpack.c.l.b16 %v616
    %v804 = vunpack.c.h.b16 %v616
    %v805 = vunpack.c.l.b16 %v617
    %v806 = vunpack.c.h.b16 %v617
    %v807 = vunpack.c.l.b16 %v618
    %v808 = vunpack.c.h.b16 %v618
    %v809 = vunpack.c.l.b16 %v619
    %v810 = vunpack.c.h.b16 %v619
    %v811 = vunpack.c.l.b16 %v620
    %v812 = vunpack.c.h.b16 %v620
    %v813 = vunpack.c.l.b16 %v621
    %v814 = vunpack.c.h.b16 %v621
    %v815 = vunpack.c.l.b16 %v622
    %v816 = vunpack.c.h.b16 %v622
    %v817 = vunpack.c.l.b16 %v623
    %v818 = vunpack.c.h.b16 %v623
    %v819 = vunpack.c.l.b16 %v624
    %v820 = vunpack.c.h.b16 %v624
    %v821 = vunpack.c.l.b16 %v625
    %v822 = vunpack.c.h.b16 %v625
    %v823 = vunpack.c.l.b16 %v626
    %v824 = vunpack.c.h.b16 %v626
    %v825 = vunpack.c.l.b16 %v627
    %v826 = vunpack.c.h.b16 %v627
    %v827 = vunpack.c.l.b16 %v628
    %v828 = vunpack.c.h.b16 %v628
    %v829 = vunpack.c.l.b16 %v629
    %v830 = vunpack.c.h.b16 %v629
    %v831 = vunpack.c.l.b16 %v630
    %v832 = vunpack.c.h.b16 %v630
    %v833 = vunpack.c.l.b16 %v631
    %v834 = vunpack.c.h.b16 %v631
    %v835 = vunpack.c.l.b16 %v632
    %v836 = vunpack.c.h.b16 %v632
    %v837 = vunpack.c.l.b16 %v633
    %v838 = vunpack.c.h.b16 %v633
    %v839 = vunpack.c.l.b16 %v634
    %v840 = vunpack.c.h.b16 %v634
    %v841 = vunpack.c.l.b16 %v635
    %v842 = vunpack.c.h.b16 %v635
    %v843 = vunpack.c.l.b16 %v636
    %v844 = vunpack.c.h.b16 %v636
    %v845 = vunpack.c.l.b16 %v637
    %v846 = vunpack.c.h.b16 %v637
    %v847 = vunpack.c.l.b16 %v638
    %v848 = vunpack.c.h.b16 %v638
    %v849 = vunpack.c.l.b16 %v639
    %v850 = vunpack.c.h.b16 %v639
    %v851 = vunpack.c.l.b16 %v640
    %v852 = vunpack.c.h.b16 %v640
    %v853 = vunpack.c.l.b16 %v641
    %v854 = vunpack.c.h.b16 %v641
    %v855 = vunpack.c.l.b16 %v642
    %v856 = vunpack.c.h.b16 %v642
    %v857 = vpack.c.b16 %v733, %v729
    %v858 = vpack.c.b16 %v734, %v730
    %v859 = vpack.c.b16 %v735, %v731
    %v860 = vpack.c.b16 %v736, %v732
    %v861 = vpack.c.b16 %v741, %v737
    %v862 = vpack.c.b16 %v742, %v738
    %v863 = vpack.c.b16 %v743, %v739
    %v864 = vpack.c.b16 %v744, %v740
    %v865 = vpack.c.b16 %v749, %v745
    %v866 = vpack.c.b16 %v750, %v746
    %v867 = vpack.c.b16 %v751, %v747
    %v868 = vpack.c.b16 %v752, %v748
    %v869 = vpack.c.b16 %v757, %v753
    %v870 = vpack.c.b16 %v758, %v754
    %v871 = vpack.c.b16 %v759, %v755
    %v872 = vpack.c.b16 %v760, %v756
    %v873 = vpack.c.b16 %v765, %v761
    %v874 = vpack.c.b16 %v766, %v762
    %v875 = vpack.c.b16 %v767, %v763
    %v876 = vpack.c.b16 %v768, %v764
    %v877 = vpack.c.b16 %v773, %v769
    %v878 = vpack.c.b16 %v774, %v770
    %v879 = vpack.c.b16 %v775, %v771
    %v880 = vpack.c.b16 %v776, %v772
    %v881 = vpack.c.b16 %v781, %v777
    %v882 = vpack.c.b16 %v782, %v778
    %v883 = vpack.c.b16 %v783, %v779
    %v884 = vpack.c.b16 %v784, %v780
    %v885 = vpack.c.b16 %v789, %v785
    %v886 = vpack.c.b16 %v790, %v786
    %v887 = vpack.c.b16 %v791, %v787
    %v888 = vpack.c.b16 %v792, %v788
    %v889 = vpack.c.b16 %v797, %v793
    %v890 = vpack.c.b16 %v798, %v794
    %v891 = vpack.c.b16 %v799, %v795
    %v892 = vpack.c.b16 %v800, %v796
    %v893 = vpack.c.b16 %v805, %v801
    %v894 = vpack.c.b16 %v806, %v802
    %v895 = vpack.c.b16 %v807, %v803
    %v896 = vpack.c.b16 %v808, %v804
    %v897 = vpack.c.b16 %v813, %v809
    %v898 = vpack.c.b16 %v814, %v810
    %v899 = vpack.c.b16 %v815, %v811
    %v900 = vpack.c.b16 %v816, %v812
    %v901 = vpack.c.b16 %v821, %v817
    %v902 = vpack.c.b16 %v822, %v818
    %v903 = vpack.c.b16 %v823, %v819
    %v904 = vpack.c.b16 %v824, %v820
    %v905 = vpack.c.b16 %v829, %v825
    %v906 = vpack.c.b16 %v830, %v826
    %v907 = vpack.c.b16 %v831, %v827
    %v908 = vpack.c.b16 %v832, %v828
    %v909 = vpack.c.b16 %v837, %v833
    %v910 = vpack.c.b16 %v838, %v834
    %v911 = vpack.c.b16 %v839, %v835
    %v912 = vpack.c.b16 %v840, %v836
    %v913 = vpack.c.b16 %v845, %v841
    %v914 = vpack.c.b16 %v846, %v842
    %v915 = vpack.c.b16 %v847, %v843
    %v916 = vpack.c.b16 %v848, %v844
    %v917 = vpack.c.b16 %v853, %v849
    %v918 = vpack.c.b16 %v854, %v850
    %v919 = vpack.c.b16 %v855, %v851
    %v920 = vpack.c.b16 %v856, %v852
    %985 = vmatprep.subr.bf16.mxu0 %v858
    %986 = vmatpush1.bf16.msra.mxu0 %v857
    %987 = vmatprep.subr.bf16.mxu0 %v862
    %988 = vmatpush1.bf16.msra.mxu0 %v861
    %989 = vmatprep.subr.bf16.mxu0 %v866
    %990 = vmatpush1.bf16.msra.mxu0 %v865
    %991 = vmatprep.subr.bf16.mxu0 %v870
    %992 = vmatpush1.bf16.msra.mxu0 %v869
    %993 = vmatprep.subr.bf16.mxu0 %v874
    %994 = vmatpush1.bf16.msra.mxu0 %v873
    %995 = vmatprep.subr.bf16.mxu0 %v878
    %996 = vmatpush1.bf16.msra.mxu0 %v877
    %997 = vmatprep.subr.bf16.mxu0 %v882
    %998 = vmatpush1.bf16.msra.mxu0 %v881
    %999 = vmatprep.subr.bf16.mxu0 %v886
    %1000 = vmatpush1.bf16.msra.mxu0 %v885
    %1001 = vmatprep.subr.bf16.mxu0 %v890
    %1002 = vmatpush1.bf16.msra.mxu0 %v889
    %1003 = vmatprep.subr.bf16.mxu0 %v894
    %1004 = vmatpush1.bf16.msra.mxu0 %v893
    %1005 = vmatprep.subr.bf16.mxu0 %v898
    %1006 = vmatpush1.bf16.msra.mxu0 %v897
    %1007 = vmatprep.subr.bf16.mxu0 %v902
    %1008 = vmatpush1.bf16.msra.mxu0 %v901
    %1009 = vmatprep.subr.bf16.mxu0 %v906
    %1010 = vmatpush1.bf16.msra.mxu0 %v905
    %1011 = vmatprep.subr.bf16.mxu0 %v910
    %1012 = vmatpush1.bf16.msra.mxu0 %v909
    %1013 = vmatprep.subr.bf16.mxu0 %v914
    %1014 = vmatpush1.bf16.msra.mxu0 %v913
    %1015 = vmatprep.subr.bf16.mxu0 %v918
    %1016 = vmatpush1.bf16.msra.mxu0 %v917
    %1017 = vmatprep.mubr.bf16.mxu0 %v174
    %1018 = vmatmul.mubr.bf16.gmra.mrb[0].mxu0 %v173
    %v1019 = vpop.f32.mrb[0].mxu0
    %v1020 = vadd.f32 %v648, %v1019
    %v1021 = vpop.f32.mrb[0].mxu0
    %v1022 = vadd.f32 %v652, %v1021
    %v1023 = vpop.f32.mrb[0].mxu0
    %v1024 = vpop.f32.mrb[0].mxu0
    %1025 = vdwg.mxu0
    %1026 = vmatprep.subr.bf16.mxu0 %v860
    %1027 = vmatpush1.bf16.msra.mxu0 %v859
    %1028 = vmatprep.subr.bf16.mxu0 %v864
    %1029 = vmatpush1.bf16.msra.mxu0 %v863
    %1030 = vmatprep.subr.bf16.mxu0 %v868
    %1031 = vmatpush1.bf16.msra.mxu0 %v867
    %1032 = vmatprep.subr.bf16.mxu0 %v872
    %1033 = vmatpush1.bf16.msra.mxu0 %v871
    %1034 = vmatprep.subr.bf16.mxu0 %v876
    %1035 = vmatpush1.bf16.msra.mxu0 %v875
    %1036 = vmatprep.subr.bf16.mxu0 %v880
    %1037 = vmatpush1.bf16.msra.mxu0 %v879
    %1038 = vmatprep.subr.bf16.mxu0 %v884
    %1039 = vmatpush1.bf16.msra.mxu0 %v883
    %1040 = vmatprep.subr.bf16.mxu0 %v888
    %1041 = vmatpush1.bf16.msra.mxu0 %v887
    %1042 = vmatprep.subr.bf16.mxu0 %v892
    %1043 = vmatpush1.bf16.msra.mxu0 %v891
    %1044 = vmatprep.subr.bf16.mxu0 %v896
    %1045 = vmatpush1.bf16.msra.mxu0 %v895
    %1046 = vmatprep.subr.bf16.mxu0 %v900
    %1047 = vmatpush1.bf16.msra.mxu0 %v899
    %1048 = vmatprep.subr.bf16.mxu0 %v904
    %1049 = vmatpush1.bf16.msra.mxu0 %v903
    %1050 = vmatprep.subr.bf16.mxu0 %v908
    %1051 = vmatpush1.bf16.msra.mxu0 %v907
    %1052 = vmatprep.subr.bf16.mxu0 %v912
    %1053 = vmatpush1.bf16.msra.mxu0 %v911
    %1054 = vmatprep.subr.bf16.mxu0 %v916
    %1055 = vmatpush1.bf16.msra.mxu0 %v915
    %1056 = vmatprep.subr.bf16.mxu0 %v920
    %1057 = vmatpush1.bf16.msra.mxu0 %v919
    %1058 = vmatprep.mubr.bf16.mxu0 %v174
    %1059 = vmatmul.mubr.bf16.gmra.mrb[0].mxu0 %v173
    %v1060 = vpop.f32.mrb[0].mxu0
    %v1061 = vadd.f32 %v656, %v1060
    %v1062 = vpop.f32.mrb[0].mxu0
    %v1063 = vadd.f32 %v660, %v1062
    %v1064 = vpop.f32.mrb[0].mxu0
    %v1065 = vpop.f32.mrb[0].mxu0
    %1066 = vdwg.mxu0
    %v1067 = vmax.f32 %v532, %v1020
    %v1068 = vmax.f32 %v534, %v1022
    %v1069 = vmax.f32 %v573, %v1061
    %v1070 = vmax.f32 %v575, %v1063
    %v1071 = vld [vmem:[#allocation5 + $0x20] sm:$0xff]
    %v1072 = vld [vmem:[#allocation5 + $0x28] sm:$0xff]
    %v1073 = vld [vmem:[#allocation5 + $0xa0] sm:$0xff]
    %v1074 = vld [vmem:[#allocation5 + $0xa8] sm:$0xff]
    %v1075 = vld [vmem:[#allocation5 + $0x120] sm:$0xff]
    %v1076 = vld [vmem:[#allocation5 + $0x128] sm:$0xff]
    %v1077 = vld [vmem:[#allocation5 + $0x1a0] sm:$0xff]
    %v1078 = vld [vmem:[#allocation5 + $0x1a8] sm:$0xff]
    %v1079 = vld [vmem:[#allocation5 + $0x220] sm:$0xff]
    %v1080 = vld [vmem:[#allocation5 + $0x228] sm:$0xff]
    %v1081 = vld [vmem:[#allocation5 + $0x2a0] sm:$0xff]
    %v1082 = vld [vmem:[#allocation5 + $0x2a8] sm:$0xff]
    %v1083 = vld [vmem:[#allocation5 + $0x320] sm:$0xff]
    %v1084 = vld [vmem:[#allocation5 + $0x328] sm:$0xff]
    %v1085 = vld [vmem:[#allocation5 + $0x3a0] sm:$0xff]
    %v1086 = vld [vmem:[#allocation5 + $0x3a8] sm:$0xff]
    %v1087 = vld [vmem:[#allocation5 + $0x420] sm:$0xff]
    %v1088 = vld [vmem:[#allocation5 + $0x428] sm:$0xff]
    %v1089 = vld [vmem:[#allocation5 + $0x4a0] sm:$0xff]
    %v1090 = vld [vmem:[#allocation5 + $0x4a8] sm:$0xff]
    %v1091 = vld [vmem:[#allocation5 + $0x520] sm:$0xff]
    %v1092 = vld [vmem:[#allocation5 + $0x528] sm:$0xff]
    %v1093 = vld [vmem:[#allocation5 + $0x5a0] sm:$0xff]
    %v1094 = vld [vmem:[#allocation5 + $0x5a8] sm:$0xff]
    %v1095 = vld [vmem:[#allocation5 + $0x620] sm:$0xff]
    %v1096 = vld [vmem:[#allocation5 + $0x628] sm:$0xff]
    %v1097 = vld [vmem:[#allocation5 + $0x6a0] sm:$0xff]
    %v1098 = vld [vmem:[#allocation5 + $0x6a8] sm:$0xff]
    %v1099 = vld [vmem:[#allocation5 + $0x720] sm:$0xff]
    %v1100 = vld [vmem:[#allocation5 + $0x728] sm:$0xff]
    %v1101 = vld [vmem:[#allocation5 + $0x7a0] sm:$0xff]
    %v1102 = vld [vmem:[#allocation5 + $0x7a8] sm:$0xff]
    %v1103 = vld [vmem:[#allocation5 + $0x820] sm:$0xff]
    %v1104 = vld [vmem:[#allocation5 + $0x828] sm:$0xff]
    %v1105 = vld [vmem:[#allocation5 + $0x8a0] sm:$0xff]
    %v1106 = vld [vmem:[#allocation5 + $0x8a8] sm:$0xff]
    %v1107 = vld [vmem:[#allocation5 + $0x920] sm:$0xff]
    %v1108 = vld [vmem:[#allocation5 + $0x928] sm:$0xff]
    %v1109 = vld [vmem:[#allocation5 + $0x9a0] sm:$0xff]
    %v1110 = vld [vmem:[#allocation5 + $0x9a8] sm:$0xff]
    %v1111 = vld [vmem:[#allocation5 + $0xa20] sm:$0xff]
    %v1112 = vld [vmem:[#allocation5 + $0xa28] sm:$0xff]
    %v1113 = vld [vmem:[#allocation5 + $0xaa0] sm:$0xff]
    %v1114 = vld [vmem:[#allocation5 + $0xaa8] sm:$0xff]
    %v1115 = vld [vmem:[#allocation5 + $0xb20] sm:$0xff]
    %v1116 = vld [vmem:[#allocation5 + $0xb28] sm:$0xff]
    %v1117 = vld [vmem:[#allocation5 + $0xba0] sm:$0xff]
    %v1118 = vld [vmem:[#allocation5 + $0xba8] sm:$0xff]
    %v1119 = vld [vmem:[#allocation5 + $0xc20] sm:$0xff]
    %v1120 = vld [vmem:[#allocation5 + $0xc28] sm:$0xff]
    %v1121 = vld [vmem:[#allocation5 + $0xca0] sm:$0xff]
    %v1122 = vld [vmem:[#allocation5 + $0xca8] sm:$0xff]
    %v1123 = vld [vmem:[#allocation5 + $0xd20] sm:$0xff]
    %v1124 = vld [vmem:[#allocation5 + $0xd28] sm:$0xff]
    %v1125 = vld [vmem:[#allocation5 + $0xda0] sm:$0xff]
    %v1126 = vld [vmem:[#allocation5 + $0xda8] sm:$0xff]
    %v1127 = vld [vmem:[#allocation5 + $0xe20] sm:$0xff]
    %v1128 = vld [vmem:[#allocation5 + $0xe28] sm:$0xff]
    %v1129 = vld [vmem:[#allocation5 + $0xea0] sm:$0xff]
    %v1130 = vld [vmem:[#allocation5 + $0xea8] sm:$0xff]
    %v1131 = vld [vmem:[#allocation5 + $0xf20] sm:$0xff]
    %v1132 = vld [vmem:[#allocation5 + $0xf28] sm:$0xff]
    %v1133 = vld [vmem:[#allocation5 + $0xfa0] sm:$0xff]
    %v1134 = vld [vmem:[#allocation5 + $0xfa8] sm:$0xff]
    %v1135 = vld [vmem:[#allocation7 + $0x8] sm:$0xf]
    %v1137 = vlaneseq
    %v1138 = vshrl.u32 %v1137, 7
    %v1139 = vsub.s32 0, %v1138
    %v1140 = vrot.slane %v1135, %v1139
    %v1141 = vlaneseq
    %v1142 = vshrl.u32 %v1141, 7
    %v1143 = vsub.s32 1, %v1142
    %v1144 = vrot.slane %v1135, %v1143
    %v1145 = vlaneseq
    %v1146 = vshrl.u32 %v1145, 7
    %v1147 = vsub.s32 2, %v1146
    %v1148 = vrot.slane %v1135, %v1147
    %v1149 = vlaneseq
    %v1150 = vshrl.u32 %v1149, 7
    %v1151 = vsub.s32 3, %v1150
    %v1152 = vrot.slane %v1135, %v1151
    %v1221 = vunpack.c.l.b16 %v1071
    %v1222 = vunpack.c.h.b16 %v1071
    %v1223 = vunpack.c.l.b16 %v1072
    %v1224 = vunpack.c.h.b16 %v1072
    %v1225 = vunpack.c.l.b16 %v1073
    %v1226 = vunpack.c.h.b16 %v1073
    %v1227 = vunpack.c.l.b16 %v1074
    %v1228 = vunpack.c.h.b16 %v1074
    %v1229 = vunpack.c.l.b16 %v1075
    %v1230 = vunpack.c.h.b16 %v1075
    %v1231 = vunpack.c.l.b16 %v1076
    %v1232 = vunpack.c.h.b16 %v1076
    %v1233 = vunpack.c.l.b16 %v1077
    %v1234 = vunpack.c.h.b16 %v1077
    %v1235 = vunpack.c.l.b16 %v1078
    %v1236 = vunpack.c.h.b16 %v1078
    %v1237 = vunpack.c.l.b16 %v1079
    %v1238 = vunpack.c.h.b16 %v1079
    %v1239 = vunpack.c.l.b16 %v1080
    %v1240 = vunpack.c.h.b16 %v1080
    %v1241 = vunpack.c.l.b16 %v1081
    %v1242 = vunpack.c.h.b16 %v1081
    %v1243 = vunpack.c.l.b16 %v1082
    %v1244 = vunpack.c.h.b16 %v1082
    %v1245 = vunpack.c.l.b16 %v1083
    %v1246 = vunpack.c.h.b16 %v1083
    %v1247 = vunpack.c.l.b16 %v1084
    %v1248 = vunpack.c.h.b16 %v1084
    %v1249 = vunpack.c.l.b16 %v1085
    %v1250 = vunpack.c.h.b16 %v1085
    %v1251 = vunpack.c.l.b16 %v1086
    %v1252 = vunpack.c.h.b16 %v1086
    %v1253 = vunpack.c.l.b16 %v1087
    %v1254 = vunpack.c.h.b16 %v1087
    %v1255 = vunpack.c.l.b16 %v1088
    %v1256 = vunpack.c.h.b16 %v1088
    %v1257 = vunpack.c.l.b16 %v1089
    %v1258 = vunpack.c.h.b16 %v1089
    %v1259 = vunpack.c.l.b16 %v1090
    %v1260 = vunpack.c.h.b16 %v1090
    %v1261 = vunpack.c.l.b16 %v1091
    %v1262 = vunpack.c.h.b16 %v1091
    %v1263 = vunpack.c.l.b16 %v1092
    %v1264 = vunpack.c.h.b16 %v1092
    %v1265 = vunpack.c.l.b16 %v1093
    %v1266 = vunpack.c.h.b16 %v1093
    %v1267 = vunpack.c.l.b16 %v1094
    %v1268 = vunpack.c.h.b16 %v1094
    %v1269 = vunpack.c.l.b16 %v1095
    %v1270 = vunpack.c.h.b16 %v1095
    %v1271 = vunpack.c.l.b16 %v1096
    %v1272 = vunpack.c.h.b16 %v1096
    %v1273 = vunpack.c.l.b16 %v1097
    %v1274 = vunpack.c.h.b16 %v1097
    %v1275 = vunpack.c.l.b16 %v1098
    %v1276 = vunpack.c.h.b16 %v1098
    %v1277 = vunpack.c.l.b16 %v1099
    %v1278 = vunpack.c.h.b16 %v1099
    %v1279 = vunpack.c.l.b16 %v1100
    %v1280 = vunpack.c.h.b16 %v1100
    %v1281 = vunpack.c.l.b16 %v1101
    %v1282 = vunpack.c.h.b16 %v1101
    %v1283 = vunpack.c.l.b16 %v1102
    %v1284 = vunpack.c.h.b16 %v1102
    %v1285 = vunpack.c.l.b16 %v1103
    %v1286 = vunpack.c.h.b16 %v1103
    %v1287 = vunpack.c.l.b16 %v1104
    %v1288 = vunpack.c.h.b16 %v1104
    %v1289 = vunpack.c.l.b16 %v1105
    %v1290 = vunpack.c.h.b16 %v1105
    %v1291 = vunpack.c.l.b16 %v1106
    %v1292 = vunpack.c.h.b16 %v1106
    %v1293 = vunpack.c.l.b16 %v1107
    %v1294 = vunpack.c.h.b16 %v1107
    %v1295 = vunpack.c.l.b16 %v1108
    %v1296 = vunpack.c.h.b16 %v1108
    %v1297 = vunpack.c.l.b16 %v1109
    %v1298 = vunpack.c.h.b16 %v1109
    %v1299 = vunpack.c.l.b16 %v1110
    %v1300 = vunpack.c.h.b16 %v1110
    %v1301 = vunpack.c.l.b16 %v1111
    %v1302 = vunpack.c.h.b16 %v1111
    %v1303 = vunpack.c.l.b16 %v1112
    %v1304 = vunpack.c.h.b16 %v1112
    %v1305 = vunpack.c.l.b16 %v1113
    %v1306 = vunpack.c.h.b16 %v1113
    %v1307 = vunpack.c.l.b16 %v1114
    %v1308 = vunpack.c.h.b16 %v1114
    %v1309 = vunpack.c.l.b16 %v1115
    %v1310 = vunpack.c.h.b16 %v1115
    %v1311 = vunpack.c.l.b16 %v1116
    %v1312 = vunpack.c.h.b16 %v1116
    %v1313 = vunpack.c.l.b16 %v1117
    %v1314 = vunpack.c.h.b16 %v1117
    %v1315 = vunpack.c.l.b16 %v1118
    %v1316 = vunpack.c.h.b16 %v1118
    %v1317 = vunpack.c.l.b16 %v1119
    %v1318 = vunpack.c.h.b16 %v1119
    %v1319 = vunpack.c.l.b16 %v1120
    %v1320 = vunpack.c.h.b16 %v1120
    %v1321 = vunpack.c.l.b16 %v1121
    %v1322 = vunpack.c.h.b16 %v1121
    %v1323 = vunpack.c.l.b16 %v1122
    %v1324 = vunpack.c.h.b16 %v1122
    %v1325 = vunpack.c.l.b16 %v1123
    %v1326 = vunpack.c.h.b16 %v1123
    %v1327 = vunpack.c.l.b16 %v1124
    %v1328 = vunpack.c.h.b16 %v1124
    %v1329 = vunpack.c.l.b16 %v1125
    %v1330 = vunpack.c.h.b16 %v1125
    %v1331 = vunpack.c.l.b16 %v1126
    %v1332 = vunpack.c.h.b16 %v1126
    %v1333 = vunpack.c.l.b16 %v1127
    %v1334 = vunpack.c.h.b16 %v1127
    %v1335 = vunpack.c.l.b16 %v1128
    %v1336 = vunpack.c.h.b16 %v1128
    %v1337 = vunpack.c.l.b16 %v1129
    %v1338 = vunpack.c.h.b16 %v1129
    %v1339 = vunpack.c.l.b16 %v1130
    %v1340 = vunpack.c.h.b16 %v1130
    %v1341 = vunpack.c.l.b16 %v1131
    %v1342 = vunpack.c.h.b16 %v1131
    %v1343 = vunpack.c.l.b16 %v1132
    %v1344 = vunpack.c.h.b16 %v1132
    %v1345 = vunpack.c.l.b16 %v1133
    %v1346 = vunpack.c.h.b16 %v1133
    %v1347 = vunpack.c.l.b16 %v1134
    %v1348 = vunpack.c.h.b16 %v1134
    %v1349 = vpack.c.b16 %v1225, %v1221
    %v1350 = vpack.c.b16 %v1226, %v1222
    %v1351 = vpack.c.b16 %v1227, %v1223
    %v1352 = vpack.c.b16 %v1228, %v1224
    %v1353 = vpack.c.b16 %v1233, %v1229
    %v1354 = vpack.c.b16 %v1234, %v1230
    %v1355 = vpack.c.b16 %v1235, %v1231
    %v1356 = vpack.c.b16 %v1236, %v1232
    %v1357 = vpack.c.b16 %v1241, %v1237
    %v1358 = vpack.c.b16 %v1242, %v1238
    %v1359 = vpack.c.b16 %v1243, %v1239
    %v1360 = vpack.c.b16 %v1244, %v1240
    %v1361 = vpack.c.b16 %v1249, %v1245
    %v1362 = vpack.c.b16 %v1250, %v1246
    %v1363 = vpack.c.b16 %v1251, %v1247
    %v1364 = vpack.c.b16 %v1252, %v1248
    %v1365 = vpack.c.b16 %v1257, %v1253
    %v1366 = vpack.c.b16 %v1258, %v1254
    %v1367 = vpack.c.b16 %v1259, %v1255
    %v1368 = vpack.c.b16 %v1260, %v1256
    %v1369 = vpack.c.b16 %v1265, %v1261
    %v1370 = vpack.c.b16 %v1266, %v1262
    %v1371 = vpack.c.b16 %v1267, %v1263
    %v1372 = vpack.c.b16 %v1268, %v1264
    %v1373 = vpack.c.b16 %v1273, %v1269
    %v1374 = vpack.c.b16 %v1274, %v1270
    %v1375 = vpack.c.b16 %v1275, %v1271
    %v1376 = vpack.c.b16 %v1276, %v1272
    %v1377 = vpack.c.b16 %v1281, %v1277
    %v1378 = vpack.c.b16 %v1282, %v1278
    %v1379 = vpack.c.b16 %v1283, %v1279
    %v1380 = vpack.c.b16 %v1284, %v1280
    %v1381 = vpack.c.b16 %v1289, %v1285
    %v1382 = vpack.c.b16 %v1290, %v1286
    %v1383 = vpack.c.b16 %v1291, %v1287
    %v1384 = vpack.c.b16 %v1292, %v1288
    %v1385 = vpack.c.b16 %v1297, %v1293
    %v1386 = vpack.c.b16 %v1298, %v1294
    %v1387 = vpack.c.b16 %v1299, %v1295
    %v1388 = vpack.c.b16 %v1300, %v1296
    %v1389 = vpack.c.b16 %v1305, %v1301
    %v1390 = vpack.c.b16 %v1306, %v1302
    %v1391 = vpack.c.b16 %v1307, %v1303
    %v1392 = vpack.c.b16 %v1308, %v1304
    %v1393 = vpack.c.b16 %v1313, %v1309
    %v1394 = vpack.c.b16 %v1314, %v1310
    %v1395 = vpack.c.b16 %v1315, %v1311
    %v1396 = vpack.c.b16 %v1316, %v1312
    %v1397 = vpack.c.b16 %v1321, %v1317
    %v1398 = vpack.c.b16 %v1322, %v1318
    %v1399 = vpack.c.b16 %v1323, %v1319
    %v1400 = vpack.c.b16 %v1324, %v1320
    %v1401 = vpack.c.b16 %v1329, %v1325
    %v1402 = vpack.c.b16 %v1330, %v1326
    %v1403 = vpack.c.b16 %v1331, %v1327
    %v1404 = vpack.c.b16 %v1332, %v1328
    %v1405 = vpack.c.b16 %v1337, %v1333
    %v1406 = vpack.c.b16 %v1338, %v1334
    %v1407 = vpack.c.b16 %v1339, %v1335
    %v1408 = vpack.c.b16 %v1340, %v1336
    %v1409 = vpack.c.b16 %v1345, %v1341
    %v1410 = vpack.c.b16 %v1346, %v1342
    %v1411 = vpack.c.b16 %v1347, %v1343
    %v1412 = vpack.c.b16 %v1348, %v1344
    %1477 = vmatprep.subr.bf16.mxu0 %v1350
    %1478 = vmatpush1.bf16.msra.mxu0 %v1349
    %1479 = vmatprep.subr.bf16.mxu0 %v1354
    %1480 = vmatpush1.bf16.msra.mxu0 %v1353
    %1481 = vmatprep.subr.bf16.mxu0 %v1358
    %1482 = vmatpush1.bf16.msra.mxu0 %v1357
    %1483 = vmatprep.subr.bf16.mxu0 %v1362
    %1484 = vmatpush1.bf16.msra.mxu0 %v1361
    %1485 = vmatprep.subr.bf16.mxu0 %v1366
    %1486 = vmatpush1.bf16.msra.mxu0 %v1365
    %1487 = vmatprep.subr.bf16.mxu0 %v1370
    %1488 = vmatpush1.bf16.msra.mxu0 %v1369
    %1489 = vmatprep.subr.bf16.mxu0 %v1374
    %1490 = vmatpush1.bf16.msra.mxu0 %v1373
    %1491 = vmatprep.subr.bf16.mxu0 %v1378
    %1492 = vmatpush1.bf16.msra.mxu0 %v1377
    %1493 = vmatprep.subr.bf16.mxu0 %v1382
    %1494 = vmatpush1.bf16.msra.mxu0 %v1381
    %1495 = vmatprep.subr.bf16.mxu0 %v1386
    %1496 = vmatpush1.bf16.msra.mxu0 %v1385
    %1497 = vmatprep.subr.bf16.mxu0 %v1390
    %1498 = vmatpush1.bf16.msra.mxu0 %v1389
    %1499 = vmatprep.subr.bf16.mxu0 %v1394
    %1500 = vmatpush1.bf16.msra.mxu0 %v1393
    %1501 = vmatprep.subr.bf16.mxu0 %v1398
    %1502 = vmatpush1.bf16.msra.mxu0 %v1397
    %1503 = vmatprep.subr.bf16.mxu0 %v1402
    %1504 = vmatpush1.bf16.msra.mxu0 %v1401
    %1505 = vmatprep.subr.bf16.mxu0 %v1406
    %1506 = vmatpush1.bf16.msra.mxu0 %v1405
    %1507 = vmatprep.subr.bf16.mxu0 %v1410
    %1508 = vmatpush1.bf16.msra.mxu0 %v1409
    %1509 = vmatprep.mubr.bf16.mxu0 %v174
    %1510 = vmatmul.mubr.bf16.gmra.mrb[0].mxu0 %v173
    %v1511 = vpop.f32.mrb[0].mxu0
    %v1512 = vadd.f32 %v1140, %v1511
    %v1513 = vpop.f32.mrb[0].mxu0
    %v1514 = vadd.f32 %v1144, %v1513
    %v1515 = vpop.f32.mrb[0].mxu0
    %v1516 = vpop.f32.mrb[0].mxu0
    %1517 = vdwg.mxu0
    %1518 = vmatprep.subr.bf16.mxu0 %v1352
    %1519 = vmatpush1.bf16.msra.mxu0 %v1351
    %1520 = vmatprep.subr.bf16.mxu0 %v1356
    %1521 = vmatpush1.bf16.msra.mxu0 %v1355
    %1522 = vmatprep.subr.bf16.mxu0 %v1360
    %1523 = vmatpush1.bf16.msra.mxu0 %v1359
    %1524 = vmatprep.subr.bf16.mxu0 %v1364
    %1525 = vmatpush1.bf16.msra.mxu0 %v1363
    %1526 = vmatprep.subr.bf16.mxu0 %v1368
    %1527 = vmatpush1.bf16.msra.mxu0 %v1367
    %1528 = vmatprep.subr.bf16.mxu0 %v1372
    %1529 = vmatpush1.bf16.msra.mxu0 %v1371
    %1530 = vmatprep.subr.bf16.mxu0 %v1376
    %1531 = vmatpush1.bf16.msra.mxu0 %v1375
    %1532 = vmatprep.subr.bf16.mxu0 %v1380
    %1533 = vmatpush1.bf16.msra.mxu0 %v1379
    %1534 = vmatprep.subr.bf16.mxu0 %v1384
    %1535 = vmatpush1.bf16.msra.mxu0 %v1383
    %1536 = vmatprep.subr.bf16.mxu0 %v1388
    %1537 = vmatpush1.bf16.msra.mxu0 %v1387
    %1538 = vmatprep.subr.bf16.mxu0 %v1392
    %1539 = vmatpush1.bf16.msra.mxu0 %v1391
    %1540 = vmatprep.subr.bf16.mxu0 %v1396
    %1541 = vmatpush1.bf16.msra.mxu0 %v1395
    %1542 = vmatprep.subr.bf16.mxu0 %v1400
    %1543 = vmatpush1.bf16.msra.mxu0 %v1399
    %1544 = vmatprep.subr.bf16.mxu0 %v1404
    %1545 = vmatpush1.bf16.msra.mxu0 %v1403
    %1546 = vmatprep.subr.bf16.mxu0 %v1408
    %1547 = vmatpush1.bf16.msra.mxu0 %v1407
    %1548 = vmatprep.subr.bf16.mxu0 %v1412
    %1549 = vmatpush1.bf16.msra.mxu0 %v1411
    %1550 = vmatprep.mubr.bf16.mxu0 %v174
    %1551 = vmatmul.mubr.bf16.gmra.mrb[0].mxu0 %v173
    %v1552 = vpop.f32.mrb[0].mxu0
    %v1553 = vadd.f32 %v1148, %v1552
    %v1554 = vpop.f32.mrb[0].mxu0
    %v1555 = vadd.f32 %v1152, %v1554
    %v1556 = vpop.f32.mrb[0].mxu0
    %v1557 = vpop.f32.mrb[0].mxu0
    %1558 = vdwg.mxu0
    %v1559 = vmax.f32 %v1067, %v1512
    %v1560 = vmax.f32 %v1068, %v1514
    %v1561 = vmax.f32 %v1069, %v1553
    %v1562 = vmax.f32 %v1070, %v1555
    %v1563 = vld [vmem:[#allocation5 + $0x30] sm:$0xff]
    %v1564 = vld [vmem:[#allocation5 + $0x38] sm:$0xff]
    %v1565 = vld [vmem:[#allocation5 + $0xb0] sm:$0xff]
    %v1566 = vld [vmem:[#allocation5 + $0xb8] sm:$0xff]
    %v1567 = vld [vmem:[#allocation5 + $0x130] sm:$0xff]
    %v1568 = vld [vmem:[#allocation5 + $0x138] sm:$0xff]
    %v1569 = vld [vmem:[#allocation5 + $0x1b0] sm:$0xff]
    %v1570 = vld [vmem:[#allocation5 + $0x1b8] sm:$0xff]
    %v1571 = vld [vmem:[#allocation5 + $0x230] sm:$0xff]
    %v1572 = vld [vmem:[#allocation5 + $0x238] sm:$0xff]
    %v1573 = vld [vmem:[#allocation5 + $0x2b0] sm:$0xff]
    %v1574 = vld [vmem:[#allocation5 + $0x2b8] sm:$0xff]
    %v1575 = vld [vmem:[#allocation5 + $0x330] sm:$0xff]
    %v1576 = vld [vmem:[#allocation5 + $0x338] sm:$0xff]
    %v1577 = vld [vmem:[#allocation5 + $0x3b0] sm:$0xff]
    %v1578 = vld [vmem:[#allocation5 + $0x3b8] sm:$0xff]
    %v1579 = vld [vmem:[#allocation5 + $0x430] sm:$0xff]
    %v1580 = vld [vmem:[#allocation5 + $0x438] sm:$0xff]
    %v1581 = vld [vmem:[#allocation5 + $0x4b0] sm:$0xff]
    %v1582 = vld [vmem:[#allocation5 + $0x4b8] sm:$0xff]
    %v1583 = vld [vmem:[#allocation5 + $0x530] sm:$0xff]
    %v1584 = vld [vmem:[#allocation5 + $0x538] sm:$0xff]
    %v1585 = vld [vmem:[#allocation5 + $0x5b0] sm:$0xff]
    %v1586 = vld [vmem:[#allocation5 + $0x5b8] sm:$0xff]
    %v1587 = vld [vmem:[#allocation5 + $0x630] sm:$0xff]
    %v1588 = vld [vmem:[#allocation5 + $0x638] sm:$0xff]
    %v1589 = vld [vmem:[#allocation5 + $0x6b0] sm:$0xff]
    %v1590 = vld [vmem:[#allocation5 + $0x6b8] sm:$0xff]
    %v1591 = vld [vmem:[#allocation5 + $0x730] sm:$0xff]
    %v1592 = vld [vmem:[#allocation5 + $0x738] sm:$0xff]
    %v1593 = vld [vmem:[#allocation5 + $0x7b0] sm:$0xff]
    %v1594 = vld [vmem:[#allocation5 + $0x7b8] sm:$0xff]
    %v1595 = vld [vmem:[#allocation5 + $0x830] sm:$0xff]
    %v1596 = vld [vmem:[#allocation5 + $0x838] sm:$0xff]
    %v1597 = vld [vmem:[#allocation5 + $0x8b0] sm:$0xff]
    %v1598 = vld [vmem:[#allocation5 + $0x8b8] sm:$0xff]
    %v1599 = vld [vmem:[#allocation5 + $0x930] sm:$0xff]
    %v1600 = vld [vmem:[#allocation5 + $0x938] sm:$0xff]
    %v1601 = vld [vmem:[#allocation5 + $0x9b0] sm:$0xff]
    %v1602 = vld [vmem:[#allocation5 + $0x9b8] sm:$0xff]
    %v1603 = vld [vmem:[#allocation5 + $0xa30] sm:$0xff]
    %v1604 = vld [vmem:[#allocation5 + $0xa38] sm:$0xff]
    %v1605 = vld [vmem:[#allocation5 + $0xab0] sm:$0xff]
    %v1606 = vld [vmem:[#allocation5 + $0xab8] sm:$0xff]
    %v1607 = vld [vmem:[#allocation5 + $0xb30] sm:$0xff]
    %v1608 = vld [vmem:[#allocation5 + $0xb38] sm:$0xff]
    %v1609 = vld [vmem:[#allocation5 + $0xbb0] sm:$0xff]
    %v1610 = vld [vmem:[#allocation5 + $0xbb8] sm:$0xff]
    %v1611 = vld [vmem:[#allocation5 + $0xc30] sm:$0xff]
    %v1612 = vld [vmem:[#allocation5 + $0xc38] sm:$0xff]
    %v1613 = vld [vmem:[#allocation5 + $0xcb0] sm:$0xff]
    %v1614 = vld [vmem:[#allocation5 + $0xcb8] sm:$0xff]
    %v1615 = vld [vmem:[#allocation5 + $0xd30] sm:$0xff]
    %v1616 = vld [vmem:[#allocation5 + $0xd38] sm:$0xff]
    %v1617 = vld [vmem:[#allocation5 + $0xdb0] sm:$0xff]
    %v1618 = vld [vmem:[#allocation5 + $0xdb8] sm:$0xff]
    %v1619 = vld [vmem:[#allocation5 + $0xe30] sm:$0xff]
    %v1620 = vld [vmem:[#allocation5 + $0xe38] sm:$0xff]
    %v1621 = vld [vmem:[#allocation5 + $0xeb0] sm:$0xff]
    %v1622 = vld [vmem:[#allocation5 + $0xeb8] sm:$0xff]
    %v1623 = vld [vmem:[#allocation5 + $0xf30] sm:$0xff]
    %v1624 = vld [vmem:[#allocation5 + $0xf38] sm:$0xff]
    %v1625 = vld [vmem:[#allocation5 + $0xfb0] sm:$0xff]
    %v1626 = vld [vmem:[#allocation5 + $0xfb8] sm:$0xff]
    %v1627 = vld [vmem:[#allocation7 + $0xc] sm:$0xf]
    %v1629 = vlaneseq
    %v1630 = vshrl.u32 %v1629, 7
    %v1631 = vsub.s32 0, %v1630
    %v1632 = vrot.slane %v1627, %v1631
    %v1633 = vlaneseq
    %v1634 = vshrl.u32 %v1633, 7
    %v1635 = vsub.s32 1, %v1634
    %v1636 = vrot.slane %v1627, %v1635
    %v1637 = vlaneseq
    %v1638 = vshrl.u32 %v1637, 7
    %v1639 = vsub.s32 2, %v1638
    %v1640 = vrot.slane %v1627, %v1639
    %v1641 = vlaneseq
    %v1642 = vshrl.u32 %v1641, 7
    %v1643 = vsub.s32 3, %v1642
    %v1644 = vrot.slane %v1627, %v1643
    %v1713 = vunpack.c.l.b16 %v1563
    %v1714 = vunpack.c.h.b16 %v1563
    %v1715 = vunpack.c.l.b16 %v1564
    %v1716 = vunpack.c.h.b16 %v1564
    %v1717 = vunpack.c.l.b16 %v1565
    %v1718 = vunpack.c.h.b16 %v1565
    %v1719 = vunpack.c.l.b16 %v1566
    %v1720 = vunpack.c.h.b16 %v1566
    %v1721 = vunpack.c.l.b16 %v1567
    %v1722 = vunpack.c.h.b16 %v1567
    %v1723 = vunpack.c.l.b16 %v1568
    %v1724 = vunpack.c.h.b16 %v1568
    %v1725 = vunpack.c.l.b16 %v1569
    %v1726 = vunpack.c.h.b16 %v1569
    %v1727 = vunpack.c.l.b16 %v1570
    %v1728 = vunpack.c.h.b16 %v1570
    %v1729 = vunpack.c.l.b16 %v1571
    %v1730 = vunpack.c.h.b16 %v1571
    %v1731 = vunpack.c.l.b16 %v1572
    %v1732 = vunpack.c.h.b16 %v1572
    %v1733 = vunpack.c.l.b16 %v1573
    %v1734 = vunpack.c.h.b16 %v1573
    %v1735 = vunpack.c.l.b16 %v1574
    %v1736 = vunpack.c.h.b16 %v1574
    %v1737 = vunpack.c.l.b16 %v1575
    %v1738 = vunpack.c.h.b16 %v1575
    %v1739 = vunpack.c.l.b16 %v1576
    %v1740 = vunpack.c.h.b16 %v1576
    %v1741 = vunpack.c.l.b16 %v1577
    %v1742 = vunpack.c.h.b16 %v1577
    %v1743 = vunpack.c.l.b16 %v1578
    %v1744 = vunpack.c.h.b16 %v1578
    %v1745 = vunpack.c.l.b16 %v1579
    %v1746 = vunpack.c.h.b16 %v1579
    %v1747 = vunpack.c.l.b16 %v1580
    %v1748 = vunpack.c.h.b16 %v1580
    %v1749 = vunpack.c.l.b16 %v1581
    %v1750 = vunpack.c.h.b16 %v1581
    %v1751 = vunpack.c.l.b16 %v1582
    %v1752 = vunpack.c.h.b16 %v1582
    %v1753 = vunpack.c.l.b16 %v1583
    %v1754 = vunpack.c.h.b16 %v1583
    %v1755 = vunpack.c.l.b16 %v1584
    %v1756 = vunpack.c.h.b16 %v1584
    %v1757 = vunpack.c.l.b16 %v1585
    %v1758 = vunpack.c.h.b16 %v1585
    %v1759 = vunpack.c.l.b16 %v1586
    %v1760 = vunpack.c.h.b16 %v1586
    %v1761 = vunpack.c.l.b16 %v1587
    %v1762 = vunpack.c.h.b16 %v1587
    %v1763 = vunpack.c.l.b16 %v1588
    %v1764 = vunpack.c.h.b16 %v1588
    %v1765 = vunpack.c.l.b16 %v1589
    %v1766 = vunpack.c.h.b16 %v1589
    %v1767 = vunpack.c.l.b16 %v1590
    %v1768 = vunpack.c.h.b16 %v1590
    %v1769 = vunpack.c.l.b16 %v1591
    %v1770 = vunpack.c.h.b16 %v1591
    %v1771 = vunpack.c.l.b16 %v1592
    %v1772 = vunpack.c.h.b16 %v1592
    %v1773 = vunpack.c.l.b16 %v1593
    %v1774 = vunpack.c.h.b16 %v1593
    %v1775 = vunpack.c.l.b16 %v1594
    %v1776 = vunpack.c.h.b16 %v1594
    %v1777 = vunpack.c.l.b16 %v1595
    %v1778 = vunpack.c.h.b16 %v1595
    %v1779 = vunpack.c.l.b16 %v1596
    %v1780 = vunpack.c.h.b16 %v1596
    %v1781 = vunpack.c.l.b16 %v1597
    %v1782 = vunpack.c.h.b16 %v1597
    %v1783 = vunpack.c.l.b16 %v1598
    %v1784 = vunpack.c.h.b16 %v1598
    %v1785 = vunpack.c.l.b16 %v1599
    %v1786 = vunpack.c.h.b16 %v1599
    %v1787 = vunpack.c.l.b16 %v1600
    %v1788 = vunpack.c.h.b16 %v1600
    %v1789 = vunpack.c.l.b16 %v1601
    %v1790 = vunpack.c.h.b16 %v1601
    %v1791 = vunpack.c.l.b16 %v1602
    %v1792 = vunpack.c.h.b16 %v1602
    %v1793 = vunpack.c.l.b16 %v1603
    %v1794 = vunpack.c.h.b16 %v1603
    %v1795 = vunpack.c.l.b16 %v1604
    %v1796 = vunpack.c.h.b16 %v1604
    %v1797 = vunpack.c.l.b16 %v1605
    %v1798 = vunpack.c.h.b16 %v1605
    %v1799 = vunpack.c.l.b16 %v1606
    %v1800 = vunpack.c.h.b16 %v1606
    %v1801 = vunpack.c.l.b16 %v1607
    %v1802 = vunpack.c.h.b16 %v1607
    %v1803 = vunpack.c.l.b16 %v1608
    %v1804 = vunpack.c.h.b16 %v1608
    %v1805 = vunpack.c.l.b16 %v1609
    %v1806 = vunpack.c.h.b16 %v1609
    %v1807 = vunpack.c.l.b16 %v1610
    %v1808 = vunpack.c.h.b16 %v1610
    %v1809 = vunpack.c.l.b16 %v1611
    %v1810 = vunpack.c.h.b16 %v1611
    %v1811 = vunpack.c.l.b16 %v1612
    %v1812 = vunpack.c.h.b16 %v1612
    %v1813 = vunpack.c.l.b16 %v1613
    %v1814 = vunpack.c.h.b16 %v1613
    %v1815 = vunpack.c.l.b16 %v1614
    %v1816 = vunpack.c.h.b16 %v1614
    %v1817 = vunpack.c.l.b16 %v1615
    %v1818 = vunpack.c.h.b16 %v1615
    %v1819 = vunpack.c.l.b16 %v1616
    %v1820 = vunpack.c.h.b16 %v1616
    %v1821 = vunpack.c.l.b16 %v1617
    %v1822 = vunpack.c.h.b16 %v1617
    %v1823 = vunpack.c.l.b16 %v1618
    %v1824 = vunpack.c.h.b16 %v1618
    %v1825 = vunpack.c.l.b16 %v1619
    %v1826 = vunpack.c.h.b16 %v1619
    %v1827 = vunpack.c.l.b16 %v1620
    %v1828 = vunpack.c.h.b16 %v1620
    %v1829 = vunpack.c.l.b16 %v1621
    %v1830 = vunpack.c.h.b16 %v1621
    %v1831 = vunpack.c.l.b16 %v1622
    %v1832 = vunpack.c.h.b16 %v1622
    %v1833 = vunpack.c.l.b16 %v1623
    %v1834 = vunpack.c.h.b16 %v1623
    %v1835 = vunpack.c.l.b16 %v1624
    %v1836 = vunpack.c.h.b16 %v1624
    %v1837 = vunpack.c.l.b16 %v1625
    %v1838 = vunpack.c.h.b16 %v1625
    %v1839 = vunpack.c.l.b16 %v1626
    %v1840 = vunpack.c.h.b16 %v1626
    %v1841 = vpack.c.b16 %v1717, %v1713
    %v1842 = vpack.c.b16 %v1718, %v1714
    %v1843 = vpack.c.b16 %v1719, %v1715
    %v1844 = vpack.c.b16 %v1720, %v1716
    %v1845 = vpack.c.b16 %v1725, %v1721
    %v1846 = vpack.c.b16 %v1726, %v1722
    %v1847 = vpack.c.b16 %v1727, %v1723
    %v1848 = vpack.c.b16 %v1728, %v1724
    %v1849 = vpack.c.b16 %v1733, %v1729
    %v1850 = vpack.c.b16 %v1734, %v1730
    %v1851 = vpack.c.b16 %v1735, %v1731
    %v1852 = vpack.c.b16 %v1736, %v1732
    %v1853 = vpack.c.b16 %v1741, %v1737
    %v1854 = vpack.c.b16 %v1742, %v1738
    %v1855 = vpack.c.b16 %v1743, %v1739
    %v1856 = vpack.c.b16 %v1744, %v1740
    %v1857 = vpack.c.b16 %v1749, %v1745
    %v1858 = vpack.c.b16 %v1750, %v1746
    %v1859 = vpack.c.b16 %v1751, %v1747
    %v1860 = vpack.c.b16 %v1752, %v1748
    %v1861 = vpack.c.b16 %v1757, %v1753
    %v1862 = vpack.c.b16 %v1758, %v1754
    %v1863 = vpack.c.b16 %v1759, %v1755
    %v1864 = vpack.c.b16 %v1760, %v1756
    %v1865 = vpack.c.b16 %v1765, %v1761
    %v1866 = vpack.c.b16 %v1766, %v1762
    %v1867 = vpack.c.b16 %v1767, %v1763
    %v1868 = vpack.c.b16 %v1768, %v1764
    %v1869 = vpack.c.b16 %v1773, %v1769
    %v1870 = vpack.c.b16 %v1774, %v1770
    %v1871 = vpack.c.b16 %v1775, %v1771
    %v1872 = vpack.c.b16 %v1776, %v1772
    %v1873 = vpack.c.b16 %v1781, %v1777
    %v1874 = vpack.c.b16 %v1782, %v1778
    %v1875 = vpack.c.b16 %v1783, %v1779
    %v1876 = vpack.c.b16 %v1784, %v1780
    %v1877 = vpack.c.b16 %v1789, %v1785
    %v1878 = vpack.c.b16 %v1790, %v1786
    %v1879 = vpack.c.b16 %v1791, %v1787
    %v1880 = vpack.c.b16 %v1792, %v1788
    %v1881 = vpack.c.b16 %v1797, %v1793
    %v1882 = vpack.c.b16 %v1798, %v1794
    %v1883 = vpack.c.b16 %v1799, %v1795
    %v1884 = vpack.c.b16 %v1800, %v1796
    %v1885 = vpack.c.b16 %v1805, %v1801
    %v1886 = vpack.c.b16 %v1806, %v1802
    %v1887 = vpack.c.b16 %v1807, %v1803
    %v1888 = vpack.c.b16 %v1808, %v1804
    %v1889 = vpack.c.b16 %v1813, %v1809
    %v1890 = vpack.c.b16 %v1814, %v1810
    %v1891 = vpack.c.b16 %v1815, %v1811
    %v1892 = vpack.c.b16 %v1816, %v1812
    %v1893 = vpack.c.b16 %v1821, %v1817
    %v1894 = vpack.c.b16 %v1822, %v1818
    %v1895 = vpack.c.b16 %v1823, %v1819
    %v1896 = vpack.c.b16 %v1824, %v1820
    %v1897 = vpack.c.b16 %v1829, %v1825
    %v1898 = vpack.c.b16 %v1830, %v1826
    %v1899 = vpack.c.b16 %v1831, %v1827
    %v1900 = vpack.c.b16 %v1832, %v1828
    %v1901 = vpack.c.b16 %v1837, %v1833
    %v1902 = vpack.c.b16 %v1838, %v1834
    %v1903 = vpack.c.b16 %v1839, %v1835
    %v1904 = vpack.c.b16 %v1840, %v1836
    %1969 = vmatprep.subr.bf16.mxu0 %v1842
    %1970 = vmatpush1.bf16.msra.mxu0 %v1841
    %1971 = vmatprep.subr.bf16.mxu0 %v1846
    %1972 = vmatpush1.bf16.msra.mxu0 %v1845
    %1973 = vmatprep.subr.bf16.mxu0 %v1850
    %1974 = vmatpush1.bf16.msra.mxu0 %v1849
    %1975 = vmatprep.subr.bf16.mxu0 %v1854
    %1976 = vmatpush1.bf16.msra.mxu0 %v1853
    %1977 = vmatprep.subr.bf16.mxu0 %v1858
    %1978 = vmatpush1.bf16.msra.mxu0 %v1857
    %1979 = vmatprep.subr.bf16.mxu0 %v1862
    %1980 = vmatpush1.bf16.msra.mxu0 %v1861
    %1981 = vmatprep.subr.bf16.mxu0 %v1866
    %1982 = vmatpush1.bf16.msra.mxu0 %v1865
    %1983 = vmatprep.subr.bf16.mxu0 %v1870
    %1984 = vmatpush1.bf16.msra.mxu0 %v1869
    %1985 = vmatprep.subr.bf16.mxu0 %v1874
    %1986 = vmatpush1.bf16.msra.mxu0 %v1873
    %1987 = vmatprep.subr.bf16.mxu0 %v1878
    %1988 = vmatpush1.bf16.msra.mxu0 %v1877
    %1989 = vmatprep.subr.bf16.mxu0 %v1882
    %1990 = vmatpush1.bf16.msra.mxu0 %v1881
    %1991 = vmatprep.subr.bf16.mxu0 %v1886
    %1992 = vmatpush1.bf16.msra.mxu0 %v1885
    %1993 = vmatprep.subr.bf16.mxu0 %v1890
    %1994 = vmatpush1.bf16.msra.mxu0 %v1889
    %1995 = vmatprep.subr.bf16.mxu0 %v1894
    %1996 = vmatpush1.bf16.msra.mxu0 %v1893
    %1997 = vmatprep.subr.bf16.mxu0 %v1898
    %1998 = vmatpush1.bf16.msra.mxu0 %v1897
    %1999 = vmatprep.subr.bf16.mxu0 %v1902
    %2000 = vmatpush1.bf16.msra.mxu0 %v1901
    %2001 = vmatprep.mubr.bf16.mxu0 %v174
    %2002 = vmatmul.mubr.bf16.gmra.mrb[0].mxu0 %v173
    %v2003 = vpop.f32.mrb[0].mxu0
    %v2004 = vadd.f32 %v1632, %v2003
    %v2005 = vpop.f32.mrb[0].mxu0
    %v2006 = vadd.f32 %v1636, %v2005
    %v2007 = vpop.f32.mrb[0].mxu0
    %v2008 = vpop.f32.mrb[0].mxu0
    %2009 = vdwg.mxu0
    %2010 = vmatprep.subr.bf16.mxu0 %v1844
    %2011 = vmatpush1.bf16.msra.mxu0 %v1843
    %2012 = vmatprep.subr.bf16.mxu0 %v1848
    %2013 = vmatpush1.bf16.msra.mxu0 %v1847
    %2014 = vmatprep.subr.bf16.mxu0 %v1852
    %2015 = vmatpush1.bf16.msra.mxu0 %v1851
    %2016 = vmatprep.subr.bf16.mxu0 %v1856
    %2017 = vmatpush1.bf16.msra.mxu0 %v1855
    %2018 = vmatprep.subr.bf16.mxu0 %v1860
    %2019 = vmatpush1.bf16.msra.mxu0 %v1859
    %2020 = vmatprep.subr.bf16.mxu0 %v1864
    %2021 = vmatpush1.bf16.msra.mxu0 %v1863
    %2022 = vmatprep.subr.bf16.mxu0 %v1868
    %2023 = vmatpush1.bf16.msra.mxu0 %v1867
    %2024 = vmatprep.subr.bf16.mxu0 %v1872
    %2025 = vmatpush1.bf16.msra.mxu0 %v1871
    %2026 = vmatprep.subr.bf16.mxu0 %v1876
    %2027 = vmatpush1.bf16.msra.mxu0 %v1875
    %2028 = vmatprep.subr.bf16.mxu0 %v1880
    %2029 = vmatpush1.bf16.msra.mxu0 %v1879
    %2030 = vmatprep.subr.bf16.mxu0 %v1884
    %2031 = vmatpush1.bf16.msra.mxu0 %v1883
    %2032 = vmatprep.subr.bf16.mxu0 %v1888
    %2033 = vmatpush1.bf16.msra.mxu0 %v1887
    %2034 = vmatprep.subr.bf16.mxu0 %v1892
    %2035 = vmatpush1.bf16.msra.mxu0 %v1891
    %2036 = vmatprep.subr.bf16.mxu0 %v1896
    %2037 = vmatpush1.bf16.msra.mxu0 %v1895
    %2038 = vmatprep.subr.bf16.mxu0 %v1900
    %2039 = vmatpush1.bf16.msra.mxu0 %v1899
    %2040 = vmatprep.subr.bf16.mxu0 %v1904
    %2041 = vmatpush1.bf16.msra.mxu0 %v1903
    %2042 = vmatprep.mubr.bf16.mxu0 %v174
    %2043 = vmatmul.mubr.bf16.gmra.mrb[0].mxu0 %v173
    %v2044 = vpop.f32.mrb[0].mxu0
    %v2045 = vadd.f32 %v1640, %v2044
    %v2046 = vpop.f32.mrb[0].mxu0
    %v2047 = vadd.f32 %v1644, %v2046
    %v2048 = vpop.f32.mrb[0].mxu0
    %v2049 = vpop.f32.mrb[0].mxu0
    %2050 = vdwg.mxu0
    %v2051 = vmax.f32 %v1559, %v2004
    %v2052 = vmax.f32 %v1560, %v2006
    %v2053 = vmax.f32 %v1561, %v2045
    %v2054 = vmax.f32 %v1562, %v2047
    %v2055 = vld [vmem:[#allocation5 + $0x40] sm:$0xff]
    %v2056 = vld [vmem:[#allocation5 + $0x48] sm:$0xff]
    %v2057 = vld [vmem:[#allocation5 + $0xc0] sm:$0xff]
    %v2058 = vld [vmem:[#allocation5 + $0xc8] sm:$0xff]
    %v2059 = vld [vmem:[#allocation5 + $0x140] sm:$0xff]
    %v2060 = vld [vmem:[#allocation5 + $0x148] sm:$0xff]
    %v2061 = vld [vmem:[#allocation5 + $0x1c0] sm:$0xff]
    %v2062 = vld [vmem:[#allocation5 + $0x1c8] sm:$0xff]
    %v2063 = vld [vmem:[#allocation5 + $0x240] sm:$0xff]
    %v2064 = vld [vmem:[#allocation5 + $0x248] sm:$0xff]
    %v2065 = vld [vmem:[#allocation5 + $0x2c0] sm:$0xff]
    %v2066 = vld [vmem:[#allocation5 + $0x2c8] sm:$0xff]
    %v2067 = vld [vmem:[#allocation5 + $0x340] sm:$0xff]
    %v2068 = vld [vmem:[#allocation5 + $0x348] sm:$0xff]
    %v2069 = vld [vmem:[#allocation5 + $0x3c0] sm:$0xff]
    %v2070 = vld [vmem:[#allocation5 + $0x3c8] sm:$0xff]
    %v2071 = vld [vmem:[#allocation5 + $0x440] sm:$0xff]
    %v2072 = vld [vmem:[#allocation5 + $0x448] sm:$0xff]
    %v2073 = vld [vmem:[#allocation5 + $0x4c0] sm:$0xff]
    %v2074 = vld [vmem:[#allocation5 + $0x4c8] sm:$0xff]
    %v2075 = vld [vmem:[#allocation5 + $0x540] sm:$0xff]
    %v2076 = vld [vmem:[#allocation5 + $0x548] sm:$0xff]
    %v2077 = vld [vmem:[#allocation5 + $0x5c0] sm:$0xff]
    %v2078 = vld [vmem:[#allocation5 + $0x5c8] sm:$0xff]
    %v2079 = vld [vmem:[#allocation5 + $0x640] sm:$0xff]
    %v2080 = vld [vmem:[#allocation5 + $0x648] sm:$0xff]
    %v2081 = vld [vmem:[#allocation5 + $0x6c0] sm:$0xff]
    %v2082 = vld [vmem:[#allocation5 + $0x6c8] sm:$0xff]
    %v2083 = vld [vmem:[#allocation5 + $0x740] sm:$0xff]
    %v2084 = vld [vmem:[#allocation5 + $0x748] sm:$0xff]
    %v2085 = vld [vmem:[#allocation5 + $0x7c0] sm:$0xff]
    %v2086 = vld [vmem:[#allocation5 + $0x7c8] sm:$0xff]
    %v2087 = vld [vmem:[#allocation5 + $0x840] sm:$0xff]
    %v2088 = vld [vmem:[#allocation5 + $0x848] sm:$0xff]
    %v2089 = vld [vmem:[#allocation5 + $0x8c0] sm:$0xff]
    %v2090 = vld [vmem:[#allocation5 + $0x8c8] sm:$0xff]
    %v2091 = vld [vmem:[#allocation5 + $0x940] sm:$0xff]
    %v2092 = vld [vmem:[#allocation5 + $0x948] sm:$0xff]
    %v2093 = vld [vmem:[#allocation5 + $0x9c0] sm:$0xff]
    %v2094 = vld [vmem:[#allocation5 + $0x9c8] sm:$0xff]
    %v2095 = vld [vmem:[#allocation5 + $0xa40] sm:$0xff]
    %v2096 = vld [vmem:[#allocation5 + $0xa48] sm:$0xff]
    %v2097 = vld [vmem:[#allocation5 + $0xac0] sm:$0xff]
    %v2098 = vld [vmem:[#allocation5 + $0xac8] sm:$0xff]
    %v2099 = vld [vmem:[#allocation5 + $0xb40] sm:$0xff]
    %v2100 = vld [vmem:[#allocation5 + $0xb48] sm:$0xff]
    %v2101 = vld [vmem:[#allocation5 + $0xbc0] sm:$0xff]
    %v2102 = vld [vmem:[#allocation5 + $0xbc8] sm:$0xff]
    %v2103 = vld [vmem:[#allocation5 + $0xc40] sm:$0xff]
    %v2104 = vld [vmem:[#allocation5 + $0xc48] sm:$0xff]
    %v2105 = vld [vmem:[#allocation5 + $0xcc0] sm:$0xff]
    %v2106 = vld [vmem:[#allocation5 + $0xcc8] sm:$0xff]
    %v2107 = vld [vmem:[#allocation5 + $0xd40] sm:$0xff]
    %v2108 = vld [vmem:[#allocation5 + $0xd48] sm:$0xff]
    %v2109 = vld [vmem:[#allocation5 + $0xdc0] sm:$0xff]
    %v2110 = vld [vmem:[#allocation5 + $0xdc8] sm:$0xff]
    %v2111 = vld [vmem:[#allocation5 + $0xe40] sm:$0xff]
    %v2112 = vld [vmem:[#allocation5 + $0xe48] sm:$0xff]
    %v2113 = vld [vmem:[#allocation5 + $0xec0] sm:$0xff]
    %v2114 = vld [vmem:[#allocation5 + $0xec8] sm:$0xff]
    %v2115 = vld [vmem:[#allocation5 + $0xf40] sm:$0xff]
    %v2116 = vld [vmem:[#allocation5 + $0xf48] sm:$0xff]
    %v2117 = vld [vmem:[#allocation5 + $0xfc0] sm:$0xff]
    %v2118 = vld [vmem:[#allocation5 + $0xfc8] sm:$0xff]
    %v2119 = vld [vmem:[#allocation7 + $0x10] sm:$0xf]
    %v2121 = vlaneseq
    %v2122 = vshrl.u32 %v2121, 7
    %v2123 = vsub.s32 0, %v2122
    %v2124 = vrot.slane %v2119, %v2123
    %v2125 = vlaneseq
    %v2126 = vshrl.u32 %v2125, 7
    %v2127 = vsub.s32 1, %v2126
    %v2128 = vrot.slane %v2119, %v2127
    %v2129 = vlaneseq
    %v2130 = vshrl.u32 %v2129, 7
    %v2131 = vsub.s32 2, %v2130
    %v2132 = vrot.slane %v2119, %v2131
    %v2133 = vlaneseq
    %v2134 = vshrl.u32 %v2133, 7
    %v2135 = vsub.s32 3, %v2134
    %v2136 = vrot.slane %v2119, %v2135
    %v2205 = vunpack.c.l.b16 %v2055
    %v2206 = vunpack.c.h.b16 %v2055
    %v2207 = vunpack.c.l.b16 %v2056
    %v2208 = vunpack.c.h.b16 %v2056
    %v2209 = vunpack.c.l.b16 %v2057
    %v2210 = vunpack.c.h.b16 %v2057
    %v2211 = vunpack.c.l.b16 %v2058
    %v2212 = vunpack.c.h.b16 %v2058
    %v2213 = vunpack.c.l.b16 %v2059
    %v2214 = vunpack.c.h.b16 %v2059
    %v2215 = vunpack.c.l.b16 %v2060
    %v2216 = vunpack.c.h.b16 %v2060
    %v2217 = vunpack.c.l.b16 %v2061
    %v2218 = vunpack.c.h.b16 %v2061
    %v2219 = vunpack.c.l.b16 %v2062
    %v2220 = vunpack.c.h.b16 %v2062
    %v2221 = vunpack.c.l.b16 %v2063
    %v2222 = vunpack.c.h.b16 %v2063
    %v2223 = vunpack.c.l.b16 %v2064
    %v2224 = vunpack.c.h.b16 %v2064
    %v2225 = vunpack.c.l.b16 %v2065
    %v2226 = vunpack.c.h.b16 %v2065
    %v2227 = vunpack.c.l.b16 %v2066
    %v2228 = vunpack.c.h.b16 %v2066
    %v2229 = vunpack.c.l.b16 %v2067
    %v2230 = vunpack.c.h.b16 %v2067
    %v2231 = vunpack.c.l.b16 %v2068
    %v2232 = vunpack.c.h.b16 %v2068
    %v2233 = vunpack.c.l.b16 %v2069
    %v2234 = vunpack.c.h.b16 %v2069
    %v2235 = vunpack.c.l.b16 %v2070
    %v2236 = vunpack.c.h.b16 %v2070
    %v2237 = vunpack.c.l.b16 %v2071
    %v2238 = vunpack.c.h.b16 %v2071
    %v2239 = vunpack.c.l.b16 %v2072
    %v2240 = vunpack.c.h.b16 %v2072
    %v2241 = vunpack.c.l.b16 %v2073
    %v2242 = vunpack.c.h.b16 %v2073
    %v2243 = vunpack.c.l.b16 %v2074
    %v2244 = vunpack.c.h.b16 %v2074
    %v2245 = vunpack.c.l.b16 %v2075
    %v2246 = vunpack.c.h.b16 %v2075
    %v2247 = vunpack.c.l.b16 %v2076
    %v2248 = vunpack.c.h.b16 %v2076
    %v2249 = vunpack.c.l.b16 %v2077
    %v2250 = vunpack.c.h.b16 %v2077
    %v2251 = vunpack.c.l.b16 %v2078
    %v2252 = vunpack.c.h.b16 %v2078
    %v2253 = vunpack.c.l.b16 %v2079
    %v2254 = vunpack.c.h.b16 %v2079
    %v2255 = vunpack.c.l.b16 %v2080
    %v2256 = vunpack.c.h.b16 %v2080
    %v2257 = vunpack.c.l.b16 %v2081
    %v2258 = vunpack.c.h.b16 %v2081
    %v2259 = vunpack.c.l.b16 %v2082
    %v2260 = vunpack.c.h.b16 %v2082
    %v2261 = vunpack.c.l.b16 %v2083
    %v2262 = vunpack.c.h.b16 %v2083
    %v2263 = vunpack.c.l.b16 %v2084
    %v2264 = vunpack.c.h.b16 %v2084
    %v2265 = vunpack.c.l.b16 %v2085
    %v2266 = vunpack.c.h.b16 %v2085
    %v2267 = vunpack.c.l.b16 %v2086
    %v2268 = vunpack.c.h.b16 %v2086
    %v2269 = vunpack.c.l.b16 %v2087
    %v2270 = vunpack.c.h.b16 %v2087
    %v2271 = vunpack.c.l.b16 %v2088
    %v2272 = vunpack.c.h.b16 %v2088
    %v2273 = vunpack.c.l.b16 %v2089
    %v2274 = vunpack.c.h.b16 %v2089
    %v2275 = vunpack.c.l.b16 %v2090
    %v2276 = vunpack.c.h.b16 %v2090
    %v2277 = vunpack.c.l.b16 %v2091
    %v2278 = vunpack.c.h.b16 %v2091
    %v2279 = vunpack.c.l.b16 %v2092
    %v2280 = vunpack.c.h.b16 %v2092
    %v2281 = vunpack.c.l.b16 %v2093
    %v2282 = vunpack.c.h.b16 %v2093
    %v2283 = vunpack.c.l.b16 %v2094
    %v2284 = vunpack.c.h.b16 %v2094
    %v2285 = vunpack.c.l.b16 %v2095
    %v2286 = vunpack.c.h.b16 %v2095
    %v2287 = vunpack.c.l.b16 %v2096
    %v2288 = vunpack.c.h.b16 %v2096
    %v2289 = vunpack.c.l.b16 %v2097
    %v2290 = vunpack.c.h.b16 %v2097
    %v2291 = vunpack.c.l.b16 %v2098
    %v2292 = vunpack.c.h.b16 %v2098
    %v2293 = vunpack.c.l.b16 %v2099
    %v2294 = vunpack.c.h.b16 %v2099
    %v2295 = vunpack.c.l.b16 %v2100
    %v2296 = vunpack.c.h.b16 %v2100
    %v2297 = vunpack.c.l.b16 %v2101
    %v2298 = vunpack.c.h.b16 %v2101
    %v2299 = vunpack.c.l.b16 %v2102
    %v2300 = vunpack.c.h.b16 %v2102
    %v2301 = vunpack.c.l.b16 %v2103
    %v2302 = vunpack.c.h.b16 %v2103
    %v2303 = vunpack.c.l.b16 %v2104
    %v2304 = vunpack.c.h.b16 %v2104
    %v2305 = vunpack.c.l.b16 %v2105
    %v2306 = vunpack.c.h.b16 %v2105
    %v2307 = vunpack.c.l.b16 %v2106
    %v2308 = vunpack.c.h.b16 %v2106
    %v2309 = vunpack.c.l.b16 %v2107
    %v2310 = vunpack.c.h.b16 %v2107
    %v2311 = vunpack.c.l.b16 %v2108
    %v2312 = vunpack.c.h.b16 %v2108
    %v2313 = vunpack.c.l.b16 %v2109
    %v2314 = vunpack.c.h.b16 %v2109
    %v2315 = vunpack.c.l.b16 %v2110
    %v2316 = vunpack.c.h.b16 %v2110
    %v2317 = vunpack.c.l.b16 %v2111
    %v2318 = vunpack.c.h.b16 %v2111
    %v2319 = vunpack.c.l.b16 %v2112
    %v2320 = vunpack.c.h.b16 %v2112
    %v2321 = vunpack.c.l.b16 %v2113
    %v2322 = vunpack.c.h.b16 %v2113
    %v2323 = vunpack.c.l.b16 %v2114
    %v2324 = vunpack.c.h.b16 %v2114
    %v2325 = vunpack.c.l.b16 %v2115
    %v2326 = vunpack.c.h.b16 %v2115
    %v2327 = vunpack.c.l.b16 %v2116
    %v2328 = vunpack.c.h.b16 %v2116
    %v2329 = vunpack.c.l.b16 %v2117
    %v2330 = vunpack.c.h.b16 %v2117
    %v2331 = vunpack.c.l.b16 %v2118
    %v2332 = vunpack.c.h.b16 %v2118
    %v2333 = vpack.c.b16 %v2209, %v2205
    %v2334 = vpack.c.b16 %v2210, %v2206
    %v2335 = vpack.c.b16 %v2211, %v2207
    %v2336 = vpack.c.b16 %v2212, %v2208
    %v2337 = vpack.c.b16 %v2217, %v2213
    %v2338 = vpack.c.b16 %v2218, %v2214
    %v2339 = vpack.c.b16 %v2219, %v2215
    %v2340 = vpack.c.b16 %v2220, %v2216
    %v2341 = vpack.c.b16 %v2225, %v2221
    %v2342 = vpack.c.b16 %v2226, %v2222
    %v2343 = vpack.c.b16 %v2227, %v2223
    %v2344 = vpack.c.b16 %v2228, %v2224
    %v2345 = vpack.c.b16 %v2233, %v2229
    %v2346 = vpack.c.b16 %v2234, %v2230
    %v2347 = vpack.c.b16 %v2235, %v2231
    %v2348 = vpack.c.b16 %v2236, %v2232
    %v2349 = vpack.c.b16 %v2241, %v2237
    %v2350 = vpack.c.b16 %v2242, %v2238
    %v2351 = vpack.c.b16 %v2243, %v2239
    %v2352 = vpack.c.b16 %v2244, %v2240
    %v2353 = vpack.c.b16 %v2249, %v2245
    %v2354 = vpack.c.b16 %v2250, %v2246
    %v2355 = vpack.c.b16 %v2251, %v2247
    %v2356 = vpack.c.b16 %v2252, %v2248
    %v2357 = vpack.c.b16 %v2257, %v2253
    %v2358 = vpack.c.b16 %v2258, %v2254
    %v2359 = vpack.c.b16 %v2259, %v2255
    %v2360 = vpack.c.b16 %v2260, %v2256
    %v2361 = vpack.c.b16 %v2265, %v2261
    %v2362 = vpack.c.b16 %v2266, %v2262
    %v2363 = vpack.c.b16 %v2267, %v2263
    %v2364 = vpack.c.b16 %v2268, %v2264
    %v2365 = vpack.c.b16 %v2273, %v2269
    %v2366 = vpack.c.b16 %v2274, %v2270
    %v2367 = vpack.c.b16 %v2275, %v2271
    %v2368 = vpack.c.b16 %v2276, %v2272
    %v2369 = vpack.c.b16 %v2281, %v2277
    %v2370 = vpack.c.b16 %v2282, %v2278
    %v2371 = vpack.c.b16 %v2283, %v2279
    %v2372 = vpack.c.b16 %v2284, %v2280
    %v2373 = vpack.c.b16 %v2289, %v2285
    %v2374 = vpack.c.b16 %v2290, %v2286
    %v2375 = vpack.c.b16 %v2291, %v2287
    %v2376 = vpack.c.b16 %v2292, %v2288
    %v2377 = vpack.c.b16 %v2297, %v2293
    %v2378 = vpack.c.b16 %v2298, %v2294
    %v2379 = vpack.c.b16 %v2299, %v2295
    %v2380 = vpack.c.b16 %v2300, %v2296
    %v2381 = vpack.c.b16 %v2305, %v2301
    %v2382 = vpack.c.b16 %v2306, %v2302
    %v2383 = vpack.c.b16 %v2307, %v2303
    %v2384 = vpack.c.b16 %v2308, %v2304
    %v2385 = vpack.c.b16 %v2313, %v2309
    %v2386 = vpack.c.b16 %v2314, %v2310
    %v2387 = vpack.c.b16 %v2315, %v2311
    %v2388 = vpack.c.b16 %v2316, %v2312
    %v2389 = vpack.c.b16 %v2321, %v2317
    %v2390 = vpack.c.b16 %v2322, %v2318
    %v2391 = vpack.c.b16 %v2323, %v2319
    %v2392 = vpack.c.b16 %v2324, %v2320
    %v2393 = vpack.c.b16 %v2329, %v2325
    %v2394 = vpack.c.b16 %v2330, %v2326
    %v2395 = vpack.c.b16 %v2331, %v2327
    %v2396 = vpack.c.b16 %v2332, %v2328
    %2461 = vmatprep.subr.bf16.mxu0 %v2334
    %2462 = vmatpush1.bf16.msra.mxu0 %v2333
    %2463 = vmatprep.subr.bf16.mxu0 %v2338
    %2464 = vmatpush1.bf16.msra.mxu0 %v2337
    %2465 = vmatprep.subr.bf16.mxu0 %v2342
    %2466 = vmatpush1.bf16.msra.mxu0 %v2341
    %2467 = vmatprep.subr.bf16.mxu0 %v2346
    %2468 = vmatpush1.bf16.msra.mxu0 %v2345
    %2469 = vmatprep.subr.bf16.mxu0 %v2350
    %2470 = vmatpush1.bf16.msra.mxu0 %v2349
    %2471 = vmatprep.subr.bf16.mxu0 %v2354
    %2472 = vmatpush1.bf16.msra.mxu0 %v2353
    %2473 = vmatprep.subr.bf16.mxu0 %v2358
    %2474 = vmatpush1.bf16.msra.mxu0 %v2357
    %2475 = vmatprep.subr.bf16.mxu0 %v2362
    %2476 = vmatpush1.bf16.msra.mxu0 %v2361
    %2477 = vmatprep.subr.bf16.mxu0 %v2366
    %2478 = vmatpush1.bf16.msra.mxu0 %v2365
    %2479 = vmatprep.subr.bf16.mxu0 %v2370
    %2480 = vmatpush1.bf16.msra.mxu0 %v2369
    %2481 = vmatprep.subr.bf16.mxu0 %v2374
    %2482 = vmatpush1.bf16.msra.mxu0 %v2373
    %2483 = vmatprep.subr.bf16.mxu0 %v2378
    %2484 = vmatpush1.bf16.msra.mxu0 %v2377
    %2485 = vmatprep.subr.bf16.mxu0 %v2382
    %2486 = vmatpush1.bf16.msra.mxu0 %v2381
    %2487 = vmatprep.subr.bf16.mxu0 %v2386
    %2488 = vmatpush1.bf16.msra.mxu0 %v2385
    %2489 = vmatprep.subr.bf16.mxu0 %v2390
    %2490 = vmatpush1.bf16.msra.mxu0 %v2389
    %2491 = vmatprep.subr.bf16.mxu0 %v2394
    %2492 = vmatpush1.bf16.msra.mxu0 %v2393
    %2493 = vmatprep.mubr.bf16.mxu0 %v174
    %2494 = vmatmul.mubr.bf16.gmra.mrb[0].mxu0 %v173
    %v2495 = vpop.f32.mrb[0].mxu0
    %v2496 = vadd.f32 %v2124, %v2495
    %v2497 = vpop.f32.mrb[0].mxu0
    %v2498 = vadd.f32 %v2128, %v2497
    %v2499 = vpop.f32.mrb[0].mxu0
    %v2500 = vpop.f32.mrb[0].mxu0
    %2501 = vdwg.mxu0
    %2502 = vmatprep.subr.bf16.mxu0 %v2336
    %2503 = vmatpush1.bf16.msra.mxu0 %v2335
    %2504 = vmatprep.subr.bf16.mxu0 %v2340
    %2505 = vmatpush1.bf16.msra.mxu0 %v2339
    %2506 = vmatprep.subr.bf16.mxu0 %v2344
    %2507 = vmatpush1.bf16.msra.mxu0 %v2343
    %2508 = vmatprep.subr.bf16.mxu0 %v2348
    %2509 = vmatpush1.bf16.msra.mxu0 %v2347
    %2510 = vmatprep.subr.bf16.mxu0 %v2352
    %2511 = vmatpush1.bf16.msra.mxu0 %v2351
    %2512 = vmatprep.subr.bf16.mxu0 %v2356
    %2513 = vmatpush1.bf16.msra.mxu0 %v2355
    %2514 = vmatprep.subr.bf16.mxu0 %v2360
    %2515 = vmatpush1.bf16.msra.mxu0 %v2359
    %2516 = vmatprep.subr.bf16.mxu0 %v2364
    %2517 = vmatpush1.bf16.msra.mxu0 %v2363
    %2518 = vmatprep.subr.bf16.mxu0 %v2368
    %2519 = vmatpush1.bf16.msra.mxu0 %v2367
    %2520 = vmatprep.subr.bf16.mxu0 %v2372
    %2521 = vmatpush1.bf16.msra.mxu0 %v2371
    %2522 = vmatprep.subr.bf16.mxu0 %v2376
    %2523 = vmatpush1.bf16.msra.mxu0 %v2375
    %2524 = vmatprep.subr.bf16.mxu0 %v2380
    %2525 = vmatpush1.bf16.msra.mxu0 %v2379
    %2526 = vmatprep.subr.bf16.mxu0 %v2384
    %2527 = vmatpush1.bf16.msra.mxu0 %v2383
    %2528 = vmatprep.subr.bf16.mxu0 %v2388
    %2529 = vmatpush1.bf16.msra.mxu0 %v2387
    %2530 = vmatprep.subr.bf16.mxu0 %v2392
    %2531 = vmatpush1.bf16.msra.mxu0 %v2391
    %2532 = vmatprep.subr.bf16.mxu0 %v2396
    %2533 = vmatpush1.bf16.msra.mxu0 %v2395
    %2534 = vmatprep.mubr.bf16.mxu0 %v174
    %2535 = vmatmul.mubr.bf16.gmra.mrb[0].mxu0 %v173
    %v2536 = vpop.f32.mrb[0].mxu0
    %v2537 = vadd.f32 %v2132, %v2536
    %v2538 = vpop.f32.mrb[0].mxu0
    %v2539 = vadd.f32 %v2136, %v2538
    %v2540 = vpop.f32.mrb[0].mxu0
    %v2541 = vpop.f32.mrb[0].mxu0
    %2542 = vdwg.mxu0
    %v2543 = vmax.f32 %v2051, %v2496
    %v2544 = vmax.f32 %v2052, %v2498
    %v2545 = vmax.f32 %v2053, %v2537
    %v2546 = vmax.f32 %v2054, %v2539
    %v2547 = vld [vmem:[#allocation5 + $0x50] sm:$0xff]
    %v2548 = vld [vmem:[#allocation5 + $0x58] sm:$0xff]
    %v2549 = vld [vmem:[#allocation5 + $0xd0] sm:$0xff]
    %v2550 = vld [vmem:[#allocation5 + $0xd8] sm:$0xff]
    %v2551 = vld [vmem:[#allocation5 + $0x150] sm:$0xff]
    %v2552 = vld [vmem:[#allocation5 + $0x158] sm:$0xff]
    %v2553 = vld [vmem:[#allocation5 + $0x1d0] sm:$0xff]
    %v2554 = vld [vmem:[#allocation5 + $0x1d8] sm:$0xff]
    %v2555 = vld [vmem:[#allocation5 + $0x250] sm:$0xff]
    %v2556 = vld [vmem:[#allocation5 + $0x258] sm:$0xff]
    %v2557 = vld [vmem:[#allocation5 + $0x2d0] sm:$0xff]
    %v2558 = vld [vmem:[#allocation5 + $0x2d8] sm:$0xff]
    %v2559 = vld [vmem:[#allocation5 + $0x350] sm:$0xff]
    %v2560 = vld [vmem:[#allocation5 + $0x358] sm:$0xff]
    %v2561 = vld [vmem:[#allocation5 + $0x3d0] sm:$0xff]
    %v2562 = vld [vmem:[#allocation5 + $0x3d8] sm:$0xff]
    %v2563 = vld [vmem:[#allocation5 + $0x450] sm:$0xff]
    %v2564 = vld [vmem:[#allocation5 + $0x458] sm:$0xff]
    %v2565 = vld [vmem:[#allocation5 + $0x4d0] sm:$0xff]
    %v2566 = vld [vmem:[#allocation5 + $0x4d8] sm:$0xff]
    %v2567 = vld [vmem:[#allocation5 + $0x550] sm:$0xff]
    %v2568 = vld [vmem:[#allocation5 + $0x558] sm:$0xff]
    %v2569 = vld [vmem:[#allocation5 + $0x5d0] sm:$0xff]
    %v2570 = vld [vmem:[#allocation5 + $0x5d8] sm:$0xff]
    %v2571 = vld [vmem:[#allocation5 + $0x650] sm:$0xff]
    %v2572 = vld [vmem:[#allocation5 + $0x658] sm:$0xff]
    %v2573 = vld [vmem:[#allocation5 + $0x6d0] sm:$0xff]
    %v2574 = vld [vmem:[#allocation5 + $0x6d8] sm:$0xff]
    %v2575 = vld [vmem:[#allocation5 + $0x750] sm:$0xff]
    %v2576 = vld [vmem:[#allocation5 + $0x758] sm:$0xff]
    %v2577 = vld [vmem:[#allocation5 + $0x7d0] sm:$0xff]
    %v2578 = vld [vmem:[#allocation5 + $0x7d8] sm:$0xff]
    %v2579 = vld [vmem:[#allocation5 + $0x850] sm:$0xff]
    %v2580 = vld [vmem:[#allocation5 + $0x858] sm:$0xff]
    %v2581 = vld [vmem:[#allocation5 + $0x8d0] sm:$0xff]
    %v2582 = vld [vmem:[#allocation5 + $0x8d8] sm:$0xff]
    %v2583 = vld [vmem:[#allocation5 + $0x950] sm:$0xff]
    %v2584 = vld [vmem:[#allocation5 + $0x958] sm:$0xff]
    %v2585 = vld [vmem:[#allocation5 + $0x9d0] sm:$0xff]
    %v2586 = vld [vmem:[#allocation5 + $0x9d8] sm:$0xff]
    %v2587 = vld [vmem:[#allocation5 + $0xa50] sm:$0xff]
    %v2588 = vld [vmem:[#allocation5 + $0xa58] sm:$0xff]
    %v2589 = vld [vmem:[#allocation5 + $0xad0] sm:$0xff]
    %v2590 = vld [vmem:[#allocation5 + $0xad8] sm:$0xff]
    %v2591 = vld [vmem:[#allocation5 + $0xb50] sm:$0xff]
    %v2592 = vld [vmem:[#allocation5 + $0xb58] sm:$0xff]
    %v2593 = vld [vmem:[#allocation5 + $0xbd0] sm:$0xff]
    %v2594 = vld [vmem:[#allocation5 + $0xbd8] sm:$0xff]
    %v2595 = vld [vmem:[#allocation5 + $0xc50] sm:$0xff]
    %v2596 = vld [vmem:[#allocation5 + $0xc58] sm:$0xff]
    %v2597 = vld [vmem:[#allocation5 + $0xcd0] sm:$0xff]
    %v2598 = vld [vmem:[#allocation5 + $0xcd8] sm:$0xff]
    %v2599 = vld [vmem:[#allocation5 + $0xd50] sm:$0xff]
    %v2600 = vld [vmem:[#allocation5 + $0xd58] sm:$0xff]
    %v2601 = vld [vmem:[#allocation5 + $0xdd0] sm:$0xff]
    %v2602 = vld [vmem:[#allocation5 + $0xdd8] sm:$0xff]
    %v2603 = vld [vmem:[#allocation5 + $0xe50] sm:$0xff]
    %v2604 = vld [vmem:[#allocation5 + $0xe58] sm:$0xff]
    %v2605 = vld [vmem:[#allocation5 + $0xed0] sm:$0xff]
    %v2606 = vld [vmem:[#allocation5 + $0xed8] sm:$0xff]
    %v2607 = vld [vmem:[#allocation5 + $0xf50] sm:$0xff]
    %v2608 = vld [vmem:[#allocation5 + $0xf58] sm:$0xff]
    %v2609 = vld [vmem:[#allocation5 + $0xfd0] sm:$0xff]
    %v2610 = vld [vmem:[#allocation5 + $0xfd8] sm:$0xff]
    %v2611 = vld [vmem:[#allocation7 + $0x14] sm:$0xf]
    %v2613 = vlaneseq
    %v2614 = vshrl.u32 %v2613, 7
    %v2615 = vsub.s32 0, %v2614
    %v2616 = vrot.slane %v2611, %v2615
    %v2617 = vlaneseq
    %v2618 = vshrl.u32 %v2617, 7
    %v2619 = vsub.s32 1, %v2618
    %v2620 = vrot.slane %v2611, %v2619
    %v2621 = vlaneseq
    %v2622 = vshrl.u32 %v2621, 7
    %v2623 = vsub.s32 2, %v2622
    %v2624 = vrot.slane %v2611, %v2623
    %v2625 = vlaneseq
    %v2626 = vshrl.u32 %v2625, 7
    %v2627 = vsub.s32 3, %v2626
    %v2628 = vrot.slane %v2611, %v2627
    %v2697 = vunpack.c.l.b16 %v2547
    %v2698 = vunpack.c.h.b16 %v2547
    %v2699 = vunpack.c.l.b16 %v2548
    %v2700 = vunpack.c.h.b16 %v2548
    %v2701 = vunpack.c.l.b16 %v2549
    %v2702 = vunpack.c.h.b16 %v2549
    %v2703 = vunpack.c.l.b16 %v2550
    %v2704 = vunpack.c.h.b16 %v2550
    %v2705 = vunpack.c.l.b16 %v2551
    %v2706 = vunpack.c.h.b16 %v2551
    %v2707 = vunpack.c.l.b16 %v2552
    %v2708 = vunpack.c.h.b16 %v2552
    %v2709 = vunpack.c.l.b16 %v2553
    %v2710 = vunpack.c.h.b16 %v2553
    %v2711 = vunpack.c.l.b16 %v2554
    %v2712 = vunpack.c.h.b16 %v2554
    %v2713 = vunpack.c.l.b16 %v2555
    %v2714 = vunpack.c.h.b16 %v2555
    %v2715 = vunpack.c.l.b16 %v2556
    %v2716 = vunpack.c.h.b16 %v2556
    %v2717 = vunpack.c.l.b16 %v2557
    %v2718 = vunpack.c.h.b16 %v2557
    %v2719 = vunpack.c.l.b16 %v2558
    %v2720 = vunpack.c.h.b16 %v2558
    %v2721 = vunpack.c.l.b16 %v2559
    %v2722 = vunpack.c.h.b16 %v2559
    %v2723 = vunpack.c.l.b16 %v2560
    %v2724 = vunpack.c.h.b16 %v2560
    %v2725 = vunpack.c.l.b16 %v2561
    %v2726 = vunpack.c.h.b16 %v2561
    %v2727 = vunpack.c.l.b16 %v2562
    %v2728 = vunpack.c.h.b16 %v2562
    %v2729 = vunpack.c.l.b16 %v2563
    %v2730 = vunpack.c.h.b16 %v2563
    %v2731 = vunpack.c.l.b16 %v2564
    %v2732 = vunpack.c.h.b16 %v2564
    %v2733 = vunpack.c.l.b16 %v2565
    %v2734 = vunpack.c.h.b16 %v2565
    %v2735 = vunpack.c.l.b16 %v2566
    %v2736 = vunpack.c.h.b16 %v2566
    %v2737 = vunpack.c.l.b16 %v2567
    %v2738 = vunpack.c.h.b16 %v2567
    %v2739 = vunpack.c.l.b16 %v2568
    %v2740 = vunpack.c.h.b16 %v2568
    %v2741 = vunpack.c.l.b16 %v2569
    %v2742 = vunpack.c.h.b16 %v2569
    %v2743 = vunpack.c.l.b16 %v2570
    %v2744 = vunpack.c.h.b16 %v2570
    %v2745 = vunpack.c.l.b16 %v2571
    %v2746 = vunpack.c.h.b16 %v2571
    %v2747 = vunpack.c.l.b16 %v2572
    %v2748 = vunpack.c.h.b16 %v2572
    %v2749 = vunpack.c.l.b16 %v2573
    %v2750 = vunpack.c.h.b16 %v2573
    %v2751 = vunpack.c.l.b16 %v2574
    %v2752 = vunpack.c.h.b16 %v2574
    %v2753 = vunpack.c.l.b16 %v2575
    %v2754 = vunpack.c.h.b16 %v2575
    %v2755 = vunpack.c.l.b16 %v2576
    %v2756 = vunpack.c.h.b16 %v2576
    %v2757 = vunpack.c.l.b16 %v2577
    %v2758 = vunpack.c.h.b16 %v2577
    %v2759 = vunpack.c.l.b16 %v2578
    %v2760 = vunpack.c.h.b16 %v2578
    %v2761 = vunpack.c.l.b16 %v2579
    %v2762 = vunpack.c.h.b16 %v2579
    %v2763 = vunpack.c.l.b16 %v2580
    %v2764 = vunpack.c.h.b16 %v2580
    %v2765 = vunpack.c.l.b16 %v2581
    %v2766 = vunpack.c.h.b16 %v2581
    %v2767 = vunpack.c.l.b16 %v2582
    %v2768 = vunpack.c.h.b16 %v2582
    %v2769 = vunpack.c.l.b16 %v2583
    %v2770 = vunpack.c.h.b16 %v2583
    %v2771 = vunpack.c.l.b16 %v2584
    %v2772 = vunpack.c.h.b16 %v2584
    %v2773 = vunpack.c.l.b16 %v2585
    %v2774 = vunpack.c.h.b16 %v2585
    %v2775 = vunpack.c.l.b16 %v2586
    %v2776 = vunpack.c.h.b16 %v2586
    %v2777 = vunpack.c.l.b16 %v2587
    %v2778 = vunpack.c.h.b16 %v2587
    %v2779 = vunpack.c.l.b16 %v2588
    %v2780 = vunpack.c.h.b16 %v2588
    %v2781 = vunpack.c.l.b16 %v2589
    %v2782 = vunpack.c.h.b16 %v2589
    %v2783 = vunpack.c.l.b16 %v2590
    %v2784 = vunpack.c.h.b16 %v2590
    %v2785 = vunpack.c.l.b16 %v2591
    %v2786 = vunpack.c.h.b16 %v2591
    %v2787 = vunpack.c.l.b16 %v2592
    %v2788 = vunpack.c.h.b16 %v2592
    %v2789 = vunpack.c.l.b16 %v2593
    %v2790 = vunpack.c.h.b16 %v2593
    %v2791 = vunpack.c.l.b16 %v2594
    %v2792 = vunpack.c.h.b16 %v2594
    %v2793 = vunpack.c.l.b16 %v2595
    %v2794 = vunpack.c.h.b16 %v2595
    %v2795 = vunpack.c.l.b16 %v2596
    %v2796 = vunpack.c.h.b16 %v2596
    %v2797 = vunpack.c.l.b16 %v2597
    %v2798 = vunpack.c.h.b16 %v2597
    %v2799 = vunpack.c.l.b16 %v2598
    %v2800 = vunpack.c.h.b16 %v2598
    %v2801 = vunpack.c.l.b16 %v2599
    %v2802 = vunpack.c.h.b16 %v2599
    %v2803 = vunpack.c.l.b16 %v2600
    %v2804 = vunpack.c.h.b16 %v2600
    %v2805 = vunpack.c.l.b16 %v2601
    %v2806 = vunpack.c.h.b16 %v2601
    %v2807 = vunpack.c.l.b16 %v2602
    %v2808 = vunpack.c.h.b16 %v2602
    %v2809 = vunpack.c.l.b16 %v2603
    %v2810 = vunpack.c.h.b16 %v2603
    %v2811 = vunpack.c.l.b16 %v2604
    %v2812 = vunpack.c.h.b16 %v2604
    %v2813 = vunpack.c.l.b16 %v2605
    %v2814 = vunpack.c.h.b16 %v2605
    %v2815 = vunpack.c.l.b16 %v2606
    %v2816 = vunpack.c.h.b16 %v2606
    %v2817 = vunpack.c.l.b16 %v2607
    %v2818 = vunpack.c.h.b16 %v2607
    %v2819 = vunpack.c.l.b16 %v2608
    %v2820 = vunpack.c.h.b16 %v2608
    %v2821 = vunpack.c.l.b16 %v2609
    %v2822 = vunpack.c.h.b16 %v2609
    %v2823 = vunpack.c.l.b16 %v2610
    %v2824 = vunpack.c.h.b16 %v2610
    %v2825 = vpack.c.b16 %v2701, %v2697
    %v2826 = vpack.c.b16 %v2702, %v2698
    %v2827 = vpack.c.b16 %v2703, %v2699
    %v2828 = vpack.c.b16 %v2704, %v2700
    %v2829 = vpack.c.b16 %v2709, %v2705
    %v2830 = vpack.c.b16 %v2710, %v2706
    %v2831 = vpack.c.b16 %v2711, %v2707
    %v2832 = vpack.c.b16 %v2712, %v2708
    %v2833 = vpack.c.b16 %v2717, %v2713
    %v2834 = vpack.c.b16 %v2718, %v2714
    %v2835 = vpack.c.b16 %v2719, %v2715
    %v2836 = vpack.c.b16 %v2720, %v2716
    %v2837 = vpack.c.b16 %v2725, %v2721
    %v2838 = vpack.c.b16 %v2726, %v2722
    %v2839 = vpack.c.b16 %v2727, %v2723
    %v2840 = vpack.c.b16 %v2728, %v2724
    %v2841 = vpack.c.b16 %v2733, %v2729
    %v2842 = vpack.c.b16 %v2734, %v2730
    %v2843 = vpack.c.b16 %v2735, %v2731
    %v2844 = vpack.c.b16 %v2736, %v2732
    %v2845 = vpack.c.b16 %v2741, %v2737
    %v2846 = vpack.c.b16 %v2742, %v2738
    %v2847 = vpack.c.b16 %v2743, %v2739
    %v2848 = vpack.c.b16 %v2744, %v2740
    %v2849 = vpack.c.b16 %v2749, %v2745
    %v2850 = vpack.c.b16 %v2750, %v2746
    %v2851 = vpack.c.b16 %v2751, %v2747
    %v2852 = vpack.c.b16 %v2752, %v2748
    %v2853 = vpack.c.b16 %v2757, %v2753
    %v2854 = vpack.c.b16 %v2758, %v2754
    %v2855 = vpack.c.b16 %v2759, %v2755
    %v2856 = vpack.c.b16 %v2760, %v2756
    %v2857 = vpack.c.b16 %v2765, %v2761
    %v2858 = vpack.c.b16 %v2766, %v2762
    %v2859 = vpack.c.b16 %v2767, %v2763
    %v2860 = vpack.c.b16 %v2768, %v2764
    %v2861 = vpack.c.b16 %v2773, %v2769
    %v2862 = vpack.c.b16 %v2774, %v2770
    %v2863 = vpack.c.b16 %v2775, %v2771
    %v2864 = vpack.c.b16 %v2776, %v2772
    %v2865 = vpack.c.b16 %v2781, %v2777
    %v2866 = vpack.c.b16 %v2782, %v2778
    %v2867 = vpack.c.b16 %v2783, %v2779
    %v2868 = vpack.c.b16 %v2784, %v2780
    %v2869 = vpack.c.b16 %v2789, %v2785
    %v2870 = vpack.c.b16 %v2790, %v2786
    %v2871 = vpack.c.b16 %v2791, %v2787
    %v2872 = vpack.c.b16 %v2792, %v2788
    %v2873 = vpack.c.b16 %v2797, %v2793
    %v2874 = vpack.c.b16 %v2798, %v2794
    %v2875 = vpack.c.b16 %v2799, %v2795
    %v2876 = vpack.c.b16 %v2800, %v2796
    %v2877 = vpack.c.b16 %v2805, %v2801
    %v2878 = vpack.c.b16 %v2806, %v2802
    %v2879 = vpack.c.b16 %v2807, %v2803
    %v2880 = vpack.c.b16 %v2808, %v2804
    %v2881 = vpack.c.b16 %v2813, %v2809
    %v2882 = vpack.c.b16 %v2814, %v2810
    %v2883 = vpack.c.b16 %v2815, %v2811
    %v2884 = vpack.c.b16 %v2816, %v2812
    %v2885 = vpack.c.b16 %v2821, %v2817
    %v2886 = vpack.c.b16 %v2822, %v2818
    %v2887 = vpack.c.b16 %v2823, %v2819
    %v2888 = vpack.c.b16 %v2824, %v2820
    %2953 = vmatprep.subr.bf16.mxu0 %v2826
    %2954 = vmatpush1.bf16.msra.mxu0 %v2825
    %2955 = vmatprep.subr.bf16.mxu0 %v2830
    %2956 = vmatpush1.bf16.msra.mxu0 %v2829
    %2957 = vmatprep.subr.bf16.mxu0 %v2834
    %2958 = vmatpush1.bf16.msra.mxu0 %v2833
    %2959 = vmatprep.subr.bf16.mxu0 %v2838
    %2960 = vmatpush1.bf16.msra.mxu0 %v2837
    %2961 = vmatprep.subr.bf16.mxu0 %v2842
    %2962 = vmatpush1.bf16.msra.mxu0 %v2841
    %2963 = vmatprep.subr.bf16.mxu0 %v2846
    %2964 = vmatpush1.bf16.msra.mxu0 %v2845
    %2965 = vmatprep.subr.bf16.mxu0 %v2850
    %2966 = vmatpush1.bf16.msra.mxu0 %v2849
    %2967 = vmatprep.subr.bf16.mxu0 %v2854
    %2968 = vmatpush1.bf16.msra.mxu0 %v2853
    %2969 = vmatprep.subr.bf16.mxu0 %v2858
    %2970 = vmatpush1.bf16.msra.mxu0 %v2857
    %2971 = vmatprep.subr.bf16.mxu0 %v2862
    %2972 = vmatpush1.bf16.msra.mxu0 %v2861
    %2973 = vmatprep.subr.bf16.mxu0 %v2866
    %2974 = vmatpush1.bf16.msra.mxu0 %v2865
    %2975 = vmatprep.subr.bf16.mxu0 %v2870
    %2976 = vmatpush1.bf16.msra.mxu0 %v2869
    %2977 = vmatprep.subr.bf16.mxu0 %v2874
    %2978 = vmatpush1.bf16.msra.mxu0 %v2873
    %2979 = vmatprep.subr.bf16.mxu0 %v2878
    %2980 = vmatpush1.bf16.msra.mxu0 %v2877
    %2981 = vmatprep.subr.bf16.mxu0 %v2882
    %2982 = vmatpush1.bf16.msra.mxu0 %v2881
    %2983 = vmatprep.subr.bf16.mxu0 %v2886
    %2984 = vmatpush1.bf16.msra.mxu0 %v2885
    %2985 = vmatprep.mubr.bf16.mxu0 %v174
    %2986 = vmatmul.mubr.bf16.gmra.mrb[0].mxu0 %v173
    %v2987 = vpop.f32.mrb[0].mxu0
    %v2988 = vadd.f32 %v2616, %v2987
    %v2989 = vpop.f32.mrb[0].mxu0
    %v2990 = vadd.f32 %v2620, %v2989
    %v2991 = vpop.f32.mrb[0].mxu0
    %v2992 = vpop.f32.mrb[0].mxu0
    %2993 = vdwg.mxu0
    %2994 = vmatprep.subr.bf16.mxu0 %v2828
    %2995 = vmatpush1.bf16.msra.mxu0 %v2827
    %2996 = vmatprep.subr.bf16.mxu0 %v2832
    %2997 = vmatpush1.bf16.msra.mxu0 %v2831
    %2998 = vmatprep.subr.bf16.mxu0 %v2836
    %2999 = vmatpush1.bf16.msra.mxu0 %v2835
    %3000 = vmatprep.subr.bf16.mxu0 %v2840
    %3001 = vmatpush1.bf16.msra.mxu0 %v2839
    %3002 = vmatprep.subr.bf16.mxu0 %v2844
    %3003 = vmatpush1.bf16.msra.mxu0 %v2843
    %3004 = vmatprep.subr.bf16.mxu0 %v2848
    %3005 = vmatpush1.bf16.msra.mxu0 %v2847
    %3006 = vmatprep.subr.bf16.mxu0 %v2852
    %3007 = vmatpush1.bf16.msra.mxu0 %v2851
    %3008 = vmatprep.subr.bf16.mxu0 %v2856
    %3009 = vmatpush1.bf16.msra.mxu0 %v2855
    %3010 = vmatprep.subr.bf16.mxu0 %v2860
    %3011 = vmatpush1.bf16.msra.mxu0 %v2859
    %3012 = vmatprep.subr.bf16.mxu0 %v2864
    %3013 = vmatpush1.bf16.msra.mxu0 %v2863
    %3014 = vmatprep.subr.bf16.mxu0 %v2868
    %3015 = vmatpush1.bf16.msra.mxu0 %v2867
    %3016 = vmatprep.subr.bf16.mxu0 %v2872
    %3017 = vmatpush1.bf16.msra.mxu0 %v2871
    %3018 = vmatprep.subr.bf16.mxu0 %v2876
    %3019 = vmatpush1.bf16.msra.mxu0 %v2875
    %3020 = vmatprep.subr.bf16.mxu0 %v2880
    %3021 = vmatpush1.bf16.msra.mxu0 %v2879
    %3022 = vmatprep.subr.bf16.mxu0 %v2884
    %3023 = vmatpush1.bf16.msra.mxu0 %v2883
    %3024 = vmatprep.subr.bf16.mxu0 %v2888
    %3025 = vmatpush1.bf16.msra.mxu0 %v2887
    %3026 = vmatprep.mubr.bf16.mxu0 %v174
    %3027 = vmatmul.mubr.bf16.gmra.mrb[0].mxu0 %v173
    %v3028 = vpop.f32.mrb[0].mxu0
    %v3029 = vadd.f32 %v2624, %v3028
    %v3030 = vpop.f32.mrb[0].mxu0
    %v3031 = vadd.f32 %v2628, %v3030
    %v3032 = vpop.f32.mrb[0].mxu0
    %v3033 = vpop.f32.mrb[0].mxu0
    %3034 = vdwg.mxu0
    %v3035 = vmax.f32 %v2543, %v2988
    %v3036 = vmax.f32 %v2544, %v2990
    %v3037 = vmax.f32 %v2545, %v3029
    %v3038 = vmax.f32 %v2546, %v3031
    %v3039 = vld [vmem:[#allocation5 + $0x60] sm:$0xff]
    %v3040 = vld [vmem:[#allocation5 + $0x68] sm:$0xff]
    %v3041 = vld [vmem:[#allocation5 + $0xe0] sm:$0xff]
    %v3042 = vld [vmem:[#allocation5 + $0xe8] sm:$0xff]
    %v3043 = vld [vmem:[#allocation5 + $0x160] sm:$0xff]
    %v3044 = vld [vmem:[#allocation5 + $0x168] sm:$0xff]
    %v3045 = vld [vmem:[#allocation5 + $0x1e0] sm:$0xff]
    %v3046 = vld [vmem:[#allocation5 + $0x1e8] sm:$0xff]
    %v3047 = vld [vmem:[#allocation5 + $0x260] sm:$0xff]
    %v3048 = vld [vmem:[#allocation5 + $0x268] sm:$0xff]
    %v3049 = vld [vmem:[#allocation5 + $0x2e0] sm:$0xff]
    %v3050 = vld [vmem:[#allocation5 + $0x2e8] sm:$0xff]
    %v3051 = vld [vmem:[#allocation5 + $0x360] sm:$0xff]
    %v3052 = vld [vmem:[#allocation5 + $0x368] sm:$0xff]
    %v3053 = vld [vmem:[#allocation5 + $0x3e0] sm:$0xff]
    %v3054 = vld [vmem:[#allocation5 + $0x3e8] sm:$0xff]
    %v3055 = vld [vmem:[#allocation5 + $0x460] sm:$0xff]
    %v3056 = vld [vmem:[#allocation5 + $0x468] sm:$0xff]
    %v3057 = vld [vmem:[#allocation5 + $0x4e0] sm:$0xff]
    %v3058 = vld [vmem:[#allocation5 + $0x4e8] sm:$0xff]
    %v3059 = vld [vmem:[#allocation5 + $0x560] sm:$0xff]
    %v3060 = vld [vmem:[#allocation5 + $0x568] sm:$0xff]
    %v3061 = vld [vmem:[#allocation5 + $0x5e0] sm:$0xff]
    %v3062 = vld [vmem:[#allocation5 + $0x5e8] sm:$0xff]
    %v3063 = vld [vmem:[#allocation5 + $0x660] sm:$0xff]
    %v3064 = vld [vmem:[#allocation5 + $0x668] sm:$0xff]
    %v3065 = vld [vmem:[#allocation5 + $0x6e0] sm:$0xff]
    %v3066 = vld [vmem:[#allocation5 + $0x6e8] sm:$0xff]
    %v3067 = vld [vmem:[#allocation5 + $0x760] sm:$0xff]
    %v3068 = vld [vmem:[#allocation5 + $0x768] sm:$0xff]
    %v3069 = vld [vmem:[#allocation5 + $0x7e0] sm:$0xff]
    %v3070 = vld [vmem:[#allocation5 + $0x7e8] sm:$0xff]
    %v3071 = vld [vmem:[#allocation5 + $0x860] sm:$0xff]
    %v3072 = vld [vmem:[#allocation5 + $0x868] sm:$0xff]
    %v3073 = vld [vmem:[#allocation5 + $0x8e0] sm:$0xff]
    %v3074 = vld [vmem:[#allocation5 + $0x8e8] sm:$0xff]
    %v3075 = vld [vmem:[#allocation5 + $0x960] sm:$0xff]
    %v3076 = vld [vmem:[#allocation5 + $0x968] sm:$0xff]
    %v3077 = vld [vmem:[#allocation5 + $0x9e0] sm:$0xff]
    %v3078 = vld [vmem:[#allocation5 + $0x9e8] sm:$0xff]
    %v3079 = vld [vmem:[#allocation5 + $0xa60] sm:$0xff]
    %v3080 = vld [vmem:[#allocation5 + $0xa68] sm:$0xff]
    %v3081 = vld [vmem:[#allocation5 + $0xae0] sm:$0xff]
    %v3082 = vld [vmem:[#allocation5 + $0xae8] sm:$0xff]
    %v3083 = vld [vmem:[#allocation5 + $0xb60] sm:$0xff]
    %v3084 = vld [vmem:[#allocation5 + $0xb68] sm:$0xff]
    %v3085 = vld [vmem:[#allocation5 + $0xbe0] sm:$0xff]
    %v3086 = vld [vmem:[#allocation5 + $0xbe8] sm:$0xff]
    %v3087 = vld [vmem:[#allocation5 + $0xc60] sm:$0xff]
    %v3088 = vld [vmem:[#allocation5 + $0xc68] sm:$0xff]
    %v3089 = vld [vmem:[#allocation5 + $0xce0] sm:$0xff]
    %v3090 = vld [vmem:[#allocation5 + $0xce8] sm:$0xff]
    %v3091 = vld [vmem:[#allocation5 + $0xd60] sm:$0xff]
    %v3092 = vld [vmem:[#allocation5 + $0xd68] sm:$0xff]
    %v3093 = vld [vmem:[#allocation5 + $0xde0] sm:$0xff]
    %v3094 = vld [vmem:[#allocation5 + $0xde8] sm:$0xff]
    %v3095 = vld [vmem:[#allocation5 + $0xe60] sm:$0xff]
    %v3096 = vld [vmem:[#allocation5 + $0xe68] sm:$0xff]
    %v3097 = vld [vmem:[#allocation5 + $0xee0] sm:$0xff]
    %v3098 = vld [vmem:[#allocation5 + $0xee8] sm:$0xff]
    %v3099 = vld [vmem:[#allocation5 + $0xf60] sm:$0xff]
    %v3100 = vld [vmem:[#allocation5 + $0xf68] sm:$0xff]
    %v3101 = vld [vmem:[#allocation5 + $0xfe0] sm:$0xff]
    %v3102 = vld [vmem:[#allocation5 + $0xfe8] sm:$0xff]
    %v3103 = vld [vmem:[#allocation7 + $0x18] sm:$0xf]
    %v3105 = vlaneseq
    %v3106 = vshrl.u32 %v3105, 7
    %v3107 = vsub.s32 0, %v3106
    %v3108 = vrot.slane %v3103, %v3107
    %v3109 = vlaneseq
    %v3110 = vshrl.u32 %v3109, 7
    %v3111 = vsub.s32 1, %v3110
    %v3112 = vrot.slane %v3103, %v3111
    %v3113 = vlaneseq
    %v3114 = vshrl.u32 %v3113, 7
    %v3115 = vsub.s32 2, %v3114
    %v3116 = vrot.slane %v3103, %v3115
    %v3117 = vlaneseq
    %v3118 = vshrl.u32 %v3117, 7
    %v3119 = vsub.s32 3, %v3118
    %v3120 = vrot.slane %v3103, %v3119
    %v3189 = vunpack.c.l.b16 %v3039
    %v3190 = vunpack.c.h.b16 %v3039
    %v3191 = vunpack.c.l.b16 %v3040
    %v3192 = vunpack.c.h.b16 %v3040
    %v3193 = vunpack.c.l.b16 %v3041
    %v3194 = vunpack.c.h.b16 %v3041
    %v3195 = vunpack.c.l.b16 %v3042
    %v3196 = vunpack.c.h.b16 %v3042
    %v3197 = vunpack.c.l.b16 %v3043
    %v3198 = vunpack.c.h.b16 %v3043
    %v3199 = vunpack.c.l.b16 %v3044
    %v3200 = vunpack.c.h.b16 %v3044
    %v3201 = vunpack.c.l.b16 %v3045
    %v3202 = vunpack.c.h.b16 %v3045
    %v3203 = vunpack.c.l.b16 %v3046
    %v3204 = vunpack.c.h.b16 %v3046
    %v3205 = vunpack.c.l.b16 %v3047
    %v3206 = vunpack.c.h.b16 %v3047
    %v3207 = vunpack.c.l.b16 %v3048
    %v3208 = vunpack.c.h.b16 %v3048
    %v3209 = vunpack.c.l.b16 %v3049
    %v3210 = vunpack.c.h.b16 %v3049
    %v3211 = vunpack.c.l.b16 %v3050
    %v3212 = vunpack.c.h.b16 %v3050
    %v3213 = vunpack.c.l.b16 %v3051
    %v3214 = vunpack.c.h.b16 %v3051
    %v3215 = vunpack.c.l.b16 %v3052
    %v3216 = vunpack.c.h.b16 %v3052
    %v3217 = vunpack.c.l.b16 %v3053
    %v3218 = vunpack.c.h.b16 %v3053
    %v3219 = vunpack.c.l.b16 %v3054
    %v3220 = vunpack.c.h.b16 %v3054
    %v3221 = vunpack.c.l.b16 %v3055
    %v3222 = vunpack.c.h.b16 %v3055
    %v3223 = vunpack.c.l.b16 %v3056
    %v3224 = vunpack.c.h.b16 %v3056
    %v3225 = vunpack.c.l.b16 %v3057
    %v3226 = vunpack.c.h.b16 %v3057
    %v3227 = vunpack.c.l.b16 %v3058
    %v3228 = vunpack.c.h.b16 %v3058
    %v3229 = vunpack.c.l.b16 %v3059
    %v3230 = vunpack.c.h.b16 %v3059
    %v3231 = vunpack.c.l.b16 %v3060
    %v3232 = vunpack.c.h.b16 %v3060
    %v3233 = vunpack.c.l.b16 %v3061
    %v3234 = vunpack.c.h.b16 %v3061
    %v3235 = vunpack.c.l.b16 %v3062
    %v3236 = vunpack.c.h.b16 %v3062
    %v3237 = vunpack.c.l.b16 %v3063
    %v3238 = vunpack.c.h.b16 %v3063
    %v3239 = vunpack.c.l.b16 %v3064
    %v3240 = vunpack.c.h.b16 %v3064
    %v3241 = vunpack.c.l.b16 %v3065
    %v3242 = vunpack.c.h.b16 %v3065
    %v3243 = vunpack.c.l.b16 %v3066
    %v3244 = vunpack.c.h.b16 %v3066
    %v3245 = vunpack.c.l.b16 %v3067
    %v3246 = vunpack.c.h.b16 %v3067
    %v3247 = vunpack.c.l.b16 %v3068
    %v3248 = vunpack.c.h.b16 %v3068
    %v3249 = vunpack.c.l.b16 %v3069
    %v3250 = vunpack.c.h.b16 %v3069
    %v3251 = vunpack.c.l.b16 %v3070
    %v3252 = vunpack.c.h.b16 %v3070
    %v3253 = vunpack.c.l.b16 %v3071
    %v3254 = vunpack.c.h.b16 %v3071
    %v3255 = vunpack.c.l.b16 %v3072
    %v3256 = vunpack.c.h.b16 %v3072
    %v3257 = vunpack.c.l.b16 %v3073
    %v3258 = vunpack.c.h.b16 %v3073
    %v3259 = vunpack.c.l.b16 %v3074
    %v3260 = vunpack.c.h.b16 %v3074
    %v3261 = vunpack.c.l.b16 %v3075
    %v3262 = vunpack.c.h.b16 %v3075
    %v3263 = vunpack.c.l.b16 %v3076
    %v3264 = vunpack.c.h.b16 %v3076
    %v3265 = vunpack.c.l.b16 %v3077
    %v3266 = vunpack.c.h.b16 %v3077
    %v3267 = vunpack.c.l.b16 %v3078
    %v3268 = vunpack.c.h.b16 %v3078
    %v3269 = vunpack.c.l.b16 %v3079
    %v3270 = vunpack.c.h.b16 %v3079
    %v3271 = vunpack.c.l.b16 %v3080
    %v3272 = vunpack.c.h.b16 %v3080
    %v3273 = vunpack.c.l.b16 %v3081
    %v3274 = vunpack.c.h.b16 %v3081
    %v3275 = vunpack.c.l.b16 %v3082
    %v3276 = vunpack.c.h.b16 %v3082
    %v3277 = vunpack.c.l.b16 %v3083
    %v3278 = vunpack.c.h.b16 %v3083
    %v3279 = vunpack.c.l.b16 %v3084
    %v3280 = vunpack.c.h.b16 %v3084
    %v3281 = vunpack.c.l.b16 %v3085
    %v3282 = vunpack.c.h.b16 %v3085
    %v3283 = vunpack.c.l.b16 %v3086
    %v3284 = vunpack.c.h.b16 %v3086
    %v3285 = vunpack.c.l.b16 %v3087
    %v3286 = vunpack.c.h.b16 %v3087
    %v3287 = vunpack.c.l.b16 %v3088
    %v3288 = vunpack.c.h.b16 %v3088
    %v3289 = vunpack.c.l.b16 %v3089
    %v3290 = vunpack.c.h.b16 %v3089
    %v3291 = vunpack.c.l.b16 %v3090
    %v3292 = vunpack.c.h.b16 %v3090
    %v3293 = vunpack.c.l.b16 %v3091
    %v3294 = vunpack.c.h.b16 %v3091
    %v3295 = vunpack.c.l.b16 %v3092
    %v3296 = vunpack.c.h.b16 %v3092
    %v3297 = vunpack.c.l.b16 %v3093
    %v3298 = vunpack.c.h.b16 %v3093
    %v3299 = vunpack.c.l.b16 %v3094
    %v3300 = vunpack.c.h.b16 %v3094
    %v3301 = vunpack.c.l.b16 %v3095
    %v3302 = vunpack.c.h.b16 %v3095
    %v3303 = vunpack.c.l.b16 %v3096
    %v3304 = vunpack.c.h.b16 %v3096
    %v3305 = vunpack.c.l.b16 %v3097
    %v3306 = vunpack.c.h.b16 %v3097
    %v3307 = vunpack.c.l.b16 %v3098
    %v3308 = vunpack.c.h.b16 %v3098
    %v3309 = vunpack.c.l.b16 %v3099
    %v3310 = vunpack.c.h.b16 %v3099
    %v3311 = vunpack.c.l.b16 %v3100
    %v3312 = vunpack.c.h.b16 %v3100
    %v3313 = vunpack.c.l.b16 %v3101
    %v3314 = vunpack.c.h.b16 %v3101
    %v3315 = vunpack.c.l.b16 %v3102
    %v3316 = vunpack.c.h.b16 %v3102
    %v3317 = vpack.c.b16 %v3193, %v3189
    %v3318 = vpack.c.b16 %v3194, %v3190
    %v3319 = vpack.c.b16 %v3195, %v3191
    %v3320 = vpack.c.b16 %v3196, %v3192
    %v3321 = vpack.c.b16 %v3201, %v3197
    %v3322 = vpack.c.b16 %v3202, %v3198
    %v3323 = vpack.c.b16 %v3203, %v3199
    %v3324 = vpack.c.b16 %v3204, %v3200
    %v3325 = vpack.c.b16 %v3209, %v3205
    %v3326 = vpack.c.b16 %v3210, %v3206
    %v3327 = vpack.c.b16 %v3211, %v3207
    %v3328 = vpack.c.b16 %v3212, %v3208
    %v3329 = vpack.c.b16 %v3217, %v3213
    %v3330 = vpack.c.b16 %v3218, %v3214
    %v3331 = vpack.c.b16 %v3219, %v3215
    %v3332 = vpack.c.b16 %v3220, %v3216
    %v3333 = vpack.c.b16 %v3225, %v3221
    %v3334 = vpack.c.b16 %v3226, %v3222
    %v3335 = vpack.c.b16 %v3227, %v3223
    %v3336 = vpack.c.b16 %v3228, %v3224
    %v3337 = vpack.c.b16 %v3233, %v3229
    %v3338 = vpack.c.b16 %v3234, %v3230
    %v3339 = vpack.c.b16 %v3235, %v3231
    %v3340 = vpack.c.b16 %v3236, %v3232
    %v3341 = vpack.c.b16 %v3241, %v3237
    %v3342 = vpack.c.b16 %v3242, %v3238
    %v3343 = vpack.c.b16 %v3243, %v3239
    %v3344 = vpack.c.b16 %v3244, %v3240
    %v3345 = vpack.c.b16 %v3249, %v3245
    %v3346 = vpack.c.b16 %v3250, %v3246
    %v3347 = vpack.c.b16 %v3251, %v3247
    %v3348 = vpack.c.b16 %v3252, %v3248
    %v3349 = vpack.c.b16 %v3257, %v3253
    %v3350 = vpack.c.b16 %v3258, %v3254
    %v3351 = vpack.c.b16 %v3259, %v3255
    %v3352 = vpack.c.b16 %v3260, %v3256
    %v3353 = vpack.c.b16 %v3265, %v3261
    %v3354 = vpack.c.b16 %v3266, %v3262
    %v3355 = vpack.c.b16 %v3267, %v3263
    %v3356 = vpack.c.b16 %v3268, %v3264
    %v3357 = vpack.c.b16 %v3273, %v3269
    %v3358 = vpack.c.b16 %v3274, %v3270
    %v3359 = vpack.c.b16 %v3275, %v3271
    %v3360 = vpack.c.b16 %v3276, %v3272
    %v3361 = vpack.c.b16 %v3281, %v3277
    %v3362 = vpack.c.b16 %v3282, %v3278
    %v3363 = vpack.c.b16 %v3283, %v3279
    %v3364 = vpack.c.b16 %v3284, %v3280
    %v3365 = vpack.c.b16 %v3289, %v3285
    %v3366 = vpack.c.b16 %v3290, %v3286
    %v3367 = vpack.c.b16 %v3291, %v3287
    %v3368 = vpack.c.b16 %v3292, %v3288
    %v3369 = vpack.c.b16 %v3297, %v3293
    %v3370 = vpack.c.b16 %v3298, %v3294
    %v3371 = vpack.c.b16 %v3299, %v3295
    %v3372 = vpack.c.b16 %v3300, %v3296
    %v3373 = vpack.c.b16 %v3305, %v3301
    %v3374 = vpack.c.b16 %v3306, %v3302
    %v3375 = vpack.c.b16 %v3307, %v3303
    %v3376 = vpack.c.b16 %v3308, %v3304
    %v3377 = vpack.c.b16 %v3313, %v3309
    %v3378 = vpack.c.b16 %v3314, %v3310
    %v3379 = vpack.c.b16 %v3315, %v3311
    %v3380 = vpack.c.b16 %v3316, %v3312
    %3445 = vmatprep.subr.bf16.mxu0 %v3318
    %3446 = vmatpush1.bf16.msra.mxu0 %v3317
    %3447 = vmatprep.subr.bf16.mxu0 %v3322
    %3448 = vmatpush1.bf16.msra.mxu0 %v3321
    %3449 = vmatprep.subr.bf16.mxu0 %v3326
    %3450 = vmatpush1.bf16.msra.mxu0 %v3325
    %3451 = vmatprep.subr.bf16.mxu0 %v3330
    %3452 = vmatpush1.bf16.msra.mxu0 %v3329
    %3453 = vmatprep.subr.bf16.mxu0 %v3334
    %3454 = vmatpush1.bf16.msra.mxu0 %v3333
    %3455 = vmatprep.subr.bf16.mxu0 %v3338
    %3456 = vmatpush1.bf16.msra.mxu0 %v3337
    %3457 = vmatprep.subr.bf16.mxu0 %v3342
    %3458 = vmatpush1.bf16.msra.mxu0 %v3341
    %3459 = vmatprep.subr.bf16.mxu0 %v3346
    %3460 = vmatpush1.bf16.msra.mxu0 %v3345
    %3461 = vmatprep.subr.bf16.mxu0 %v3350
    %3462 = vmatpush1.bf16.msra.mxu0 %v3349
    %3463 = vmatprep.subr.bf16.mxu0 %v3354
    %3464 = vmatpush1.bf16.msra.mxu0 %v3353
    %3465 = vmatprep.subr.bf16.mxu0 %v3358
    %3466 = vmatpush1.bf16.msra.mxu0 %v3357
    %3467 = vmatprep.subr.bf16.mxu0 %v3362
    %3468 = vmatpush1.bf16.msra.mxu0 %v3361
    %3469 = vmatprep.subr.bf16.mxu0 %v3366
    %3470 = vmatpush1.bf16.msra.mxu0 %v3365
    %3471 = vmatprep.subr.bf16.mxu0 %v3370
    %3472 = vmatpush1.bf16.msra.mxu0 %v3369
    %3473 = vmatprep.subr.bf16.mxu0 %v3374
    %3474 = vmatpush1.bf16.msra.mxu0 %v3373
    %3475 = vmatprep.subr.bf16.mxu0 %v3378
    %3476 = vmatpush1.bf16.msra.mxu0 %v3377
    %3477 = vmatprep.mubr.bf16.mxu0 %v174
    %3478 = vmatmul.mubr.bf16.gmra.mrb[0].mxu0 %v173
    %v3479 = vpop.f32.mrb[0].mxu0
    %v3480 = vadd.f32 %v3108, %v3479
    %v3481 = vpop.f32.mrb[0].mxu0
    %v3482 = vadd.f32 %v3112, %v3481
    %v3483 = vpop.f32.mrb[0].mxu0
    %v3484 = vpop.f32.mrb[0].mxu0
    %3485 = vdwg.mxu0
    %3486 = vmatprep.subr.bf16.mxu0 %v3320
    %3487 = vmatpush1.bf16.msra.mxu0 %v3319
    %3488 = vmatprep.subr.bf16.mxu0 %v3324
    %3489 = vmatpush1.bf16.msra.mxu0 %v3323
    %3490 = vmatprep.subr.bf16.mxu0 %v3328
    %3491 = vmatpush1.bf16.msra.mxu0 %v3327
    %3492 = vmatprep.subr.bf16.mxu0 %v3332
    %3493 = vmatpush1.bf16.msra.mxu0 %v3331
    %3494 = vmatprep.subr.bf16.mxu0 %v3336
    %3495 = vmatpush1.bf16.msra.mxu0 %v3335
    %3496 = vmatprep.subr.bf16.mxu0 %v3340
    %3497 = vmatpush1.bf16.msra.mxu0 %v3339
    %3498 = vmatprep.subr.bf16.mxu0 %v3344
    %3499 = vmatpush1.bf16.msra.mxu0 %v3343
    %3500 = vmatprep.subr.bf16.mxu0 %v3348
    %3501 = vmatpush1.bf16.msra.mxu0 %v3347
    %3502 = vmatprep.subr.bf16.mxu0 %v3352
    %3503 = vmatpush1.bf16.msra.mxu0 %v3351
    %3504 = vmatprep.subr.bf16.mxu0 %v3356
    %3505 = vmatpush1.bf16.msra.mxu0 %v3355
    %3506 = vmatprep.subr.bf16.mxu0 %v3360
    %3507 = vmatpush1.bf16.msra.mxu0 %v3359
    %3508 = vmatprep.subr.bf16.mxu0 %v3364
    %3509 = vmatpush1.bf16.msra.mxu0 %v3363
    %3510 = vmatprep.subr.bf16.mxu0 %v3368
    %3511 = vmatpush1.bf16.msra.mxu0 %v3367
    %3512 = vmatprep.subr.bf16.mxu0 %v3372
    %3513 = vmatpush1.bf16.msra.mxu0 %v3371
    %3514 = vmatprep.subr.bf16.mxu0 %v3376
    %3515 = vmatpush1.bf16.msra.mxu0 %v3375
    %3516 = vmatprep.subr.bf16.mxu0 %v3380
    %3517 = vmatpush1.bf16.msra.mxu0 %v3379
    %3518 = vmatprep.mubr.bf16.mxu0 %v174
    %3519 = vmatmul.mubr.bf16.gmra.mrb[0].mxu0 %v173
    %v3520 = vpop.f32.mrb[0].mxu0
    %v3521 = vadd.f32 %v3116, %v3520
    %v3522 = vpop.f32.mrb[0].mxu0
    %v3523 = vadd.f32 %v3120, %v3522
    %v3524 = vpop.f32.mrb[0].mxu0
    %v3525 = vpop.f32.mrb[0].mxu0
    %3526 = vdwg.mxu0
    %v3527 = vmax.f32 %v3035, %v3480
    %v3528 = vmax.f32 %v3036, %v3482
    %v3529 = vmax.f32 %v3037, %v3521
    %v3530 = vmax.f32 %v3038, %v3523
    %v3531 = vld [vmem:[#allocation5 + $0x70] sm:$0xff]
    %v3532 = vld [vmem:[#allocation5 + $0x78] sm:$0xff]
    %v3533 = vld [vmem:[#allocation5 + $0xf0] sm:$0xff]
    %v3534 = vld [vmem:[#allocation5 + $0xf8] sm:$0xff]
    %v3535 = vld [vmem:[#allocation5 + $0x170] sm:$0xff]
    %v3536 = vld [vmem:[#allocation5 + $0x178] sm:$0xff]
    %v3537 = vld [vmem:[#allocation5 + $0x1f0] sm:$0xff]
    %v3538 = vld [vmem:[#allocation5 + $0x1f8] sm:$0xff]
    %v3539 = vld [vmem:[#allocation5 + $0x270] sm:$0xff]
    %v3540 = vld [vmem:[#allocation5 + $0x278] sm:$0xff]
    %v3541 = vld [vmem:[#allocation5 + $0x2f0] sm:$0xff]
    %v3542 = vld [vmem:[#allocation5 + $0x2f8] sm:$0xff]
    %v3543 = vld [vmem:[#allocation5 + $0x370] sm:$0xff]
    %v3544 = vld [vmem:[#allocation5 + $0x378] sm:$0xff]
    %v3545 = vld [vmem:[#allocation5 + $0x3f0] sm:$0xff]
    %v3546 = vld [vmem:[#allocation5 + $0x3f8] sm:$0xff]
    %v3547 = vld [vmem:[#allocation5 + $0x470] sm:$0xff]
    %v3548 = vld [vmem:[#allocation5 + $0x478] sm:$0xff]
    %v3549 = vld [vmem:[#allocation5 + $0x4f0] sm:$0xff]
    %v3550 = vld [vmem:[#allocation5 + $0x4f8] sm:$0xff]
    %v3551 = vld [vmem:[#allocation5 + $0x570] sm:$0xff]
    %v3552 = vld [vmem:[#allocation5 + $0x578] sm:$0xff]
    %v3553 = vld [vmem:[#allocation5 + $0x5f0] sm:$0xff]
    %v3554 = vld [vmem:[#allocation5 + $0x5f8] sm:$0xff]
    %v3555 = vld [vmem:[#allocation5 + $0x670] sm:$0xff]
    %v3556 = vld [vmem:[#allocation5 + $0x678] sm:$0xff]
    %v3557 = vld [vmem:[#allocation5 + $0x6f0] sm:$0xff]
    %v3558 = vld [vmem:[#allocation5 + $0x6f8] sm:$0xff]
    %v3559 = vld [vmem:[#allocation5 + $0x770] sm:$0xff]
    %v3560 = vld [vmem:[#allocation5 + $0x778] sm:$0xff]
    %v3561 = vld [vmem:[#allocation5 + $0x7f0] sm:$0xff]
    %v3562 = vld [vmem:[#allocation5 + $0x7f8] sm:$0xff]
    %v3563 = vld [vmem:[#allocation5 + $0x870] sm:$0xff]
    %v3564 = vld [vmem:[#allocation5 + $0x878] sm:$0xff]
    %v3565 = vld [vmem:[#allocation5 + $0x8f0] sm:$0xff]
    %v3566 = vld [vmem:[#allocation5 + $0x8f8] sm:$0xff]
    %v3567 = vld [vmem:[#allocation5 + $0x970] sm:$0xff]
    %v3568 = vld [vmem:[#allocation5 + $0x978] sm:$0xff]
    %v3569 = vld [vmem:[#allocation5 + $0x9f0] sm:$0xff]
    %v3570 = vld [vmem:[#allocation5 + $0x9f8] sm:$0xff]
    %v3571 = vld [vmem:[#allocation5 + $0xa70] sm:$0xff]
    %v3572 = vld [vmem:[#allocation5 + $0xa78] sm:$0xff]
    %v3573 = vld [vmem:[#allocation5 + $0xaf0] sm:$0xff]
    %v3574 = vld [vmem:[#allocation5 + $0xaf8] sm:$0xff]
    %v3575 = vld [vmem:[#allocation5 + $0xb70] sm:$0xff]
    %v3576 = vld [vmem:[#allocation5 + $0xb78] sm:$0xff]
    %v3577 = vld [vmem:[#allocation5 + $0xbf0] sm:$0xff]
    %v3578 = vld [vmem:[#allocation5 + $0xbf8] sm:$0xff]
    %v3579 = vld [vmem:[#allocation5 + $0xc70] sm:$0xff]
    %v3580 = vld [vmem:[#allocation5 + $0xc78] sm:$0xff]
    %v3581 = vld [vmem:[#allocation5 + $0xcf0] sm:$0xff]
    %v3582 = vld [vmem:[#allocation5 + $0xcf8] sm:$0xff]
    %v3583 = vld [vmem:[#allocation5 + $0xd70] sm:$0xff]
    %v3584 = vld [vmem:[#allocation5 + $0xd78] sm:$0xff]
    %v3585 = vld [vmem:[#allocation5 + $0xdf0] sm:$0xff]
    %v3586 = vld [vmem:[#allocation5 + $0xdf8] sm:$0xff]
    %v3587 = vld [vmem:[#allocation5 + $0xe70] sm:$0xff]
    %v3588 = vld [vmem:[#allocation5 + $0xe78] sm:$0xff]
    %v3589 = vld [vmem:[#allocation5 + $0xef0] sm:$0xff]
    %v3590 = vld [vmem:[#allocation5 + $0xef8] sm:$0xff]
    %v3591 = vld [vmem:[#allocation5 + $0xf70] sm:$0xff]
    %v3592 = vld [vmem:[#allocation5 + $0xf78] sm:$0xff]
    %v3593 = vld [vmem:[#allocation5 + $0xff0] sm:$0xff]
    %v3594 = vld [vmem:[#allocation5 + $0xff8] sm:$0xff]
    %v3595 = vld [vmem:[#allocation7 + $0x1c] sm:$0xf]
    %v3597 = vlaneseq
    %v3598 = vshrl.u32 %v3597, 7
    %v3599 = vsub.s32 0, %v3598
    %v3600 = vrot.slane %v3595, %v3599
    %v3601 = vlaneseq
    %v3602 = vshrl.u32 %v3601, 7
    %v3603 = vsub.s32 1, %v3602
    %v3604 = vrot.slane %v3595, %v3603
    %v3605 = vlaneseq
    %v3606 = vshrl.u32 %v3605, 7
    %v3607 = vsub.s32 2, %v3606
    %v3608 = vrot.slane %v3595, %v3607
    %v3609 = vlaneseq
    %v3610 = vshrl.u32 %v3609, 7
    %v3611 = vsub.s32 3, %v3610
    %v3612 = vrot.slane %v3595, %v3611
    %v3681 = vunpack.c.l.b16 %v3531
    %v3682 = vunpack.c.h.b16 %v3531
    %v3683 = vunpack.c.l.b16 %v3532
    %v3684 = vunpack.c.h.b16 %v3532
    %v3685 = vunpack.c.l.b16 %v3533
    %v3686 = vunpack.c.h.b16 %v3533
    %v3687 = vunpack.c.l.b16 %v3534
    %v3688 = vunpack.c.h.b16 %v3534
    %v3689 = vunpack.c.l.b16 %v3535
    %v3690 = vunpack.c.h.b16 %v3535
    %v3691 = vunpack.c.l.b16 %v3536
    %v3692 = vunpack.c.h.b16 %v3536
    %v3693 = vunpack.c.l.b16 %v3537
    %v3694 = vunpack.c.h.b16 %v3537
    %v3695 = vunpack.c.l.b16 %v3538
    %v3696 = vunpack.c.h.b16 %v3538
    %v3697 = vunpack.c.l.b16 %v3539
    %v3698 = vunpack.c.h.b16 %v3539
    %v3699 = vunpack.c.l.b16 %v3540
    %v3700 = vunpack.c.h.b16 %v3540
    %v3701 = vunpack.c.l.b16 %v3541
    %v3702 = vunpack.c.h.b16 %v3541
    %v3703 = vunpack.c.l.b16 %v3542
    %v3704 = vunpack.c.h.b16 %v3542
    %v3705 = vunpack.c.l.b16 %v3543
    %v3706 = vunpack.c.h.b16 %v3543
    %v3707 = vunpack.c.l.b16 %v3544
    %v3708 = vunpack.c.h.b16 %v3544
    %v3709 = vunpack.c.l.b16 %v3545
    %v3710 = vunpack.c.h.b16 %v3545
    %v3711 = vunpack.c.l.b16 %v3546
    %v3712 = vunpack.c.h.b16 %v3546
    %v3713 = vunpack.c.l.b16 %v3547
    %v3714 = vunpack.c.h.b16 %v3547
    %v3715 = vunpack.c.l.b16 %v3548
    %v3716 = vunpack.c.h.b16 %v3548
    %v3717 = vunpack.c.l.b16 %v3549
    %v3718 = vunpack.c.h.b16 %v3549
    %v3719 = vunpack.c.l.b16 %v3550
    %v3720 = vunpack.c.h.b16 %v3550
    %v3721 = vunpack.c.l.b16 %v3551
    %v3722 = vunpack.c.h.b16 %v3551
    %v3723 = vunpack.c.l.b16 %v3552
    %v3724 = vunpack.c.h.b16 %v3552
    %v3725 = vunpack.c.l.b16 %v3553
    %v3726 = vunpack.c.h.b16 %v3553
    %v3727 = vunpack.c.l.b16 %v3554
    %v3728 = vunpack.c.h.b16 %v3554
    %v3729 = vunpack.c.l.b16 %v3555
    %v3730 = vunpack.c.h.b16 %v3555
    %v3731 = vunpack.c.l.b16 %v3556
    %v3732 = vunpack.c.h.b16 %v3556
    %v3733 = vunpack.c.l.b16 %v3557
    %v3734 = vunpack.c.h.b16 %v3557
    %v3735 = vunpack.c.l.b16 %v3558
    %v3736 = vunpack.c.h.b16 %v3558
    %v3737 = vunpack.c.l.b16 %v3559
    %v3738 = vunpack.c.h.b16 %v3559
    %v3739 = vunpack.c.l.b16 %v3560
    %v3740 = vunpack.c.h.b16 %v3560
    %v3741 = vunpack.c.l.b16 %v3561
    %v3742 = vunpack.c.h.b16 %v3561
    %v3743 = vunpack.c.l.b16 %v3562
    %v3744 = vunpack.c.h.b16 %v3562
    %v3745 = vunpack.c.l.b16 %v3563
    %v3746 = vunpack.c.h.b16 %v3563
    %v3747 = vunpack.c.l.b16 %v3564
    %v3748 = vunpack.c.h.b16 %v3564
    %v3749 = vunpack.c.l.b16 %v3565
    %v3750 = vunpack.c.h.b16 %v3565
    %v3751 = vunpack.c.l.b16 %v3566
    %v3752 = vunpack.c.h.b16 %v3566
    %v3753 = vunpack.c.l.b16 %v3567
    %v3754 = vunpack.c.h.b16 %v3567
    %v3755 = vunpack.c.l.b16 %v3568
    %v3756 = vunpack.c.h.b16 %v3568
    %v3757 = vunpack.c.l.b16 %v3569
    %v3758 = vunpack.c.h.b16 %v3569
    %v3759 = vunpack.c.l.b16 %v3570
    %v3760 = vunpack.c.h.b16 %v3570
    %v3761 = vunpack.c.l.b16 %v3571
    %v3762 = vunpack.c.h.b16 %v3571
    %v3763 = vunpack.c.l.b16 %v3572
    %v3764 = vunpack.c.h.b16 %v3572
    %v3765 = vunpack.c.l.b16 %v3573
    %v3766 = vunpack.c.h.b16 %v3573
    %v3767 = vunpack.c.l.b16 %v3574
    %v3768 = vunpack.c.h.b16 %v3574
    %v3769 = vunpack.c.l.b16 %v3575
    %v3770 = vunpack.c.h.b16 %v3575
    %v3771 = vunpack.c.l.b16 %v3576
    %v3772 = vunpack.c.h.b16 %v3576
    %v3773 = vunpack.c.l.b16 %v3577
    %v3774 = vunpack.c.h.b16 %v3577
    %v3775 = vunpack.c.l.b16 %v3578
    %v3776 = vunpack.c.h.b16 %v3578
    %v3777 = vunpack.c.l.b16 %v3579
    %v3778 = vunpack.c.h.b16 %v3579
    %v3779 = vunpack.c.l.b16 %v3580
    %v3780 = vunpack.c.h.b16 %v3580
    %v3781 = vunpack.c.l.b16 %v3581
    %v3782 = vunpack.c.h.b16 %v3581
    %v3783 = vunpack.c.l.b16 %v3582
    %v3784 = vunpack.c.h.b16 %v3582
    %v3785 = vunpack.c.l.b16 %v3583
    %v3786 = vunpack.c.h.b16 %v3583
    %v3787 = vunpack.c.l.b16 %v3584
    %v3788 = vunpack.c.h.b16 %v3584
    %v3789 = vunpack.c.l.b16 %v3585
    %v3790 = vunpack.c.h.b16 %v3585
    %v3791 = vunpack.c.l.b16 %v3586
    %v3792 = vunpack.c.h.b16 %v3586
    %v3793 = vunpack.c.l.b16 %v3587
    %v3794 = vunpack.c.h.b16 %v3587
    %v3795 = vunpack.c.l.b16 %v3588
    %v3796 = vunpack.c.h.b16 %v3588
    %v3797 = vunpack.c.l.b16 %v3589
    %v3798 = vunpack.c.h.b16 %v3589
    %v3799 = vunpack.c.l.b16 %v3590
    %v3800 = vunpack.c.h.b16 %v3590
    %v3801 = vunpack.c.l.b16 %v3591
    %v3802 = vunpack.c.h.b16 %v3591
    %v3803 = vunpack.c.l.b16 %v3592
    %v3804 = vunpack.c.h.b16 %v3592
    %v3805 = vunpack.c.l.b16 %v3593
    %v3806 = vunpack.c.h.b16 %v3593
    %v3807 = vunpack.c.l.b16 %v3594
    %v3808 = vunpack.c.h.b16 %v3594
    %v3809 = vpack.c.b16 %v3685, %v3681
    %v3810 = vpack.c.b16 %v3686, %v3682
    %v3811 = vpack.c.b16 %v3687, %v3683
    %v3812 = vpack.c.b16 %v3688, %v3684
    %v3813 = vpack.c.b16 %v3693, %v3689
    %v3814 = vpack.c.b16 %v3694, %v3690
    %v3815 = vpack.c.b16 %v3695, %v3691
    %v3816 = vpack.c.b16 %v3696, %v3692
    %v3817 = vpack.c.b16 %v3701, %v3697
    %v3818 = vpack.c.b16 %v3702, %v3698
    %v3819 = vpack.c.b16 %v3703, %v3699
    %v3820 = vpack.c.b16 %v3704, %v3700
    %v3821 = vpack.c.b16 %v3709, %v3705
    %v3822 = vpack.c.b16 %v3710, %v3706
    %v3823 = vpack.c.b16 %v3711, %v3707
    %v3824 = vpack.c.b16 %v3712, %v3708
    %v3825 = vpack.c.b16 %v3717, %v3713
    %v3826 = vpack.c.b16 %v3718, %v3714
    %v3827 = vpack.c.b16 %v3719, %v3715
    %v3828 = vpack.c.b16 %v3720, %v3716
    %v3829 = vpack.c.b16 %v3725, %v3721
    %v3830 = vpack.c.b16 %v3726, %v3722
    %v3831 = vpack.c.b16 %v3727, %v3723
    %v3832 = vpack.c.b16 %v3728, %v3724
    %v3833 = vpack.c.b16 %v3733, %v3729
    %v3834 = vpack.c.b16 %v3734, %v3730
    %v3835 = vpack.c.b16 %v3735, %v3731
    %v3836 = vpack.c.b16 %v3736, %v3732
    %v3837 = vpack.c.b16 %v3741, %v3737
    %v3838 = vpack.c.b16 %v3742, %v3738
    %v3839 = vpack.c.b16 %v3743, %v3739
    %v3840 = vpack.c.b16 %v3744, %v3740
    %v3841 = vpack.c.b16 %v3749, %v3745
    %v3842 = vpack.c.b16 %v3750, %v3746
    %v3843 = vpack.c.b16 %v3751, %v3747
    %v3844 = vpack.c.b16 %v3752, %v3748
    %v3845 = vpack.c.b16 %v3757, %v3753
    %v3846 = vpack.c.b16 %v3758, %v3754
    %v3847 = vpack.c.b16 %v3759, %v3755
    %v3848 = vpack.c.b16 %v3760, %v3756
    %v3849 = vpack.c.b16 %v3765, %v3761
    %v3850 = vpack.c.b16 %v3766, %v3762
    %v3851 = vpack.c.b16 %v3767, %v3763
    %v3852 = vpack.c.b16 %v3768, %v3764
    %v3853 = vpack.c.b16 %v3773, %v3769
    %v3854 = vpack.c.b16 %v3774, %v3770
    %v3855 = vpack.c.b16 %v3775, %v3771
    %v3856 = vpack.c.b16 %v3776, %v3772
    %v3857 = vpack.c.b16 %v3781, %v3777
    %v3858 = vpack.c.b16 %v3782, %v3778
    %v3859 = vpack.c.b16 %v3783, %v3779
    %v3860 = vpack.c.b16 %v3784, %v3780
    %v3861 = vpack.c.b16 %v3789, %v3785
    %v3862 = vpack.c.b16 %v3790, %v3786
    %v3863 = vpack.c.b16 %v3791, %v3787
    %v3864 = vpack.c.b16 %v3792, %v3788
    %v3865 = vpack.c.b16 %v3797, %v3793
    %v3866 = vpack.c.b16 %v3798, %v3794
    %v3867 = vpack.c.b16 %v3799, %v3795
    %v3868 = vpack.c.b16 %v3800, %v3796
    %v3869 = vpack.c.b16 %v3805, %v3801
    %v3870 = vpack.c.b16 %v3806, %v3802
    %v3871 = vpack.c.b16 %v3807, %v3803
    %v3872 = vpack.c.b16 %v3808, %v3804
    %3937 = vmatprep.subr.bf16.mxu0 %v3810
    %3938 = vmatpush1.bf16.msra.mxu0 %v3809
    %3939 = vmatprep.subr.bf16.mxu0 %v3814
    %3940 = vmatpush1.bf16.msra.mxu0 %v3813
    %3941 = vmatprep.subr.bf16.mxu0 %v3818
    %3942 = vmatpush1.bf16.msra.mxu0 %v3817
    %3943 = vmatprep.subr.bf16.mxu0 %v3822
    %3944 = vmatpush1.bf16.msra.mxu0 %v3821
    %3945 = vmatprep.subr.bf16.mxu0 %v3826
    %3946 = vmatpush1.bf16.msra.mxu0 %v3825
    %3947 = vmatprep.subr.bf16.mxu0 %v3830
    %3948 = vmatpush1.bf16.msra.mxu0 %v3829
    %3949 = vmatprep.subr.bf16.mxu0 %v3834
    %3950 = vmatpush1.bf16.msra.mxu0 %v3833
    %3951 = vmatprep.subr.bf16.mxu0 %v3838
    %3952 = vmatpush1.bf16.msra.mxu0 %v3837
    %3953 = vmatprep.subr.bf16.mxu0 %v3842
    %3954 = vmatpush1.bf16.msra.mxu0 %v3841
    %3955 = vmatprep.subr.bf16.mxu0 %v3846
    %3956 = vmatpush1.bf16.msra.mxu0 %v3845
    %3957 = vmatprep.subr.bf16.mxu0 %v3850
    %3958 = vmatpush1.bf16.msra.mxu0 %v3849
    %3959 = vmatprep.subr.bf16.mxu0 %v3854
    %3960 = vmatpush1.bf16.msra.mxu0 %v3853
    %3961 = vmatprep.subr.bf16.mxu0 %v3858
    %3962 = vmatpush1.bf16.msra.mxu0 %v3857
    %3963 = vmatprep.subr.bf16.mxu0 %v3862
    %3964 = vmatpush1.bf16.msra.mxu0 %v3861
    %3965 = vmatprep.subr.bf16.mxu0 %v3866
    %3966 = vmatpush1.bf16.msra.mxu0 %v3865
    %3967 = vmatprep.subr.bf16.mxu0 %v3870
    %3968 = vmatpush1.bf16.msra.mxu0 %v3869
    %3969 = vmatprep.mubr.bf16.mxu0 %v174
    %3970 = vmatmul.mubr.bf16.gmra.mrb[0].mxu0 %v173
    %v3971 = vpop.f32.mrb[0].mxu0
    %v3972 = vadd.f32 %v3600, %v3971
    %v3973 = vpop.f32.mrb[0].mxu0
    %v3974 = vadd.f32 %v3604, %v3973
    %v3975 = vpop.f32.mrb[0].mxu0
    %v3976 = vpop.f32.mrb[0].mxu0
    %3977 = vdwg.mxu0
    %3978 = vmatprep.subr.bf16.mxu0 %v3812
    %3979 = vmatpush1.bf16.msra.mxu0 %v3811
    %3980 = vmatprep.subr.bf16.mxu0 %v3816
    %3981 = vmatpush1.bf16.msra.mxu0 %v3815
    %3982 = vmatprep.subr.bf16.mxu0 %v3820
    %3983 = vmatpush1.bf16.msra.mxu0 %v3819
    %3984 = vmatprep.subr.bf16.mxu0 %v3824
    %3985 = vmatpush1.bf16.msra.mxu0 %v3823
    %3986 = vmatprep.subr.bf16.mxu0 %v3828
    %3987 = vmatpush1.bf16.msra.mxu0 %v3827
    %3988 = vmatprep.subr.bf16.mxu0 %v3832
    %3989 = vmatpush1.bf16.msra.mxu0 %v3831
    %3990 = vmatprep.subr.bf16.mxu0 %v3836
    %3991 = vmatpush1.bf16.msra.mxu0 %v3835
    %3992 = vmatprep.subr.bf16.mxu0 %v3840
    %3993 = vmatpush1.bf16.msra.mxu0 %v3839
    %3994 = vmatprep.subr.bf16.mxu0 %v3844
    %3995 = vmatpush1.bf16.msra.mxu0 %v3843
    %3996 = vmatprep.subr.bf16.mxu0 %v3848
    %3997 = vmatpush1.bf16.msra.mxu0 %v3847
    %3998 = vmatprep.subr.bf16.mxu0 %v3852
    %3999 = vmatpush1.bf16.msra.mxu0 %v3851
    %4000 = vmatprep.subr.bf16.mxu0 %v3856
    %4001 = vmatpush1.bf16.msra.mxu0 %v3855
    %4002 = vmatprep.subr.bf16.mxu0 %v3860
    %4003 = vmatpush1.bf16.msra.mxu0 %v3859
    %4004 = vmatprep.subr.bf16.mxu0 %v3864
    %4005 = vmatpush1.bf16.msra.mxu0 %v3863
    %4006 = vmatprep.subr.bf16.mxu0 %v3868
    %4007 = vmatpush1.bf16.msra.mxu0 %v3867
    %4008 = vmatprep.subr.bf16.mxu0 %v3872
    %4009 = vmatpush1.bf16.msra.mxu0 %v3871
    %4010 = vmatprep.mubr.bf16.mxu0 %v174
    %4011 = vmatmul.mubr.bf16.gmra.mrb[0].mxu0 %v173
    %v4012 = vpop.f32.mrb[0].mxu0
    %v4013 = vadd.f32 %v3608, %v4012
    %v4014 = vpop.f32.mrb[0].mxu0
    %v4015 = vadd.f32 %v3612, %v4014
    %v4016 = vpop.f32.mrb[0].mxu0
    %v4017 = vpop.f32.mrb[0].mxu0
    %4018 = vdwg.mxu0
    %v4019 = vmax.f32 %v3527, %v3972
    %v4020 = vmax.f32 %v3528, %v3974
    %v4021 = vmax.f32 %v3529, %v4013
    %v4022 = vmax.f32 %v3530, %v4015
    %v4023 = vpack.c.bf16 %v4019, %v4019
    %v4024 = vpack.c.bf16 %v4020, %v4020
    %v4025 = vpack.c.bf16 %v4021, %v4021
    %v4026 = vpack.c.bf16 %v4022, %v4022
    %v4027 = vld [vmem:[#allocation8] sm:$0xff]
    %v4028 = vld [vmem:[#allocation8 + $0x8] sm:$0xff]
    %v4029 = vld [vmem:[#allocation8 + $0x10] sm:$0xff]
    %v4030 = vld [vmem:[#allocation8 + $0x18] sm:$0xff]
    %v4031 = vld [vmem:[#allocation8 + $0x20] sm:$0xff]
    %v4032 = vld [vmem:[#allocation8 + $0x28] sm:$0xff]
    %v4033 = vld [vmem:[#allocation8 + $0x30] sm:$0xff]
    %v4034 = vld [vmem:[#allocation8 + $0x38] sm:$0xff]
    %v4035 = vld [vmem:[#allocation8 + $0x40] sm:$0xff]
    %v4036 = vld [vmem:[#allocation8 + $0x48] sm:$0xff]
    %v4037 = vld [vmem:[#allocation8 + $0x50] sm:$0xff]
    %v4038 = vld [vmem:[#allocation8 + $0x58] sm:$0xff]
    %v4039 = vld [vmem:[#allocation8 + $0x60] sm:$0xff]
    %v4040 = vld [vmem:[#allocation8 + $0x68] sm:$0xff]
    %v4041 = vld [vmem:[#allocation8 + $0x70] sm:$0xff]
    %v4042 = vld [vmem:[#allocation8 + $0x78] sm:$0xff]
    %v4043 = vld [vmem:[#allocation8 + $0x80] sm:$0xff]
    %v4044 = vld [vmem:[#allocation8 + $0x88] sm:$0xff]
    %v4045 = vld [vmem:[#allocation8 + $0x90] sm:$0xff]
    %v4046 = vld [vmem:[#allocation8 + $0x98] sm:$0xff]
    %v4047 = vld [vmem:[#allocation8 + $0xa0] sm:$0xff]
    %v4048 = vld [vmem:[#allocation8 + $0xa8] sm:$0xff]
    %v4049 = vld [vmem:[#allocation8 + $0xb0] sm:$0xff]
    %v4050 = vld [vmem:[#allocation8 + $0xb8] sm:$0xff]
    %v4051 = vld [vmem:[#allocation8 + $0xc0] sm:$0xff]
    %v4052 = vld [vmem:[#allocation8 + $0xc8] sm:$0xff]
    %v4053 = vld [vmem:[#allocation8 + $0xd0] sm:$0xff]
    %v4054 = vld [vmem:[#allocation8 + $0xd8] sm:$0xff]
    %v4055 = vld [vmem:[#allocation8 + $0xe0] sm:$0xff]
    %v4056 = vld [vmem:[#allocation8 + $0xe8] sm:$0xff]
    %v4057 = vld [vmem:[#allocation8 + $0xf0] sm:$0xff]
    %v4058 = vld [vmem:[#allocation8 + $0xf8] sm:$0xff]
    %v4059 = vld [vmem:[#allocation8 + $0x100] sm:$0xff]
    %v4060 = vld [vmem:[#allocation8 + $0x108] sm:$0xff]
    %v4061 = vld [vmem:[#allocation8 + $0x110] sm:$0xff]
    %v4062 = vld [vmem:[#allocation8 + $0x118] sm:$0xff]
    %v4063 = vld [vmem:[#allocation8 + $0x120] sm:$0xff]
    %v4064 = vld [vmem:[#allocation8 + $0x128] sm:$0xff]
    %v4065 = vld [vmem:[#allocation8 + $0x130] sm:$0xff]
    %v4066 = vld [vmem:[#allocation8 + $0x138] sm:$0xff]
    %v4067 = vld [vmem:[#allocation8 + $0x140] sm:$0xff]
    %v4068 = vld [vmem:[#allocation8 + $0x148] sm:$0xff]
    %v4069 = vld [vmem:[#allocation8 + $0x150] sm:$0xff]
    %v4070 = vld [vmem:[#allocation8 + $0x158] sm:$0xff]
    %v4071 = vld [vmem:[#allocation8 + $0x160] sm:$0xff]
    %v4072 = vld [vmem:[#allocation8 + $0x168] sm:$0xff]
    %v4073 = vld [vmem:[#allocation8 + $0x170] sm:$0xff]
    %v4074 = vld [vmem:[#allocation8 + $0x178] sm:$0xff]
    %v4075 = vld [vmem:[#allocation8 + $0x180] sm:$0xff]
    %v4076 = vld [vmem:[#allocation8 + $0x188] sm:$0xff]
    %v4077 = vld [vmem:[#allocation8 + $0x190] sm:$0xff]
    %v4078 = vld [vmem:[#allocation8 + $0x198] sm:$0xff]
    %v4079 = vld [vmem:[#allocation8 + $0x1a0] sm:$0xff]
    %v4080 = vld [vmem:[#allocation8 + $0x1a8] sm:$0xff]
    %v4081 = vld [vmem:[#allocation8 + $0x1b0] sm:$0xff]
    %v4082 = vld [vmem:[#allocation8 + $0x1b8] sm:$0xff]
    %v4083 = vld [vmem:[#allocation8 + $0x1c0] sm:$0xff]
    %v4084 = vld [vmem:[#allocation8 + $0x1c8] sm:$0xff]
    %v4085 = vld [vmem:[#allocation8 + $0x1d0] sm:$0xff]
    %v4086 = vld [vmem:[#allocation8 + $0x1d8] sm:$0xff]
    %v4087 = vld [vmem:[#allocation8 + $0x1e0] sm:$0xff]
    %v4088 = vld [vmem:[#allocation8 + $0x1e8] sm:$0xff]
    %v4089 = vld [vmem:[#allocation8 + $0x1f0] sm:$0xff]
    %v4090 = vld [vmem:[#allocation8 + $0x1f8] sm:$0xff]
    %v4091 = vld [vmem:[#allocation8 + $0x200] sm:$0xff]
    %v4092 = vld [vmem:[#allocation8 + $0x208] sm:$0xff]
    %v4093 = vld [vmem:[#allocation8 + $0x210] sm:$0xff]
    %v4094 = vld [vmem:[#allocation8 + $0x218] sm:$0xff]
    %v4095 = vld [vmem:[#allocation8 + $0x220] sm:$0xff]
    %v4096 = vld [vmem:[#allocation8 + $0x228] sm:$0xff]
    %v4097 = vld [vmem:[#allocation8 + $0x230] sm:$0xff]
    %v4098 = vld [vmem:[#allocation8 + $0x238] sm:$0xff]
    %v4099 = vld [vmem:[#allocation8 + $0x240] sm:$0xff]
    %v4100 = vld [vmem:[#allocation8 + $0x248] sm:$0xff]
    %v4101 = vld [vmem:[#allocation8 + $0x250] sm:$0xff]
    %v4102 = vld [vmem:[#allocation8 + $0x258] sm:$0xff]
    %v4103 = vld [vmem:[#allocation8 + $0x260] sm:$0xff]
    %v4104 = vld [vmem:[#allocation8 + $0x268] sm:$0xff]
    %v4105 = vld [vmem:[#allocation8 + $0x270] sm:$0xff]
    %v4106 = vld [vmem:[#allocation8 + $0x278] sm:$0xff]
    %v4107 = vld [vmem:[#allocation8 + $0x280] sm:$0xff]
    %v4108 = vld [vmem:[#allocation8 + $0x288] sm:$0xff]
    %v4109 = vld [vmem:[#allocation8 + $0x290] sm:$0xff]
    %v4110 = vld [vmem:[#allocation8 + $0x298] sm:$0xff]
    %v4111 = vld [vmem:[#allocation8 + $0x2a0] sm:$0xff]
    %v4112 = vld [vmem:[#allocation8 + $0x2a8] sm:$0xff]
    %v4113 = vld [vmem:[#allocation8 + $0x2b0] sm:$0xff]
    %v4114 = vld [vmem:[#allocation8 + $0x2b8] sm:$0xff]
    %v4115 = vld [vmem:[#allocation8 + $0x2c0] sm:$0xff]
    %v4116 = vld [vmem:[#allocation8 + $0x2c8] sm:$0xff]
    %v4117 = vld [vmem:[#allocation8 + $0x2d0] sm:$0xff]
    %v4118 = vld [vmem:[#allocation8 + $0x2d8] sm:$0xff]
    %v4119 = vld [vmem:[#allocation8 + $0x2e0] sm:$0xff]
    %v4120 = vld [vmem:[#allocation8 + $0x2e8] sm:$0xff]
    %v4121 = vld [vmem:[#allocation8 + $0x2f0] sm:$0xff]
    %v4122 = vld [vmem:[#allocation8 + $0x2f8] sm:$0xff]
    %v4123 = vld [vmem:[#allocation8 + $0x300] sm:$0xff]
    %v4124 = vld [vmem:[#allocation8 + $0x308] sm:$0xff]
    %v4125 = vld [vmem:[#allocation8 + $0x310] sm:$0xff]
    %v4126 = vld [vmem:[#allocation8 + $0x318] sm:$0xff]
    %v4127 = vld [vmem:[#allocation8 + $0x320] sm:$0xff]
    %v4128 = vld [vmem:[#allocation8 + $0x328] sm:$0xff]
    %v4129 = vld [vmem:[#allocation8 + $0x330] sm:$0xff]
    %v4130 = vld [vmem:[#allocation8 + $0x338] sm:$0xff]
    %v4131 = vld [vmem:[#allocation8 + $0x340] sm:$0xff]
    %v4132 = vld [vmem:[#allocation8 + $0x348] sm:$0xff]
    %v4133 = vld [vmem:[#allocation8 + $0x350] sm:$0xff]
    %v4134 = vld [vmem:[#allocation8 + $0x358] sm:$0xff]
    %v4135 = vld [vmem:[#allocation8 + $0x360] sm:$0xff]
    %v4136 = vld [vmem:[#allocation8 + $0x368] sm:$0xff]
    %v4137 = vld [vmem:[#allocation8 + $0x370] sm:$0xff]
    %v4138 = vld [vmem:[#allocation8 + $0x378] sm:$0xff]
    %v4139 = vld [vmem:[#allocation8 + $0x380] sm:$0xff]
    %v4140 = vld [vmem:[#allocation8 + $0x388] sm:$0xff]
    %v4141 = vld [vmem:[#allocation8 + $0x390] sm:$0xff]
    %v4142 = vld [vmem:[#allocation8 + $0x398] sm:$0xff]
    %v4143 = vld [vmem:[#allocation8 + $0x3a0] sm:$0xff]
    %v4144 = vld [vmem:[#allocation8 + $0x3a8] sm:$0xff]
    %v4145 = vld [vmem:[#allocation8 + $0x3b0] sm:$0xff]
    %v4146 = vld [vmem:[#allocation8 + $0x3b8] sm:$0xff]
    %v4147 = vld [vmem:[#allocation8 + $0x3c0] sm:$0xff]
    %v4148 = vld [vmem:[#allocation8 + $0x3c8] sm:$0xff]
    %v4149 = vld [vmem:[#allocation8 + $0x3d0] sm:$0xff]
    %v4150 = vld [vmem:[#allocation8 + $0x3d8] sm:$0xff]
    %v4151 = vld [vmem:[#allocation8 + $0x3e0] sm:$0xff]
    %v4152 = vld [vmem:[#allocation8 + $0x3e8] sm:$0xff]
    %v4153 = vld [vmem:[#allocation8 + $0x3f0] sm:$0xff]
    %v4154 = vld [vmem:[#allocation8 + $0x3f8] sm:$0xff]
    %v4155 = vld [vmem:[#allocation8 + $0x400] sm:$0xff]
    %v4156 = vld [vmem:[#allocation8 + $0x408] sm:$0xff]
    %v4157 = vld [vmem:[#allocation8 + $0x410] sm:$0xff]
    %v4158 = vld [vmem:[#allocation8 + $0x418] sm:$0xff]
    %v4159 = vld [vmem:[#allocation8 + $0x420] sm:$0xff]
    %v4160 = vld [vmem:[#allocation8 + $0x428] sm:$0xff]
    %v4161 = vld [vmem:[#allocation8 + $0x430] sm:$0xff]
    %v4162 = vld [vmem:[#allocation8 + $0x438] sm:$0xff]
    %v4163 = vld [vmem:[#allocation8 + $0x440] sm:$0xff]
    %v4164 = vld [vmem:[#allocation8 + $0x448] sm:$0xff]
    %v4165 = vld [vmem:[#allocation8 + $0x450] sm:$0xff]
    %v4166 = vld [vmem:[#allocation8 + $0x458] sm:$0xff]
    %v4167 = vld [vmem:[#allocation8 + $0x460] sm:$0xff]
    %v4168 = vld [vmem:[#allocation8 + $0x468] sm:$0xff]
    %v4169 = vld [vmem:[#allocation8 + $0x470] sm:$0xff]
    %v4170 = vld [vmem:[#allocation8 + $0x478] sm:$0xff]
    %v4171 = vld [vmem:[#allocation8 + $0x480] sm:$0xff]
    %v4172 = vld [vmem:[#allocation8 + $0x488] sm:$0xff]
    %v4173 = vld [vmem:[#allocation8 + $0x490] sm:$0xff]
    %v4174 = vld [vmem:[#allocation8 + $0x498] sm:$0xff]
    %v4175 = vld [vmem:[#allocation8 + $0x4a0] sm:$0xff]
    %v4176 = vld [vmem:[#allocation8 + $0x4a8] sm:$0xff]
    %v4177 = vld [vmem:[#allocation8 + $0x4b0] sm:$0xff]
    %v4178 = vld [vmem:[#allocation8 + $0x4b8] sm:$0xff]
    %v4179 = vld [vmem:[#allocation8 + $0x4c0] sm:$0xff]
    %v4180 = vld [vmem:[#allocation8 + $0x4c8] sm:$0xff]
    %v4181 = vld [vmem:[#allocation8 + $0x4d0] sm:$0xff]
    %v4182 = vld [vmem:[#allocation8 + $0x4d8] sm:$0xff]
    %v4183 = vld [vmem:[#allocation8 + $0x4e0] sm:$0xff]
    %v4184 = vld [vmem:[#allocation8 + $0x4e8] sm:$0xff]
    %v4185 = vld [vmem:[#allocation8 + $0x4f0] sm:$0xff]
    %v4186 = vld [vmem:[#allocation8 + $0x4f8] sm:$0xff]
    %v4187 = vld [vmem:[#allocation8 + $0x500] sm:$0xff]
    %v4188 = vld [vmem:[#allocation8 + $0x508] sm:$0xff]
    %v4189 = vld [vmem:[#allocation8 + $0x510] sm:$0xff]
    %v4190 = vld [vmem:[#allocation8 + $0x518] sm:$0xff]
    %v4191 = vld [vmem:[#allocation8 + $0x520] sm:$0xff]
    %v4192 = vld [vmem:[#allocation8 + $0x528] sm:$0xff]
    %v4193 = vld [vmem:[#allocation8 + $0x530] sm:$0xff]
    %v4194 = vld [vmem:[#allocation8 + $0x538] sm:$0xff]
    %v4195 = vld [vmem:[#allocation8 + $0x540] sm:$0xff]
    %v4196 = vld [vmem:[#allocation8 + $0x548] sm:$0xff]
    %v4197 = vld [vmem:[#allocation8 + $0x550] sm:$0xff]
    %v4198 = vld [vmem:[#allocation8 + $0x558] sm:$0xff]
    %v4199 = vld [vmem:[#allocation8 + $0x560] sm:$0xff]
    %v4200 = vld [vmem:[#allocation8 + $0x568] sm:$0xff]
    %v4201 = vld [vmem:[#allocation8 + $0x570] sm:$0xff]
    %v4202 = vld [vmem:[#allocation8 + $0x578] sm:$0xff]
    %v4203 = vld [vmem:[#allocation8 + $0x580] sm:$0xff]
    %v4204 = vld [vmem:[#allocation8 + $0x588] sm:$0xff]
    %v4205 = vld [vmem:[#allocation8 + $0x590] sm:$0xff]
    %v4206 = vld [vmem:[#allocation8 + $0x598] sm:$0xff]
    %v4207 = vld [vmem:[#allocation8 + $0x5a0] sm:$0xff]
    %v4208 = vld [vmem:[#allocation8 + $0x5a8] sm:$0xff]
    %v4209 = vld [vmem:[#allocation8 + $0x5b0] sm:$0xff]
    %v4210 = vld [vmem:[#allocation8 + $0x5b8] sm:$0xff]
    %v4211 = vld [vmem:[#allocation8 + $0x5c0] sm:$0xff]
    %v4212 = vld [vmem:[#allocation8 + $0x5c8] sm:$0xff]
    %v4213 = vld [vmem:[#allocation8 + $0x5d0] sm:$0xff]
    %v4214 = vld [vmem:[#allocation8 + $0x5d8] sm:$0xff]
    %v4215 = vld [vmem:[#allocation8 + $0x5e0] sm:$0xff]
    %v4216 = vld [vmem:[#allocation8 + $0x5e8] sm:$0xff]
    %v4217 = vld [vmem:[#allocation8 + $0x5f0] sm:$0xff]
    %v4218 = vld [vmem:[#allocation8 + $0x5f8] sm:$0xff]
    %v4219 = vld [vmem:[#allocation8 + $0x600] sm:$0xff]
    %v4220 = vld [vmem:[#allocation8 + $0x608] sm:$0xff]
    %v4221 = vld [vmem:[#allocation8 + $0x610] sm:$0xff]
    %v4222 = vld [vmem:[#allocation8 + $0x618] sm:$0xff]
    %v4223 = vld [vmem:[#allocation8 + $0x620] sm:$0xff]
    %v4224 = vld [vmem:[#allocation8 + $0x628] sm:$0xff]
    %v4225 = vld [vmem:[#allocation8 + $0x630] sm:$0xff]
    %v4226 = vld [vmem:[#allocation8 + $0x638] sm:$0xff]
    %v4227 = vld [vmem:[#allocation8 + $0x640] sm:$0xff]
    %v4228 = vld [vmem:[#allocation8 + $0x648] sm:$0xff]
    %v4229 = vld [vmem:[#allocation8 + $0x650] sm:$0xff]
    %v4230 = vld [vmem:[#allocation8 + $0x658] sm:$0xff]
    %v4231 = vld [vmem:[#allocation8 + $0x660] sm:$0xff]
    %v4232 = vld [vmem:[#allocation8 + $0x668] sm:$0xff]
    %v4233 = vld [vmem:[#allocation8 + $0x670] sm:$0xff]
    %v4234 = vld [vmem:[#allocation8 + $0x678] sm:$0xff]
    %v4235 = vld [vmem:[#allocation8 + $0x680] sm:$0xff]
    %v4236 = vld [vmem:[#allocation8 + $0x688] sm:$0xff]
    %v4237 = vld [vmem:[#allocation8 + $0x690] sm:$0xff]
    %v4238 = vld [vmem:[#allocation8 + $0x698] sm:$0xff]
    %v4239 = vld [vmem:[#allocation8 + $0x6a0] sm:$0xff]
    %v4240 = vld [vmem:[#allocation8 + $0x6a8] sm:$0xff]
    %v4241 = vld [vmem:[#allocation8 + $0x6b0] sm:$0xff]
    %v4242 = vld [vmem:[#allocation8 + $0x6b8] sm:$0xff]
    %v4243 = vld [vmem:[#allocation8 + $0x6c0] sm:$0xff]
    %v4244 = vld [vmem:[#allocation8 + $0x6c8] sm:$0xff]
    %v4245 = vld [vmem:[#allocation8 + $0x6d0] sm:$0xff]
    %v4246 = vld [vmem:[#allocation8 + $0x6d8] sm:$0xff]
    %v4247 = vld [vmem:[#allocation8 + $0x6e0] sm:$0xff]
    %v4248 = vld [vmem:[#allocation8 + $0x6e8] sm:$0xff]
    %v4249 = vld [vmem:[#allocation8 + $0x6f0] sm:$0xff]
    %v4250 = vld [vmem:[#allocation8 + $0x6f8] sm:$0xff]
    %v4251 = vld [vmem:[#allocation8 + $0x700] sm:$0xff]
    %v4252 = vld [vmem:[#allocation8 + $0x708] sm:$0xff]
    %v4253 = vld [vmem:[#allocation8 + $0x710] sm:$0xff]
    %v4254 = vld [vmem:[#allocation8 + $0x718] sm:$0xff]
    %v4255 = vld [vmem:[#allocation8 + $0x720] sm:$0xff]
    %v4256 = vld [vmem:[#allocation8 + $0x728] sm:$0xff]
    %v4257 = vld [vmem:[#allocation8 + $0x730] sm:$0xff]
    %v4258 = vld [vmem:[#allocation8 + $0x738] sm:$0xff]
    %v4259 = vld [vmem:[#allocation8 + $0x740] sm:$0xff]
    %v4260 = vld [vmem:[#allocation8 + $0x748] sm:$0xff]
    %v4261 = vld [vmem:[#allocation8 + $0x750] sm:$0xff]
    %v4262 = vld [vmem:[#allocation8 + $0x758] sm:$0xff]
    %v4263 = vld [vmem:[#allocation8 + $0x760] sm:$0xff]
    %v4264 = vld [vmem:[#allocation8 + $0x768] sm:$0xff]
    %v4265 = vld [vmem:[#allocation8 + $0x770] sm:$0xff]
    %v4266 = vld [vmem:[#allocation8 + $0x778] sm:$0xff]
    %v4267 = vld [vmem:[#allocation8 + $0x780] sm:$0xff]
    %v4268 = vld [vmem:[#allocation8 + $0x788] sm:$0xff]
    %v4269 = vld [vmem:[#allocation8 + $0x790] sm:$0xff]
    %v4270 = vld [vmem:[#allocation8 + $0x798] sm:$0xff]
    %v4271 = vld [vmem:[#allocation8 + $0x7a0] sm:$0xff]
    %v4272 = vld [vmem:[#allocation8 + $0x7a8] sm:$0xff]
    %v4273 = vld [vmem:[#allocation8 + $0x7b0] sm:$0xff]
    %v4274 = vld [vmem:[#allocation8 + $0x7b8] sm:$0xff]
    %v4275 = vld [vmem:[#allocation8 + $0x7c0] sm:$0xff]
    %v4276 = vld [vmem:[#allocation8 + $0x7c8] sm:$0xff]
    %v4277 = vld [vmem:[#allocation8 + $0x7d0] sm:$0xff]
    %v4278 = vld [vmem:[#allocation8 + $0x7d8] sm:$0xff]
    %v4279 = vld [vmem:[#allocation8 + $0x7e0] sm:$0xff]
    %v4280 = vld [vmem:[#allocation8 + $0x7e8] sm:$0xff]
    %v4281 = vld [vmem:[#allocation8 + $0x7f0] sm:$0xff]
    %v4282 = vld [vmem:[#allocation8 + $0x7f8] sm:$0xff]
    %v4283 = vld [vmem:[#allocation10] sm:$0xff]
    %v4285 = vlaneseq
    %v4286 = vshrl.u32 %v4285, 7
    %v4287 = vsub.s32 0, %v4286
    %v4288 = vrot.slane %v4283, %v4287
    %v4289 = vlaneseq
    %v4290 = vshrl.u32 %v4289, 7
    %v4291 = vsub.s32 1, %v4290
    %v4292 = vrot.slane %v4283, %v4291
    %v4293 = vlaneseq
    %v4294 = vshrl.u32 %v4293, 7
    %v4295 = vsub.s32 2, %v4294
    %v4296 = vrot.slane %v4283, %v4295
    %v4297 = vlaneseq
    %v4298 = vshrl.u32 %v4297, 7
    %v4299 = vsub.s32 3, %v4298
    %v4300 = vrot.slane %v4283, %v4299
    %v4301 = vlaneseq
    %v4302 = vshrl.u32 %v4301, 7
    %v4303 = vsub.s32 4, %v4302
    %v4304 = vrot.slane %v4283, %v4303
    %v4305 = vlaneseq
    %v4306 = vshrl.u32 %v4305, 7
    %v4307 = vsub.s32 5, %v4306
    %v4308 = vrot.slane %v4283, %v4307
    %v4309 = vlaneseq
    %v4310 = vshrl.u32 %v4309, 7
    %v4311 = vsub.s32 6, %v4310
    %v4312 = vrot.slane %v4283, %v4311
    %v4313 = vlaneseq
    %v4314 = vshrl.u32 %v4313, 7
    %v4315 = vsub.s32 7, %v4314
    %v4316 = vrot.slane %v4283, %v4315
    %v4581 = vunpack.c.l.b16 %v4027
    %v4582 = vunpack.c.h.b16 %v4027
    %v4583 = vunpack.c.l.b16 %v4028
    %v4584 = vunpack.c.h.b16 %v4028
    %v4585 = vunpack.c.l.b16 %v4029
    %v4586 = vunpack.c.h.b16 %v4029
    %v4587 = vunpack.c.l.b16 %v4030
    %v4588 = vunpack.c.h.b16 %v4030
    %v4589 = vunpack.c.l.b16 %v4031
    %v4590 = vunpack.c.h.b16 %v4031
    %v4591 = vunpack.c.l.b16 %v4032
    %v4592 = vunpack.c.h.b16 %v4032
    %v4593 = vunpack.c.l.b16 %v4033
    %v4594 = vunpack.c.h.b16 %v4033
    %v4595 = vunpack.c.l.b16 %v4034
    %v4596 = vunpack.c.h.b16 %v4034
    %v4597 = vunpack.c.l.b16 %v4035
    %v4598 = vunpack.c.h.b16 %v4035
    %v4599 = vunpack.c.l.b16 %v4036
    %v4600 = vunpack.c.h.b16 %v4036
    %v4601 = vunpack.c.l.b16 %v4037
    %v4602 = vunpack.c.h.b16 %v4037
    %v4603 = vunpack.c.l.b16 %v4038
    %v4604 = vunpack.c.h.b16 %v4038
    %v4605 = vunpack.c.l.b16 %v4039
    %v4606 = vunpack.c.h.b16 %v4039
    %v4607 = vunpack.c.l.b16 %v4040
    %v4608 = vunpack.c.h.b16 %v4040
    %v4609 = vunpack.c.l.b16 %v4041
    %v4610 = vunpack.c.h.b16 %v4041
    %v4611 = vunpack.c.l.b16 %v4042
    %v4612 = vunpack.c.h.b16 %v4042
    %v4613 = vunpack.c.l.b16 %v4043
    %v4614 = vunpack.c.h.b16 %v4043
    %v4615 = vunpack.c.l.b16 %v4044
    %v4616 = vunpack.c.h.b16 %v4044
    %v4617 = vunpack.c.l.b16 %v4045
    %v4618 = vunpack.c.h.b16 %v4045
    %v4619 = vunpack.c.l.b16 %v4046
    %v4620 = vunpack.c.h.b16 %v4046
    %v4621 = vunpack.c.l.b16 %v4047
    %v4622 = vunpack.c.h.b16 %v4047
    %v4623 = vunpack.c.l.b16 %v4048
    %v4624 = vunpack.c.h.b16 %v4048
    %v4625 = vunpack.c.l.b16 %v4049
    %v4626 = vunpack.c.h.b16 %v4049
    %v4627 = vunpack.c.l.b16 %v4050
    %v4628 = vunpack.c.h.b16 %v4050
    %v4629 = vunpack.c.l.b16 %v4051
    %v4630 = vunpack.c.h.b16 %v4051
    %v4631 = vunpack.c.l.b16 %v4052
    %v4632 = vunpack.c.h.b16 %v4052
    %v4633 = vunpack.c.l.b16 %v4053
    %v4634 = vunpack.c.h.b16 %v4053
    %v4635 = vunpack.c.l.b16 %v4054
    %v4636 = vunpack.c.h.b16 %v4054
    %v4637 = vunpack.c.l.b16 %v4055
    %v4638 = vunpack.c.h.b16 %v4055
    %v4639 = vunpack.c.l.b16 %v4056
    %v4640 = vunpack.c.h.b16 %v4056
    %v4641 = vunpack.c.l.b16 %v4057
    %v4642 = vunpack.c.h.b16 %v4057
    %v4643 = vunpack.c.l.b16 %v4058
    %v4644 = vunpack.c.h.b16 %v4058
    %v4645 = vunpack.c.l.b16 %v4059
    %v4646 = vunpack.c.h.b16 %v4059
    %v4647 = vunpack.c.l.b16 %v4060
    %v4648 = vunpack.c.h.b16 %v4060
    %v4649 = vunpack.c.l.b16 %v4061
    %v4650 = vunpack.c.h.b16 %v4061
    %v4651 = vunpack.c.l.b16 %v4062
    %v4652 = vunpack.c.h.b16 %v4062
    %v4653 = vunpack.c.l.b16 %v4063
    %v4654 = vunpack.c.h.b16 %v4063
    %v4655 = vunpack.c.l.b16 %v4064
    %v4656 = vunpack.c.h.b16 %v4064
    %v4657 = vunpack.c.l.b16 %v4065
    %v4658 = vunpack.c.h.b16 %v4065
    %v4659 = vunpack.c.l.b16 %v4066
    %v4660 = vunpack.c.h.b16 %v4066
    %v4661 = vunpack.c.l.b16 %v4067
    %v4662 = vunpack.c.h.b16 %v4067
    %v4663 = vunpack.c.l.b16 %v4068
    %v4664 = vunpack.c.h.b16 %v4068
    %v4665 = vunpack.c.l.b16 %v4069
    %v4666 = vunpack.c.h.b16 %v4069
    %v4667 = vunpack.c.l.b16 %v4070
    %v4668 = vunpack.c.h.b16 %v4070
    %v4669 = vunpack.c.l.b16 %v4071
    %v4670 = vunpack.c.h.b16 %v4071
    %v4671 = vunpack.c.l.b16 %v4072
    %v4672 = vunpack.c.h.b16 %v4072
    %v4673 = vunpack.c.l.b16 %v4073
    %v4674 = vunpack.c.h.b16 %v4073
    %v4675 = vunpack.c.l.b16 %v4074
    %v4676 = vunpack.c.h.b16 %v4074
    %v4677 = vunpack.c.l.b16 %v4075
    %v4678 = vunpack.c.h.b16 %v4075
    %v4679 = vunpack.c.l.b16 %v4076
    %v4680 = vunpack.c.h.b16 %v4076
    %v4681 = vunpack.c.l.b16 %v4077
    %v4682 = vunpack.c.h.b16 %v4077
    %v4683 = vunpack.c.l.b16 %v4078
    %v4684 = vunpack.c.h.b16 %v4078
    %v4685 = vunpack.c.l.b16 %v4079
    %v4686 = vunpack.c.h.b16 %v4079
    %v4687 = vunpack.c.l.b16 %v4080
    %v4688 = vunpack.c.h.b16 %v4080
    %v4689 = vunpack.c.l.b16 %v4081
    %v4690 = vunpack.c.h.b16 %v4081
    %v4691 = vunpack.c.l.b16 %v4082
    %v4692 = vunpack.c.h.b16 %v4082
    %v4693 = vunpack.c.l.b16 %v4083
    %v4694 = vunpack.c.h.b16 %v4083
    %v4695 = vunpack.c.l.b16 %v4084
    %v4696 = vunpack.c.h.b16 %v4084
    %v4697 = vunpack.c.l.b16 %v4085
    %v4698 = vunpack.c.h.b16 %v4085
    %v4699 = vunpack.c.l.b16 %v4086
    %v4700 = vunpack.c.h.b16 %v4086
    %v4701 = vunpack.c.l.b16 %v4087
    %v4702 = vunpack.c.h.b16 %v4087
    %v4703 = vunpack.c.l.b16 %v4088
    %v4704 = vunpack.c.h.b16 %v4088
    %v4705 = vunpack.c.l.b16 %v4089
    %v4706 = vunpack.c.h.b16 %v4089
    %v4707 = vunpack.c.l.b16 %v4090
    %v4708 = vunpack.c.h.b16 %v4090
    %v4709 = vunpack.c.l.b16 %v4091
    %v4710 = vunpack.c.h.b16 %v4091
    %v4711 = vunpack.c.l.b16 %v4092
    %v4712 = vunpack.c.h.b16 %v4092
    %v4713 = vunpack.c.l.b16 %v4093
    %v4714 = vunpack.c.h.b16 %v4093
    %v4715 = vunpack.c.l.b16 %v4094
    %v4716 = vunpack.c.h.b16 %v4094
    %v4717 = vunpack.c.l.b16 %v4095
    %v4718 = vunpack.c.h.b16 %v4095
    %v4719 = vunpack.c.l.b16 %v4096
    %v4720 = vunpack.c.h.b16 %v4096
    %v4721 = vunpack.c.l.b16 %v4097
    %v4722 = vunpack.c.h.b16 %v4097
    %v4723 = vunpack.c.l.b16 %v4098
    %v4724 = vunpack.c.h.b16 %v4098
    %v4725 = vunpack.c.l.b16 %v4099
    %v4726 = vunpack.c.h.b16 %v4099
    %v4727 = vunpack.c.l.b16 %v4100
    %v4728 = vunpack.c.h.b16 %v4100
    %v4729 = vunpack.c.l.b16 %v4101
    %v4730 = vunpack.c.h.b16 %v4101
    %v4731 = vunpack.c.l.b16 %v4102
    %v4732 = vunpack.c.h.b16 %v4102
    %v4733 = vunpack.c.l.b16 %v4103
    %v4734 = vunpack.c.h.b16 %v4103
    %v4735 = vunpack.c.l.b16 %v4104
    %v4736 = vunpack.c.h.b16 %v4104
    %v4737 = vunpack.c.l.b16 %v4105
    %v4738 = vunpack.c.h.b16 %v4105
    %v4739 = vunpack.c.l.b16 %v4106
    %v4740 = vunpack.c.h.b16 %v4106
    %v4741 = vunpack.c.l.b16 %v4107
    %v4742 = vunpack.c.h.b16 %v4107
    %v4743 = vunpack.c.l.b16 %v4108
    %v4744 = vunpack.c.h.b16 %v4108
    %v4745 = vunpack.c.l.b16 %v4109
    %v4746 = vunpack.c.h.b16 %v4109
    %v4747 = vunpack.c.l.b16 %v4110
    %v4748 = vunpack.c.h.b16 %v4110
    %v4749 = vunpack.c.l.b16 %v4111
    %v4750 = vunpack.c.h.b16 %v4111
    %v4751 = vunpack.c.l.b16 %v4112
    %v4752 = vunpack.c.h.b16 %v4112
    %v4753 = vunpack.c.l.b16 %v4113
    %v4754 = vunpack.c.h.b16 %v4113
    %v4755 = vunpack.c.l.b16 %v4114
    %v4756 = vunpack.c.h.b16 %v4114
    %v4757 = vunpack.c.l.b16 %v4115
    %v4758 = vunpack.c.h.b16 %v4115
    %v4759 = vunpack.c.l.b16 %v4116
    %v4760 = vunpack.c.h.b16 %v4116
    %v4761 = vunpack.c.l.b16 %v4117
    %v4762 = vunpack.c.h.b16 %v4117
    %v4763 = vunpack.c.l.b16 %v4118
    %v4764 = vunpack.c.h.b16 %v4118
    %v4765 = vunpack.c.l.b16 %v4119
    %v4766 = vunpack.c.h.b16 %v4119
    %v4767 = vunpack.c.l.b16 %v4120
    %v4768 = vunpack.c.h.b16 %v4120
    %v4769 = vunpack.c.l.b16 %v4121
    %v4770 = vunpack.c.h.b16 %v4121
    %v4771 = vunpack.c.l.b16 %v4122
    %v4772 = vunpack.c.h.b16 %v4122
    %v4773 = vunpack.c.l.b16 %v4123
    %v4774 = vunpack.c.h.b16 %v4123
    %v4775 = vunpack.c.l.b16 %v4124
    %v4776 = vunpack.c.h.b16 %v4124
    %v4777 = vunpack.c.l.b16 %v4125
    %v4778 = vunpack.c.h.b16 %v4125
    %v4779 = vunpack.c.l.b16 %v4126
    %v4780 = vunpack.c.h.b16 %v4126
    %v4781 = vunpack.c.l.b16 %v4127
    %v4782 = vunpack.c.h.b16 %v4127
    %v4783 = vunpack.c.l.b16 %v4128
    %v4784 = vunpack.c.h.b16 %v4128
    %v4785 = vunpack.c.l.b16 %v4129
    %v4786 = vunpack.c.h.b16 %v4129
    %v4787 = vunpack.c.l.b16 %v4130
    %v4788 = vunpack.c.h.b16 %v4130
    %v4789 = vunpack.c.l.b16 %v4131
    %v4790 = vunpack.c.h.b16 %v4131
    %v4791 = vunpack.c.l.b16 %v4132
    %v4792 = vunpack.c.h.b16 %v4132
    %v4793 = vunpack.c.l.b16 %v4133
    %v4794 = vunpack.c.h.b16 %v4133
    %v4795 = vunpack.c.l.b16 %v4134
    %v4796 = vunpack.c.h.b16 %v4134
    %v4797 = vunpack.c.l.b16 %v4135
    %v4798 = vunpack.c.h.b16 %v4135
    %v4799 = vunpack.c.l.b16 %v4136
    %v4800 = vunpack.c.h.b16 %v4136
    %v4801 = vunpack.c.l.b16 %v4137
    %v4802 = vunpack.c.h.b16 %v4137
    %v4803 = vunpack.c.l.b16 %v4138
    %v4804 = vunpack.c.h.b16 %v4138
    %v4805 = vunpack.c.l.b16 %v4139
    %v4806 = vunpack.c.h.b16 %v4139
    %v4807 = vunpack.c.l.b16 %v4140
    %v4808 = vunpack.c.h.b16 %v4140
    %v4809 = vunpack.c.l.b16 %v4141
    %v4810 = vunpack.c.h.b16 %v4141
    %v4811 = vunpack.c.l.b16 %v4142
    %v4812 = vunpack.c.h.b16 %v4142
    %v4813 = vunpack.c.l.b16 %v4143
    %v4814 = vunpack.c.h.b16 %v4143
    %v4815 = vunpack.c.l.b16 %v4144
    %v4816 = vunpack.c.h.b16 %v4144
    %v4817 = vunpack.c.l.b16 %v4145
    %v4818 = vunpack.c.h.b16 %v4145
    %v4819 = vunpack.c.l.b16 %v4146
    %v4820 = vunpack.c.h.b16 %v4146
    %v4821 = vunpack.c.l.b16 %v4147
    %v4822 = vunpack.c.h.b16 %v4147
    %v4823 = vunpack.c.l.b16 %v4148
    %v4824 = vunpack.c.h.b16 %v4148
    %v4825 = vunpack.c.l.b16 %v4149
    %v4826 = vunpack.c.h.b16 %v4149
    %v4827 = vunpack.c.l.b16 %v4150
    %v4828 = vunpack.c.h.b16 %v4150
    %v4829 = vunpack.c.l.b16 %v4151
    %v4830 = vunpack.c.h.b16 %v4151
    %v4831 = vunpack.c.l.b16 %v4152
    %v4832 = vunpack.c.h.b16 %v4152
    %v4833 = vunpack.c.l.b16 %v4153
    %v4834 = vunpack.c.h.b16 %v4153
    %v4835 = vunpack.c.l.b16 %v4154
    %v4836 = vunpack.c.h.b16 %v4154
    %v4837 = vunpack.c.l.b16 %v4155
    %v4838 = vunpack.c.h.b16 %v4155
    %v4839 = vunpack.c.l.b16 %v4156
    %v4840 = vunpack.c.h.b16 %v4156
    %v4841 = vunpack.c.l.b16 %v4157
    %v4842 = vunpack.c.h.b16 %v4157
    %v4843 = vunpack.c.l.b16 %v4158
    %v4844 = vunpack.c.h.b16 %v4158
    %v4845 = vunpack.c.l.b16 %v4159
    %v4846 = vunpack.c.h.b16 %v4159
    %v4847 = vunpack.c.l.b16 %v4160
    %v4848 = vunpack.c.h.b16 %v4160
    %v4849 = vunpack.c.l.b16 %v4161
    %v4850 = vunpack.c.h.b16 %v4161
    %v4851 = vunpack.c.l.b16 %v4162
    %v4852 = vunpack.c.h.b16 %v4162
    %v4853 = vunpack.c.l.b16 %v4163
    %v4854 = vunpack.c.h.b16 %v4163
    %v4855 = vunpack.c.l.b16 %v4164
    %v4856 = vunpack.c.h.b16 %v4164
    %v4857 = vunpack.c.l.b16 %v4165
    %v4858 = vunpack.c.h.b16 %v4165
    %v4859 = vunpack.c.l.b16 %v4166
    %v4860 = vunpack.c.h.b16 %v4166
    %v4861 = vunpack.c.l.b16 %v4167
    %v4862 = vunpack.c.h.b16 %v4167
    %v4863 = vunpack.c.l.b16 %v4168
    %v4864 = vunpack.c.h.b16 %v4168
    %v4865 = vunpack.c.l.b16 %v4169
    %v4866 = vunpack.c.h.b16 %v4169
    %v4867 = vunpack.c.l.b16 %v4170
    %v4868 = vunpack.c.h.b16 %v4170
    %v4869 = vunpack.c.l.b16 %v4171
    %v4870 = vunpack.c.h.b16 %v4171
    %v4871 = vunpack.c.l.b16 %v4172
    %v4872 = vunpack.c.h.b16 %v4172
    %v4873 = vunpack.c.l.b16 %v4173
    %v4874 = vunpack.c.h.b16 %v4173
    %v4875 = vunpack.c.l.b16 %v4174
    %v4876 = vunpack.c.h.b16 %v4174
    %v4877 = vunpack.c.l.b16 %v4175
    %v4878 = vunpack.c.h.b16 %v4175
    %v4879 = vunpack.c.l.b16 %v4176
    %v4880 = vunpack.c.h.b16 %v4176
    %v4881 = vunpack.c.l.b16 %v4177
    %v4882 = vunpack.c.h.b16 %v4177
    %v4883 = vunpack.c.l.b16 %v4178
    %v4884 = vunpack.c.h.b16 %v4178
    %v4885 = vunpack.c.l.b16 %v4179
    %v4886 = vunpack.c.h.b16 %v4179
    %v4887 = vunpack.c.l.b16 %v4180
    %v4888 = vunpack.c.h.b16 %v4180
    %v4889 = vunpack.c.l.b16 %v4181
    %v4890 = vunpack.c.h.b16 %v4181
    %v4891 = vunpack.c.l.b16 %v4182
    %v4892 = vunpack.c.h.b16 %v4182
    %v4893 = vunpack.c.l.b16 %v4183
    %v4894 = vunpack.c.h.b16 %v4183
    %v4895 = vunpack.c.l.b16 %v4184
    %v4896 = vunpack.c.h.b16 %v4184
    %v4897 = vunpack.c.l.b16 %v4185
    %v4898 = vunpack.c.h.b16 %v4185
    %v4899 = vunpack.c.l.b16 %v4186
    %v4900 = vunpack.c.h.b16 %v4186
    %v4901 = vunpack.c.l.b16 %v4187
    %v4902 = vunpack.c.h.b16 %v4187
    %v4903 = vunpack.c.l.b16 %v4188
    %v4904 = vunpack.c.h.b16 %v4188
    %v4905 = vunpack.c.l.b16 %v4189
    %v4906 = vunpack.c.h.b16 %v4189
    %v4907 = vunpack.c.l.b16 %v4190
    %v4908 = vunpack.c.h.b16 %v4190
    %v4909 = vunpack.c.l.b16 %v4191
    %v4910 = vunpack.c.h.b16 %v4191
    %v4911 = vunpack.c.l.b16 %v4192
    %v4912 = vunpack.c.h.b16 %v4192
    %v4913 = vunpack.c.l.b16 %v4193
    %v4914 = vunpack.c.h.b16 %v4193
    %v4915 = vunpack.c.l.b16 %v4194
    %v4916 = vunpack.c.h.b16 %v4194
    %v4917 = vunpack.c.l.b16 %v4195
    %v4918 = vunpack.c.h.b16 %v4195
    %v4919 = vunpack.c.l.b16 %v4196
    %v4920 = vunpack.c.h.b16 %v4196
    %v4921 = vunpack.c.l.b16 %v4197
    %v4922 = vunpack.c.h.b16 %v4197
    %v4923 = vunpack.c.l.b16 %v4198
    %v4924 = vunpack.c.h.b16 %v4198
    %v4925 = vunpack.c.l.b16 %v4199
    %v4926 = vunpack.c.h.b16 %v4199
    %v4927 = vunpack.c.l.b16 %v4200
    %v4928 = vunpack.c.h.b16 %v4200
    %v4929 = vunpack.c.l.b16 %v4201
    %v4930 = vunpack.c.h.b16 %v4201
    %v4931 = vunpack.c.l.b16 %v4202
    %v4932 = vunpack.c.h.b16 %v4202
    %v4933 = vunpack.c.l.b16 %v4203
    %v4934 = vunpack.c.h.b16 %v4203
    %v4935 = vunpack.c.l.b16 %v4204
    %v4936 = vunpack.c.h.b16 %v4204
    %v4937 = vunpack.c.l.b16 %v4205
    %v4938 = vunpack.c.h.b16 %v4205
    %v4939 = vunpack.c.l.b16 %v4206
    %v4940 = vunpack.c.h.b16 %v4206
    %v4941 = vunpack.c.l.b16 %v4207
    %v4942 = vunpack.c.h.b16 %v4207
    %v4943 = vunpack.c.l.b16 %v4208
    %v4944 = vunpack.c.h.b16 %v4208
    %v4945 = vunpack.c.l.b16 %v4209
    %v4946 = vunpack.c.h.b16 %v4209
    %v4947 = vunpack.c.l.b16 %v4210
    %v4948 = vunpack.c.h.b16 %v4210
    %v4949 = vunpack.c.l.b16 %v4211
    %v4950 = vunpack.c.h.b16 %v4211
    %v4951 = vunpack.c.l.b16 %v4212
    %v4952 = vunpack.c.h.b16 %v4212
    %v4953 = vunpack.c.l.b16 %v4213
    %v4954 = vunpack.c.h.b16 %v4213
    %v4955 = vunpack.c.l.b16 %v4214
    %v4956 = vunpack.c.h.b16 %v4214
    %v4957 = vunpack.c.l.b16 %v4215
    %v4958 = vunpack.c.h.b16 %v4215
    %v4959 = vunpack.c.l.b16 %v4216
    %v4960 = vunpack.c.h.b16 %v4216
    %v4961 = vunpack.c.l.b16 %v4217
    %v4962 = vunpack.c.h.b16 %v4217
    %v4963 = vunpack.c.l.b16 %v4218
    %v4964 = vunpack.c.h.b16 %v4218
    %v4965 = vunpack.c.l.b16 %v4219
    %v4966 = vunpack.c.h.b16 %v4219
    %v4967 = vunpack.c.l.b16 %v4220
    %v4968 = vunpack.c.h.b16 %v4220
    %v4969 = vunpack.c.l.b16 %v4221
    %v4970 = vunpack.c.h.b16 %v4221
    %v4971 = vunpack.c.l.b16 %v4222
    %v4972 = vunpack.c.h.b16 %v4222
    %v4973 = vunpack.c.l.b16 %v4223
    %v4974 = vunpack.c.h.b16 %v4223
    %v4975 = vunpack.c.l.b16 %v4224
    %v4976 = vunpack.c.h.b16 %v4224
    %v4977 = vunpack.c.l.b16 %v4225
    %v4978 = vunpack.c.h.b16 %v4225
    %v4979 = vunpack.c.l.b16 %v4226
    %v4980 = vunpack.c.h.b16 %v4226
    %v4981 = vunpack.c.l.b16 %v4227
    %v4982 = vunpack.c.h.b16 %v4227
    %v4983 = vunpack.c.l.b16 %v4228
    %v4984 = vunpack.c.h.b16 %v4228
    %v4985 = vunpack.c.l.b16 %v4229
    %v4986 = vunpack.c.h.b16 %v4229
    %v4987 = vunpack.c.l.b16 %v4230
    %v4988 = vunpack.c.h.b16 %v4230
    %v4989 = vunpack.c.l.b16 %v4231
    %v4990 = vunpack.c.h.b16 %v4231
    %v4991 = vunpack.c.l.b16 %v4232
    %v4992 = vunpack.c.h.b16 %v4232
    %v4993 = vunpack.c.l.b16 %v4233
    %v4994 = vunpack.c.h.b16 %v4233
    %v4995 = vunpack.c.l.b16 %v4234
    %v4996 = vunpack.c.h.b16 %v4234
    %v4997 = vunpack.c.l.b16 %v4235
    %v4998 = vunpack.c.h.b16 %v4235
    %v4999 = vunpack.c.l.b16 %v4236
    %v5000 = vunpack.c.h.b16 %v4236
    %v5001 = vunpack.c.l.b16 %v4237
    %v5002 = vunpack.c.h.b16 %v4237
    %v5003 = vunpack.c.l.b16 %v4238
    %v5004 = vunpack.c.h.b16 %v4238
    %v5005 = vunpack.c.l.b16 %v4239
    %v5006 = vunpack.c.h.b16 %v4239
    %v5007 = vunpack.c.l.b16 %v4240
    %v5008 = vunpack.c.h.b16 %v4240
    %v5009 = vunpack.c.l.b16 %v4241
    %v5010 = vunpack.c.h.b16 %v4241
    %v5011 = vunpack.c.l.b16 %v4242
    %v5012 = vunpack.c.h.b16 %v4242
    %v5013 = vunpack.c.l.b16 %v4243
    %v5014 = vunpack.c.h.b16 %v4243
    %v5015 = vunpack.c.l.b16 %v4244
    %v5016 = vunpack.c.h.b16 %v4244
    %v5017 = vunpack.c.l.b16 %v4245
    %v5018 = vunpack.c.h.b16 %v4245
    %v5019 = vunpack.c.l.b16 %v4246
    %v5020 = vunpack.c.h.b16 %v4246
    %v5021 = vunpack.c.l.b16 %v4247
    %v5022 = vunpack.c.h.b16 %v4247
    %v5023 = vunpack.c.l.b16 %v4248
    %v5024 = vunpack.c.h.b16 %v4248
    %v5025 = vunpack.c.l.b16 %v4249
    %v5026 = vunpack.c.h.b16 %v4249
    %v5027 = vunpack.c.l.b16 %v4250
    %v5028 = vunpack.c.h.b16 %v4250
    %v5029 = vunpack.c.l.b16 %v4251
    %v5030 = vunpack.c.h.b16 %v4251
    %v5031 = vunpack.c.l.b16 %v4252
    %v5032 = vunpack.c.h.b16 %v4252
    %v5033 = vunpack.c.l.b16 %v4253
    %v5034 = vunpack.c.h.b16 %v4253
    %v5035 = vunpack.c.l.b16 %v4254
    %v5036 = vunpack.c.h.b16 %v4254
    %v5037 = vunpack.c.l.b16 %v4255
    %v5038 = vunpack.c.h.b16 %v4255
    %v5039 = vunpack.c.l.b16 %v4256
    %v5040 = vunpack.c.h.b16 %v4256
    %v5041 = vunpack.c.l.b16 %v4257
    %v5042 = vunpack.c.h.b16 %v4257
    %v5043 = vunpack.c.l.b16 %v4258
    %v5044 = vunpack.c.h.b16 %v4258
    %v5045 = vunpack.c.l.b16 %v4259
    %v5046 = vunpack.c.h.b16 %v4259
    %v5047 = vunpack.c.l.b16 %v4260
    %v5048 = vunpack.c.h.b16 %v4260
    %v5049 = vunpack.c.l.b16 %v4261
    %v5050 = vunpack.c.h.b16 %v4261
    %v5051 = vunpack.c.l.b16 %v4262
    %v5052 = vunpack.c.h.b16 %v4262
    %v5053 = vunpack.c.l.b16 %v4263
    %v5054 = vunpack.c.h.b16 %v4263
    %v5055 = vunpack.c.l.b16 %v4264
    %v5056 = vunpack.c.h.b16 %v4264
    %v5057 = vunpack.c.l.b16 %v4265
    %v5058 = vunpack.c.h.b16 %v4265
    %v5059 = vunpack.c.l.b16 %v4266
    %v5060 = vunpack.c.h.b16 %v4266
    %v5061 = vunpack.c.l.b16 %v4267
    %v5062 = vunpack.c.h.b16 %v4267
    %v5063 = vunpack.c.l.b16 %v4268
    %v5064 = vunpack.c.h.b16 %v4268
    %v5065 = vunpack.c.l.b16 %v4269
    %v5066 = vunpack.c.h.b16 %v4269
    %v5067 = vunpack.c.l.b16 %v4270
    %v5068 = vunpack.c.h.b16 %v4270
    %v5069 = vunpack.c.l.b16 %v4271
    %v5070 = vunpack.c.h.b16 %v4271
    %v5071 = vunpack.c.l.b16 %v4272
    %v5072 = vunpack.c.h.b16 %v4272
    %v5073 = vunpack.c.l.b16 %v4273
    %v5074 = vunpack.c.h.b16 %v4273
    %v5075 = vunpack.c.l.b16 %v4274
    %v5076 = vunpack.c.h.b16 %v4274
    %v5077 = vunpack.c.l.b16 %v4275
    %v5078 = vunpack.c.h.b16 %v4275
    %v5079 = vunpack.c.l.b16 %v4276
    %v5080 = vunpack.c.h.b16 %v4276
    %v5081 = vunpack.c.l.b16 %v4277
    %v5082 = vunpack.c.h.b16 %v4277
    %v5083 = vunpack.c.l.b16 %v4278
    %v5084 = vunpack.c.h.b16 %v4278
    %v5085 = vunpack.c.l.b16 %v4279
    %v5086 = vunpack.c.h.b16 %v4279
    %v5087 = vunpack.c.l.b16 %v4280
    %v5088 = vunpack.c.h.b16 %v4280
    %v5089 = vunpack.c.l.b16 %v4281
    %v5090 = vunpack.c.h.b16 %v4281
    %v5091 = vunpack.c.l.b16 %v4282
    %v5092 = vunpack.c.h.b16 %v4282
    %v5093 = vpack.c.b16 %v4589, %v4581
    %v5094 = vpack.c.b16 %v4590, %v4582
    %v5095 = vpack.c.b16 %v4591, %v4583
    %v5096 = vpack.c.b16 %v4592, %v4584
    %v5097 = vpack.c.b16 %v4593, %v4585
    %v5098 = vpack.c.b16 %v4594, %v4586
    %v5099 = vpack.c.b16 %v4595, %v4587
    %v5100 = vpack.c.b16 %v4596, %v4588
    %v5101 = vpack.c.b16 %v4605, %v4597
    %v5102 = vpack.c.b16 %v4606, %v4598
    %v5103 = vpack.c.b16 %v4607, %v4599
    %v5104 = vpack.c.b16 %v4608, %v4600
    %v5105 = vpack.c.b16 %v4609, %v4601
    %v5106 = vpack.c.b16 %v4610, %v4602
    %v5107 = vpack.c.b16 %v4611, %v4603
    %v5108 = vpack.c.b16 %v4612, %v4604
    %v5109 = vpack.c.b16 %v4621, %v4613
    %v5110 = vpack.c.b16 %v4622, %v4614
    %v5111 = vpack.c.b16 %v4623, %v4615
    %v5112 = vpack.c.b16 %v4624, %v4616
    %v5113 = vpack.c.b16 %v4625, %v4617
    %v5114 = vpack.c.b16 %v4626, %v4618
    %v5115 = vpack.c.b16 %v4627, %v4619
    %v5116 = vpack.c.b16 %v4628, %v4620
    %v5117 = vpack.c.b16 %v4637, %v4629
    %v5118 = vpack.c.b16 %v4638, %v4630
    %v5119 = vpack.c.b16 %v4639, %v4631
    %v5120 = vpack.c.b16 %v4640, %v4632
    %v5121 = vpack.c.b16 %v4641, %v4633
    %v5122 = vpack.c.b16 %v4642, %v4634
    %v5123 = vpack.c.b16 %v4643, %v4635
    %v5124 = vpack.c.b16 %v4644, %v4636
    %v5125 = vpack.c.b16 %v4653, %v4645
    %v5126 = vpack.c.b16 %v4654, %v4646
    %v5127 = vpack.c.b16 %v4655, %v4647
    %v5128 = vpack.c.b16 %v4656, %v4648
    %v5129 = vpack.c.b16 %v4657, %v4649
    %v5130 = vpack.c.b16 %v4658, %v4650
    %v5131 = vpack.c.b16 %v4659, %v4651
    %v5132 = vpack.c.b16 %v4660, %v4652
    %v5133 = vpack.c.b16 %v4669, %v4661
    %v5134 = vpack.c.b16 %v4670, %v4662
    %v5135 = vpack.c.b16 %v4671, %v4663
    %v5136 = vpack.c.b16 %v4672, %v4664
    %v5137 = vpack.c.b16 %v4673, %v4665
    %v5138 = vpack.c.b16 %v4674, %v4666
    %v5139 = vpack.c.b16 %v4675, %v4667
    %v5140 = vpack.c.b16 %v4676, %v4668
    %v5141 = vpack.c.b16 %v4685, %v4677
    %v5142 = vpack.c.b16 %v4686, %v4678
    %v5143 = vpack.c.b16 %v4687, %v4679
    %v5144 = vpack.c.b16 %v4688, %v4680
    %v5145 = vpack.c.b16 %v4689, %v4681
    %v5146 = vpack.c.b16 %v4690, %v4682
    %v5147 = vpack.c.b16 %v4691, %v4683
    %v5148 = vpack.c.b16 %v4692, %v4684
    %v5149 = vpack.c.b16 %v4701, %v4693
    %v5150 = vpack.c.b16 %v4702, %v4694
    %v5151 = vpack.c.b16 %v4703, %v4695
    %v5152 = vpack.c.b16 %v4704, %v4696
    %v5153 = vpack.c.b16 %v4705, %v4697
    %v5154 = vpack.c.b16 %v4706, %v4698
    %v5155 = vpack.c.b16 %v4707, %v4699
    %v5156 = vpack.c.b16 %v4708, %v4700
    %v5157 = vpack.c.b16 %v4717, %v4709
    %v5158 = vpack.c.b16 %v4718, %v4710
    %v5159 = vpack.c.b16 %v4719, %v4711
    %v5160 = vpack.c.b16 %v4720, %v4712
    %v5161 = vpack.c.b16 %v4721, %v4713
    %v5162 = vpack.c.b16 %v4722, %v4714
    %v5163 = vpack.c.b16 %v4723, %v4715
    %v5164 = vpack.c.b16 %v4724, %v4716
    %v5165 = vpack.c.b16 %v4733, %v4725
    %v5166 = vpack.c.b16 %v4734, %v4726
    %v5167 = vpack.c.b16 %v4735, %v4727
    %v5168 = vpack.c.b16 %v4736, %v4728
    %v5169 = vpack.c.b16 %v4737, %v4729
    %v5170 = vpack.c.b16 %v4738, %v4730
    %v5171 = vpack.c.b16 %v4739, %v4731
    %v5172 = vpack.c.b16 %v4740, %v4732
    %v5173 = vpack.c.b16 %v4749, %v4741
    %v5174 = vpack.c.b16 %v4750, %v4742
    %v5175 = vpack.c.b16 %v4751, %v4743
    %v5176 = vpack.c.b16 %v4752, %v4744
    %v5177 = vpack.c.b16 %v4753, %v4745
    %v5178 = vpack.c.b16 %v4754, %v4746
    %v5179 = vpack.c.b16 %v4755, %v4747
    %v5180 = vpack.c.b16 %v4756, %v4748
    %v5181 = vpack.c.b16 %v4765, %v4757
    %v5182 = vpack.c.b16 %v4766, %v4758
    %v5183 = vpack.c.b16 %v4767, %v4759
    %v5184 = vpack.c.b16 %v4768, %v4760
    %v5185 = vpack.c.b16 %v4769, %v4761
    %v5186 = vpack.c.b16 %v4770, %v4762
    %v5187 = vpack.c.b16 %v4771, %v4763
    %v5188 = vpack.c.b16 %v4772, %v4764
    %v5189 = vpack.c.b16 %v4781, %v4773
    %v5190 = vpack.c.b16 %v4782, %v4774
    %v5191 = vpack.c.b16 %v4783, %v4775
    %v5192 = vpack.c.b16 %v4784, %v4776
    %v5193 = vpack.c.b16 %v4785, %v4777
    %v5194 = vpack.c.b16 %v4786, %v4778
    %v5195 = vpack.c.b16 %v4787, %v4779
    %v5196 = vpack.c.b16 %v4788, %v4780
    %v5197 = vpack.c.b16 %v4797, %v4789
    %v5198 = vpack.c.b16 %v4798, %v4790
    %v5199 = vpack.c.b16 %v4799, %v4791
    %v5200 = vpack.c.b16 %v4800, %v4792
    %v5201 = vpack.c.b16 %v4801, %v4793
    %v5202 = vpack.c.b16 %v4802, %v4794
    %v5203 = vpack.c.b16 %v4803, %v4795
    %v5204 = vpack.c.b16 %v4804, %v4796
    %v5205 = vpack.c.b16 %v4813, %v4805
    %v5206 = vpack.c.b16 %v4814, %v4806
    %v5207 = vpack.c.b16 %v4815, %v4807
    %v5208 = vpack.c.b16 %v4816, %v4808
    %v5209 = vpack.c.b16 %v4817, %v4809
    %v5210 = vpack.c.b16 %v4818, %v4810
    %v5211 = vpack.c.b16 %v4819, %v4811
    %v5212 = vpack.c.b16 %v4820, %v4812
    %v5213 = vpack.c.b16 %v4829, %v4821
    %v5214 = vpack.c.b16 %v4830, %v4822
    %v5215 = vpack.c.b16 %v4831, %v4823
    %v5216 = vpack.c.b16 %v4832, %v4824
    %v5217 = vpack.c.b16 %v4833, %v4825
    %v5218 = vpack.c.b16 %v4834, %v4826
    %v5219 = vpack.c.b16 %v4835, %v4827
    %v5220 = vpack.c.b16 %v4836, %v4828
    %v5221 = vpack.c.b16 %v4845, %v4837
    %v5222 = vpack.c.b16 %v4846, %v4838
    %v5223 = vpack.c.b16 %v4847, %v4839
    %v5224 = vpack.c.b16 %v4848, %v4840
    %v5225 = vpack.c.b16 %v4849, %v4841
    %v5226 = vpack.c.b16 %v4850, %v4842
    %v5227 = vpack.c.b16 %v4851, %v4843
    %v5228 = vpack.c.b16 %v4852, %v4844
    %v5229 = vpack.c.b16 %v4861, %v4853
    %v5230 = vpack.c.b16 %v4862, %v4854
    %v5231 = vpack.c.b16 %v4863, %v4855
    %v5232 = vpack.c.b16 %v4864, %v4856
    %v5233 = vpack.c.b16 %v4865, %v4857
    %v5234 = vpack.c.b16 %v4866, %v4858
    %v5235 = vpack.c.b16 %v4867, %v4859
    %v5236 = vpack.c.b16 %v4868, %v4860
    %v5237 = vpack.c.b16 %v4877, %v4869
    %v5238 = vpack.c.b16 %v4878, %v4870
    %v5239 = vpack.c.b16 %v4879, %v4871
    %v5240 = vpack.c.b16 %v4880, %v4872
    %v5241 = vpack.c.b16 %v4881, %v4873
    %v5242 = vpack.c.b16 %v4882, %v4874
    %v5243 = vpack.c.b16 %v4883, %v4875
    %v5244 = vpack.c.b16 %v4884, %v4876
    %v5245 = vpack.c.b16 %v4893, %v4885
    %v5246 = vpack.c.b16 %v4894, %v4886
    %v5247 = vpack.c.b16 %v4895, %v4887
    %v5248 = vpack.c.b16 %v4896, %v4888
    %v5249 = vpack.c.b16 %v4897, %v4889
    %v5250 = vpack.c.b16 %v4898, %v4890
    %v5251 = vpack.c.b16 %v4899, %v4891
    %v5252 = vpack.c.b16 %v4900, %v4892
    %v5253 = vpack.c.b16 %v4909, %v4901
    %v5254 = vpack.c.b16 %v4910, %v4902
    %v5255 = vpack.c.b16 %v4911, %v4903
    %v5256 = vpack.c.b16 %v4912, %v4904
    %v5257 = vpack.c.b16 %v4913, %v4905
    %v5258 = vpack.c.b16 %v4914, %v4906
    %v5259 = vpack.c.b16 %v4915, %v4907
    %v5260 = vpack.c.b16 %v4916, %v4908
    %v5261 = vpack.c.b16 %v4925, %v4917
    %v5262 = vpack.c.b16 %v4926, %v4918
    %v5263 = vpack.c.b16 %v4927, %v4919
    %v5264 = vpack.c.b16 %v4928, %v4920
    %v5265 = vpack.c.b16 %v4929, %v4921
    %v5266 = vpack.c.b16 %v4930, %v4922
    %v5267 = vpack.c.b16 %v4931, %v4923
    %v5268 = vpack.c.b16 %v4932, %v4924
    %v5269 = vpack.c.b16 %v4941, %v4933
    %v5270 = vpack.c.b16 %v4942, %v4934
    %v5271 = vpack.c.b16 %v4943, %v4935
    %v5272 = vpack.c.b16 %v4944, %v4936
    %v5273 = vpack.c.b16 %v4945, %v4937
    %v5274 = vpack.c.b16 %v4946, %v4938
    %v5275 = vpack.c.b16 %v4947, %v4939
    %v5276 = vpack.c.b16 %v4948, %v4940
    %v5277 = vpack.c.b16 %v4957, %v4949
    %v5278 = vpack.c.b16 %v4958, %v4950
    %v5279 = vpack.c.b16 %v4959, %v4951
    %v5280 = vpack.c.b16 %v4960, %v4952
    %v5281 = vpack.c.b16 %v4961, %v4953
    %v5282 = vpack.c.b16 %v4962, %v4954
    %v5283 = vpack.c.b16 %v4963, %v4955
    %v5284 = vpack.c.b16 %v4964, %v4956
    %v5285 = vpack.c.b16 %v4973, %v4965
    %v5286 = vpack.c.b16 %v4974, %v4966
    %v5287 = vpack.c.b16 %v4975, %v4967
    %v5288 = vpack.c.b16 %v4976, %v4968
    %v5289 = vpack.c.b16 %v4977, %v4969
    %v5290 = vpack.c.b16 %v4978, %v4970
    %v5291 = vpack.c.b16 %v4979, %v4971
    %v5292 = vpack.c.b16 %v4980, %v4972
    %v5293 = vpack.c.b16 %v4989, %v4981
    %v5294 = vpack.c.b16 %v4990, %v4982
    %v5295 = vpack.c.b16 %v4991, %v4983
    %v5296 = vpack.c.b16 %v4992, %v4984
    %v5297 = vpack.c.b16 %v4993, %v4985
    %v5298 = vpack.c.b16 %v4994, %v4986
    %v5299 = vpack.c.b16 %v4995, %v4987
    %v5300 = vpack.c.b16 %v4996, %v4988
    %v5301 = vpack.c.b16 %v5005, %v4997
    %v5302 = vpack.c.b16 %v5006, %v4998
    %v5303 = vpack.c.b16 %v5007, %v4999
    %v5304 = vpack.c.b16 %v5008, %v5000
    %v5305 = vpack.c.b16 %v5009, %v5001
    %v5306 = vpack.c.b16 %v5010, %v5002
    %v5307 = vpack.c.b16 %v5011, %v5003
    %v5308 = vpack.c.b16 %v5012, %v5004
    %v5309 = vpack.c.b16 %v5021, %v5013
    %v5310 = vpack.c.b16 %v5022, %v5014
    %v5311 = vpack.c.b16 %v5023, %v5015
    %v5312 = vpack.c.b16 %v5024, %v5016
    %v5313 = vpack.c.b16 %v5025, %v5017
    %v5314 = vpack.c.b16 %v5026, %v5018
    %v5315 = vpack.c.b16 %v5027, %v5019
    %v5316 = vpack.c.b16 %v5028, %v5020
    %v5317 = vpack.c.b16 %v5037, %v5029
    %v5318 = vpack.c.b16 %v5038, %v5030
    %v5319 = vpack.c.b16 %v5039, %v5031
    %v5320 = vpack.c.b16 %v5040, %v5032
    %v5321 = vpack.c.b16 %v5041, %v5033
    %v5322 = vpack.c.b16 %v5042, %v5034
    %v5323 = vpack.c.b16 %v5043, %v5035
    %v5324 = vpack.c.b16 %v5044, %v5036
    %v5325 = vpack.c.b16 %v5053, %v5045
    %v5326 = vpack.c.b16 %v5054, %v5046
    %v5327 = vpack.c.b16 %v5055, %v5047
    %v5328 = vpack.c.b16 %v5056, %v5048
    %v5329 = vpack.c.b16 %v5057, %v5049
    %v5330 = vpack.c.b16 %v5058, %v5050
    %v5331 = vpack.c.b16 %v5059, %v5051
    %v5332 = vpack.c.b16 %v5060, %v5052
    %v5333 = vpack.c.b16 %v5069, %v5061
    %v5334 = vpack.c.b16 %v5070, %v5062
    %v5335 = vpack.c.b16 %v5071, %v5063
    %v5336 = vpack.c.b16 %v5072, %v5064
    %v5337 = vpack.c.b16 %v5073, %v5065
    %v5338 = vpack.c.b16 %v5074, %v5066
    %v5339 = vpack.c.b16 %v5075, %v5067
    %v5340 = vpack.c.b16 %v5076, %v5068
    %v5341 = vpack.c.b16 %v5085, %v5077
    %v5342 = vpack.c.b16 %v5086, %v5078
    %v5343 = vpack.c.b16 %v5087, %v5079
    %v5344 = vpack.c.b16 %v5088, %v5080
    %v5345 = vpack.c.b16 %v5089, %v5081
    %v5346 = vpack.c.b16 %v5090, %v5082
    %v5347 = vpack.c.b16 %v5091, %v5083
    %v5348 = vpack.c.b16 %v5092, %v5084
    %5605 = vmatprep.subr.bf16.mxu0 %v5094
    %5606 = vmatpush1.bf16.msra.mxu0 %v5093
    %5607 = vmatprep.subr.bf16.mxu0 %v5102
    %5608 = vmatpush1.bf16.msra.mxu0 %v5101
    %5609 = vmatprep.subr.bf16.mxu0 %v5110
    %5610 = vmatpush1.bf16.msra.mxu0 %v5109
    %5611 = vmatprep.subr.bf16.mxu0 %v5118
    %5612 = vmatpush1.bf16.msra.mxu0 %v5117
    %5613 = vmatprep.subr.bf16.mxu0 %v5126
    %5614 = vmatpush1.bf16.msra.mxu0 %v5125
    %5615 = vmatprep.subr.bf16.mxu0 %v5134
    %5616 = vmatpush1.bf16.msra.mxu0 %v5133
    %5617 = vmatprep.subr.bf16.mxu0 %v5142
    %5618 = vmatpush1.bf16.msra.mxu0 %v5141
    %5619 = vmatprep.subr.bf16.mxu0 %v5150
    %5620 = vmatpush1.bf16.msra.mxu0 %v5149
    %5621 = vmatprep.subr.bf16.mxu0 %v5158
    %5622 = vmatpush1.bf16.msra.mxu0 %v5157
    %5623 = vmatprep.subr.bf16.mxu0 %v5166
    %5624 = vmatpush1.bf16.msra.mxu0 %v5165
    %5625 = vmatprep.subr.bf16.mxu0 %v5174
    %5626 = vmatpush1.bf16.msra.mxu0 %v5173
    %5627 = vmatprep.subr.bf16.mxu0 %v5182
    %5628 = vmatpush1.bf16.msra.mxu0 %v5181
    %5629 = vmatprep.subr.bf16.mxu0 %v5190
    %5630 = vmatpush1.bf16.msra.mxu0 %v5189
    %5631 = vmatprep.subr.bf16.mxu0 %v5198
    %5632 = vmatpush1.bf16.msra.mxu0 %v5197
    %5633 = vmatprep.subr.bf16.mxu0 %v5206
    %5634 = vmatpush1.bf16.msra.mxu0 %v5205
    %5635 = vmatprep.subr.bf16.mxu0 %v5214
    %5636 = vmatpush1.bf16.msra.mxu0 %v5213
    %5637 = vmatprep.mubr.bf16.mxu0 %v4024
    %5638 = vmatmul.mubr.bf16.gmra.mrb[0].mxu0 %v4023
    %v5639 = vpop.f32.mrb[0].mxu0
    %v5640 = vadd.f32 %v4288, %v5639
    %v5641 = vpop.f32.mrb[0].mxu0
    %v5642 = vadd.f32 %v4292, %v5641
    %v5643 = vpop.f32.mrb[0].mxu0
    %v5644 = vpop.f32.mrb[0].mxu0
    %5645 = vdwg.mxu0
    %5646 = vmatprep.subr.bf16.mxu0 %v5222
    %5647 = vmatpush1.bf16.msra.mxu0 %v5221
    %5648 = vmatprep.subr.bf16.mxu0 %v5230
    %5649 = vmatpush1.bf16.msra.mxu0 %v5229
    %5650 = vmatprep.subr.bf16.mxu0 %v5238
    %5651 = vmatpush1.bf16.msra.mxu0 %v5237
    %5652 = vmatprep.subr.bf16.mxu0 %v5246
    %5653 = vmatpush1.bf16.msra.mxu0 %v5245
    %5654 = vmatprep.subr.bf16.mxu0 %v5254
    %5655 = vmatpush1.bf16.msra.mxu0 %v5253
    %5656 = vmatprep.subr.bf16.mxu0 %v5262
    %5657 = vmatpush1.bf16.msra.mxu0 %v5261
    %5658 = vmatprep.subr.bf16.mxu0 %v5270
    %5659 = vmatpush1.bf16.msra.mxu0 %v5269
    %5660 = vmatprep.subr.bf16.mxu0 %v5278
    %5661 = vmatpush1.bf16.msra.mxu0 %v5277
    %5662 = vmatprep.subr.bf16.mxu0 %v5286
    %5663 = vmatpush1.bf16.msra.mxu0 %v5285
    %5664 = vmatprep.subr.bf16.mxu0 %v5294
    %5665 = vmatpush1.bf16.msra.mxu0 %v5293
    %5666 = vmatprep.subr.bf16.mxu0 %v5302
    %5667 = vmatpush1.bf16.msra.mxu0 %v5301
    %5668 = vmatprep.subr.bf16.mxu0 %v5310
    %5669 = vmatpush1.bf16.msra.mxu0 %v5309
    %5670 = vmatprep.subr.bf16.mxu0 %v5318
    %5671 = vmatpush1.bf16.msra.mxu0 %v5317
    %5672 = vmatprep.subr.bf16.mxu0 %v5326
    %5673 = vmatpush1.bf16.msra.mxu0 %v5325
    %5674 = vmatprep.subr.bf16.mxu0 %v5334
    %5675 = vmatpush1.bf16.msra.mxu0 %v5333
    %5676 = vmatprep.subr.bf16.mxu0 %v5342
    %5677 = vmatpush1.bf16.msra.mxu0 %v5341
    %5678 = vmatprep.mubr.bf16.mxu0 %v4026
    %5679 = vmatmul.mubr.bf16.gmra.mrb[0].mxu0 %v4025
    %v5680 = vpop.f32.mrb[0].mxu0
    %v5681 = vadd.f32 %v5640, %v5680
    %v5682 = vpop.f32.mrb[0].mxu0
    %v5683 = vadd.f32 %v5642, %v5682
    %v5684 = vpop.f32.mrb[0].mxu0
    %v5685 = vpop.f32.mrb[0].mxu0
    %5686 = vdwg.mxu0
    %5687 = vmatprep.subr.bf16.mxu0 %v5096
    %5688 = vmatpush1.bf16.msra.mxu0 %v5095
    %5689 = vmatprep.subr.bf16.mxu0 %v5104
    %5690 = vmatpush1.bf16.msra.mxu0 %v5103
    %5691 = vmatprep.subr.bf16.mxu0 %v5112
    %5692 = vmatpush1.bf16.msra.mxu0 %v5111
    %5693 = vmatprep.subr.bf16.mxu0 %v5120
    %5694 = vmatpush1.bf16.msra.mxu0 %v5119
    %5695 = vmatprep.subr.bf16.mxu0 %v5128
    %5696 = vmatpush1.bf16.msra.mxu0 %v5127
    %5697 = vmatprep.subr.bf16.mxu0 %v5136
    %5698 = vmatpush1.bf16.msra.mxu0 %v5135
    %5699 = vmatprep.subr.bf16.mxu0 %v5144
    %5700 = vmatpush1.bf16.msra.mxu0 %v5143
    %5701 = vmatprep.subr.bf16.mxu0 %v5152
    %5702 = vmatpush1.bf16.msra.mxu0 %v5151
    %5703 = vmatprep.subr.bf16.mxu0 %v5160
    %5704 = vmatpush1.bf16.msra.mxu0 %v5159
    %5705 = vmatprep.subr.bf16.mxu0 %v5168
    %5706 = vmatpush1.bf16.msra.mxu0 %v5167
    %5707 = vmatprep.subr.bf16.mxu0 %v5176
    %5708 = vmatpush1.bf16.msra.mxu0 %v5175
    %5709 = vmatprep.subr.bf16.mxu0 %v5184
    %5710 = vmatpush1.bf16.msra.mxu0 %v5183
    %5711 = vmatprep.subr.bf16.mxu0 %v5192
    %5712 = vmatpush1.bf16.msra.mxu0 %v5191
    %5713 = vmatprep.subr.bf16.mxu0 %v5200
    %5714 = vmatpush1.bf16.msra.mxu0 %v5199
    %5715 = vmatprep.subr.bf16.mxu0 %v5208
    %5716 = vmatpush1.bf16.msra.mxu0 %v5207
    %5717 = vmatprep.subr.bf16.mxu0 %v5216
    %5718 = vmatpush1.bf16.msra.mxu0 %v5215
    %5719 = vmatprep.mubr.bf16.mxu0 %v4024
    %5720 = vmatmul.mubr.bf16.gmra.mrb[0].mxu0 %v4023
    %v5721 = vpop.f32.mrb[0].mxu0
    %v5722 = vadd.f32 %v4296, %v5721
    %v5723 = vpop.f32.mrb[0].mxu0
    %v5724 = vadd.f32 %v4300, %v5723
    %v5725 = vpop.f32.mrb[0].mxu0
    %v5726 = vpop.f32.mrb[0].mxu0
    %5727 = vdwg.mxu0
    %5728 = vmatprep.subr.bf16.mxu0 %v5224
    %5729 = vmatpush1.bf16.msra.mxu0 %v5223
    %5730 = vmatprep.subr.bf16.mxu0 %v5232
    %5731 = vmatpush1.bf16.msra.mxu0 %v5231
    %5732 = vmatprep.subr.bf16.mxu0 %v5240
    %5733 = vmatpush1.bf16.msra.mxu0 %v5239
    %5734 = vmatprep.subr.bf16.mxu0 %v5248
    %5735 = vmatpush1.bf16.msra.mxu0 %v5247
    %5736 = vmatprep.subr.bf16.mxu0 %v5256
    %5737 = vmatpush1.bf16.msra.mxu0 %v5255
    %5738 = vmatprep.subr.bf16.mxu0 %v5264
    %5739 = vmatpush1.bf16.msra.mxu0 %v5263
    %5740 = vmatprep.subr.bf16.mxu0 %v5272
    %5741 = vmatpush1.bf16.msra.mxu0 %v5271
    %5742 = vmatprep.subr.bf16.mxu0 %v5280
    %5743 = vmatpush1.bf16.msra.mxu0 %v5279
    %5744 = vmatprep.subr.bf16.mxu0 %v5288
    %5745 = vmatpush1.bf16.msra.mxu0 %v5287
    %5746 = vmatprep.subr.bf16.mxu0 %v5296
    %5747 = vmatpush1.bf16.msra.mxu0 %v5295
    %5748 = vmatprep.subr.bf16.mxu0 %v5304
    %5749 = vmatpush1.bf16.msra.mxu0 %v5303
    %5750 = vmatprep.subr.bf16.mxu0 %v5312
    %5751 = vmatpush1.bf16.msra.mxu0 %v5311
    %5752 = vmatprep.subr.bf16.mxu0 %v5320
    %5753 = vmatpush1.bf16.msra.mxu0 %v5319
    %5754 = vmatprep.subr.bf16.mxu0 %v5328
    %5755 = vmatpush1.bf16.msra.mxu0 %v5327
    %5756 = vmatprep.subr.bf16.mxu0 %v5336
    %5757 = vmatpush1.bf16.msra.mxu0 %v5335
    %5758 = vmatprep.subr.bf16.mxu0 %v5344
    %5759 = vmatpush1.bf16.msra.mxu0 %v5343
    %5760 = vmatprep.mubr.bf16.mxu0 %v4026
    %5761 = vmatmul.mubr.bf16.gmra.mrb[0].mxu0 %v4025
    %v5762 = vpop.f32.mrb[0].mxu0
    %v5763 = vadd.f32 %v5722, %v5762
    %v5764 = vpop.f32.mrb[0].mxu0
    %v5765 = vadd.f32 %v5724, %v5764
    %v5766 = vpop.f32.mrb[0].mxu0
    %v5767 = vpop.f32.mrb[0].mxu0
    %5768 = vdwg.mxu0
    %5769 = vmatprep.subr.bf16.mxu0 %v5098
    %5770 = vmatpush1.bf16.msra.mxu0 %v5097
    %5771 = vmatprep.subr.bf16.mxu0 %v5106
    %5772 = vmatpush1.bf16.msra.mxu0 %v5105
    %5773 = vmatprep.subr.bf16.mxu0 %v5114
    %5774 = vmatpush1.bf16.msra.mxu0 %v5113
    %5775 = vmatprep.subr.bf16.mxu0 %v5122
    %5776 = vmatpush1.bf16.msra.mxu0 %v5121
    %5777 = vmatprep.subr.bf16.mxu0 %v5130
    %5778 = vmatpush1.bf16.msra.mxu0 %v5129
    %5779 = vmatprep.subr.bf16.mxu0 %v5138
    %5780 = vmatpush1.bf16.msra.mxu0 %v5137
    %5781 = vmatprep.subr.bf16.mxu0 %v5146
    %5782 = vmatpush1.bf16.msra.mxu0 %v5145
    %5783 = vmatprep.subr.bf16.mxu0 %v5154
    %5784 = vmatpush1.bf16.msra.mxu0 %v5153
    %5785 = vmatprep.subr.bf16.mxu0 %v5162
    %5786 = vmatpush1.bf16.msra.mxu0 %v5161
    %5787 = vmatprep.subr.bf16.mxu0 %v5170
    %5788 = vmatpush1.bf16.msra.mxu0 %v5169
    %5789 = vmatprep.subr.bf16.mxu0 %v5178
    %5790 = vmatpush1.bf16.msra.mxu0 %v5177
    %5791 = vmatprep.subr.bf16.mxu0 %v5186
    %5792 = vmatpush1.bf16.msra.mxu0 %v5185
    %5793 = vmatprep.subr.bf16.mxu0 %v5194
    %5794 = vmatpush1.bf16.msra.mxu0 %v5193
    %5795 = vmatprep.subr.bf16.mxu0 %v5202
    %5796 = vmatpush1.bf16.msra.mxu0 %v5201
    %5797 = vmatprep.subr.bf16.mxu0 %v5210
    %5798 = vmatpush1.bf16.msra.mxu0 %v5209
    %5799 = vmatprep.subr.bf16.mxu0 %v5218
    %5800 = vmatpush1.bf16.msra.mxu0 %v5217
    %5801 = vmatprep.mubr.bf16.mxu0 %v4024
    %5802 = vmatmul.mubr.bf16.gmra.mrb[0].mxu0 %v4023
    %v5803 = vpop.f32.mrb[0].mxu0
    %v5804 = vadd.f32 %v4304, %v5803
    %v5805 = vpop.f32.mrb[0].mxu0
    %v5806 = vadd.f32 %v4308, %v5805
    %v5807 = vpop.f32.mrb[0].mxu0
    %v5808 = vpop.f32.mrb[0].mxu0
    %5809 = vdwg.mxu0
    %5810 = vmatprep.subr.bf16.mxu0 %v5226
    %5811 = vmatpush1.bf16.msra.mxu0 %v5225
    %5812 = vmatprep.subr.bf16.mxu0 %v5234
    %5813 = vmatpush1.bf16.msra.mxu0 %v5233
    %5814 = vmatprep.subr.bf16.mxu0 %v5242
    %5815 = vmatpush1.bf16.msra.mxu0 %v5241
    %5816 = vmatprep.subr.bf16.mxu0 %v5250
    %5817 = vmatpush1.bf16.msra.mxu0 %v5249
    %5818 = vmatprep.subr.bf16.mxu0 %v5258
    %5819 = vmatpush1.bf16.msra.mxu0 %v5257
    %5820 = vmatprep.subr.bf16.mxu0 %v5266
    %5821 = vmatpush1.bf16.msra.mxu0 %v5265
    %5822 = vmatprep.subr.bf16.mxu0 %v5274
    %5823 = vmatpush1.bf16.msra.mxu0 %v5273
    %5824 = vmatprep.subr.bf16.mxu0 %v5282
    %5825 = vmatpush1.bf16.msra.mxu0 %v5281
    %5826 = vmatprep.subr.bf16.mxu0 %v5290
    %5827 = vmatpush1.bf16.msra.mxu0 %v5289
    %5828 = vmatprep.subr.bf16.mxu0 %v5298
    %5829 = vmatpush1.bf16.msra.mxu0 %v5297
    %5830 = vmatprep.subr.bf16.mxu0 %v5306
    %5831 = vmatpush1.bf16.msra.mxu0 %v5305
    %5832 = vmatprep.subr.bf16.mxu0 %v5314
    %5833 = vmatpush1.bf16.msra.mxu0 %v5313
    %5834 = vmatprep.subr.bf16.mxu0 %v5322
    %5835 = vmatpush1.bf16.msra.mxu0 %v5321
    %5836 = vmatprep.subr.bf16.mxu0 %v5330
    %5837 = vmatpush1.bf16.msra.mxu0 %v5329
    %5838 = vmatprep.subr.bf16.mxu0 %v5338
    %5839 = vmatpush1.bf16.msra.mxu0 %v5337
    %5840 = vmatprep.subr.bf16.mxu0 %v5346
    %5841 = vmatpush1.bf16.msra.mxu0 %v5345
    %5842 = vmatprep.mubr.bf16.mxu0 %v4026
    %5843 = vmatmul.mubr.bf16.gmra.mrb[0].mxu0 %v4025
    %v5844 = vpop.f32.mrb[0].mxu0
    %v5845 = vadd.f32 %v5804, %v5844
    %v5846 = vpop.f32.mrb[0].mxu0
    %v5847 = vadd.f32 %v5806, %v5846
    %v5848 = vpop.f32.mrb[0].mxu0
    %v5849 = vpop.f32.mrb[0].mxu0
    %5850 = vdwg.mxu0
    %5851 = vmatprep.subr.bf16.mxu0 %v5100
    %5852 = vmatpush1.bf16.msra.mxu0 %v5099
    %5853 = vmatprep.subr.bf16.mxu0 %v5108
    %5854 = vmatpush1.bf16.msra.mxu0 %v5107
    %5855 = vmatprep.subr.bf16.mxu0 %v5116
    %5856 = vmatpush1.bf16.msra.mxu0 %v5115
    %5857 = vmatprep.subr.bf16.mxu0 %v5124
    %5858 = vmatpush1.bf16.msra.mxu0 %v5123
    %5859 = vmatprep.subr.bf16.mxu0 %v5132
    %5860 = vmatpush1.bf16.msra.mxu0 %v5131
    %5861 = vmatprep.subr.bf16.mxu0 %v5140
    %5862 = vmatpush1.bf16.msra.mxu0 %v5139
    %5863 = vmatprep.subr.bf16.mxu0 %v5148
    %5864 = vmatpush1.bf16.msra.mxu0 %v5147
    %5865 = vmatprep.subr.bf16.mxu0 %v5156
    %5866 = vmatpush1.bf16.msra.mxu0 %v5155
    %5867 = vmatprep.subr.bf16.mxu0 %v5164
    %5868 = vmatpush1.bf16.msra.mxu0 %v5163
    %5869 = vmatprep.subr.bf16.mxu0 %v5172
    %5870 = vmatpush1.bf16.msra.mxu0 %v5171
    %5871 = vmatprep.subr.bf16.mxu0 %v5180
    %5872 = vmatpush1.bf16.msra.mxu0 %v5179
    %5873 = vmatprep.subr.bf16.mxu0 %v5188
    %5874 = vmatpush1.bf16.msra.mxu0 %v5187
    %5875 = vmatprep.subr.bf16.mxu0 %v5196
    %5876 = vmatpush1.bf16.msra.mxu0 %v5195
    %5877 = vmatprep.subr.bf16.mxu0 %v5204
    %5878 = vmatpush1.bf16.msra.mxu0 %v5203
    %5879 = vmatprep.subr.bf16.mxu0 %v5212
    %5880 = vmatpush1.bf16.msra.mxu0 %v5211
    %5881 = vmatprep.subr.bf16.mxu0 %v5220
    %5882 = vmatpush1.bf16.msra.mxu0 %v5219
    %5883 = vmatprep.mubr.bf16.mxu0 %v4024
    %5884 = vmatmul.mubr.bf16.gmra.mrb[0].mxu0 %v4023
    %v5885 = vpop.f32.mrb[0].mxu0
    %v5886 = vadd.f32 %v4312, %v5885
    %v5887 = vpop.f32.mrb[0].mxu0
    %v5888 = vadd.f32 %v4316, %v5887
    %v5889 = vpop.f32.mrb[0].mxu0
    %v5890 = vpop.f32.mrb[0].mxu0
    %5891 = vdwg.mxu0
    %5892 = vmatprep.subr.bf16.mxu0 %v5228
    %5893 = vmatpush1.bf16.msra.mxu0 %v5227
    %5894 = vmatprep.subr.bf16.mxu0 %v5236
    %5895 = vmatpush1.bf16.msra.mxu0 %v5235
    %5896 = vmatprep.subr.bf16.mxu0 %v5244
    %5897 = vmatpush1.bf16.msra.mxu0 %v5243
    %5898 = vmatprep.subr.bf16.mxu0 %v5252
    %5899 = vmatpush1.bf16.msra.mxu0 %v5251
    %5900 = vmatprep.subr.bf16.mxu0 %v5260
    %5901 = vmatpush1.bf16.msra.mxu0 %v5259
    %5902 = vmatprep.subr.bf16.mxu0 %v5268
    %5903 = vmatpush1.bf16.msra.mxu0 %v5267
    %5904 = vmatprep.subr.bf16.mxu0 %v5276
    %5905 = vmatpush1.bf16.msra.mxu0 %v5275
    %5906 = vmatprep.subr.bf16.mxu0 %v5284
    %5907 = vmatpush1.bf16.msra.mxu0 %v5283
    %5908 = vmatprep.subr.bf16.mxu0 %v5292
    %5909 = vmatpush1.bf16.msra.mxu0 %v5291
    %5910 = vmatprep.subr.bf16.mxu0 %v5300
    %5911 = vmatpush1.bf16.msra.mxu0 %v5299
    %5912 = vmatprep.subr.bf16.mxu0 %v5308
    %5913 = vmatpush1.bf16.msra.mxu0 %v5307
    %5914 = vmatprep.subr.bf16.mxu0 %v5316
    %5915 = vmatpush1.bf16.msra.mxu0 %v5315
    %5916 = vmatprep.subr.bf16.mxu0 %v5324
    %5917 = vmatpush1.bf16.msra.mxu0 %v5323
    %5918 = vmatprep.subr.bf16.mxu0 %v5332
    %5919 = vmatpush1.bf16.msra.mxu0 %v5331
    %5920 = vmatprep.subr.bf16.mxu0 %v5340
    %5921 = vmatpush1.bf16.msra.mxu0 %v5339
    %5922 = vmatprep.subr.bf16.mxu0 %v5348
    %5923 = vmatpush1.bf16.msra.mxu0 %v5347
    %5924 = vmatprep.mubr.bf16.mxu0 %v4026
    %5925 = vmatmul.mubr.bf16.gmra.mrb[0].mxu0 %v4025
    %v5926 = vpop.f32.mrb[0].mxu0
    %v5927 = vadd.f32 %v5886, %v5926
    %v5928 = vpop.f32.mrb[0].mxu0
    %v5929 = vadd.f32 %v5888, %v5928
    %v5930 = vpop.f32.mrb[0].mxu0
    %v5931 = vpop.f32.mrb[0].mxu0
    %5932 = vdwg.mxu0
    %v5933 = vmax.f32 %v5681, %v5683
    %v5934 = vmax.f32 %v5933, %v5763
    %v5935 = vmax.f32 %v5934, %v5765
    %v5936 = vmax.f32 %v5935, %v5845
    %v5937 = vmax.f32 %v5936, %v5847
    %v5938 = vmax.f32 %v5937, %v5927
    %v5939 = vmax.f32 %v5938, %v5929
    %5940 = vmax.xlane.f32.xlu0 %v5939
    %v5941 = vpop.xlane.xlu0 %5940
    %v5942 = vsub.f32 %v5939, %v5941
    %v5943 = vmul.f32 %v5942, 1.442695
    %v5944 = vpow.pop %v5943
    %5945 = vadd.xlane.f32.xlu0 %v5944
    %v5946 = vpop.xlane.xlu0 %5945
    %v5947 = vlog2.pop %v5946
    %v5948 = vmul.f32 %v5947, 0.6931472
    %v5949 = vadd.f32 %v5941, %v5948
    %v5950 = vsub.f32 %v5939, %v5949
    %5951 = vst [vmem:[#allocation11] sm:$0xff] %v5950
    // Predicated region
    $region42: #{tpu_custom_call.1} parent=1 // pred_check
      _
    $region43: #{tpu_custom_call.1} parent=1 // pred_check_branch
      %5953 = sbr.rel (0) target = $region45
    $region44: #{tpu_custom_call.1} parent=1 // pred_region
      %s5955 = ssub.s32 128, 128
      %5956 = vsyncadd [#allocation4], %s5955
      %s5958 = sshll.u32 [#allocation11], 4
      %s5959 = int_to_ptr.vmem [resolvable:$true] %s5958
      %5961 = dma.vmem_to_hbm [thread:$0]  %s5959, 128, %s5, [#allocation4]
    $region45: #{tpu_custom_call.1} parent=1 // pred_fallthru
      _
    // Predicated region
    $region46: #{tpu_custom_call.1} parent=1 // pred_check
      _
    $region47: #{tpu_custom_call.1} parent=1 // pred_check_branch
      %5963 = sbr.rel (0) target = $region49
    $region48: #{tpu_custom_call.1} parent=1 // pred_region
      %5964 = dma.done [#allocation4], 128
    $region49: #{tpu_custom_call.1} parent=1 // pred_fallthru
      _
    %5965 = vsyncpa [#allocation3], 1
    %5966 = vsyncpa [#allocation6], 1
    %5967 = vsyncpa [#allocation9], 1
    %5968 = vsyncpa [#allocation4], 1

</llo_original>
